<compile_context>
chip_gen: v6e
topology: v6e:2x2x1
jax: 0.10.0
libtpu: 0.0.40
codegen_flags: <defaults>
</compile_context>

<pallas_src>
import jax
import jax.numpy as jnp
from jax.experimental import pallas as pl
from jax.experimental.pallas import tpu as pltpu

# ----------------------------- config -----------------------------
IN_CHANNELS   = 8
CHANNELS      = 16
MULTIPLIERS   = (2, 2, 1)
FACTORS       = (2, 2)
NUM_BLOCKS    = (1, 1)
RESNET_GROUPS = 4
OUT_CHANNELS  = 2
NUM_FILTERS   = 8          # NUM_FILTERS * OUT_CHANNELS == CHANNELS * MULTIPLIERS[-1]
WINDOW_LENGTH = 4
STRIDE        = 4
BATCH         = 2
SEQ           = 8
EPS           = 1e-5

assert NUM_FILTERS * OUT_CHANNELS == CHANNELS * MULTIPLIERS[-1]
assert WINDOW_LENGTH == STRIDE


# ----------------------------- in-kernel helpers (operate on values) -----------------------------
def _silu(x):
    return x * jax.nn.sigmoid(x)


def _group_norm(x, gamma, beta, groups):
    # x: (C, L); gamma/beta: (C, 1).  Two-pass mean/variance per group, no matmuls.
    C, L = x.shape
    cg = C // groups
    xg = x.reshape(groups, cg, L)                                              # (G, C/G, L)
    mu = jnp.mean(jnp.mean(xg, axis=2, keepdims=True), axis=1, keepdims=True)  # (G, 1, 1)
    d = xg - mu
    var = jnp.mean(jnp.mean(d * d, axis=2, keepdims=True), axis=1, keepdims=True)
    xn = (d * jax.lax.rsqrt(var + EPS)).reshape(C, L)
    return xn * gamma + beta


def _conv3(x, w, b):
    # "same" Conv1d(k=3, stride=1, pad=1).  x: (Cin, L); w: (3, Cout, Cin); b: (Cout, 1).
    Cin, L = x.shape
    zcol = jnp.zeros((Cin, 1), dtype=x.dtype)
    x_prev = jnp.concatenate([zcol, x[:, : L - 1]], axis=1)   # x[:, j-1], zero at j = 0
    x_next = jnp.concatenate([x[:, 1:], zcol], axis=1)        # x[:, j+1], zero at j = L-1
    y = jnp.dot(w[1], x, preferred_element_type=jnp.float32)
    y = y + jnp.dot(w[0], x_prev, preferred_element_type=jnp.float32)
    y = y + jnp.dot(w[2], x_next, preferred_element_type=jnp.float32)
    return y + b


def _upsample_nearest(x, factor):
    # nearest upsample along lanes: out[:, j*factor + f] = x[:, j]  (broadcast + reshape, no matmul)
    C, L = x.shape
    return jnp.broadcast_to(x[:, :, None], (C, L, factor)).reshape(C, L * factor)


def _wavdec(x, w, b):
    # ConvTranspose1d with kernel_size == stride == K, padding=0 (learned inverse filterbank):
    #   out[:, i*K + k] = w[k] @ x[:, i]     (stack + reshape, no scatter matrix)
    K, Cout, _ = w.shape
    _, L = x.shape
    taps = [jnp.dot(w[k], x, preferred_element_type=jnp.float32) for k in range(K)]
    y = jnp.stack(taps, axis=-1).reshape(Cout, L * K)
    return y + b


# ----------------------------- fused Pallas kernel -----------------------------
def _make_decoder_kernel(num_blocks, factors, groups):
    def kernel(*refs):
        x_ref, o_ref = refs[0], refs[-1]
        it = iter(refs[1:-1])
        nxt = lambda: next(it)[...]          # load next packed parameter

        x = x_ref[...]                       # (IN_CHANNELS, L)

        # to_in: Conv1d(kernel_size=1)
        w_in = nxt(); b_in = nxt()
        x = jnp.dot(w_in, x, preferred_element_type=jnp.float32) + b_in

        # UpsampleBlock1d stack
        for n_blk, factor in zip(num_blocks, factors):
            for _ in range(n_blk):           # ResnetBlock1d (GN -> SiLU -> Conv3) x2 + skip
                g1 = nxt(); be1 = nxt(); w1 = nxt(); b1 = nxt()
                g2 = nxt(); be2 = nxt(); w2 = nxt(); b2 = nxt()
                h = _conv3(_silu(_group_norm(x, g1, be1, groups)), w1, b1)
                h = _conv3(_silu(_group_norm(h, g2, be2, groups)), w2, b2)
                x = h + x                    # to_out is Identity (in_channels == out_channels)
            wu = nxt(); bu = nxt()           # Upsample1d: nearest upsample + Conv1d(k=3, p=1)
            x = _conv3(_upsample_nearest(x, factor), wu, bu)

        # to_out: WAVdec1d (lane-dense final store, last dim = 128)
        ww = nxt(); wb = nxt()
        o_ref[...] = _wavdec(x, ww, wb)

    return kernel


# ----------------------------- host-side wrappers -----------------------------
def pack_params(params):
    """One-time re-packing of PyTorch-layout params into the kernel layout (hoisted out of forward)."""
    def conv3_pack(w):                       # (Cout, Cin, 3) -> (3, Cout, Cin)
        return jnp.transpose(w, (2, 0, 1))

    def col(v):
        return v.reshape(-1, 1)

    flat = [params["to_in"]["w"][:, :, 0], col(params["to_in"]["b"])]
    for lp in params["upsamples"]:
        for bp in lp["blocks"]:
            flat += [col(bp["gn1_g"]), col(bp["gn1_b"]), conv3_pack(bp["w1"]), col(bp["b1"]),
                     col(bp["gn2_g"]), col(bp["gn2_b"]), conv3_pack(bp["w2"]), col(bp["b2"])]
        flat += [conv3_pack(lp["upsample"]["w"]), col(lp["upsample"]["b"])]
    # ConvTranspose1d weight (Cin, Cout, K) -> (K, Cout, Cin)
    flat += [jnp.transpose(params["to_out"]["w"], (2, 1, 0)), col(params["to_out"]["b"])]
    return tuple(flat)


def decoder_forward(x, packed):
    B, Cin, L = x.shape
    Lout = L
    for f in FACTORS:
        Lout *= f
    Lout *= STRIDE

    kernel = _make_decoder_kernel(NUM_BLOCKS, FACTORS, RESNET_GROUPS)

    def full_spec(shape):
        n = len(shape)
        return pl.BlockSpec(shape, lambda b, _n=n: (0,) * _n)

    in_specs = [pl.BlockSpec((None, Cin, L), lambda b: (b, 0, 0))]
    in_specs += [full_spec(p.shape) for p in packed]

    return pl.pallas_call(
        kernel,
        grid=(B,),
        in_specs=in_specs,
        out_specs=pl.BlockSpec((None, OUT_CHANNELS, Lout), lambda b: (b, 0, 0)),
        out_shape=jax.ShapeDtypeStruct((B, OUT_CHANNELS, Lout), jnp.float32),
        compiler_params=pltpu.CompilerParams(
            dimension_semantics=("parallel",),          # B=2 -> both TensorCores on v7x
            vmem_limit_bytes=32 * 1024 * 1024,          # fits all generations (v7x: 64 MiB VMEM)
        ),
    )(x, *packed)


# ----------------------------- deterministic params -----------------------------
def _conv_params(key, cout, cin, k):
    kw, kb = jax.random.split(key)
    bound = 1.0 / float(cin * k) ** 0.5
    w = jax.random.uniform(kw, (cout, cin, k), jnp.float32, -bound, bound)
    b = jax.random.uniform(kb, (cout,), jnp.float32, -bound, bound)
    return w, b


def init_params(key):
    keys = iter(jax.random.split(key, 64))
    params = {}
    c0 = CHANNELS * MULTIPLIERS[0]
    w, b = _conv_params(next(keys), c0, IN_CHANNELS, 1)
    params["to_in"] = {"w": w, "b": b}
    ups = []
    for i in range(len(FACTORS)):
        cin = CHANNELS * MULTIPLIERS[i]
        cout = CHANNELS * MULTIPLIERS[i + 1]
        blocks = []
        for _ in range(NUM_BLOCKS[i]):
            w1, b1 = _conv_params(next(keys), cin, cin, 3)
            w2, b2 = _conv_params(next(keys), cin, cin, 3)
            blocks.append(dict(
                gn1_g=jnp.ones((cin,), jnp.float32), gn1_b=jnp.zeros((cin,), jnp.float32),
                w1=w1, b1=b1,
                gn2_g=jnp.ones((cin,), jnp.float32), gn2_b=jnp.zeros((cin,), jnp.float32),
                w2=w2, b2=b2))
        uw, ub = _conv_params(next(keys), cout, cin, 3)
        ups.append(dict(blocks=blocks, upsample=dict(w=uw, b=ub)))
    params["upsamples"] = ups
    cin_wav = NUM_FILTERS * OUT_CHANNELS
    kw, kb = jax.random.split(next(keys))
    bound = 1.0 / float(cin_wav * WINDOW_LENGTH) ** 0.5
    ww = jax.random.uniform(kw, (cin_wav, OUT_CHANNELS, WINDOW_LENGTH), jnp.float32, -bound, bound)
    wb = jax.random.uniform(kb, (OUT_CHANNELS,), jnp.float32, -bound, bound)
    params["to_out"] = dict(w=ww, b=wb)
    return params


# ----------------------------- pure-JAX reference -----------------------------
def _ref_conv1d(x, w, b, padding):
    y = jax.lax.conv_general_dilated(x, w, window_strides=(1,), padding=[(padding, padding)],
                                     dimension_numbers=("NCH", "OIH", "NCH"))
    return y + b[None, :, None]


def _ref_groupnorm(x, gamma, beta, groups):
    B, C, L = x.shape
    xg = x.reshape(B, groups, -1)
    mu = xg.mean(axis=2, keepdims=True)
    var = ((xg - mu) ** 2).mean(axis=2, keepdims=True)
    xn = ((xg - mu) / jnp.sqrt(var + EPS)).reshape(B, C, L)
    return xn * gamma[None, :, None] + beta[None, :, None]


def _ref_silu(x):
    return x * jax.nn.sigmoid(x)


def _ref_resnet(x, p, groups):
    h = _ref_conv1d(_ref_silu(_ref_groupnorm(x, p["gn1_g"], p["gn1_b"], groups)), p["w1"], p["b1"], 1)
    h = _ref_conv1d(_ref_silu(_ref_groupnorm(h, p["gn2_g"], p["gn2_b"], groups)), p["w2"], p["b2"], 1)
    return h + x


def ref_forward(x, params):
    x = _ref_conv1d(x, params["to_in"]["w"], params["to_in"]["b"], 0)
    for lp, factor in zip(params["upsamples"], FACTORS):
        for bp in lp["blocks"]:
            x = _ref_resnet(x, bp, RESNET_GROUPS)
        x = jnp.repeat(x, factor, axis=2)
        x = _ref_conv1d(x, lp["upsample"]["w"], lp["upsample"]["b"], 1)
    w = params["to_out"]["w"]
    B, Cin, L = x.shape
    Cout, K = w.shape[1], w.shape[2]
    y = jnp.einsum("bci,cok->boik", x, w).reshape(B, Cout, L * K)
    return y + params["to_out"]["b"][None, :, None]


# ----------------------------- main -----------------------------
if __name__ == "__main__":
    key = jax.random.PRNGKey(0)
    k_params, k_x = jax.random.split(key)
    params = init_params(k_params)
    packed = pack_params(params)              # hoisted one-time weight packing
    x = jax.random.normal(k_x, (BATCH, IN_CHANNELS, SEQ), jnp.float32)

    y = decoder_forward(x, packed)
    y = jax.block_until_ready(y)

    expected_len = SEQ * FACTORS[0] * FACTORS[1] * STRIDE
    assert y.shape == (BATCH, OUT_CHANNELS, expected_len), y.shape

    y_ref = ref_forward(x, params)
    if not bool(jnp.allclose(y, y_ref, atol=1e-3, rtol=1e-3)):
        raise AssertionError("Pallas Decoder1d output mismatch vs JAX reference")

    print("KERNEL_OK")
</pallas_src>

<mosaic_0001>
module attributes {stable_mosaic.version = 11 : i64} {
  func.func @kernel(%arg0: i32, %arg1: memref<1x8x8xf32, #tpu.memory_space<vmem>>, %arg2: memref<32x8xf32, #tpu.memory_space<vmem>>, %arg3: memref<32x1xf32, #tpu.memory_space<vmem>>, %arg4: memref<32x1xf32, #tpu.memory_space<vmem>>, %arg5: memref<32x1xf32, #tpu.memory_space<vmem>>, %arg6: memref<3x32x32xf32, #tpu.memory_space<vmem>>, %arg7: memref<32x1xf32, #tpu.memory_space<vmem>>, %arg8: memref<32x1xf32, #tpu.memory_space<vmem>>, %arg9: memref<32x1xf32, #tpu.memory_space<vmem>>, %arg10: memref<3x32x32xf32, #tpu.memory_space<vmem>>, %arg11: memref<32x1xf32, #tpu.memory_space<vmem>>, %arg12: memref<3x32x32xf32, #tpu.memory_space<vmem>>, %arg13: memref<32x1xf32, #tpu.memory_space<vmem>>, %arg14: memref<32x1xf32, #tpu.memory_space<vmem>>, %arg15: memref<32x1xf32, #tpu.memory_space<vmem>>, %arg16: memref<3x32x32xf32, #tpu.memory_space<vmem>>, %arg17: memref<32x1xf32, #tpu.memory_space<vmem>>, %arg18: memref<32x1xf32, #tpu.memory_space<vmem>>, %arg19: memref<32x1xf32, #tpu.memory_space<vmem>>, %arg20: memref<3x32x32xf32, #tpu.memory_space<vmem>>, %arg21: memref<32x1xf32, #tpu.memory_space<vmem>>, %arg22: memref<3x16x32xf32, #tpu.memory_space<vmem>>, %arg23: memref<16x1xf32, #tpu.memory_space<vmem>>, %arg24: memref<4x2x16xf32, #tpu.memory_space<vmem>>, %arg25: memref<2x1xf32, #tpu.memory_space<vmem>>, %arg26: memref<1x2x128xf32, #tpu.memory_space<vmem>>) attributes {dimension_semantics = [#tpu.dimension_semantics<parallel>], iteration_bounds = array<i64: 2>, scalar_prefetch = 0 : i64, scratch_operands = 0 : i64, tpu.core_type = #tpu.core_type<tc>, window_params = [{transform_indices = @transform_0, window_bounds = array<i64: 1, 8, 8>}, {pipeline_mode = #tpu.pipeline_mode<synchronous>, transform_indices = @transform_1, window_bounds = array<i64: 32, 8>}, {pipeline_mode = #tpu.pipeline_mode<synchronous>, transform_indices = @transform_2, window_bounds = array<i64: 32, 1>}, {pipeline_mode = #tpu.pipeline_mode<synchronous>, transform_indices = @transform_3, window_bounds = array<i64: 32, 1>}, {pipeline_mode = #tpu.pipeline_mode<synchronous>, transform_indices = @transform_4, window_bounds = array<i64: 32, 1>}, {pipeline_mode = #tpu.pipeline_mode<synchronous>, transform_indices = @transform_5, window_bounds = array<i64: 3, 32, 32>}, {pipeline_mode = #tpu.pipeline_mode<synchronous>, transform_indices = @transform_6, window_bounds = array<i64: 32, 1>}, {pipeline_mode = #tpu.pipeline_mode<synchronous>, transform_indices = @transform_7, window_bounds = array<i64: 32, 1>}, {pipeline_mode = #tpu.pipeline_mode<synchronous>, transform_indices = @transform_8, window_bounds = array<i64: 32, 1>}, {pipeline_mode = #tpu.pipeline_mode<synchronous>, transform_indices = @transform_9, window_bounds = array<i64: 3, 32, 32>}, {pipeline_mode = #tpu.pipeline_mode<synchronous>, transform_indices = @transform_10, window_bounds = array<i64: 32, 1>}, {pipeline_mode = #tpu.pipeline_mode<synchronous>, transform_indices = @transform_11, window_bounds = array<i64: 3, 32, 32>}, {pipeline_mode = #tpu.pipeline_mode<synchronous>, transform_indices = @transform_12, window_bounds = array<i64: 32, 1>}, {pipeline_mode = #tpu.pipeline_mode<synchronous>, transform_indices = @transform_13, window_bounds = array<i64: 32, 1>}, {pipeline_mode = #tpu.pipeline_mode<synchronous>, transform_indices = @transform_14, window_bounds = array<i64: 32, 1>}, {pipeline_mode = #tpu.pipeline_mode<synchronous>, transform_indices = @transform_15, window_bounds = array<i64: 3, 32, 32>}, {pipeline_mode = #tpu.pipeline_mode<synchronous>, transform_indices = @transform_16, window_bounds = array<i64: 32, 1>}, {pipeline_mode = #tpu.pipeline_mode<synchronous>, transform_indices = @transform_17, window_bounds = array<i64: 32, 1>}, {pipeline_mode = #tpu.pipeline_mode<synchronous>, transform_indices = @transform_18, window_bounds = array<i64: 32, 1>}, {pipeline_mode = #tpu.pipeline_mode<synchronous>, transform_indices = @transform_19, window_bounds = array<i64: 3, 32, 32>}, {pipeline_mode = #tpu.pipeline_mode<synchronous>, transform_indices = @transform_20, window_bounds = array<i64: 32, 1>}, {pipeline_mode = #tpu.pipeline_mode<synchronous>, transform_indices = @transform_21, window_bounds = array<i64: 3, 16, 32>}, {pipeline_mode = #tpu.pipeline_mode<synchronous>, transform_indices = @transform_22, window_bounds = array<i64: 16, 1>}, {pipeline_mode = #tpu.pipeline_mode<synchronous>, transform_indices = @transform_23, window_bounds = array<i64: 4, 2, 16>}, {pipeline_mode = #tpu.pipeline_mode<synchronous>, transform_indices = @transform_24, window_bounds = array<i64: 2, 1>}, {transform_indices = @transform_25, window_bounds = array<i64: 1, 2, 128>}]} {
    %c0 = arith.constant 0 : index
    %c0_0 = arith.constant 0 : index
    %c0_1 = arith.constant 0 : index
    %0 = vector.load %arg1[%c0, %c0_0, %c0_1] : memref<1x8x8xf32, #tpu.memory_space<vmem>>, vector<1x8x8xf32>
    %1 = vector.shape_cast %0 : vector<1x8x8xf32> to vector<8x8xf32>
    %c0_2 = arith.constant 0 : index
    %c0_3 = arith.constant 0 : index
    %2 = vector.load %arg2[%c0_2, %c0_3] : memref<32x8xf32, #tpu.memory_space<vmem>>, vector<32x8xf32>
    %c0_4 = arith.constant 0 : index
    %c0_5 = arith.constant 0 : index
    %3 = vector.load %arg3[%c0_4, %c0_5] : memref<32x1xf32, #tpu.memory_space<vmem>>, vector<32x1xf32>
    %cst = arith.constant dense<0.000000e+00> : vector<32x8xf32>
    %4 = tpu.matmul %2, %1, %cst {dimension_numbers = #tpu.dot_dimension_numbers<[1], [0], [0], [1], [0, 0, 1, 1], [], []>} : vector<32x8xf32>, vector<8x8xf32>, vector<32x8xf32> -> vector<32x8xf32>
    %5 = vector.broadcast %3 : vector<32x1xf32> to vector<32x8xf32>
    %6 = arith.addf %4, %5 : vector<32x8xf32>
    %c0_6 = arith.constant 0 : index
    %c0_7 = arith.constant 0 : index
    %7 = vector.load %arg4[%c0_6, %c0_7] : memref<32x1xf32, #tpu.memory_space<vmem>>, vector<32x1xf32>
    %c0_8 = arith.constant 0 : index
    %c0_9 = arith.constant 0 : index
    %8 = vector.load %arg5[%c0_8, %c0_9] : memref<32x1xf32, #tpu.memory_space<vmem>>, vector<32x1xf32>
    %c0_10 = arith.constant 0 : index
    %c0_11 = arith.constant 0 : index
    %c0_12 = arith.constant 0 : index
    %9 = vector.load %arg6[%c0_10, %c0_11, %c0_12] : memref<3x32x32xf32, #tpu.memory_space<vmem>>, vector<3x32x32xf32>
    %c0_13 = arith.constant 0 : index
    %c0_14 = arith.constant 0 : index
    %10 = vector.load %arg7[%c0_13, %c0_14] : memref<32x1xf32, #tpu.memory_space<vmem>>, vector<32x1xf32>
    %c0_15 = arith.constant 0 : index
    %c0_16 = arith.constant 0 : index
    %11 = vector.load %arg8[%c0_15, %c0_16] : memref<32x1xf32, #tpu.memory_space<vmem>>, vector<32x1xf32>
    %c0_17 = arith.constant 0 : index
    %c0_18 = arith.constant 0 : index
    %12 = vector.load %arg9[%c0_17, %c0_18] : memref<32x1xf32, #tpu.memory_space<vmem>>, vector<32x1xf32>
    %c0_19 = arith.constant 0 : index
    %c0_20 = arith.constant 0 : index
    %c0_21 = arith.constant 0 : index
    %13 = vector.load %arg10[%c0_19, %c0_20, %c0_21] : memref<3x32x32xf32, #tpu.memory_space<vmem>>, vector<3x32x32xf32>
    %c0_22 = arith.constant 0 : index
    %c0_23 = arith.constant 0 : index
    %14 = vector.load %arg11[%c0_22, %c0_23] : memref<32x1xf32, #tpu.memory_space<vmem>>, vector<32x1xf32>
    %15 = vector.shape_cast %6 : vector<32x8xf32> to vector<4x8x8xf32>
    %cst_24 = arith.constant dense<0.000000e+00> : vector<4x8xf32>
    %16 = vector.multi_reduction <add>, %15, %cst_24 [2] : vector<4x8x8xf32> to vector<4x8xf32>
    %17 = vector.shape_cast %16 : vector<4x8xf32> to vector<4x8x1xf32>
    %cst_25 = arith.constant 8.000000e+00 : f32
    %18 = vector.broadcast %cst_25 : f32 to vector<4x8x1xf32>
    %19 = arith.divf %17, %18 : vector<4x8x1xf32>
    %cst_26 = arith.constant dense<0.000000e+00> : vector<4x1xf32>
    %20 = vector.multi_reduction <add>, %19, %cst_26 [1] : vector<4x8x1xf32> to vector<4x1xf32>
    %21 = vector.shape_cast %20 : vector<4x1xf32> to vector<4x1x1xf32>
    %cst_27 = arith.constant 8.000000e+00 : f32
    %22 = vector.broadcast %cst_27 : f32 to vector<4x1x1xf32>
    %23 = arith.divf %21, %22 : vector<4x1x1xf32>
    %24 = vector.broadcast %23 : vector<4x1x1xf32> to vector<4x8x8xf32>
    %25 = arith.subf %15, %24 : vector<4x8x8xf32>
    %26 = arith.mulf %25, %25 : vector<4x8x8xf32>
    %cst_28 = arith.constant dense<0.000000e+00> : vector<4x8xf32>
    %27 = vector.multi_reduction <add>, %26, %cst_28 [2] : vector<4x8x8xf32> to vector<4x8xf32>
    %28 = vector.shape_cast %27 : vector<4x8xf32> to vector<4x8x1xf32>
    %cst_29 = arith.constant 8.000000e+00 : f32
    %29 = vector.broadcast %cst_29 : f32 to vector<4x8x1xf32>
    %30 = arith.divf %28, %29 : vector<4x8x1xf32>
    %cst_30 = arith.constant dense<0.000000e+00> : vector<4x1xf32>
    %31 = vector.multi_reduction <add>, %30, %cst_30 [1] : vector<4x8x1xf32> to vector<4x1xf32>
    %32 = vector.shape_cast %31 : vector<4x1xf32> to vector<4x1x1xf32>
    %cst_31 = arith.constant 8.000000e+00 : f32
    %33 = vector.broadcast %cst_31 : f32 to vector<4x1x1xf32>
    %34 = arith.divf %32, %33 : vector<4x1x1xf32>
    %cst_32 = arith.constant 9.99999974E-6 : f32
    %35 = vector.broadcast %cst_32 : f32 to vector<4x1x1xf32>
    %36 = arith.addf %34, %35 : vector<4x1x1xf32>
    %37 = math.rsqrt %36 : vector<4x1x1xf32>
    %38 = vector.broadcast %37 : vector<4x1x1xf32> to vector<4x8x8xf32>
    %39 = arith.mulf %25, %38 : vector<4x8x8xf32>
    %40 = vector.shape_cast %39 : vector<4x8x8xf32> to vector<32x8xf32>
    %41 = vector.broadcast %7 : vector<32x1xf32> to vector<32x8xf32>
    %42 = arith.mulf %40, %41 : vector<32x8xf32>
    %43 = vector.broadcast %8 : vector<32x1xf32> to vector<32x8xf32>
    %44 = arith.addf %42, %43 : vector<32x8xf32>
    %45 = arith.negf %44 : vector<32x8xf32>
    %46 = math.exp %45 : vector<32x8xf32>
    %cst_33 = arith.constant 1.000000e+00 : f32
    %47 = vector.broadcast %cst_33 : f32 to vector<32x8xf32>
    %48 = arith.addf %47, %46 : vector<32x8xf32>
    %49 = arith.divf %47, %48 : vector<32x8xf32>
    %50 = arith.mulf %44, %49 : vector<32x8xf32>
    %cst_34 = arith.constant 0.000000e+00 : f32
    %51 = vector.broadcast %cst_34 : f32 to vector<32x1xf32>
    %52 = vector.extract_strided_slice %50 {offsets = [0, 0], sizes = [32, 7], strides = [1, 1]} : vector<32x8xf32> to vector<32x7xf32>
    %53 = tpu.concatenate %51, %52 in 1 : vector<32x1xf32>, vector<32x7xf32> -> vector<32x8xf32>
    %54 = vector.extract_strided_slice %50 {offsets = [0, 1], sizes = [32, 7], strides = [1, 1]} : vector<32x8xf32> to vector<32x7xf32>
    %55 = tpu.concatenate %54, %51 in 1 : vector<32x7xf32>, vector<32x1xf32> -> vector<32x8xf32>
    %56 = vector.extract_strided_slice %9 {offsets = [1, 0, 0], sizes = [1, 32, 32], strides = [1, 1, 1]} : vector<3x32x32xf32> to vector<1x32x32xf32>
    %57 = vector.shape_cast %56 : vector<1x32x32xf32> to vector<32x32xf32>
    %cst_35 = arith.constant dense<0.000000e+00> : vector<32x8xf32>
    %58 = tpu.matmul %57, %50, %cst_35 {dimension_numbers = #tpu.dot_dimension_numbers<[1], [0], [0], [1], [0, 0, 1, 1], [], []>} : vector<32x32xf32>, vector<32x8xf32>, vector<32x8xf32> -> vector<32x8xf32>
    %59 = vector.extract_strided_slice %9 {offsets = [0, 0, 0], sizes = [1, 32, 32], strides = [1, 1, 1]} : vector<3x32x32xf32> to vector<1x32x32xf32>
    %60 = vector.shape_cast %59 : vector<1x32x32xf32> to vector<32x32xf32>
    %cst_36 = arith.constant dense<0.000000e+00> : vector<32x8xf32>
    %61 = tpu.matmul %60, %53, %cst_36 {dimension_numbers = #tpu.dot_dimension_numbers<[1], [0], [0], [1], [0, 0, 1, 1], [], []>} : vector<32x32xf32>, vector<32x8xf32>, vector<32x8xf32> -> vector<32x8xf32>
    %62 = arith.addf %58, %61 : vector<32x8xf32>
    %63 = vector.extract_strided_slice %9 {offsets = [2, 0, 0], sizes = [1, 32, 32], strides = [1, 1, 1]} : vector<3x32x32xf32> to vector<1x32x32xf32>
    %64 = vector.shape_cast %63 : vector<1x32x32xf32> to vector<32x32xf32>
    %cst_37 = arith.constant dense<0.000000e+00> : vector<32x8xf32>
    %65 = tpu.matmul %64, %55, %cst_37 {dimension_numbers = #tpu.dot_dimension_numbers<[1], [0], [0], [1], [0, 0, 1, 1], [], []>} : vector<32x32xf32>, vector<32x8xf32>, vector<32x8xf32> -> vector<32x8xf32>
    %66 = arith.addf %62, %65 : vector<32x8xf32>
    %67 = vector.broadcast %10 : vector<32x1xf32> to vector<32x8xf32>
    %68 = arith.addf %66, %67 : vector<32x8xf32>
    %69 = vector.shape_cast %68 : vector<32x8xf32> to vector<4x8x8xf32>
    %cst_38 = arith.constant dense<0.000000e+00> : vector<4x8xf32>
    %70 = vector.multi_reduction <add>, %69, %cst_38 [2] : vector<4x8x8xf32> to vector<4x8xf32>
    %71 = vector.shape_cast %70 : vector<4x8xf32> to vector<4x8x1xf32>
    %cst_39 = arith.constant 8.000000e+00 : f32
    %72 = vector.broadcast %cst_39 : f32 to vector<4x8x1xf32>
    %73 = arith.divf %71, %72 : vector<4x8x1xf32>
    %cst_40 = arith.constant dense<0.000000e+00> : vector<4x1xf32>
    %74 = vector.multi_reduction <add>, %73, %cst_40 [1] : vector<4x8x1xf32> to vector<4x1xf32>
    %75 = vector.shape_cast %74 : vector<4x1xf32> to vector<4x1x1xf32>
    %cst_41 = arith.constant 8.000000e+00 : f32
    %76 = vector.broadcast %cst_41 : f32 to vector<4x1x1xf32>
    %77 = arith.divf %75, %76 : vector<4x1x1xf32>
    %78 = vector.broadcast %77 : vector<4x1x1xf32> to vector<4x8x8xf32>
    %79 = arith.subf %69, %78 : vector<4x8x8xf32>
    %80 = arith.mulf %79, %79 : vector<4x8x8xf32>
    %cst_42 = arith.constant dense<0.000000e+00> : vector<4x8xf32>
    %81 = vector.multi_reduction <add>, %80, %cst_42 [2] : vector<4x8x8xf32> to vector<4x8xf32>
    %82 = vector.shape_cast %81 : vector<4x8xf32> to vector<4x8x1xf32>
    %cst_43 = arith.constant 8.000000e+00 : f32
    %83 = vector.broadcast %cst_43 : f32 to vector<4x8x1xf32>
    %84 = arith.divf %82, %83 : vector<4x8x1xf32>
    %cst_44 = arith.constant dense<0.000000e+00> : vector<4x1xf32>
    %85 = vector.multi_reduction <add>, %84, %cst_44 [1] : vector<4x8x1xf32> to vector<4x1xf32>
    %86 = vector.shape_cast %85 : vector<4x1xf32> to vector<4x1x1xf32>
    %cst_45 = arith.constant 8.000000e+00 : f32
    %87 = vector.broadcast %cst_45 : f32 to vector<4x1x1xf32>
    %88 = arith.divf %86, %87 : vector<4x1x1xf32>
    %cst_46 = arith.constant 9.99999974E-6 : f32
    %89 = vector.broadcast %cst_46 : f32 to vector<4x1x1xf32>
    %90 = arith.addf %88, %89 : vector<4x1x1xf32>
    %91 = math.rsqrt %90 : vector<4x1x1xf32>
    %92 = vector.broadcast %91 : vector<4x1x1xf32> to vector<4x8x8xf32>
    %93 = arith.mulf %79, %92 : vector<4x8x8xf32>
    %94 = vector.shape_cast %93 : vector<4x8x8xf32> to vector<32x8xf32>
    %95 = vector.broadcast %11 : vector<32x1xf32> to vector<32x8xf32>
    %96 = arith.mulf %94, %95 : vector<32x8xf32>
    %97 = vector.broadcast %12 : vector<32x1xf32> to vector<32x8xf32>
    %98 = arith.addf %96, %97 : vector<32x8xf32>
    %99 = arith.negf %98 : vector<32x8xf32>
    %100 = math.exp %99 : vector<32x8xf32>
    %cst_47 = arith.constant 1.000000e+00 : f32
    %101 = vector.broadcast %cst_47 : f32 to vector<32x8xf32>
    %102 = arith.addf %101, %100 : vector<32x8xf32>
    %103 = arith.divf %101, %102 : vector<32x8xf32>
    %104 = arith.mulf %98, %103 : vector<32x8xf32>
    %cst_48 = arith.constant 0.000000e+00 : f32
    %105 = vector.broadcast %cst_48 : f32 to vector<32x1xf32>
    %106 = vector.extract_strided_slice %104 {offsets = [0, 0], sizes = [32, 7], strides = [1, 1]} : vector<32x8xf32> to vector<32x7xf32>
    %107 = tpu.concatenate %105, %106 in 1 : vector<32x1xf32>, vector<32x7xf32> -> vector<32x8xf32>
    %108 = vector.extract_strided_slice %104 {offsets = [0, 1], sizes = [32, 7], strides = [1, 1]} : vector<32x8xf32> to vector<32x7xf32>
    %109 = tpu.concatenate %108, %105 in 1 : vector<32x7xf32>, vector<32x1xf32> -> vector<32x8xf32>
    %110 = vector.extract_strided_slice %13 {offsets = [1, 0, 0], sizes = [1, 32, 32], strides = [1, 1, 1]} : vector<3x32x32xf32> to vector<1x32x32xf32>
    %111 = vector.shape_cast %110 : vector<1x32x32xf32> to vector<32x32xf32>
    %cst_49 = arith.constant dense<0.000000e+00> : vector<32x8xf32>
    %112 = tpu.matmul %111, %104, %cst_49 {dimension_numbers = #tpu.dot_dimension_numbers<[1], [0], [0], [1], [0, 0, 1, 1], [], []>} : vector<32x32xf32>, vector<32x8xf32>, vector<32x8xf32> -> vector<32x8xf32>
    %113 = vector.extract_strided_slice %13 {offsets = [0, 0, 0], sizes = [1, 32, 32], strides = [1, 1, 1]} : vector<3x32x32xf32> to vector<1x32x32xf32>
    %114 = vector.shape_cast %113 : vector<1x32x32xf32> to vector<32x32xf32>
    %cst_50 = arith.constant dense<0.000000e+00> : vector<32x8xf32>
    %115 = tpu.matmul %114, %107, %cst_50 {dimension_numbers = #tpu.dot_dimension_numbers<[1], [0], [0], [1], [0, 0, 1, 1], [], []>} : vector<32x32xf32>, vector<32x8xf32>, vector<32x8xf32> -> vector<32x8xf32>
    %116 = arith.addf %112, %115 : vector<32x8xf32>
    %117 = vector.extract_strided_slice %13 {offsets = [2, 0, 0], sizes = [1, 32, 32], strides = [1, 1, 1]} : vector<3x32x32xf32> to vector<1x32x32xf32>
    %118 = vector.shape_cast %117 : vector<1x32x32xf32> to vector<32x32xf32>
    %cst_51 = arith.constant dense<0.000000e+00> : vector<32x8xf32>
    %119 = tpu.matmul %118, %109, %cst_51 {dimension_numbers = #tpu.dot_dimension_numbers<[1], [0], [0], [1], [0, 0, 1, 1], [], []>} : vector<32x32xf32>, vector<32x8xf32>, vector<32x8xf32> -> vector<32x8xf32>
    %120 = arith.addf %116, %119 : vector<32x8xf32>
    %121 = vector.broadcast %14 : vector<32x1xf32> to vector<32x8xf32>
    %122 = arith.addf %120, %121 : vector<32x8xf32>
    %123 = arith.addf %122, %6 : vector<32x8xf32>
    %c0_52 = arith.constant 0 : index
    %c0_53 = arith.constant 0 : index
    %c0_54 = arith.constant 0 : index
    %124 = vector.load %arg12[%c0_52, %c0_53, %c0_54] : memref<3x32x32xf32, #tpu.memory_space<vmem>>, vector<3x32x32xf32>
    %c0_55 = arith.constant 0 : index
    %c0_56 = arith.constant 0 : index
    %125 = vector.load %arg13[%c0_55, %c0_56] : memref<32x1xf32, #tpu.memory_space<vmem>>, vector<32x1xf32>
    %126 = vector.shape_cast %123 : vector<32x8xf32> to vector<32x8x1xf32>
    %127 = vector.shape_cast %126 : vector<32x8x1xf32> to vector<32x8x1xf32>
    %128 = vector.broadcast %127 : vector<32x8x1xf32> to vector<32x8x2xf32>
    %129 = vector.shape_cast %128 : vector<32x8x2xf32> to vector<32x16xf32>
    %cst_57 = arith.constant 0.000000e+00 : f32
    %130 = vector.broadcast %cst_57 : f32 to vector<32x1xf32>
    %131 = vector.extract_strided_slice %129 {offsets = [0, 0], sizes = [32, 15], strides = [1, 1]} : vector<32x16xf32> to vector<32x15xf32>
    %132 = tpu.concatenate %130, %131 in 1 : vector<32x1xf32>, vector<32x15xf32> -> vector<32x16xf32>
    %133 = vector.extract_strided_slice %129 {offsets = [0, 1], sizes = [32, 15], strides = [1, 1]} : vector<32x16xf32> to vector<32x15xf32>
    %134 = tpu.concatenate %133, %130 in 1 : vector<32x15xf32>, vector<32x1xf32> -> vector<32x16xf32>
    %135 = vector.extract_strided_slice %124 {offsets = [1, 0, 0], sizes = [1, 32, 32], strides = [1, 1, 1]} : vector<3x32x32xf32> to vector<1x32x32xf32>
    %136 = vector.shape_cast %135 : vector<1x32x32xf32> to vector<32x32xf32>
    %cst_58 = arith.constant dense<0.000000e+00> : vector<32x16xf32>
    %137 = tpu.matmul %136, %129, %cst_58 {dimension_numbers = #tpu.dot_dimension_numbers<[1], [0], [0], [1], [0, 0, 1, 1], [], []>} : vector<32x32xf32>, vector<32x16xf32>, vector<32x16xf32> -> vector<32x16xf32>
    %138 = vector.extract_strided_slice %124 {offsets = [0, 0, 0], sizes = [1, 32, 32], strides = [1, 1, 1]} : vector<3x32x32xf32> to vector<1x32x32xf32>
    %139 = vector.shape_cast %138 : vector<1x32x32xf32> to vector<32x32xf32>
    %cst_59 = arith.constant dense<0.000000e+00> : vector<32x16xf32>
    %140 = tpu.matmul %139, %132, %cst_59 {dimension_numbers = #tpu.dot_dimension_numbers<[1], [0], [0], [1], [0, 0, 1, 1], [], []>} : vector<32x32xf32>, vector<32x16xf32>, vector<32x16xf32> -> vector<32x16xf32>
    %141 = arith.addf %137, %140 : vector<32x16xf32>
    %142 = vector.extract_strided_slice %124 {offsets = [2, 0, 0], sizes = [1, 32, 32], strides = [1, 1, 1]} : vector<3x32x32xf32> to vector<1x32x32xf32>
    %143 = vector.shape_cast %142 : vector<1x32x32xf32> to vector<32x32xf32>
    %cst_60 = arith.constant dense<0.000000e+00> : vector<32x16xf32>
    %144 = tpu.matmul %143, %134, %cst_60 {dimension_numbers = #tpu.dot_dimension_numbers<[1], [0], [0], [1], [0, 0, 1, 1], [], []>} : vector<32x32xf32>, vector<32x16xf32>, vector<32x16xf32> -> vector<32x16xf32>
    %145 = arith.addf %141, %144 : vector<32x16xf32>
    %146 = vector.broadcast %125 : vector<32x1xf32> to vector<32x16xf32>
    %147 = arith.addf %145, %146 : vector<32x16xf32>
    %c0_61 = arith.constant 0 : index
    %c0_62 = arith.constant 0 : index
    %148 = vector.load %arg14[%c0_61, %c0_62] : memref<32x1xf32, #tpu.memory_space<vmem>>, vector<32x1xf32>
    %c0_63 = arith.constant 0 : index
    %c0_64 = arith.constant 0 : index
    %149 = vector.load %arg15[%c0_63, %c0_64] : memref<32x1xf32, #tpu.memory_space<vmem>>, vector<32x1xf32>
    %c0_65 = arith.constant 0 : index
    %c0_66 = arith.constant 0 : index
    %c0_67 = arith.constant 0 : index
    %150 = vector.load %arg16[%c0_65, %c0_66, %c0_67] : memref<3x32x32xf32, #tpu.memory_space<vmem>>, vector<3x32x32xf32>
    %c0_68 = arith.constant 0 : index
    %c0_69 = arith.constant 0 : index
    %151 = vector.load %arg17[%c0_68, %c0_69] : memref<32x1xf32, #tpu.memory_space<vmem>>, vector<32x1xf32>
    %c0_70 = arith.constant 0 : index
    %c0_71 = arith.constant 0 : index
    %152 = vector.load %arg18[%c0_70, %c0_71] : memref<32x1xf32, #tpu.memory_space<vmem>>, vector<32x1xf32>
    %c0_72 = arith.constant 0 : index
    %c0_73 = arith.constant 0 : index
    %153 = vector.load %arg19[%c0_72, %c0_73] : memref<32x1xf32, #tpu.memory_space<vmem>>, vector<32x1xf32>
    %c0_74 = arith.constant 0 : index
    %c0_75 = arith.constant 0 : index
    %c0_76 = arith.constant 0 : index
    %154 = vector.load %arg20[%c0_74, %c0_75, %c0_76] : memref<3x32x32xf32, #tpu.memory_space<vmem>>, vector<3x32x32xf32>
    %c0_77 = arith.constant 0 : index
    %c0_78 = arith.constant 0 : index
    %155 = vector.load %arg21[%c0_77, %c0_78] : memref<32x1xf32, #tpu.memory_space<vmem>>, vector<32x1xf32>
    %156 = vector.shape_cast %147 : vector<32x16xf32> to vector<4x8x16xf32>
    %cst_79 = arith.constant dense<0.000000e+00> : vector<4x8xf32>
    %157 = vector.multi_reduction <add>, %156, %cst_79 [2] : vector<4x8x16xf32> to vector<4x8xf32>
    %158 = vector.shape_cast %157 : vector<4x8xf32> to vector<4x8x1xf32>
    %cst_80 = arith.constant 1.600000e+01 : f32
    %159 = vector.broadcast %cst_80 : f32 to vector<4x8x1xf32>
    %160 = arith.divf %158, %159 : vector<4x8x1xf32>
    %cst_81 = arith.constant dense<0.000000e+00> : vector<4x1xf32>
    %161 = vector.multi_reduction <add>, %160, %cst_81 [1] : vector<4x8x1xf32> to vector<4x1xf32>
    %162 = vector.shape_cast %161 : vector<4x1xf32> to vector<4x1x1xf32>
    %cst_82 = arith.constant 8.000000e+00 : f32
    %163 = vector.broadcast %cst_82 : f32 to vector<4x1x1xf32>
    %164 = arith.divf %162, %163 : vector<4x1x1xf32>
    %165 = vector.broadcast %164 : vector<4x1x1xf32> to vector<4x8x16xf32>
    %166 = arith.subf %156, %165 : vector<4x8x16xf32>
    %167 = arith.mulf %166, %166 : vector<4x8x16xf32>
    %cst_83 = arith.constant dense<0.000000e+00> : vector<4x8xf32>
    %168 = vector.multi_reduction <add>, %167, %cst_83 [2] : vector<4x8x16xf32> to vector<4x8xf32>
    %169 = vector.shape_cast %168 : vector<4x8xf32> to vector<4x8x1xf32>
    %cst_84 = arith.constant 1.600000e+01 : f32
    %170 = vector.broadcast %cst_84 : f32 to vector<4x8x1xf32>
    %171 = arith.divf %169, %170 : vector<4x8x1xf32>
    %cst_85 = arith.constant dense<0.000000e+00> : vector<4x1xf32>
    %172 = vector.multi_reduction <add>, %171, %cst_85 [1] : vector<4x8x1xf32> to vector<4x1xf32>
    %173 = vector.shape_cast %172 : vector<4x1xf32> to vector<4x1x1xf32>
    %cst_86 = arith.constant 8.000000e+00 : f32
    %174 = vector.broadcast %cst_86 : f32 to vector<4x1x1xf32>
    %175 = arith.divf %173, %174 : vector<4x1x1xf32>
    %cst_87 = arith.constant 9.99999974E-6 : f32
    %176 = vector.broadcast %cst_87 : f32 to vector<4x1x1xf32>
    %177 = arith.addf %175, %176 : vector<4x1x1xf32>
    %178 = math.rsqrt %177 : vector<4x1x1xf32>
    %179 = vector.broadcast %178 : vector<4x1x1xf32> to vector<4x8x16xf32>
    %180 = arith.mulf %166, %179 : vector<4x8x16xf32>
    %181 = vector.shape_cast %180 : vector<4x8x16xf32> to vector<32x16xf32>
    %182 = vector.broadcast %148 : vector<32x1xf32> to vector<32x16xf32>
    %183 = arith.mulf %181, %182 : vector<32x16xf32>
    %184 = vector.broadcast %149 : vector<32x1xf32> to vector<32x16xf32>
    %185 = arith.addf %183, %184 : vector<32x16xf32>
    %186 = arith.negf %185 : vector<32x16xf32>
    %187 = math.exp %186 : vector<32x16xf32>
    %cst_88 = arith.constant 1.000000e+00 : f32
    %188 = vector.broadcast %cst_88 : f32 to vector<32x16xf32>
    %189 = arith.addf %188, %187 : vector<32x16xf32>
    %190 = arith.divf %188, %189 : vector<32x16xf32>
    %191 = arith.mulf %185, %190 : vector<32x16xf32>
    %cst_89 = arith.constant 0.000000e+00 : f32
    %192 = vector.broadcast %cst_89 : f32 to vector<32x1xf32>
    %193 = vector.extract_strided_slice %191 {offsets = [0, 0], sizes = [32, 15], strides = [1, 1]} : vector<32x16xf32> to vector<32x15xf32>
    %194 = tpu.concatenate %192, %193 in 1 : vector<32x1xf32>, vector<32x15xf32> -> vector<32x16xf32>
    %195 = vector.extract_strided_slice %191 {offsets = [0, 1], sizes = [32, 15], strides = [1, 1]} : vector<32x16xf32> to vector<32x15xf32>
    %196 = tpu.concatenate %195, %192 in 1 : vector<32x15xf32>, vector<32x1xf32> -> vector<32x16xf32>
    %197 = vector.extract_strided_slice %150 {offsets = [1, 0, 0], sizes = [1, 32, 32], strides = [1, 1, 1]} : vector<3x32x32xf32> to vector<1x32x32xf32>
    %198 = vector.shape_cast %197 : vector<1x32x32xf32> to vector<32x32xf32>
    %cst_90 = arith.constant dense<0.000000e+00> : vector<32x16xf32>
    %199 = tpu.matmul %198, %191, %cst_90 {dimension_numbers = #tpu.dot_dimension_numbers<[1], [0], [0], [1], [0, 0, 1, 1], [], []>} : vector<32x32xf32>, vector<32x16xf32>, vector<32x16xf32> -> vector<32x16xf32>
    %200 = vector.extract_strided_slice %150 {offsets = [0, 0, 0], sizes = [1, 32, 32], strides = [1, 1, 1]} : vector<3x32x32xf32> to vector<1x32x32xf32>
    %201 = vector.shape_cast %200 : vector<1x32x32xf32> to vector<32x32xf32>
    %cst_91 = arith.constant dense<0.000000e+00> : vector<32x16xf32>
    %202 = tpu.matmul %201, %194, %cst_91 {dimension_numbers = #tpu.dot_dimension_numbers<[1], [0], [0], [1], [0, 0, 1, 1], [], []>} : vector<32x32xf32>, vector<32x16xf32>, vector<32x16xf32> -> vector<32x16xf32>
    %203 = arith.addf %199, %202 : vector<32x16xf32>
    %204 = vector.extract_strided_slice %150 {offsets = [2, 0, 0], sizes = [1, 32, 32], strides = [1, 1, 1]} : vector<3x32x32xf32> to vector<1x32x32xf32>
    %205 = vector.shape_cast %204 : vector<1x32x32xf32> to vector<32x32xf32>
    %cst_92 = arith.constant dense<0.000000e+00> : vector<32x16xf32>
    %206 = tpu.matmul %205, %196, %cst_92 {dimension_numbers = #tpu.dot_dimension_numbers<[1], [0], [0], [1], [0, 0, 1, 1], [], []>} : vector<32x32xf32>, vector<32x16xf32>, vector<32x16xf32> -> vector<32x16xf32>
    %207 = arith.addf %203, %206 : vector<32x16xf32>
    %208 = vector.broadcast %151 : vector<32x1xf32> to vector<32x16xf32>
    %209 = arith.addf %207, %208 : vector<32x16xf32>
    %210 = vector.shape_cast %209 : vector<32x16xf32> to vector<4x8x16xf32>
    %cst_93 = arith.constant dense<0.000000e+00> : vector<4x8xf32>
    %211 = vector.multi_reduction <add>, %210, %cst_93 [2] : vector<4x8x16xf32> to vector<4x8xf32>
    %212 = vector.shape_cast %211 : vector<4x8xf32> to vector<4x8x1xf32>
    %cst_94 = arith.constant 1.600000e+01 : f32
    %213 = vector.broadcast %cst_94 : f32 to vector<4x8x1xf32>
    %214 = arith.divf %212, %213 : vector<4x8x1xf32>
    %cst_95 = arith.constant dense<0.000000e+00> : vector<4x1xf32>
    %215 = vector.multi_reduction <add>, %214, %cst_95 [1] : vector<4x8x1xf32> to vector<4x1xf32>
    %216 = vector.shape_cast %215 : vector<4x1xf32> to vector<4x1x1xf32>
    %cst_96 = arith.constant 8.000000e+00 : f32
    %217 = vector.broadcast %cst_96 : f32 to vector<4x1x1xf32>
    %218 = arith.divf %216, %217 : vector<4x1x1xf32>
    %219 = vector.broadcast %218 : vector<4x1x1xf32> to vector<4x8x16xf32>
    %220 = arith.subf %210, %219 : vector<4x8x16xf32>
    %221 = arith.mulf %220, %220 : vector<4x8x16xf32>
    %cst_97 = arith.constant dense<0.000000e+00> : vector<4x8xf32>
    %222 = vector.multi_reduction <add>, %221, %cst_97 [2] : vector<4x8x16xf32> to vector<4x8xf32>
    %223 = vector.shape_cast %222 : vector<4x8xf32> to vector<4x8x1xf32>
    %cst_98 = arith.constant 1.600000e+01 : f32
    %224 = vector.broadcast %cst_98 : f32 to vector<4x8x1xf32>
    %225 = arith.divf %223, %224 : vector<4x8x1xf32>
    %cst_99 = arith.constant dense<0.000000e+00> : vector<4x1xf32>
    %226 = vector.multi_reduction <add>, %225, %cst_99 [1] : vector<4x8x1xf32> to vector<4x1xf32>
    %227 = vector.shape_cast %226 : vector<4x1xf32> to vector<4x1x1xf32>
    %cst_100 = arith.constant 8.000000e+00 : f32
    %228 = vector.broadcast %cst_100 : f32 to vector<4x1x1xf32>
    %229 = arith.divf %227, %228 : vector<4x1x1xf32>
    %cst_101 = arith.constant 9.99999974E-6 : f32
    %230 = vector.broadcast %cst_101 : f32 to vector<4x1x1xf32>
    %231 = arith.addf %229, %230 : vector<4x1x1xf32>
    %232 = math.rsqrt %231 : vector<4x1x1xf32>
    %233 = vector.broadcast %232 : vector<4x1x1xf32> to vector<4x8x16xf32>
    %234 = arith.mulf %220, %233 : vector<4x8x16xf32>
    %235 = vector.shape_cast %234 : vector<4x8x16xf32> to vector<32x16xf32>
    %236 = vector.broadcast %152 : vector<32x1xf32> to vector<32x16xf32>
    %237 = arith.mulf %235, %236 : vector<32x16xf32>
    %238 = vector.broadcast %153 : vector<32x1xf32> to vector<32x16xf32>
    %239 = arith.addf %237, %238 : vector<32x16xf32>
    %240 = arith.negf %239 : vector<32x16xf32>
    %241 = math.exp %240 : vector<32x16xf32>
    %cst_102 = arith.constant 1.000000e+00 : f32
    %242 = vector.broadcast %cst_102 : f32 to vector<32x16xf32>
    %243 = arith.addf %242, %241 : vector<32x16xf32>
    %244 = arith.divf %242, %243 : vector<32x16xf32>
    %245 = arith.mulf %239, %244 : vector<32x16xf32>
    %cst_103 = arith.constant 0.000000e+00 : f32
    %246 = vector.broadcast %cst_103 : f32 to vector<32x1xf32>
    %247 = vector.extract_strided_slice %245 {offsets = [0, 0], sizes = [32, 15], strides = [1, 1]} : vector<32x16xf32> to vector<32x15xf32>
    %248 = tpu.concatenate %246, %247 in 1 : vector<32x1xf32>, vector<32x15xf32> -> vector<32x16xf32>
    %249 = vector.extract_strided_slice %245 {offsets = [0, 1], sizes = [32, 15], strides = [1, 1]} : vector<32x16xf32> to vector<32x15xf32>
    %250 = tpu.concatenate %249, %246 in 1 : vector<32x15xf32>, vector<32x1xf32> -> vector<32x16xf32>
    %251 = vector.extract_strided_slice %154 {offsets = [1, 0, 0], sizes = [1, 32, 32], strides = [1, 1, 1]} : vector<3x32x32xf32> to vector<1x32x32xf32>
    %252 = vector.shape_cast %251 : vector<1x32x32xf32> to vector<32x32xf32>
    %cst_104 = arith.constant dense<0.000000e+00> : vector<32x16xf32>
    %253 = tpu.matmul %252, %245, %cst_104 {dimension_numbers = #tpu.dot_dimension_numbers<[1], [0], [0], [1], [0, 0, 1, 1], [], []>} : vector<32x32xf32>, vector<32x16xf32>, vector<32x16xf32> -> vector<32x16xf32>
    %254 = vector.extract_strided_slice %154 {offsets = [0, 0, 0], sizes = [1, 32, 32], strides = [1, 1, 1]} : vector<3x32x32xf32> to vector<1x32x32xf32>
    %255 = vector.shape_cast %254 : vector<1x32x32xf32> to vector<32x32xf32>
    %cst_105 = arith.constant dense<0.000000e+00> : vector<32x16xf32>
    %256 = tpu.matmul %255, %248, %cst_105 {dimension_numbers = #tpu.dot_dimension_numbers<[1], [0], [0], [1], [0, 0, 1, 1], [], []>} : vector<32x32xf32>, vector<32x16xf32>, vector<32x16xf32> -> vector<32x16xf32>
    %257 = arith.addf %253, %256 : vector<32x16xf32>
    %258 = vector.extract_strided_slice %154 {offsets = [2, 0, 0], sizes = [1, 32, 32], strides = [1, 1, 1]} : vector<3x32x32xf32> to vector<1x32x32xf32>
    %259 = vector.shape_cast %258 : vector<1x32x32xf32> to vector<32x32xf32>
    %cst_106 = arith.constant dense<0.000000e+00> : vector<32x16xf32>
    %260 = tpu.matmul %259, %250, %cst_106 {dimension_numbers = #tpu.dot_dimension_numbers<[1], [0], [0], [1], [0, 0, 1, 1], [], []>} : vector<32x32xf32>, vector<32x16xf32>, vector<32x16xf32> -> vector<32x16xf32>
    %261 = arith.addf %257, %260 : vector<32x16xf32>
    %262 = vector.broadcast %155 : vector<32x1xf32> to vector<32x16xf32>
    %263 = arith.addf %261, %262 : vector<32x16xf32>
    %264 = arith.addf %263, %147 : vector<32x16xf32>
    %c0_107 = arith.constant 0 : index
    %c0_108 = arith.constant 0 : index
    %c0_109 = arith.constant 0 : index
    %265 = vector.load %arg22[%c0_107, %c0_108, %c0_109] : memref<3x16x32xf32, #tpu.memory_space<vmem>>, vector<3x16x32xf32>
    %c0_110 = arith.constant 0 : index
    %c0_111 = arith.constant 0 : index
    %266 = vector.load %arg23[%c0_110, %c0_111] : memref<16x1xf32, #tpu.memory_space<vmem>>, vector<16x1xf32>
    %267 = vector.shape_cast %264 : vector<32x16xf32> to vector<32x16x1xf32>
    %268 = vector.shape_cast %267 : vector<32x16x1xf32> to vector<32x16x1xf32>
    %269 = vector.broadcast %268 : vector<32x16x1xf32> to vector<32x16x2xf32>
    %270 = vector.shape_cast %269 : vector<32x16x2xf32> to vector<32x32xf32>
    %cst_112 = arith.constant 0.000000e+00 : f32
    %271 = vector.broadcast %cst_112 : f32 to vector<32x1xf32>
    %272 = vector.extract_strided_slice %270 {offsets = [0, 0], sizes = [32, 31], strides = [1, 1]} : vector<32x32xf32> to vector<32x31xf32>
    %273 = tpu.concatenate %271, %272 in 1 : vector<32x1xf32>, vector<32x31xf32> -> vector<32x32xf32>
    %274 = vector.extract_strided_slice %270 {offsets = [0, 1], sizes = [32, 31], strides = [1, 1]} : vector<32x32xf32> to vector<32x31xf32>
    %275 = tpu.concatenate %274, %271 in 1 : vector<32x31xf32>, vector<32x1xf32> -> vector<32x32xf32>
    %276 = vector.extract_strided_slice %265 {offsets = [1, 0, 0], sizes = [1, 16, 32], strides = [1, 1, 1]} : vector<3x16x32xf32> to vector<1x16x32xf32>
    %277 = vector.shape_cast %276 : vector<1x16x32xf32> to vector<16x32xf32>
    %cst_113 = arith.constant dense<0.000000e+00> : vector<16x32xf32>
    %278 = tpu.matmul %277, %270, %cst_113 {dimension_numbers = #tpu.dot_dimension_numbers<[1], [0], [0], [1], [0, 0, 1, 1], [], []>} : vector<16x32xf32>, vector<32x32xf32>, vector<16x32xf32> -> vector<16x32xf32>
    %279 = vector.extract_strided_slice %265 {offsets = [0, 0, 0], sizes = [1, 16, 32], strides = [1, 1, 1]} : vector<3x16x32xf32> to vector<1x16x32xf32>
    %280 = vector.shape_cast %279 : vector<1x16x32xf32> to vector<16x32xf32>
    %cst_114 = arith.constant dense<0.000000e+00> : vector<16x32xf32>
    %281 = tpu.matmul %280, %273, %cst_114 {dimension_numbers = #tpu.dot_dimension_numbers<[1], [0], [0], [1], [0, 0, 1, 1], [], []>} : vector<16x32xf32>, vector<32x32xf32>, vector<16x32xf32> -> vector<16x32xf32>
    %282 = arith.addf %278, %281 : vector<16x32xf32>
    %283 = vector.extract_strided_slice %265 {offsets = [2, 0, 0], sizes = [1, 16, 32], strides = [1, 1, 1]} : vector<3x16x32xf32> to vector<1x16x32xf32>
    %284 = vector.shape_cast %283 : vector<1x16x32xf32> to vector<16x32xf32>
    %cst_115 = arith.constant dense<0.000000e+00> : vector<16x32xf32>
    %285 = tpu.matmul %284, %275, %cst_115 {dimension_numbers = #tpu.dot_dimension_numbers<[1], [0], [0], [1], [0, 0, 1, 1], [], []>} : vector<16x32xf32>, vector<32x32xf32>, vector<16x32xf32> -> vector<16x32xf32>
    %286 = arith.addf %282, %285 : vector<16x32xf32>
    %287 = vector.broadcast %266 : vector<16x1xf32> to vector<16x32xf32>
    %288 = arith.addf %286, %287 : vector<16x32xf32>
    %c0_116 = arith.constant 0 : index
    %c0_117 = arith.constant 0 : index
    %c0_118 = arith.constant 0 : index
    %289 = vector.load %arg24[%c0_116, %c0_117, %c0_118] : memref<4x2x16xf32, #tpu.memory_space<vmem>>, vector<4x2x16xf32>
    %c0_119 = arith.constant 0 : index
    %c0_120 = arith.constant 0 : index
    %290 = vector.load %arg25[%c0_119, %c0_120] : memref<2x1xf32, #tpu.memory_space<vmem>>, vector<2x1xf32>
    %291 = vector.extract_strided_slice %289 {offsets = [0, 0, 0], sizes = [1, 2, 16], strides = [1, 1, 1]} : vector<4x2x16xf32> to vector<1x2x16xf32>
    %292 = vector.shape_cast %291 : vector<1x2x16xf32> to vector<2x16xf32>
    %cst_121 = arith.constant dense<0.000000e+00> : vector<2x32xf32>
    %293 = tpu.matmul %292, %288, %cst_121 {dimension_numbers = #tpu.dot_dimension_numbers<[1], [0], [0], [1], [0, 0, 1, 1], [], []>} : vector<2x16xf32>, vector<16x32xf32>, vector<2x32xf32> -> vector<2x32xf32>
    %294 = vector.extract_strided_slice %289 {offsets = [1, 0, 0], sizes = [1, 2, 16], strides = [1, 1, 1]} : vector<4x2x16xf32> to vector<1x2x16xf32>
    %295 = vector.shape_cast %294 : vector<1x2x16xf32> to vector<2x16xf32>
    %cst_122 = arith.constant dense<0.000000e+00> : vector<2x32xf32>
    %296 = tpu.matmul %295, %288, %cst_122 {dimension_numbers = #tpu.dot_dimension_numbers<[1], [0], [0], [1], [0, 0, 1, 1], [], []>} : vector<2x16xf32>, vector<16x32xf32>, vector<2x32xf32> -> vector<2x32xf32>
    %297 = vector.extract_strided_slice %289 {offsets = [2, 0, 0], sizes = [1, 2, 16], strides = [1, 1, 1]} : vector<4x2x16xf32> to vector<1x2x16xf32>
    %298 = vector.shape_cast %297 : vector<1x2x16xf32> to vector<2x16xf32>
    %cst_123 = arith.constant dense<0.000000e+00> : vector<2x32xf32>
    %299 = tpu.matmul %298, %288, %cst_123 {dimension_numbers = #tpu.dot_dimension_numbers<[1], [0], [0], [1], [0, 0, 1, 1], [], []>} : vector<2x16xf32>, vector<16x32xf32>, vector<2x32xf32> -> vector<2x32xf32>
    %300 = vector.extract_strided_slice %289 {offsets = [3, 0, 0], sizes = [1, 2, 16], strides = [1, 1, 1]} : vector<4x2x16xf32> to vector<1x2x16xf32>
    %301 = vector.shape_cast %300 : vector<1x2x16xf32> to vector<2x16xf32>
    %cst_124 = arith.constant dense<0.000000e+00> : vector<2x32xf32>
    %302 = tpu.matmul %301, %288, %cst_124 {dimension_numbers = #tpu.dot_dimension_numbers<[1], [0], [0], [1], [0, 0, 1, 1], [], []>} : vector<2x16xf32>, vector<16x32xf32>, vector<2x32xf32> -> vector<2x32xf32>
    %303 = vector.shape_cast %293 : vector<2x32xf32> to vector<2x32x1xf32>
    %304 = vector.shape_cast %296 : vector<2x32xf32> to vector<2x32x1xf32>
    %305 = vector.shape_cast %299 : vector<2x32xf32> to vector<2x32x1xf32>
    %306 = vector.shape_cast %302 : vector<2x32xf32> to vector<2x32x1xf32>
    %307 = tpu.concatenate %303, %304, %305, %306 in 2 : vector<2x32x1xf32>, vector<2x32x1xf32>, vector<2x32x1xf32>, vector<2x32x1xf32> -> vector<2x32x4xf32>
    %308 = vector.shape_cast %307 : vector<2x32x4xf32> to vector<2x128xf32>
    %309 = vector.broadcast %290 : vector<2x1xf32> to vector<2x128xf32>
    %310 = arith.addf %308, %309 : vector<2x128xf32>
    %c0_125 = arith.constant 0 : index
    %c0_126 = arith.constant 0 : index
    %c0_127 = arith.constant 0 : index
    %311 = vector.load %arg26[%c0_125, %c0_126, %c0_127] : memref<1x2x128xf32, #tpu.memory_space<vmem>>, vector<1x2x128xf32>
    %312 = vector.shape_cast %311 : vector<1x2x128xf32> to vector<2x128xf32>
    %313 = vector.shape_cast %310 : vector<2x128xf32> to vector<1x2x128xf32>
    tpu.vector_store %arg26[%c0_125, %c0_126, %c0_127], %313 {strides = array<i32>} : memref<1x2x128xf32, #tpu.memory_space<vmem>>, vector<1x2x128xf32>,
    return
  }
  func.func @transform_0(%arg0: i32) -> (i32, i32, i32) {
    %c0_i32 = arith.constant 0 : i32
    %c0_i32_0 = arith.constant 0 : i32
    %c0_i32_1 = arith.constant 0 : i32
    return %arg0, %c0_i32, %c0_i32_0 : i32, i32, i32
  }
  func.func @transform_1(%arg0: i32) -> (i32, i32) {
    %c0_i32 = arith.constant 0 : i32
    %c0_i32_0 = arith.constant 0 : i32
    %c0_i32_1 = arith.constant 0 : i32
    return %c0_i32, %c0_i32_0 : i32, i32
  }
  func.func @transform_2(%arg0: i32) -> (i32, i32) {
    %c0_i32 = arith.constant 0 : i32
    %c0_i32_0 = arith.constant 0 : i32
    %c0_i32_1 = arith.constant 0 : i32
    return %c0_i32, %c0_i32_0 : i32, i32
  }
  func.func @transform_3(%arg0: i32) -> (i32, i32) {
    %c0_i32 = arith.constant 0 : i32
    %c0_i32_0 = arith.constant 0 : i32
    %c0_i32_1 = arith.constant 0 : i32
    return %c0_i32, %c0_i32_0 : i32, i32
  }
  func.func @transform_4(%arg0: i32) -> (i32, i32) {
    %c0_i32 = arith.constant 0 : i32
    %c0_i32_0 = arith.constant 0 : i32
    %c0_i32_1 = arith.constant 0 : i32
    return %c0_i32, %c0_i32_0 : i32, i32
  }
  func.func @transform_5(%arg0: i32) -> (i32, i32, i32) {
    %c0_i32 = arith.constant 0 : i32
    %c0_i32_0 = arith.constant 0 : i32
    %c0_i32_1 = arith.constant 0 : i32
    %c0_i32_2 = arith.constant 0 : i32
    return %c0_i32, %c0_i32_0, %c0_i32_1 : i32, i32, i32
  }
  func.func @transform_6(%arg0: i32) -> (i32, i32) {
    %c0_i32 = arith.constant 0 : i32
    %c0_i32_0 = arith.constant 0 : i32
    %c0_i32_1 = arith.constant 0 : i32
    return %c0_i32, %c0_i32_0 : i32, i32
  }
  func.func @transform_7(%arg0: i32) -> (i32, i32) {
    %c0_i32 = arith.constant 0 : i32
    %c0_i32_0 = arith.constant 0 : i32
    %c0_i32_1 = arith.constant 0 : i32
    return %c0_i32, %c0_i32_0 : i32, i32
  }
  func.func @transform_8(%arg0: i32) -> (i32, i32) {
    %c0_i32 = arith.constant 0 : i32
    %c0_i32_0 = arith.constant 0 : i32
    %c0_i32_1 = arith.constant 0 : i32
    return %c0_i32, %c0_i32_0 : i32, i32
  }
  func.func @transform_9(%arg0: i32) -> (i32, i32, i32) {
    %c0_i32 = arith.constant 0 : i32
    %c0_i32_0 = arith.constant 0 : i32
    %c0_i32_1 = arith.constant 0 : i32
    %c0_i32_2 = arith.constant 0 : i32
    return %c0_i32, %c0_i32_0, %c0_i32_1 : i32, i32, i32
  }
  func.func @transform_10(%arg0: i32) -> (i32, i32) {
    %c0_i32 = arith.constant 0 : i32
    %c0_i32_0 = arith.constant 0 : i32
    %c0_i32_1 = arith.constant 0 : i32
    return %c0_i32, %c0_i32_0 : i32, i32
  }
  func.func @transform_11(%arg0: i32) -> (i32, i32, i32) {
    %c0_i32 = arith.constant 0 : i32
    %c0_i32_0 = arith.constant 0 : i32
    %c0_i32_1 = arith.constant 0 : i32
    %c0_i32_2 = arith.constant 0 : i32
    return %c0_i32, %c0_i32_0, %c0_i32_1 : i32, i32, i32
  }
  func.func @transform_12(%arg0: i32) -> (i32, i32) {
    %c0_i32 = arith.constant 0 : i32
    %c0_i32_0 = arith.constant 0 : i32
    %c0_i32_1 = arith.constant 0 : i32
    return %c0_i32, %c0_i32_0 : i32, i32
  }
  func.func @transform_13(%arg0: i32) -> (i32, i32) {
    %c0_i32 = arith.constant 0 : i32
    %c0_i32_0 = arith.constant 0 : i32
    %c0_i32_1 = arith.constant 0 : i32
    return %c0_i32, %c0_i32_0 : i32, i32
  }
  func.func @transform_14(%arg0: i32) -> (i32, i32) {
    %c0_i32 = arith.constant 0 : i32
    %c0_i32_0 = arith.constant 0 : i32
    %c0_i32_1 = arith.constant 0 : i32
    return %c0_i32, %c0_i32_0 : i32, i32
  }
  func.func @transform_15(%arg0: i32) -> (i32, i32, i32) {
    %c0_i32 = arith.constant 0 : i32
    %c0_i32_0 = arith.constant 0 : i32
    %c0_i32_1 = arith.constant 0 : i32
    %c0_i32_2 = arith.constant 0 : i32
    return %c0_i32, %c0_i32_0, %c0_i32_1 : i32, i32, i32
  }
  func.func @transform_16(%arg0: i32) -> (i32, i32) {
    %c0_i32 = arith.constant 0 : i32
    %c0_i32_0 = arith.constant 0 : i32
    %c0_i32_1 = arith.constant 0 : i32
    return %c0_i32, %c0_i32_0 : i32, i32
  }
  func.func @transform_17(%arg0: i32) -> (i32, i32) {
    %c0_i32 = arith.constant 0 : i32
    %c0_i32_0 = arith.constant 0 : i32
    %c0_i32_1 = arith.constant 0 : i32
    return %c0_i32, %c0_i32_0 : i32, i32
  }
  func.func @transform_18(%arg0: i32) -> (i32, i32) {
    %c0_i32 = arith.constant 0 : i32
    %c0_i32_0 = arith.constant 0 : i32
    %c0_i32_1 = arith.constant 0 : i32
    return %c0_i32, %c0_i32_0 : i32, i32
  }
  func.func @transform_19(%arg0: i32) -> (i32, i32, i32) {
    %c0_i32 = arith.constant 0 : i32
    %c0_i32_0 = arith.constant 0 : i32
    %c0_i32_1 = arith.constant 0 : i32
    %c0_i32_2 = arith.constant 0 : i32
    return %c0_i32, %c0_i32_0, %c0_i32_1 : i32, i32, i32
  }
  func.func @transform_20(%arg0: i32) -> (i32, i32) {
    %c0_i32 = arith.constant 0 : i32
    %c0_i32_0 = arith.constant 0 : i32
    %c0_i32_1 = arith.constant 0 : i32
    return %c0_i32, %c0_i32_0 : i32, i32
  }
  func.func @transform_21(%arg0: i32) -> (i32, i32, i32) {
    %c0_i32 = arith.constant 0 : i32
    %c0_i32_0 = arith.constant 0 : i32
    %c0_i32_1 = arith.constant 0 : i32
    %c0_i32_2 = arith.constant 0 : i32
    return %c0_i32, %c0_i32_0, %c0_i32_1 : i32, i32, i32
  }
  func.func @transform_22(%arg0: i32) -> (i32, i32) {
    %c0_i32 = arith.constant 0 : i32
    %c0_i32_0 = arith.constant 0 : i32
    %c0_i32_1 = arith.constant 0 : i32
    return %c0_i32, %c0_i32_0 : i32, i32
  }
  func.func @transform_23(%arg0: i32) -> (i32, i32, i32) {
    %c0_i32 = arith.constant 0 : i32
    %c0_i32_0 = arith.constant 0 : i32
    %c0_i32_1 = arith.constant 0 : i32
    %c0_i32_2 = arith.constant 0 : i32
    return %c0_i32, %c0_i32_0, %c0_i32_1 : i32, i32, i32
  }
  func.func @transform_24(%arg0: i32) -> (i32, i32) {
    %c0_i32 = arith.constant 0 : i32
    %c0_i32_0 = arith.constant 0 : i32
    %c0_i32_1 = arith.constant 0 : i32
    return %c0_i32, %c0_i32_0 : i32, i32
  }
  func.func @transform_25(%arg0: i32) -> (i32, i32, i32) {
    %c0_i32 = arith.constant 0 : i32
    %c0_i32_0 = arith.constant 0 : i32
    %c0_i32_1 = arith.constant 0 : i32
    return %arg0, %c0_i32, %c0_i32_0 : i32, i32, i32
  }
}

</mosaic_0001>

<llo_original>
// kernel: tpu_custom_call.1
$region0: #{tpu_custom_call.1}
  #allocation0 [shape = 'u32[]', space=smem, size = 0x4, offset = 0x4, fixed_abs, tag = 'smem constant byte address 0x4 - core index']
  #allocation1 [shape = 'u32[144,128]{1,0:T(1,128)}', space=vmem, size = 0x12000, scoped, tag = 'internal scratch']
  %s0 = inlined_call_operand.hbm [shape: f32[2,8,8], index: 0, kind: input, shape index: {}]
  %s1 = inlined_call_operand.vmem [shape: f32[32,8], index: 1, kind: input, shape index: {}]
  %s2 = inlined_call_operand.vmem [shape: f32[32,1], index: 2, kind: input, shape index: {}]
  %s3 = inlined_call_operand.vmem [shape: f32[32,1], index: 3, kind: input, shape index: {}]
  %s4 = inlined_call_operand.vmem [shape: f32[32,1], index: 4, kind: input, shape index: {}]
  %s5 = inlined_call_operand.vmem [shape: f32[3,32,32], index: 5, kind: input, shape index: {}]
  %s6 = inlined_call_operand.vmem [shape: f32[32,1], index: 6, kind: input, shape index: {}]
  %s7 = inlined_call_operand.vmem [shape: f32[32,1], index: 7, kind: input, shape index: {}]
  %s8 = inlined_call_operand.vmem [shape: f32[32,1], index: 8, kind: input, shape index: {}]
  %s9 = inlined_call_operand.vmem [shape: f32[3,32,32], index: 9, kind: input, shape index: {}]
  %s10 = inlined_call_operand.vmem [shape: f32[32,1], index: 10, kind: input, shape index: {}]
  %s11 = inlined_call_operand.vmem [shape: f32[3,32,32], index: 11, kind: input, shape index: {}]
  %s12 = inlined_call_operand.vmem [shape: f32[32,1], index: 12, kind: input, shape index: {}]
  %s13 = inlined_call_operand.vmem [shape: f32[32,1], index: 13, kind: input, shape index: {}]
  %s14 = inlined_call_operand.vmem [shape: f32[32,1], index: 14, kind: input, shape index: {}]
  %s15 = inlined_call_operand.vmem [shape: f32[3,32,32], index: 15, kind: input, shape index: {}]
  %s16 = inlined_call_operand.vmem [shape: f32[32,1], index: 16, kind: input, shape index: {}]
  %s17 = inlined_call_operand.vmem [shape: f32[32,1], index: 17, kind: input, shape index: {}]
  %s18 = inlined_call_operand.vmem [shape: f32[32,1], index: 18, kind: input, shape index: {}]
  %s19 = inlined_call_operand.vmem [shape: f32[3,32,32], index: 19, kind: input, shape index: {}]
  %s20 = inlined_call_operand.vmem [shape: f32[32,1], index: 20, kind: input, shape index: {}]
  %s21 = inlined_call_operand.vmem [shape: f32[3,16,32], index: 21, kind: input, shape index: {}]
  %s22 = inlined_call_operand.vmem [shape: f32[16,1], index: 22, kind: input, shape index: {}]
  %s23 = inlined_call_operand.vmem [shape: f32[4,2,16], index: 23, kind: input, shape index: {}]
  %s24 = inlined_call_operand.vmem [shape: f32[2,1], index: 24, kind: input, shape index: {}]
  %s25 = inlined_call_operand.hbm [shape: f32[2,2,128], index: 25, kind: output, shape index: {}]
  %s26 = sld [smem:[#allocation0]]
  $region137: #{tpu_custom_call.1} parent=0
    _
  %s28 = ssub.s32 1, %s26
  %s29 = scalar_select 0, %s28, %s26
  $region1: #{tpu_custom_call.1} parent=0
    #allocation2 [shape = 'u8[8192]{0}', space=vmem, size = 0x2000, scoped, tag = 'input window, operand 0']
    #allocation3 [shape = 's32[2]{0}', space=sflag, size = 0x8, scoped, tag = 'scoped memory for tpu_custom_call.1']
    #allocation4 [shape = 's32[2]{0}', space=sflag, size = 0x8, scoped, tag = 'scoped memory for tpu_custom_call.1']
    #allocation5 [shape = 'u8[2048]{0}', space=vmem, size = 0x800, scoped, tag = 'output window, operand 0']
    %30 = vsyncpa [#allocation3], 0
    %s31 = scalar_lea.sflag [#allocation3], 1
    %32 = vsyncpa %s31, 0
    %33 = vsyncpa [#allocation4], 0
    %s34 = scalar_lea.sflag [#allocation4], 1
    %35 = vsyncpa %s34, 0
    loop: start=0, step=1, limit=4
    $region2: #{tpu_custom_call.1} parent=1 // loop_pre_header
      _
    $region3: #{tpu_custom_call.1} parent=1 // loop_header
      %s37 = sphi 0, %s41
      %p38 = scmp.ge.s32.totalorder %s37, 4
      %s47 = sphi 0, %s49
      %s50 = sphi 0, %s47
      %s51 = sphi 0, %s50
      %s67 = sphi 0, %s51
      %s71 = sphi 0, %s71
      %s73 = sphi 0, %s71
      %s74 = sphi 0, %s73
      %s88 = sphi 0, %s74
      %s92 = sphi 0, %s92
      %s94 = sphi 0, %s92
      %s95 = sphi 0, %s94
      %s109 = sphi 0, %s95
      %s113 = sphi 0, %s113
      %s115 = sphi 0, %s113
      %s116 = sphi 0, %s115
      %s130 = sphi 0, %s116
      %s134 = sphi 0, %s134
      %s136 = sphi 0, %s134
      %s137 = sphi 0, %s136
      %s151 = sphi 0, %s137
      %s155 = sphi 0, %s155
      %s157 = sphi 0, %s155
      %s158 = sphi 0, %s157
      %s172 = sphi 0, %s158
      %s176 = sphi 0, %s176
      %s178 = sphi 0, %s176
      %s179 = sphi 0, %s178
      %s193 = sphi 0, %s179
      %s197 = sphi 0, %s197
      %s199 = sphi 0, %s197
      %s200 = sphi 0, %s199
      %s214 = sphi 0, %s200
      %s218 = sphi 0, %s218
      %s220 = sphi 0, %s218
      %s221 = sphi 0, %s220
      %s235 = sphi 0, %s221
      %s239 = sphi 0, %s239
      %s241 = sphi 0, %s239
      %s242 = sphi 0, %s241
      %s256 = sphi 0, %s242
      %s260 = sphi 0, %s260
      %s262 = sphi 0, %s260
      %s263 = sphi 0, %s262
      %s277 = sphi 0, %s263
      %s281 = sphi 0, %s281
      %s283 = sphi 0, %s281
      %s284 = sphi 0, %s283
      %s298 = sphi 0, %s284
      %s302 = sphi 0, %s302
      %s304 = sphi 0, %s302
      %s305 = sphi 0, %s304
      %s319 = sphi 0, %s305
      %s323 = sphi 0, %s323
      %s325 = sphi 0, %s323
      %s326 = sphi 0, %s325
      %s340 = sphi 0, %s326
      %s344 = sphi 0, %s344
      %s346 = sphi 0, %s344
      %s347 = sphi 0, %s346
      %s361 = sphi 0, %s347
      %s365 = sphi 0, %s365
      %s367 = sphi 0, %s365
      %s368 = sphi 0, %s367
      %s382 = sphi 0, %s368
      %s386 = sphi 0, %s386
      %s388 = sphi 0, %s386
      %s389 = sphi 0, %s388
      %s403 = sphi 0, %s389
      %s407 = sphi 0, %s407
      %s409 = sphi 0, %s407
      %s410 = sphi 0, %s409
      %s424 = sphi 0, %s410
      %s428 = sphi 0, %s428
      %s430 = sphi 0, %s428
      %s431 = sphi 0, %s430
      %s445 = sphi 0, %s431
      %s449 = sphi 0, %s449
      %s451 = sphi 0, %s449
      %s452 = sphi 0, %s451
      %s466 = sphi 0, %s452
      %s470 = sphi 0, %s470
      %s472 = sphi 0, %s470
      %s473 = sphi 0, %s472
      %s487 = sphi 0, %s473
      %s491 = sphi 0, %s491
      %s493 = sphi 0, %s491
      %s494 = sphi 0, %s493
      %s508 = sphi 0, %s494
      %s512 = sphi 0, %s512
      %s514 = sphi 0, %s512
      %s515 = sphi 0, %s514
      %s529 = sphi 0, %s515
      %s533 = sphi 0, %s533
      %s535 = sphi 0, %s533
      %s536 = sphi 0, %s535
      %s550 = sphi 0, %s536
      %s554 = sphi 0, %s554
      %s556 = sphi 0, %s554
      %s557 = sphi 0, %s556
      %s571 = sphi 0, %s557
      %s577 = sphi 0, %s579
      %s580 = sphi 0, %s577
      %s581 = sphi 0, %s580
      %s597 = sphi 0, %s581
    $region4: #{tpu_custom_call.1} parent=1 // loop_header_branch
      %40 = sbr.rel (%p38) target = $region8
    $region5: #{tpu_custom_call.1} parent=1 // loop_body
      %s42 = ssub.s32 %s37, 1
      %s43 = ssub.s32 %s37, 2
      %s44 = sadd.s32 %s37, 1
      %s45 = ssub.s32 %s37, %s44
      %p46 = scmp.eq.s32.totalorder %s45, 0
      %s48 = sadd.s32 %s47, 1
      %s49 = scalar_select %p46, %s47, %s48
      %p52 = pneg %p46
      %p53 = scmp.eq.s32.totalorder %s37, 1
      %p54 = por %p52, %p53
      %p55 = scmp.ne.s32.totalorder %s47, %s50
      %p56 = scmp.eq.s32.totalorder %s37, 0
      %p57 = por %p55, %p56
      %p58 = scmp.ne.s32.totalorder %s47, %s50
      %p59 = scmp.eq.s32.totalorder %s42, 1
      %p60 = por %p58, %p59
      %p61 = scmp.ne.s32.totalorder %s50, %s51
      %p62 = scmp.eq.s32.totalorder %s42, 0
      %p63 = por %p61, %p62
      %p64 = scmp.ne.s32.totalorder %s50, %s51
      %p65 = scmp.eq.s32.totalorder %s43, 1
      %p66 = por %p64, %p65
      %p68 = scmp.ne.s32.totalorder %s51, %s67
      %p69 = scmp.eq.s32.totalorder %s43, 0
      %p70 = por %p68, %p69
      %s72 = sadd.s32 %s71, 1
      %p75 = scmp.eq.s32.totalorder %s37, 1
      %p76 = scmp.ne.s32.totalorder %s71, %s73
      %p77 = scmp.eq.s32.totalorder %s37, 0
      %p78 = por %p76, %p77
      %p79 = scmp.ne.s32.totalorder %s71, %s73
      %p80 = scmp.eq.s32.totalorder %s42, 1
      %p81 = por %p79, %p80
      %p82 = scmp.ne.s32.totalorder %s73, %s74
      %p83 = scmp.eq.s32.totalorder %s42, 0
      %p84 = por %p82, %p83
      %p85 = scmp.ne.s32.totalorder %s73, %s74
      %p86 = scmp.eq.s32.totalorder %s43, 1
      %p87 = por %p85, %p86
      %p89 = scmp.ne.s32.totalorder %s74, %s88
      %p90 = scmp.eq.s32.totalorder %s43, 0
      %p91 = por %p89, %p90
      %s93 = sadd.s32 %s92, 1
      %p96 = scmp.eq.s32.totalorder %s37, 1
      %p97 = scmp.ne.s32.totalorder %s92, %s94
      %p98 = scmp.eq.s32.totalorder %s37, 0
      %p99 = por %p97, %p98
      %p100 = scmp.ne.s32.totalorder %s92, %s94
      %p101 = scmp.eq.s32.totalorder %s42, 1
      %p102 = por %p100, %p101
      %p103 = scmp.ne.s32.totalorder %s94, %s95
      %p104 = scmp.eq.s32.totalorder %s42, 0
      %p105 = por %p103, %p104
      %p106 = scmp.ne.s32.totalorder %s94, %s95
      %p107 = scmp.eq.s32.totalorder %s43, 1
      %p108 = por %p106, %p107
      %p110 = scmp.ne.s32.totalorder %s95, %s109
      %p111 = scmp.eq.s32.totalorder %s43, 0
      %p112 = por %p110, %p111
      %s114 = sadd.s32 %s113, 1
      %p117 = scmp.eq.s32.totalorder %s37, 1
      %p118 = scmp.ne.s32.totalorder %s113, %s115
      %p119 = scmp.eq.s32.totalorder %s37, 0
      %p120 = por %p118, %p119
      %p121 = scmp.ne.s32.totalorder %s113, %s115
      %p122 = scmp.eq.s32.totalorder %s42, 1
      %p123 = por %p121, %p122
      %p124 = scmp.ne.s32.totalorder %s115, %s116
      %p125 = scmp.eq.s32.totalorder %s42, 0
      %p126 = por %p124, %p125
      %p127 = scmp.ne.s32.totalorder %s115, %s116
      %p128 = scmp.eq.s32.totalorder %s43, 1
      %p129 = por %p127, %p128
      %p131 = scmp.ne.s32.totalorder %s116, %s130
      %p132 = scmp.eq.s32.totalorder %s43, 0
      %p133 = por %p131, %p132
      %s135 = sadd.s32 %s134, 1
      %p138 = scmp.eq.s32.totalorder %s37, 1
      %p139 = scmp.ne.s32.totalorder %s134, %s136
      %p140 = scmp.eq.s32.totalorder %s37, 0
      %p141 = por %p139, %p140
      %p142 = scmp.ne.s32.totalorder %s134, %s136
      %p143 = scmp.eq.s32.totalorder %s42, 1
      %p144 = por %p142, %p143
      %p145 = scmp.ne.s32.totalorder %s136, %s137
      %p146 = scmp.eq.s32.totalorder %s42, 0
      %p147 = por %p145, %p146
      %p148 = scmp.ne.s32.totalorder %s136, %s137
      %p149 = scmp.eq.s32.totalorder %s43, 1
      %p150 = por %p148, %p149
      %p152 = scmp.ne.s32.totalorder %s137, %s151
      %p153 = scmp.eq.s32.totalorder %s43, 0
      %p154 = por %p152, %p153
      %s156 = sadd.s32 %s155, 1
      %p159 = scmp.eq.s32.totalorder %s37, 1
      %p160 = scmp.ne.s32.totalorder %s155, %s157
      %p161 = scmp.eq.s32.totalorder %s37, 0
      %p162 = por %p160, %p161
      %p163 = scmp.ne.s32.totalorder %s155, %s157
      %p164 = scmp.eq.s32.totalorder %s42, 1
      %p165 = por %p163, %p164
      %p166 = scmp.ne.s32.totalorder %s157, %s158
      %p167 = scmp.eq.s32.totalorder %s42, 0
      %p168 = por %p166, %p167
      %p169 = scmp.ne.s32.totalorder %s157, %s158
      %p170 = scmp.eq.s32.totalorder %s43, 1
      %p171 = por %p169, %p170
      %p173 = scmp.ne.s32.totalorder %s158, %s172
      %p174 = scmp.eq.s32.totalorder %s43, 0
      %p175 = por %p173, %p174
      %s177 = sadd.s32 %s176, 1
      %p180 = scmp.eq.s32.totalorder %s37, 1
      %p181 = scmp.ne.s32.totalorder %s176, %s178
      %p182 = scmp.eq.s32.totalorder %s37, 0
      %p183 = por %p181, %p182
      %p184 = scmp.ne.s32.totalorder %s176, %s178
      %p185 = scmp.eq.s32.totalorder %s42, 1
      %p186 = por %p184, %p185
      %p187 = scmp.ne.s32.totalorder %s178, %s179
      %p188 = scmp.eq.s32.totalorder %s42, 0
      %p189 = por %p187, %p188
      %p190 = scmp.ne.s32.totalorder %s178, %s179
      %p191 = scmp.eq.s32.totalorder %s43, 1
      %p192 = por %p190, %p191
      %p194 = scmp.ne.s32.totalorder %s179, %s193
      %p195 = scmp.eq.s32.totalorder %s43, 0
      %p196 = por %p194, %p195
      %s198 = sadd.s32 %s197, 1
      %p201 = scmp.eq.s32.totalorder %s37, 1
      %p202 = scmp.ne.s32.totalorder %s197, %s199
      %p203 = scmp.eq.s32.totalorder %s37, 0
      %p204 = por %p202, %p203
      %p205 = scmp.ne.s32.totalorder %s197, %s199
      %p206 = scmp.eq.s32.totalorder %s42, 1
      %p207 = por %p205, %p206
      %p208 = scmp.ne.s32.totalorder %s199, %s200
      %p209 = scmp.eq.s32.totalorder %s42, 0
      %p210 = por %p208, %p209
      %p211 = scmp.ne.s32.totalorder %s199, %s200
      %p212 = scmp.eq.s32.totalorder %s43, 1
      %p213 = por %p211, %p212
      %p215 = scmp.ne.s32.totalorder %s200, %s214
      %p216 = scmp.eq.s32.totalorder %s43, 0
      %p217 = por %p215, %p216
      %s219 = sadd.s32 %s218, 1
      %p222 = scmp.eq.s32.totalorder %s37, 1
      %p223 = scmp.ne.s32.totalorder %s218, %s220
      %p224 = scmp.eq.s32.totalorder %s37, 0
      %p225 = por %p223, %p224
      %p226 = scmp.ne.s32.totalorder %s218, %s220
      %p227 = scmp.eq.s32.totalorder %s42, 1
      %p228 = por %p226, %p227
      %p229 = scmp.ne.s32.totalorder %s220, %s221
      %p230 = scmp.eq.s32.totalorder %s42, 0
      %p231 = por %p229, %p230
      %p232 = scmp.ne.s32.totalorder %s220, %s221
      %p233 = scmp.eq.s32.totalorder %s43, 1
      %p234 = por %p232, %p233
      %p236 = scmp.ne.s32.totalorder %s221, %s235
      %p237 = scmp.eq.s32.totalorder %s43, 0
      %p238 = por %p236, %p237
      %s240 = sadd.s32 %s239, 1
      %p243 = scmp.eq.s32.totalorder %s37, 1
      %p244 = scmp.ne.s32.totalorder %s239, %s241
      %p245 = scmp.eq.s32.totalorder %s37, 0
      %p246 = por %p244, %p245
      %p247 = scmp.ne.s32.totalorder %s239, %s241
      %p248 = scmp.eq.s32.totalorder %s42, 1
      %p249 = por %p247, %p248
      %p250 = scmp.ne.s32.totalorder %s241, %s242
      %p251 = scmp.eq.s32.totalorder %s42, 0
      %p252 = por %p250, %p251
      %p253 = scmp.ne.s32.totalorder %s241, %s242
      %p254 = scmp.eq.s32.totalorder %s43, 1
      %p255 = por %p253, %p254
      %p257 = scmp.ne.s32.totalorder %s242, %s256
      %p258 = scmp.eq.s32.totalorder %s43, 0
      %p259 = por %p257, %p258
      %s261 = sadd.s32 %s260, 1
      %p264 = scmp.eq.s32.totalorder %s37, 1
      %p265 = scmp.ne.s32.totalorder %s260, %s262
      %p266 = scmp.eq.s32.totalorder %s37, 0
      %p267 = por %p265, %p266
      %p268 = scmp.ne.s32.totalorder %s260, %s262
      %p269 = scmp.eq.s32.totalorder %s42, 1
      %p270 = por %p268, %p269
      %p271 = scmp.ne.s32.totalorder %s262, %s263
      %p272 = scmp.eq.s32.totalorder %s42, 0
      %p273 = por %p271, %p272
      %p274 = scmp.ne.s32.totalorder %s262, %s263
      %p275 = scmp.eq.s32.totalorder %s43, 1
      %p276 = por %p274, %p275
      %p278 = scmp.ne.s32.totalorder %s263, %s277
      %p279 = scmp.eq.s32.totalorder %s43, 0
      %p280 = por %p278, %p279
      %s282 = sadd.s32 %s281, 1
      %p285 = scmp.eq.s32.totalorder %s37, 1
      %p286 = scmp.ne.s32.totalorder %s281, %s283
      %p287 = scmp.eq.s32.totalorder %s37, 0
      %p288 = por %p286, %p287
      %p289 = scmp.ne.s32.totalorder %s281, %s283
      %p290 = scmp.eq.s32.totalorder %s42, 1
      %p291 = por %p289, %p290
      %p292 = scmp.ne.s32.totalorder %s283, %s284
      %p293 = scmp.eq.s32.totalorder %s42, 0
      %p294 = por %p292, %p293
      %p295 = scmp.ne.s32.totalorder %s283, %s284
      %p296 = scmp.eq.s32.totalorder %s43, 1
      %p297 = por %p295, %p296
      %p299 = scmp.ne.s32.totalorder %s284, %s298
      %p300 = scmp.eq.s32.totalorder %s43, 0
      %p301 = por %p299, %p300
      %s303 = sadd.s32 %s302, 1
      %p306 = scmp.eq.s32.totalorder %s37, 1
      %p307 = scmp.ne.s32.totalorder %s302, %s304
      %p308 = scmp.eq.s32.totalorder %s37, 0
      %p309 = por %p307, %p308
      %p310 = scmp.ne.s32.totalorder %s302, %s304
      %p311 = scmp.eq.s32.totalorder %s42, 1
      %p312 = por %p310, %p311
      %p313 = scmp.ne.s32.totalorder %s304, %s305
      %p314 = scmp.eq.s32.totalorder %s42, 0
      %p315 = por %p313, %p314
      %p316 = scmp.ne.s32.totalorder %s304, %s305
      %p317 = scmp.eq.s32.totalorder %s43, 1
      %p318 = por %p316, %p317
      %p320 = scmp.ne.s32.totalorder %s305, %s319
      %p321 = scmp.eq.s32.totalorder %s43, 0
      %p322 = por %p320, %p321
      %s324 = sadd.s32 %s323, 1
      %p327 = scmp.eq.s32.totalorder %s37, 1
      %p328 = scmp.ne.s32.totalorder %s323, %s325
      %p329 = scmp.eq.s32.totalorder %s37, 0
      %p330 = por %p328, %p329
      %p331 = scmp.ne.s32.totalorder %s323, %s325
      %p332 = scmp.eq.s32.totalorder %s42, 1
      %p333 = por %p331, %p332
      %p334 = scmp.ne.s32.totalorder %s325, %s326
      %p335 = scmp.eq.s32.totalorder %s42, 0
      %p336 = por %p334, %p335
      %p337 = scmp.ne.s32.totalorder %s325, %s326
      %p338 = scmp.eq.s32.totalorder %s43, 1
      %p339 = por %p337, %p338
      %p341 = scmp.ne.s32.totalorder %s326, %s340
      %p342 = scmp.eq.s32.totalorder %s43, 0
      %p343 = por %p341, %p342
      %s345 = sadd.s32 %s344, 1
      %p348 = scmp.eq.s32.totalorder %s37, 1
      %p349 = scmp.ne.s32.totalorder %s344, %s346
      %p350 = scmp.eq.s32.totalorder %s37, 0
      %p351 = por %p349, %p350
      %p352 = scmp.ne.s32.totalorder %s344, %s346
      %p353 = scmp.eq.s32.totalorder %s42, 1
      %p354 = por %p352, %p353
      %p355 = scmp.ne.s32.totalorder %s346, %s347
      %p356 = scmp.eq.s32.totalorder %s42, 0
      %p357 = por %p355, %p356
      %p358 = scmp.ne.s32.totalorder %s346, %s347
      %p359 = scmp.eq.s32.totalorder %s43, 1
      %p360 = por %p358, %p359
      %p362 = scmp.ne.s32.totalorder %s347, %s361
      %p363 = scmp.eq.s32.totalorder %s43, 0
      %p364 = por %p362, %p363
      %s366 = sadd.s32 %s365, 1
      %p369 = scmp.eq.s32.totalorder %s37, 1
      %p370 = scmp.ne.s32.totalorder %s365, %s367
      %p371 = scmp.eq.s32.totalorder %s37, 0
      %p372 = por %p370, %p371
      %p373 = scmp.ne.s32.totalorder %s365, %s367
      %p374 = scmp.eq.s32.totalorder %s42, 1
      %p375 = por %p373, %p374
      %p376 = scmp.ne.s32.totalorder %s367, %s368
      %p377 = scmp.eq.s32.totalorder %s42, 0
      %p378 = por %p376, %p377
      %p379 = scmp.ne.s32.totalorder %s367, %s368
      %p380 = scmp.eq.s32.totalorder %s43, 1
      %p381 = por %p379, %p380
      %p383 = scmp.ne.s32.totalorder %s368, %s382
      %p384 = scmp.eq.s32.totalorder %s43, 0
      %p385 = por %p383, %p384
      %s387 = sadd.s32 %s386, 1
      %p390 = scmp.eq.s32.totalorder %s37, 1
      %p391 = scmp.ne.s32.totalorder %s386, %s388
      %p392 = scmp.eq.s32.totalorder %s37, 0
      %p393 = por %p391, %p392
      %p394 = scmp.ne.s32.totalorder %s386, %s388
      %p395 = scmp.eq.s32.totalorder %s42, 1
      %p396 = por %p394, %p395
      %p397 = scmp.ne.s32.totalorder %s388, %s389
      %p398 = scmp.eq.s32.totalorder %s42, 0
      %p399 = por %p397, %p398
      %p400 = scmp.ne.s32.totalorder %s388, %s389
      %p401 = scmp.eq.s32.totalorder %s43, 1
      %p402 = por %p400, %p401
      %p404 = scmp.ne.s32.totalorder %s389, %s403
      %p405 = scmp.eq.s32.totalorder %s43, 0
      %p406 = por %p404, %p405
      %s408 = sadd.s32 %s407, 1
      %p411 = scmp.eq.s32.totalorder %s37, 1
      %p412 = scmp.ne.s32.totalorder %s407, %s409
      %p413 = scmp.eq.s32.totalorder %s37, 0
      %p414 = por %p412, %p413
      %p415 = scmp.ne.s32.totalorder %s407, %s409
      %p416 = scmp.eq.s32.totalorder %s42, 1
      %p417 = por %p415, %p416
      %p418 = scmp.ne.s32.totalorder %s409, %s410
      %p419 = scmp.eq.s32.totalorder %s42, 0
      %p420 = por %p418, %p419
      %p421 = scmp.ne.s32.totalorder %s409, %s410
      %p422 = scmp.eq.s32.totalorder %s43, 1
      %p423 = por %p421, %p422
      %p425 = scmp.ne.s32.totalorder %s410, %s424
      %p426 = scmp.eq.s32.totalorder %s43, 0
      %p427 = por %p425, %p426
      %s429 = sadd.s32 %s428, 1
      %p432 = scmp.eq.s32.totalorder %s37, 1
      %p433 = scmp.ne.s32.totalorder %s428, %s430
      %p434 = scmp.eq.s32.totalorder %s37, 0
      %p435 = por %p433, %p434
      %p436 = scmp.ne.s32.totalorder %s428, %s430
      %p437 = scmp.eq.s32.totalorder %s42, 1
      %p438 = por %p436, %p437
      %p439 = scmp.ne.s32.totalorder %s430, %s431
      %p440 = scmp.eq.s32.totalorder %s42, 0
      %p441 = por %p439, %p440
      %p442 = scmp.ne.s32.totalorder %s430, %s431
      %p443 = scmp.eq.s32.totalorder %s43, 1
      %p444 = por %p442, %p443
      %p446 = scmp.ne.s32.totalorder %s431, %s445
      %p447 = scmp.eq.s32.totalorder %s43, 0
      %p448 = por %p446, %p447
      %s450 = sadd.s32 %s449, 1
      %p453 = scmp.eq.s32.totalorder %s37, 1
      %p454 = scmp.ne.s32.totalorder %s449, %s451
      %p455 = scmp.eq.s32.totalorder %s37, 0
      %p456 = por %p454, %p455
      %p457 = scmp.ne.s32.totalorder %s449, %s451
      %p458 = scmp.eq.s32.totalorder %s42, 1
      %p459 = por %p457, %p458
      %p460 = scmp.ne.s32.totalorder %s451, %s452
      %p461 = scmp.eq.s32.totalorder %s42, 0
      %p462 = por %p460, %p461
      %p463 = scmp.ne.s32.totalorder %s451, %s452
      %p464 = scmp.eq.s32.totalorder %s43, 1
      %p465 = por %p463, %p464
      %p467 = scmp.ne.s32.totalorder %s452, %s466
      %p468 = scmp.eq.s32.totalorder %s43, 0
      %p469 = por %p467, %p468
      %s471 = sadd.s32 %s470, 1
      %p474 = scmp.eq.s32.totalorder %s37, 1
      %p475 = scmp.ne.s32.totalorder %s470, %s472
      %p476 = scmp.eq.s32.totalorder %s37, 0
      %p477 = por %p475, %p476
      %p478 = scmp.ne.s32.totalorder %s470, %s472
      %p479 = scmp.eq.s32.totalorder %s42, 1
      %p480 = por %p478, %p479
      %p481 = scmp.ne.s32.totalorder %s472, %s473
      %p482 = scmp.eq.s32.totalorder %s42, 0
      %p483 = por %p481, %p482
      %p484 = scmp.ne.s32.totalorder %s472, %s473
      %p485 = scmp.eq.s32.totalorder %s43, 1
      %p486 = por %p484, %p485
      %p488 = scmp.ne.s32.totalorder %s473, %s487
      %p489 = scmp.eq.s32.totalorder %s43, 0
      %p490 = por %p488, %p489
      %s492 = sadd.s32 %s491, 1
      %p495 = scmp.eq.s32.totalorder %s37, 1
      %p496 = scmp.ne.s32.totalorder %s491, %s493
      %p497 = scmp.eq.s32.totalorder %s37, 0
      %p498 = por %p496, %p497
      %p499 = scmp.ne.s32.totalorder %s491, %s493
      %p500 = scmp.eq.s32.totalorder %s42, 1
      %p501 = por %p499, %p500
      %p502 = scmp.ne.s32.totalorder %s493, %s494
      %p503 = scmp.eq.s32.totalorder %s42, 0
      %p504 = por %p502, %p503
      %p505 = scmp.ne.s32.totalorder %s493, %s494
      %p506 = scmp.eq.s32.totalorder %s43, 1
      %p507 = por %p505, %p506
      %p509 = scmp.ne.s32.totalorder %s494, %s508
      %p510 = scmp.eq.s32.totalorder %s43, 0
      %p511 = por %p509, %p510
      %s513 = sadd.s32 %s512, 1
      %p516 = scmp.eq.s32.totalorder %s37, 1
      %p517 = scmp.ne.s32.totalorder %s512, %s514
      %p518 = scmp.eq.s32.totalorder %s37, 0
      %p519 = por %p517, %p518
      %p520 = scmp.ne.s32.totalorder %s512, %s514
      %p521 = scmp.eq.s32.totalorder %s42, 1
      %p522 = por %p520, %p521
      %p523 = scmp.ne.s32.totalorder %s514, %s515
      %p524 = scmp.eq.s32.totalorder %s42, 0
      %p525 = por %p523, %p524
      %p526 = scmp.ne.s32.totalorder %s514, %s515
      %p527 = scmp.eq.s32.totalorder %s43, 1
      %p528 = por %p526, %p527
      %p530 = scmp.ne.s32.totalorder %s515, %s529
      %p531 = scmp.eq.s32.totalorder %s43, 0
      %p532 = por %p530, %p531
      %s534 = sadd.s32 %s533, 1
      %p537 = scmp.eq.s32.totalorder %s37, 1
      %p538 = scmp.ne.s32.totalorder %s533, %s535
      %p539 = scmp.eq.s32.totalorder %s37, 0
      %p540 = por %p538, %p539
      %p541 = scmp.ne.s32.totalorder %s533, %s535
      %p542 = scmp.eq.s32.totalorder %s42, 1
      %p543 = por %p541, %p542
      %p544 = scmp.ne.s32.totalorder %s535, %s536
      %p545 = scmp.eq.s32.totalorder %s42, 0
      %p546 = por %p544, %p545
      %p547 = scmp.ne.s32.totalorder %s535, %s536
      %p548 = scmp.eq.s32.totalorder %s43, 1
      %p549 = por %p547, %p548
      %p551 = scmp.ne.s32.totalorder %s536, %s550
      %p552 = scmp.eq.s32.totalorder %s43, 0
      %p553 = por %p551, %p552
      %s555 = sadd.s32 %s554, 1
      %p558 = scmp.eq.s32.totalorder %s37, 1
      %p559 = scmp.ne.s32.totalorder %s554, %s556
      %p560 = scmp.eq.s32.totalorder %s37, 0
      %p561 = por %p559, %p560
      %p562 = scmp.ne.s32.totalorder %s554, %s556
      %p563 = scmp.eq.s32.totalorder %s42, 1
      %p564 = por %p562, %p563
      %p565 = scmp.ne.s32.totalorder %s556, %s557
      %p566 = scmp.eq.s32.totalorder %s42, 0
      %p567 = por %p565, %p566
      %p568 = scmp.ne.s32.totalorder %s556, %s557
      %p569 = scmp.eq.s32.totalorder %s43, 1
      %p570 = por %p568, %p569
      %p572 = scmp.ne.s32.totalorder %s557, %s571
      %p573 = scmp.eq.s32.totalorder %s43, 0
      %p574 = por %p572, %p573
      %s575 = ssub.s32 %s37, %s44
      %p576 = scmp.eq.s32.totalorder %s575, 0
      %s578 = sadd.s32 %s577, 1
      %s579 = scalar_select %p576, %s577, %s578
      %p582 = pneg %p576
      %p583 = scmp.eq.s32.totalorder %s37, 1
      %p584 = por %p582, %p583
      %p585 = scmp.ne.s32.totalorder %s577, %s580
      %p586 = scmp.eq.s32.totalorder %s37, 0
      %p587 = por %p585, %p586
      %p588 = scmp.ne.s32.totalorder %s577, %s580
      %p589 = scmp.eq.s32.totalorder %s42, 1
      %p590 = por %p588, %p589
      %p591 = scmp.ne.s32.totalorder %s580, %s581
      %p592 = scmp.eq.s32.totalorder %s42, 0
      %p593 = por %p591, %p592
      %p594 = scmp.ne.s32.totalorder %s580, %s581
      %p595 = scmp.eq.s32.totalorder %s43, 1
      %p596 = por %p594, %p595
      %p598 = scmp.ne.s32.totalorder %s581, %s597
      %p599 = scmp.eq.s32.totalorder %s43, 0
      %p600 = por %p598, %p599
      %p601 = scmp.le.s32.totalorder 1, %s37
      %p602 = scmp.lt.s32.totalorder %s37, 3
      %p603 = pnand %p601, %p602
      %p604 = pneg %p603
      // Predicated region
      $region9: #{tpu_custom_call.1} parent=5 // pred_check
        _
      $region10: #{tpu_custom_call.1} parent=5 // pred_check_branch
        %606 = sbr.rel (%p603) target = $region12
      $region11: #{tpu_custom_call.1} parent=5 // pred_region
        %s607 = ssub.s32 %s37, 1
        // Predicated region
        $region13: #{tpu_custom_call.1} parent=11 // pred_check
          %p608 = pneg %p84
        $region14: #{tpu_custom_call.1} parent=11 // pred_check_branch
          %610 = sbr.rel (%p608) target = $region16
        $region15: #{tpu_custom_call.1} parent=11 // pred_region
          _
        $region16: #{tpu_custom_call.1} parent=11 // pred_fallthru
          _
        // Predicated region
        $region17: #{tpu_custom_call.1} parent=11 // pred_check
          %p611 = pneg %p105
        $region18: #{tpu_custom_call.1} parent=11 // pred_check_branch
          %613 = sbr.rel (%p611) target = $region20
        $region19: #{tpu_custom_call.1} parent=11 // pred_region
          _
        $region20: #{tpu_custom_call.1} parent=11 // pred_fallthru
          _
        // Predicated region
        $region21: #{tpu_custom_call.1} parent=11 // pred_check
          %p614 = pneg %p126
        $region22: #{tpu_custom_call.1} parent=11 // pred_check_branch
          %616 = sbr.rel (%p614) target = $region24
        $region23: #{tpu_custom_call.1} parent=11 // pred_region
          _
        $region24: #{tpu_custom_call.1} parent=11 // pred_fallthru
          _
        // Predicated region
        $region25: #{tpu_custom_call.1} parent=11 // pred_check
          %p617 = pneg %p147
        $region26: #{tpu_custom_call.1} parent=11 // pred_check_branch
          %619 = sbr.rel (%p617) target = $region28
        $region27: #{tpu_custom_call.1} parent=11 // pred_region
          _
        $region28: #{tpu_custom_call.1} parent=11 // pred_fallthru
          _
        // Predicated region
        $region29: #{tpu_custom_call.1} parent=11 // pred_check
          %p620 = pneg %p168
        $region30: #{tpu_custom_call.1} parent=11 // pred_check_branch
          %622 = sbr.rel (%p620) target = $region32
        $region31: #{tpu_custom_call.1} parent=11 // pred_region
          _
        $region32: #{tpu_custom_call.1} parent=11 // pred_fallthru
          _
        // Predicated region
        $region33: #{tpu_custom_call.1} parent=11 // pred_check
          %p623 = pneg %p189
        $region34: #{tpu_custom_call.1} parent=11 // pred_check_branch
          %625 = sbr.rel (%p623) target = $region36
        $region35: #{tpu_custom_call.1} parent=11 // pred_region
          _
        $region36: #{tpu_custom_call.1} parent=11 // pred_fallthru
          _
        // Predicated region
        $region37: #{tpu_custom_call.1} parent=11 // pred_check
          %p626 = pneg %p210
        $region38: #{tpu_custom_call.1} parent=11 // pred_check_branch
          %628 = sbr.rel (%p626) target = $region40
        $region39: #{tpu_custom_call.1} parent=11 // pred_region
          _
        $region40: #{tpu_custom_call.1} parent=11 // pred_fallthru
          _
        // Predicated region
        $region41: #{tpu_custom_call.1} parent=11 // pred_check
          %p629 = pneg %p231
        $region42: #{tpu_custom_call.1} parent=11 // pred_check_branch
          %631 = sbr.rel (%p629) target = $region44
        $region43: #{tpu_custom_call.1} parent=11 // pred_region
          _
        $region44: #{tpu_custom_call.1} parent=11 // pred_fallthru
          _
        // Predicated region
        $region45: #{tpu_custom_call.1} parent=11 // pred_check
          %p632 = pneg %p252
        $region46: #{tpu_custom_call.1} parent=11 // pred_check_branch
          %634 = sbr.rel (%p632) target = $region48
        $region47: #{tpu_custom_call.1} parent=11 // pred_region
          _
        $region48: #{tpu_custom_call.1} parent=11 // pred_fallthru
          _
        // Predicated region
        $region49: #{tpu_custom_call.1} parent=11 // pred_check
          %p635 = pneg %p273
        $region50: #{tpu_custom_call.1} parent=11 // pred_check_branch
          %637 = sbr.rel (%p635) target = $region52
        $region51: #{tpu_custom_call.1} parent=11 // pred_region
          _
        $region52: #{tpu_custom_call.1} parent=11 // pred_fallthru
          _
        // Predicated region
        $region53: #{tpu_custom_call.1} parent=11 // pred_check
          %p638 = pneg %p294
        $region54: #{tpu_custom_call.1} parent=11 // pred_check_branch
          %640 = sbr.rel (%p638) target = $region56
        $region55: #{tpu_custom_call.1} parent=11 // pred_region
          _
        $region56: #{tpu_custom_call.1} parent=11 // pred_fallthru
          _
        // Predicated region
        $region57: #{tpu_custom_call.1} parent=11 // pred_check
          %p641 = pneg %p315
        $region58: #{tpu_custom_call.1} parent=11 // pred_check_branch
          %643 = sbr.rel (%p641) target = $region60
        $region59: #{tpu_custom_call.1} parent=11 // pred_region
          _
        $region60: #{tpu_custom_call.1} parent=11 // pred_fallthru
          _
        // Predicated region
        $region61: #{tpu_custom_call.1} parent=11 // pred_check
          %p644 = pneg %p336
        $region62: #{tpu_custom_call.1} parent=11 // pred_check_branch
          %646 = sbr.rel (%p644) target = $region64
        $region63: #{tpu_custom_call.1} parent=11 // pred_region
          _
        $region64: #{tpu_custom_call.1} parent=11 // pred_fallthru
          _
        // Predicated region
        $region65: #{tpu_custom_call.1} parent=11 // pred_check
          %p647 = pneg %p357
        $region66: #{tpu_custom_call.1} parent=11 // pred_check_branch
          %649 = sbr.rel (%p647) target = $region68
        $region67: #{tpu_custom_call.1} parent=11 // pred_region
          _
        $region68: #{tpu_custom_call.1} parent=11 // pred_fallthru
          _
        // Predicated region
        $region69: #{tpu_custom_call.1} parent=11 // pred_check
          %p650 = pneg %p378
        $region70: #{tpu_custom_call.1} parent=11 // pred_check_branch
          %652 = sbr.rel (%p650) target = $region72
        $region71: #{tpu_custom_call.1} parent=11 // pred_region
          _
        $region72: #{tpu_custom_call.1} parent=11 // pred_fallthru
          _
        // Predicated region
        $region73: #{tpu_custom_call.1} parent=11 // pred_check
          %p653 = pneg %p399
        $region74: #{tpu_custom_call.1} parent=11 // pred_check_branch
          %655 = sbr.rel (%p653) target = $region76
        $region75: #{tpu_custom_call.1} parent=11 // pred_region
          _
        $region76: #{tpu_custom_call.1} parent=11 // pred_fallthru
          _
        // Predicated region
        $region77: #{tpu_custom_call.1} parent=11 // pred_check
          %p656 = pneg %p420
        $region78: #{tpu_custom_call.1} parent=11 // pred_check_branch
          %658 = sbr.rel (%p656) target = $region80
        $region79: #{tpu_custom_call.1} parent=11 // pred_region
          _
        $region80: #{tpu_custom_call.1} parent=11 // pred_fallthru
          _
        // Predicated region
        $region81: #{tpu_custom_call.1} parent=11 // pred_check
          %p659 = pneg %p441
        $region82: #{tpu_custom_call.1} parent=11 // pred_check_branch
          %661 = sbr.rel (%p659) target = $region84
        $region83: #{tpu_custom_call.1} parent=11 // pred_region
          _
        $region84: #{tpu_custom_call.1} parent=11 // pred_fallthru
          _
        // Predicated region
        $region85: #{tpu_custom_call.1} parent=11 // pred_check
          %p662 = pneg %p462
        $region86: #{tpu_custom_call.1} parent=11 // pred_check_branch
          %664 = sbr.rel (%p662) target = $region88
        $region87: #{tpu_custom_call.1} parent=11 // pred_region
          _
        $region88: #{tpu_custom_call.1} parent=11 // pred_fallthru
          _
        // Predicated region
        $region89: #{tpu_custom_call.1} parent=11 // pred_check
          %p665 = pneg %p483
        $region90: #{tpu_custom_call.1} parent=11 // pred_check_branch
          %667 = sbr.rel (%p665) target = $region92
        $region91: #{tpu_custom_call.1} parent=11 // pred_region
          _
        $region92: #{tpu_custom_call.1} parent=11 // pred_fallthru
          _
        // Predicated region
        $region93: #{tpu_custom_call.1} parent=11 // pred_check
          %p668 = pneg %p504
        $region94: #{tpu_custom_call.1} parent=11 // pred_check_branch
          %670 = sbr.rel (%p668) target = $region96
        $region95: #{tpu_custom_call.1} parent=11 // pred_region
          _
        $region96: #{tpu_custom_call.1} parent=11 // pred_fallthru
          _
        // Predicated region
        $region97: #{tpu_custom_call.1} parent=11 // pred_check
          %p671 = pneg %p525
        $region98: #{tpu_custom_call.1} parent=11 // pred_check_branch
          %673 = sbr.rel (%p671) target = $region100
        $region99: #{tpu_custom_call.1} parent=11 // pred_region
          _
        $region100: #{tpu_custom_call.1} parent=11 // pred_fallthru
          _
        // Predicated region
        $region101: #{tpu_custom_call.1} parent=11 // pred_check
          %p674 = pneg %p546
        $region102: #{tpu_custom_call.1} parent=11 // pred_check_branch
          %676 = sbr.rel (%p674) target = $region104
        $region103: #{tpu_custom_call.1} parent=11 // pred_region
          _
        $region104: #{tpu_custom_call.1} parent=11 // pred_fallthru
          _
        // Predicated region
        $region105: #{tpu_custom_call.1} parent=11 // pred_check
          %p677 = pneg %p567
        $region106: #{tpu_custom_call.1} parent=11 // pred_check_branch
          %679 = sbr.rel (%p677) target = $region108
        $region107: #{tpu_custom_call.1} parent=11 // pred_region
          _
        $region108: #{tpu_custom_call.1} parent=11 // pred_fallthru
          _
      $region12: #{tpu_custom_call.1} parent=5 // pred_fallthru
        _
      %p680 = scmp.lt.s32.totalorder %s37, 2
      // Predicated region
      $region109: #{tpu_custom_call.1} parent=5 // pred_check
        %p681 = pneg %p680
      $region110: #{tpu_custom_call.1} parent=5 // pred_check_branch
        %683 = sbr.rel (%p681) target = $region112
      $region111: #{tpu_custom_call.1} parent=5 // pred_region
        // Predicated region
        $region113: #{tpu_custom_call.1} parent=111 // pred_check
          %p684 = pneg %p57
        $region114: #{tpu_custom_call.1} parent=111 // pred_check_branch
          %686 = sbr.rel (%p684) target = $region116
        $region115: #{tpu_custom_call.1} parent=111 // pred_region
          %s687 = sand.u32 %s47, 1
          %s688 = scalar_lea.sflag [#allocation3], %s687
          %s689 = sand.u32 %s47, 1
          %s690 = smul.addr %s689, 8
          %s691 = scalar_lea.vmem [#allocation2], %s690
          %s693 = ssub.s32 128, 128
          %694 = vsyncadd %s688, %s693
          %s695 = smul.addr %s37, 128
          %s696 = scalar_lea.hbm %s0, %s695
          %s698 = sshll.u32 %s691, 4
          %s699 = int_to_ptr.vmem [resolvable:$true] %s698
          %701 = dma.hbm_to_vmem [thread:$0]  %s696, 128, %s699, %s688
        $region116: #{tpu_custom_call.1} parent=111 // pred_fallthru
          _
      $region112: #{tpu_custom_call.1} parent=5 // pred_fallthru
        _
      %p702 = scmp.le.s32.totalorder 1, %s37
      %p703 = scmp.lt.s32.totalorder %s37, 3
      %p704 = pnand %p702, %p703
      %p705 = pneg %p704
      // Predicated region
      $region117: #{tpu_custom_call.1} parent=5 // pred_check
        _
      $region118: #{tpu_custom_call.1} parent=5 // pred_check_branch
        %707 = sbr.rel (%p704) target = $region120
      $region119: #{tpu_custom_call.1} parent=5 // pred_region
        %s708 = ssub.s32 %s37, 1
        %s709 = sand.u32 %s50, 1
        %s710 = scalar_lea.sflag [#allocation3], %s709
        %s711 = sand.u32 %s50, 1
        %s712 = smul.addr %s711, 8
        %s713 = scalar_lea.vmem [#allocation2], %s712
        // Predicated region
        $region121: #{tpu_custom_call.1} parent=119 // pred_check
          %p714 = pneg %p63
        $region122: #{tpu_custom_call.1} parent=119 // pred_check_branch
          %716 = sbr.rel (%p714) target = $region124
        $region123: #{tpu_custom_call.1} parent=119 // pred_region
          %717 = dma.done %s710, 128
        $region124: #{tpu_custom_call.1} parent=119 // pred_fallthru
          _
        %s718 = sand.u32 %s50, 1
        %s719 = scalar_lea.sflag [#allocation3], %s718
        %s720 = sand.u32 %s50, 1
        %s721 = smul.addr %s720, 8
        %s722 = scalar_lea.vmem [#allocation2], %s721
        %p723 = pneg %p63
        %p724 = pneg %p60
        %p725 = pneg %p84
        %p726 = pneg %p81
        %p727 = pneg %p105
        %p728 = pneg %p102
        %p729 = pneg %p126
        %p730 = pneg %p123
        %p731 = pneg %p147
        %p732 = pneg %p144
        %p733 = pneg %p168
        %p734 = pneg %p165
        %p735 = pneg %p189
        %p736 = pneg %p186
        %p737 = pneg %p210
        %p738 = pneg %p207
        %p739 = pneg %p231
        %p740 = pneg %p228
        %p741 = pneg %p252
        %p742 = pneg %p249
        %p743 = pneg %p273
        %p744 = pneg %p270
        %p745 = pneg %p294
        %p746 = pneg %p291
        %p747 = pneg %p315
        %p748 = pneg %p312
        %p749 = pneg %p336
        %p750 = pneg %p333
        %p751 = pneg %p357
        %p752 = pneg %p354
        %p753 = pneg %p378
        %p754 = pneg %p375
        %p755 = pneg %p399
        %p756 = pneg %p396
        %p757 = pneg %p420
        %p758 = pneg %p417
        %p759 = pneg %p441
        %p760 = pneg %p438
        %p761 = pneg %p462
        %p762 = pneg %p459
        %p763 = pneg %p483
        %p764 = pneg %p480
        %p765 = pneg %p504
        %p766 = pneg %p501
        %p767 = pneg %p525
        %p768 = pneg %p522
        %p769 = pneg %p546
        %p770 = pneg %p543
        %p771 = pneg %p567
        %p772 = pneg %p564
        %p773 = pneg %p593
        %p774 = pneg %p590
        %s775 = sand.u32 %s580, 1
        %s776 = scalar_lea.sflag [#allocation4], %s775
        %s777 = sand.u32 %s580, 1
        %s778 = smul.addr %s777, 2
        %s779 = scalar_lea.vmem [#allocation5], %s778
        %v780 = vld [vmem:[%s713] sm:$0xff]
        %v781 = vld [vmem:[%s1] sm:$0xff]
        %v782 = vld [vmem:[%s1 + $0x8] sm:$0xff]
        %v783 = vld [vmem:[%s1 + $0x10] sm:$0xff]
        %v784 = vld [vmem:[%s1 + $0x18] sm:$0xff]
        %v785 = vld [vmem:[%s2] sm:$0xff]
        %v786 = vld [vmem:[%s2 + $0x8] sm:$0xff]
        %v787 = vld [vmem:[%s2 + $0x10] sm:$0xff]
        %v788 = vld [vmem:[%s2 + $0x18] sm:$0xff]
        %790 = vset.pattern.permute.xlu0 0
        %791 = vperm.xlu0 %790, %v785
        %v792 = vpop.permute.xlu0 %791
        %795 = vset.pattern.permute.xlu0 0
        %796 = vperm.xlu0 %795, %v786
        %v797 = vpop.permute.xlu0 %796
        %800 = vset.pattern.permute.xlu0 0
        %801 = vperm.xlu0 %800, %v787
        %v802 = vpop.permute.xlu0 %801
        %805 = vset.pattern.permute.xlu0 0
        %806 = vperm.xlu0 %805, %v788
        %v807 = vpop.permute.xlu0 %806
        %vm809 = vcmask 64512
        %v811 = vsel %vm809, %v781, 0
        %v814 = vsel %vm809, %v782, 0
        %v817 = vsel %vm809, %v783, 0
        %v820 = vsel %vm809, %v784, 0
        %822 = vmatprep.subr.mxu0 0.0
        %823 = vmatpush1.msra.mxu0 0.0
        %824 = vmatprep.subr.mxu0 0.0
        %825 = vmatpush1.msra.mxu0 0.0
        %826 = vmatprep.subr.mxu0 0.0
        %827 = vmatpush1.msra.mxu0 0.0
        %828 = vmatprep.subr.mxu0 0.0
        %829 = vmatpush1.msra.mxu0 0.0
        %830 = vmatprep.subr.mxu0 0.0
        %831 = vmatpush1.msra.mxu0 0.0
        %832 = vmatprep.subr.mxu0 0.0
        %833 = vmatpush1.msra.mxu0 0.0
        %834 = vmatprep.subr.mxu0 0.0
        %835 = vmatpush1.msra.mxu0 0.0
        %836 = vmatprep.subr.mxu0 0.0
        %837 = vmatpush1.msra.mxu0 0.0
        %838 = vmatprep.subr.mxu0 0.0
        %839 = vmatpush1.msra.mxu0 0.0
        %840 = vmatprep.subr.mxu0 0.0
        %841 = vmatpush1.msra.mxu0 0.0
        %842 = vmatprep.subr.mxu0 0.0
        %843 = vmatpush1.msra.mxu0 0.0
        %844 = vmatprep.subr.mxu0 0.0
        %845 = vmatpush1.msra.mxu0 0.0
        %846 = vmatprep.subr.mxu0 0.0
        %847 = vmatpush1.msra.mxu0 0.0
        %848 = vmatprep.subr.mxu0 0.0
        %849 = vmatpush1.msra.mxu0 0.0
        %850 = vmatprep.subr.mxu0 0.0
        %851 = vmatpush1.msra.mxu0 0.0
        %852 = vmatprep.subr.mxu0 0.0
        %853 = vmatpush1.msra.mxu0 %v780
        %854 = vmatprep.subr.mxu0 0.0
        %855 = vmatpush2.msra.mxu0 0.0
        %856 = vmatprep.subr.mxu0 0.0
        %857 = vmatpush2.msra.mxu0 0.0
        %858 = vmatprep.subr.mxu0 0.0
        %859 = vmatpush2.msra.mxu0 0.0
        %860 = vmatprep.subr.mxu0 0.0
        %861 = vmatpush2.msra.mxu0 0.0
        %862 = vmatprep.subr.mxu0 0.0
        %863 = vmatpush2.msra.mxu0 0.0
        %864 = vmatprep.subr.mxu0 0.0
        %865 = vmatpush2.msra.mxu0 0.0
        %866 = vmatprep.subr.mxu0 0.0
        %867 = vmatpush2.msra.mxu0 0.0
        %868 = vmatprep.subr.mxu0 0.0
        %869 = vmatpush2.msra.mxu0 0.0
        %870 = vmatprep.subr.mxu0 0.0
        %871 = vmatpush2.msra.mxu0 0.0
        %872 = vmatprep.subr.mxu0 0.0
        %873 = vmatpush2.msra.mxu0 0.0
        %874 = vmatprep.subr.mxu0 0.0
        %875 = vmatpush2.msra.mxu0 0.0
        %876 = vmatprep.subr.mxu0 0.0
        %877 = vmatpush2.msra.mxu0 0.0
        %878 = vmatprep.subr.mxu0 0.0
        %879 = vmatpush2.msra.mxu0 0.0
        %880 = vmatprep.subr.mxu0 0.0
        %881 = vmatpush2.msra.mxu0 0.0
        %882 = vmatprep.subr.mxu0 0.0
        %883 = vmatpush2.msra.mxu0 0.0
        %884 = vmatprep.subr.mxu0 0.0
        %885 = vmatpush2.msra.mxu0 0.0
        %886 = vmatprep.mubr.f32.mxu0 0.0
        %887 = vmatmul.mubr.f32.gmra.mxu0 %v811
        %v888 = vpop.f32.mrf.mxu0
        %v889 = vadd.f32 %v792, %v888
        %v890 = vpop.f32.mrf.mxu0
        %891 = vmatprep.mubr.f32.mxu0 0.0
        %892 = vmatmul.mubr.f32.gmra.mxu0 %v814
        %v893 = vpop.f32.mrf.mxu0
        %v894 = vadd.f32 %v797, %v893
        %v895 = vpop.f32.mrf.mxu0
        %896 = vmatprep.mubr.f32.mxu0 0.0
        %897 = vmatmul.mubr.f32.gmra.mxu0 %v817
        %v898 = vpop.f32.mrf.mxu0
        %v899 = vadd.f32 %v802, %v898
        %v900 = vpop.f32.mrf.mxu0
        %901 = vmatprep.mubr.f32.mxu0 0.0
        %902 = vmatmul.mubr.f32.gmra.mxu0 %v820
        %v903 = vpop.f32.mrf.mxu0
        %v904 = vadd.f32 %v807, %v903
        %v905 = vpop.f32.mrf.mxu0
        %906 = vdwg.mxu0
        %v907 = vld [vmem:[%s3] sm:$0xff]
        %v908 = vld [vmem:[%s3 + $0x8] sm:$0xff]
        %v909 = vld [vmem:[%s3 + $0x10] sm:$0xff]
        %v910 = vld [vmem:[%s3 + $0x18] sm:$0xff]
        %v911 = vld [vmem:[%s4] sm:$0xff]
        %v912 = vld [vmem:[%s4 + $0x8] sm:$0xff]
        %v913 = vld [vmem:[%s4 + $0x10] sm:$0xff]
        %v914 = vld [vmem:[%s4 + $0x18] sm:$0xff]
        %v915 = vld [vmem:[%s5] sm:$0xff]
        %v916 = vld [vmem:[%s5 + $0x8] sm:$0xff]
        %v917 = vld [vmem:[%s5 + $0x10] sm:$0xff]
        %v918 = vld [vmem:[%s5 + $0x18] sm:$0xff]
        %v919 = vld [vmem:[%s5 + $0x20] sm:$0xff]
        %v920 = vld [vmem:[%s5 + $0x28] sm:$0xff]
        %v921 = vld [vmem:[%s5 + $0x30] sm:$0xff]
        %v922 = vld [vmem:[%s5 + $0x38] sm:$0xff]
        %v923 = vld [vmem:[%s5 + $0x40] sm:$0xff]
        %v924 = vld [vmem:[%s5 + $0x48] sm:$0xff]
        %v925 = vld [vmem:[%s5 + $0x50] sm:$0xff]
        %v926 = vld [vmem:[%s5 + $0x58] sm:$0xff]
        %v927 = vld [vmem:[%s6] sm:$0xff]
        %v928 = vld [vmem:[%s6 + $0x8] sm:$0xff]
        %v929 = vld [vmem:[%s6 + $0x10] sm:$0xff]
        %v930 = vld [vmem:[%s6 + $0x18] sm:$0xff]
        %v931 = vld [vmem:[%s7] sm:$0xff]
        %v932 = vld [vmem:[%s7 + $0x8] sm:$0xff]
        %v933 = vld [vmem:[%s7 + $0x10] sm:$0xff]
        %v934 = vld [vmem:[%s7 + $0x18] sm:$0xff]
        %v935 = vld [vmem:[%s8] sm:$0xff]
        %v936 = vld [vmem:[%s8 + $0x8] sm:$0xff]
        %v937 = vld [vmem:[%s8 + $0x10] sm:$0xff]
        %v938 = vld [vmem:[%s8 + $0x18] sm:$0xff]
        %v939 = vld [vmem:[%s9] sm:$0xff]
        %v940 = vld [vmem:[%s9 + $0x8] sm:$0xff]
        %v941 = vld [vmem:[%s9 + $0x10] sm:$0xff]
        %v942 = vld [vmem:[%s9 + $0x18] sm:$0xff]
        %v943 = vld [vmem:[%s9 + $0x20] sm:$0xff]
        %v944 = vld [vmem:[%s9 + $0x28] sm:$0xff]
        %v945 = vld [vmem:[%s9 + $0x30] sm:$0xff]
        %v946 = vld [vmem:[%s9 + $0x38] sm:$0xff]
        %v947 = vld [vmem:[%s9 + $0x40] sm:$0xff]
        %v948 = vld [vmem:[%s9 + $0x48] sm:$0xff]
        %v949 = vld [vmem:[%s9 + $0x50] sm:$0xff]
        %v950 = vld [vmem:[%s9 + $0x58] sm:$0xff]
        %v951 = vld [vmem:[%s10] sm:$0xff]
        %v952 = vld [vmem:[%s10 + $0x8] sm:$0xff]
        %v953 = vld [vmem:[%s10 + $0x10] sm:$0xff]
        %v954 = vld [vmem:[%s10 + $0x18] sm:$0xff]
        %v955 = vsel %vm809, %v889, 0.0
        %956 = vadd.xlane.f32.xlu0 %v955
        %v957 = vpop.xlane.xlu0 %956
        %v958 = vsel %vm809, %v894, 0.0
        %959 = vadd.xlane.f32.xlu0 %v958
        %v960 = vpop.xlane.xlu0 %959
        %v961 = vsel %vm809, %v899, 0.0
        %962 = vadd.xlane.f32.xlu0 %v961
        %v963 = vpop.xlane.xlu0 %962
        %v964 = vsel %vm809, %v904, 0.0
        %965 = vadd.xlane.f32.xlu0 %v964
        %v966 = vpop.xlane.xlu0 %965
        %v967 = vrcp.pop 8.0
        %v968 = vmul.f32 %v957, %v967
        %v969 = vmul.f32 %v960, %v967
        %v970 = vmul.f32 %v963, %v967
        %v971 = vmul.f32 %v966, %v967
        %v972 = vrot.slane %v968, 4
        %v973 = vadd.f32 %v968, %v972
        %v974 = vrot.slane %v973, 2
        %v975 = vadd.f32 %v973, %v974
        %v976 = vrot.slane %v975, 1
        %v977 = vadd.f32 %v975, %v976
        %v978 = vrot.slane %v969, 4
        %v979 = vadd.f32 %v969, %v978
        %v980 = vrot.slane %v979, 2
        %v981 = vadd.f32 %v979, %v980
        %v982 = vrot.slane %v981, 1
        %v983 = vadd.f32 %v981, %v982
        %v984 = vrot.slane %v970, 4
        %v985 = vadd.f32 %v970, %v984
        %v986 = vrot.slane %v985, 2
        %v987 = vadd.f32 %v985, %v986
        %v988 = vrot.slane %v987, 1
        %v989 = vadd.f32 %v987, %v988
        %v990 = vrot.slane %v971, 4
        %v991 = vadd.f32 %v971, %v990
        %v992 = vrot.slane %v991, 2
        %v993 = vadd.f32 %v991, %v992
        %v994 = vrot.slane %v993, 1
        %v995 = vadd.f32 %v993, %v994
        %v996 = vmul.f32 %v977, %v967
        %v997 = vmul.f32 %v983, %v967
        %v998 = vmul.f32 %v989, %v967
        %v999 = vmul.f32 %v995, %v967
        %v1000 = vsub.f32 %v889, %v996
        %v1001 = vsub.f32 %v894, %v997
        %v1002 = vsub.f32 %v899, %v998
        %v1003 = vsub.f32 %v904, %v999
        %v1004 = vmul.f32 %v1000, %v1000
        %v1005 = vmul.f32 %v1001, %v1001
        %v1006 = vmul.f32 %v1002, %v1002
        %v1007 = vmul.f32 %v1003, %v1003
        %v1008 = vsel %vm809, %v1004, 0.0
        %1009 = vadd.xlane.f32.xlu0 %v1008
        %v1010 = vpop.xlane.xlu0 %1009
        %v1011 = vsel %vm809, %v1005, 0.0
        %1012 = vadd.xlane.f32.xlu0 %v1011
        %v1013 = vpop.xlane.xlu0 %1012
        %v1014 = vsel %vm809, %v1006, 0.0
        %1015 = vadd.xlane.f32.xlu0 %v1014
        %v1016 = vpop.xlane.xlu0 %1015
        %v1017 = vsel %vm809, %v1007, 0.0
        %1018 = vadd.xlane.f32.xlu0 %v1017
        %v1019 = vpop.xlane.xlu0 %1018
        %v1020 = vmul.f32 %v1010, %v967
        %v1021 = vmul.f32 %v1013, %v967
        %v1022 = vmul.f32 %v1016, %v967
        %v1023 = vmul.f32 %v1019, %v967
        %v1024 = vrot.slane %v1020, 4
        %v1025 = vadd.f32 %v1020, %v1024
        %v1026 = vrot.slane %v1025, 2
        %v1027 = vadd.f32 %v1025, %v1026
        %v1028 = vrot.slane %v1027, 1
        %v1029 = vadd.f32 %v1027, %v1028
        %v1030 = vrot.slane %v1021, 4
        %v1031 = vadd.f32 %v1021, %v1030
        %v1032 = vrot.slane %v1031, 2
        %v1033 = vadd.f32 %v1031, %v1032
        %v1034 = vrot.slane %v1033, 1
        %v1035 = vadd.f32 %v1033, %v1034
        %v1036 = vrot.slane %v1022, 4
        %v1037 = vadd.f32 %v1022, %v1036
        %v1038 = vrot.slane %v1037, 2
        %v1039 = vadd.f32 %v1037, %v1038
        %v1040 = vrot.slane %v1039, 1
        %v1041 = vadd.f32 %v1039, %v1040
        %v1042 = vrot.slane %v1023, 4
        %v1043 = vadd.f32 %v1023, %v1042
        %v1044 = vrot.slane %v1043, 2
        %v1045 = vadd.f32 %v1043, %v1044
        %v1046 = vrot.slane %v1045, 1
        %v1047 = vadd.f32 %v1045, %v1046
        %v1048 = vmul.f32 %v1029, %v967
        %v1049 = vmul.f32 %v1035, %v967
        %v1050 = vmul.f32 %v1041, %v967
        %v1051 = vmul.f32 %v1047, %v967
        %v1052 = vadd.f32 %v1048, 1e-05
        %v1053 = vadd.f32 %v1049, 1e-05
        %v1054 = vadd.f32 %v1050, 1e-05
        %v1055 = vadd.f32 %v1051, 1e-05
        %v1056 = vrsqrt.pop %v1052
        %v1057 = vrsqrt.pop %v1053
        %v1058 = vrsqrt.pop %v1054
        %v1059 = vrsqrt.pop %v1055
        %v1060 = vmul.f32 %v1000, %v1056
        %v1061 = vmul.f32 %v1001, %v1057
        %v1062 = vmul.f32 %v1002, %v1058
        %v1063 = vmul.f32 %v1003, %v1059
        %1065 = vset.pattern.permute.xlu0 0
        %1066 = vperm.xlu0 %1065, %v907
        %v1067 = vpop.permute.xlu0 %1066
        %1070 = vset.pattern.permute.xlu0 0
        %1071 = vperm.xlu0 %1070, %v908
        %v1072 = vpop.permute.xlu0 %1071
        %1075 = vset.pattern.permute.xlu0 0
        %1076 = vperm.xlu0 %1075, %v909
        %v1077 = vpop.permute.xlu0 %1076
        %1080 = vset.pattern.permute.xlu0 0
        %1081 = vperm.xlu0 %1080, %v910
        %v1082 = vpop.permute.xlu0 %1081
        %v1084 = vmul.f32 %v1060, %v1067
        %v1085 = vmul.f32 %v1061, %v1072
        %v1086 = vmul.f32 %v1062, %v1077
        %v1087 = vmul.f32 %v1063, %v1082
        %1089 = vset.pattern.permute.xlu0 0
        %1090 = vperm.xlu0 %1089, %v911
        %v1091 = vpop.permute.xlu0 %1090
        %1094 = vset.pattern.permute.xlu0 0
        %1095 = vperm.xlu0 %1094, %v912
        %v1096 = vpop.permute.xlu0 %1095
        %1099 = vset.pattern.permute.xlu0 0
        %1100 = vperm.xlu0 %1099, %v913
        %v1101 = vpop.permute.xlu0 %1100
        %1104 = vset.pattern.permute.xlu0 0
        %1105 = vperm.xlu0 %1104, %v914
        %v1106 = vpop.permute.xlu0 %1105
        %v1108 = vadd.f32 %v1084, %v1091
        %v1109 = vadd.f32 %v1085, %v1096
        %v1110 = vadd.f32 %v1086, %v1101
        %v1111 = vadd.f32 %v1087, %v1106
        %v1112 = vxor.u32 %v1108, 2147483648
        %v1113 = vxor.u32 %v1109, 2147483648
        %v1114 = vxor.u32 %v1110, 2147483648
        %v1115 = vxor.u32 %v1111, 2147483648
        %v1116 = vmul.f32 %v1112, 1.442695
        %v1117 = vpow.pop %v1116
        %v1118 = vmul.f32 %v1113, 1.442695
        %v1119 = vpow.pop %v1118
        %v1120 = vmul.f32 %v1114, 1.442695
        %v1121 = vpow.pop %v1120
        %v1122 = vmul.f32 %v1115, 1.442695
        %v1123 = vpow.pop %v1122
        %v1124 = vadd.f32 %v1117, 1.0
        %v1125 = vadd.f32 %v1119, 1.0
        %v1126 = vadd.f32 %v1121, 1.0
        %v1127 = vadd.f32 %v1123, 1.0
        %v1128 = vrcp.pop %v1124
        %v1129 = vmul.f32 1.0, %v1128
        %v1130 = vrcp.pop %v1125
        %v1131 = vmul.f32 1.0, %v1130
        %v1132 = vrcp.pop %v1126
        %v1133 = vmul.f32 1.0, %v1132
        %v1134 = vrcp.pop %v1127
        %v1135 = vmul.f32 1.0, %v1134
        %v1136 = vmul.f32 %v1108, %v1129
        %v1137 = vmul.f32 %v1109, %v1131
        %v1138 = vmul.f32 %v1110, %v1133
        %v1139 = vmul.f32 %v1111, %v1135
        %1144 = vrot.lane.b32.xlu0 %v1136, 1
        %v1145 = vpop.permute.xlu0 %1144
        %1146 = vrot.lane.b32.xlu0 %v1137, 1
        %v1147 = vpop.permute.xlu0 %1146
        %1148 = vrot.lane.b32.xlu0 %v1138, 1
        %v1149 = vpop.permute.xlu0 %1148
        %1150 = vrot.lane.b32.xlu0 %v1139, 1
        %v1151 = vpop.permute.xlu0 %1150
        %vm1156 = vcmask 7168
        %v1157 = vsel %vm1156, 0.0, %v1145
        %v1158 = vsel %vm1156, 0.0, %v1147
        %v1159 = vsel %vm1156, 0.0, %v1149
        %v1160 = vsel %vm1156, 0.0, %v1151
        %1161 = vrot.lane.b32.xlu0 %v1136, 127
        %v1162 = vpop.permute.xlu0 %1161
        %1163 = vrot.lane.b32.xlu0 %v1137, 127
        %v1164 = vpop.permute.xlu0 %1163
        %1165 = vrot.lane.b32.xlu0 %v1138, 127
        %v1166 = vpop.permute.xlu0 %1165
        %1167 = vrot.lane.b32.xlu0 %v1139, 127
        %v1168 = vpop.permute.xlu0 %1167
        %vm1173 = vcmask 56320
        %v1174 = vsel %vm1173, %v1162, 0.0
        %v1175 = vsel %vm1173, %v1164, 0.0
        %v1176 = vsel %vm1173, %v1166, 0.0
        %v1177 = vsel %vm1173, %v1168, 0.0
        %vm1178 = vcmask 261120
        %v1180 = vsel %vm1178, %v915, 0
        %v1183 = vsel %vm1178, %v916, 0
        %v1186 = vsel %vm1178, %v917, 0
        %v1189 = vsel %vm1178, %v918, 0
        %1191 = vmatprep.subr.mxu0 0.0
        %1192 = vmatpush1.msra.mxu0 0.0
        %1193 = vmatprep.subr.mxu0 0.0
        %1194 = vmatpush1.msra.mxu0 0.0
        %1195 = vmatprep.subr.mxu0 0.0
        %1196 = vmatpush1.msra.mxu0 0.0
        %1197 = vmatprep.subr.mxu0 0.0
        %1198 = vmatpush1.msra.mxu0 0.0
        %1199 = vmatprep.subr.mxu0 0.0
        %1200 = vmatpush1.msra.mxu0 0.0
        %1201 = vmatprep.subr.mxu0 0.0
        %1202 = vmatpush1.msra.mxu0 0.0
        %1203 = vmatprep.subr.mxu0 0.0
        %1204 = vmatpush1.msra.mxu0 0.0
        %1205 = vmatprep.subr.mxu0 0.0
        %1206 = vmatpush1.msra.mxu0 0.0
        %1207 = vmatprep.subr.mxu0 0.0
        %1208 = vmatpush1.msra.mxu0 0.0
        %1209 = vmatprep.subr.mxu0 0.0
        %1210 = vmatpush1.msra.mxu0 0.0
        %1211 = vmatprep.subr.mxu0 0.0
        %1212 = vmatpush1.msra.mxu0 0.0
        %1213 = vmatprep.subr.mxu0 0.0
        %1214 = vmatpush1.msra.mxu0 0.0
        %1215 = vmatprep.subr.mxu0 0.0
        %1216 = vmatpush1.msra.mxu0 %v1160
        %1217 = vmatprep.subr.mxu0 0.0
        %1218 = vmatpush1.msra.mxu0 %v1159
        %1219 = vmatprep.subr.mxu0 0.0
        %1220 = vmatpush1.msra.mxu0 %v1158
        %1221 = vmatprep.subr.mxu0 0.0
        %1222 = vmatpush1.msra.mxu0 %v1157
        %1223 = vmatprep.subr.mxu0 0.0
        %1224 = vmatpush2.msra.mxu0 0.0
        %1225 = vmatprep.subr.mxu0 0.0
        %1226 = vmatpush2.msra.mxu0 0.0
        %1227 = vmatprep.subr.mxu0 0.0
        %1228 = vmatpush2.msra.mxu0 0.0
        %1229 = vmatprep.subr.mxu0 0.0
        %1230 = vmatpush2.msra.mxu0 0.0
        %1231 = vmatprep.subr.mxu0 0.0
        %1232 = vmatpush2.msra.mxu0 0.0
        %1233 = vmatprep.subr.mxu0 0.0
        %1234 = vmatpush2.msra.mxu0 0.0
        %1235 = vmatprep.subr.mxu0 0.0
        %1236 = vmatpush2.msra.mxu0 0.0
        %1237 = vmatprep.subr.mxu0 0.0
        %1238 = vmatpush2.msra.mxu0 0.0
        %1239 = vmatprep.subr.mxu0 0.0
        %1240 = vmatpush2.msra.mxu0 0.0
        %1241 = vmatprep.subr.mxu0 0.0
        %1242 = vmatpush2.msra.mxu0 0.0
        %1243 = vmatprep.subr.mxu0 0.0
        %1244 = vmatpush2.msra.mxu0 0.0
        %1245 = vmatprep.subr.mxu0 0.0
        %1246 = vmatpush2.msra.mxu0 0.0
        %1247 = vmatprep.subr.mxu0 0.0
        %1248 = vmatpush2.msra.mxu0 0.0
        %1249 = vmatprep.subr.mxu0 0.0
        %1250 = vmatpush2.msra.mxu0 0.0
        %1251 = vmatprep.subr.mxu0 0.0
        %1252 = vmatpush2.msra.mxu0 0.0
        %1253 = vmatprep.subr.mxu0 0.0
        %1254 = vmatpush2.msra.mxu0 0.0
        %1255 = vmatprep.mubr.f32.mxu0 0.0
        %1256 = vmatmul.mubr.f32.gmra.mxu0 %v1180
        %v1257 = vpop.f32.mrf.mxu0
        %v1258 = vadd.f32 0.0, %v1257
        %v1259 = vpop.f32.mrf.mxu0
        %1260 = vmatprep.mubr.f32.mxu0 0.0
        %1261 = vmatmul.mubr.f32.gmra.mxu0 %v1183
        %v1262 = vpop.f32.mrf.mxu0
        %v1263 = vadd.f32 0.0, %v1262
        %v1264 = vpop.f32.mrf.mxu0
        %1265 = vmatprep.mubr.f32.mxu0 0.0
        %1266 = vmatmul.mubr.f32.gmra.mxu0 %v1186
        %v1267 = vpop.f32.mrf.mxu0
        %v1268 = vadd.f32 0.0, %v1267
        %v1269 = vpop.f32.mrf.mxu0
        %1270 = vmatprep.mubr.f32.mxu0 0.0
        %1271 = vmatmul.mubr.f32.gmra.mxu0 %v1189
        %v1272 = vpop.f32.mrf.mxu0
        %v1273 = vadd.f32 0.0, %v1272
        %v1274 = vpop.f32.mrf.mxu0
        %1275 = vdwg.mxu0
        %v1277 = vsel %vm1178, %v919, 0
        %v1280 = vsel %vm1178, %v920, 0
        %v1283 = vsel %vm1178, %v921, 0
        %v1286 = vsel %vm1178, %v922, 0
        %1288 = vmatprep.subr.mxu0 0.0
        %1289 = vmatpush1.msra.mxu0 0.0
        %1290 = vmatprep.subr.mxu0 0.0
        %1291 = vmatpush1.msra.mxu0 0.0
        %1292 = vmatprep.subr.mxu0 0.0
        %1293 = vmatpush1.msra.mxu0 0.0
        %1294 = vmatprep.subr.mxu0 0.0
        %1295 = vmatpush1.msra.mxu0 0.0
        %1296 = vmatprep.subr.mxu0 0.0
        %1297 = vmatpush1.msra.mxu0 0.0
        %1298 = vmatprep.subr.mxu0 0.0
        %1299 = vmatpush1.msra.mxu0 0.0
        %1300 = vmatprep.subr.mxu0 0.0
        %1301 = vmatpush1.msra.mxu0 0.0
        %1302 = vmatprep.subr.mxu0 0.0
        %1303 = vmatpush1.msra.mxu0 0.0
        %1304 = vmatprep.subr.mxu0 0.0
        %1305 = vmatpush1.msra.mxu0 0.0
        %1306 = vmatprep.subr.mxu0 0.0
        %1307 = vmatpush1.msra.mxu0 0.0
        %1308 = vmatprep.subr.mxu0 0.0
        %1309 = vmatpush1.msra.mxu0 0.0
        %1310 = vmatprep.subr.mxu0 0.0
        %1311 = vmatpush1.msra.mxu0 0.0
        %1312 = vmatprep.subr.mxu0 0.0
        %1313 = vmatpush1.msra.mxu0 %v1139
        %1314 = vmatprep.subr.mxu0 0.0
        %1315 = vmatpush1.msra.mxu0 %v1138
        %1316 = vmatprep.subr.mxu0 0.0
        %1317 = vmatpush1.msra.mxu0 %v1137
        %1318 = vmatprep.subr.mxu0 0.0
        %1319 = vmatpush1.msra.mxu0 %v1136
        %1320 = vmatprep.subr.mxu0 0.0
        %1321 = vmatpush2.msra.mxu0 0.0
        %1322 = vmatprep.subr.mxu0 0.0
        %1323 = vmatpush2.msra.mxu0 0.0
        %1324 = vmatprep.subr.mxu0 0.0
        %1325 = vmatpush2.msra.mxu0 0.0
        %1326 = vmatprep.subr.mxu0 0.0
        %1327 = vmatpush2.msra.mxu0 0.0
        %1328 = vmatprep.subr.mxu0 0.0
        %1329 = vmatpush2.msra.mxu0 0.0
        %1330 = vmatprep.subr.mxu0 0.0
        %1331 = vmatpush2.msra.mxu0 0.0
        %1332 = vmatprep.subr.mxu0 0.0
        %1333 = vmatpush2.msra.mxu0 0.0
        %1334 = vmatprep.subr.mxu0 0.0
        %1335 = vmatpush2.msra.mxu0 0.0
        %1336 = vmatprep.subr.mxu0 0.0
        %1337 = vmatpush2.msra.mxu0 0.0
        %1338 = vmatprep.subr.mxu0 0.0
        %1339 = vmatpush2.msra.mxu0 0.0
        %1340 = vmatprep.subr.mxu0 0.0
        %1341 = vmatpush2.msra.mxu0 0.0
        %1342 = vmatprep.subr.mxu0 0.0
        %1343 = vmatpush2.msra.mxu0 0.0
        %1344 = vmatprep.subr.mxu0 0.0
        %1345 = vmatpush2.msra.mxu0 0.0
        %1346 = vmatprep.subr.mxu0 0.0
        %1347 = vmatpush2.msra.mxu0 0.0
        %1348 = vmatprep.subr.mxu0 0.0
        %1349 = vmatpush2.msra.mxu0 0.0
        %1350 = vmatprep.subr.mxu0 0.0
        %1351 = vmatpush2.msra.mxu0 0.0
        %1352 = vmatprep.mubr.f32.mxu0 0.0
        %1353 = vmatmul.mubr.f32.gmra.mxu0 %v1277
        %v1354 = vpop.f32.mrf.mxu0
        %v1355 = vadd.f32 %v1258, %v1354
        %v1356 = vpop.f32.mrf.mxu0
        %1357 = vmatprep.mubr.f32.mxu0 0.0
        %1358 = vmatmul.mubr.f32.gmra.mxu0 %v1280
        %v1359 = vpop.f32.mrf.mxu0
        %v1360 = vadd.f32 %v1263, %v1359
        %v1361 = vpop.f32.mrf.mxu0
        %1362 = vmatprep.mubr.f32.mxu0 0.0
        %1363 = vmatmul.mubr.f32.gmra.mxu0 %v1283
        %v1364 = vpop.f32.mrf.mxu0
        %v1365 = vadd.f32 %v1268, %v1364
        %v1366 = vpop.f32.mrf.mxu0
        %1367 = vmatprep.mubr.f32.mxu0 0.0
        %1368 = vmatmul.mubr.f32.gmra.mxu0 %v1286
        %v1369 = vpop.f32.mrf.mxu0
        %v1370 = vadd.f32 %v1273, %v1369
        %v1371 = vpop.f32.mrf.mxu0
        %1372 = vdwg.mxu0
        %v1374 = vsel %vm1178, %v923, 0
        %v1377 = vsel %vm1178, %v924, 0
        %v1380 = vsel %vm1178, %v925, 0
        %v1383 = vsel %vm1178, %v926, 0
        %1385 = vmatprep.subr.mxu0 0.0
        %1386 = vmatpush1.msra.mxu0 0.0
        %1387 = vmatprep.subr.mxu0 0.0
        %1388 = vmatpush1.msra.mxu0 0.0
        %1389 = vmatprep.subr.mxu0 0.0
        %1390 = vmatpush1.msra.mxu0 0.0
        %1391 = vmatprep.subr.mxu0 0.0
        %1392 = vmatpush1.msra.mxu0 0.0
        %1393 = vmatprep.subr.mxu0 0.0
        %1394 = vmatpush1.msra.mxu0 0.0
        %1395 = vmatprep.subr.mxu0 0.0
        %1396 = vmatpush1.msra.mxu0 0.0
        %1397 = vmatprep.subr.mxu0 0.0
        %1398 = vmatpush1.msra.mxu0 0.0
        %1399 = vmatprep.subr.mxu0 0.0
        %1400 = vmatpush1.msra.mxu0 0.0
        %1401 = vmatprep.subr.mxu0 0.0
        %1402 = vmatpush1.msra.mxu0 0.0
        %1403 = vmatprep.subr.mxu0 0.0
        %1404 = vmatpush1.msra.mxu0 0.0
        %1405 = vmatprep.subr.mxu0 0.0
        %1406 = vmatpush1.msra.mxu0 0.0
        %1407 = vmatprep.subr.mxu0 0.0
        %1408 = vmatpush1.msra.mxu0 0.0
        %1409 = vmatprep.subr.mxu0 0.0
        %1410 = vmatpush1.msra.mxu0 %v1177
        %1411 = vmatprep.subr.mxu0 0.0
        %1412 = vmatpush1.msra.mxu0 %v1176
        %1413 = vmatprep.subr.mxu0 0.0
        %1414 = vmatpush1.msra.mxu0 %v1175
        %1415 = vmatprep.subr.mxu0 0.0
        %1416 = vmatpush1.msra.mxu0 %v1174
        %1417 = vmatprep.subr.mxu0 0.0
        %1418 = vmatpush2.msra.mxu0 0.0
        %1419 = vmatprep.subr.mxu0 0.0
        %1420 = vmatpush2.msra.mxu0 0.0
        %1421 = vmatprep.subr.mxu0 0.0
        %1422 = vmatpush2.msra.mxu0 0.0
        %1423 = vmatprep.subr.mxu0 0.0
        %1424 = vmatpush2.msra.mxu0 0.0
        %1425 = vmatprep.subr.mxu0 0.0
        %1426 = vmatpush2.msra.mxu0 0.0
        %1427 = vmatprep.subr.mxu0 0.0
        %1428 = vmatpush2.msra.mxu0 0.0
        %1429 = vmatprep.subr.mxu0 0.0
        %1430 = vmatpush2.msra.mxu0 0.0
        %1431 = vmatprep.subr.mxu0 0.0
        %1432 = vmatpush2.msra.mxu0 0.0
        %1433 = vmatprep.subr.mxu0 0.0
        %1434 = vmatpush2.msra.mxu0 0.0
        %1435 = vmatprep.subr.mxu0 0.0
        %1436 = vmatpush2.msra.mxu0 0.0
        %1437 = vmatprep.subr.mxu0 0.0
        %1438 = vmatpush2.msra.mxu0 0.0
        %1439 = vmatprep.subr.mxu0 0.0
        %1440 = vmatpush2.msra.mxu0 0.0
        %1441 = vmatprep.subr.mxu0 0.0
        %1442 = vmatpush2.msra.mxu0 0.0
        %1443 = vmatprep.subr.mxu0 0.0
        %1444 = vmatpush2.msra.mxu0 0.0
        %1445 = vmatprep.subr.mxu0 0.0
        %1446 = vmatpush2.msra.mxu0 0.0
        %1447 = vmatprep.subr.mxu0 0.0
        %1448 = vmatpush2.msra.mxu0 0.0
        %1449 = vmatprep.mubr.f32.mxu0 0.0
        %1450 = vmatmul.mubr.f32.gmra.mxu0 %v1374
        %v1451 = vpop.f32.mrf.mxu0
        %v1452 = vadd.f32 0.0, %v1451
        %v1453 = vpop.f32.mrf.mxu0
        %1454 = vmatprep.mubr.f32.mxu0 0.0
        %1455 = vmatmul.mubr.f32.gmra.mxu0 %v1377
        %v1456 = vpop.f32.mrf.mxu0
        %v1457 = vadd.f32 0.0, %v1456
        %v1458 = vpop.f32.mrf.mxu0
        %1459 = vmatprep.mubr.f32.mxu0 0.0
        %1460 = vmatmul.mubr.f32.gmra.mxu0 %v1380
        %v1461 = vpop.f32.mrf.mxu0
        %v1462 = vadd.f32 0.0, %v1461
        %v1463 = vpop.f32.mrf.mxu0
        %1464 = vmatprep.mubr.f32.mxu0 0.0
        %1465 = vmatmul.mubr.f32.gmra.mxu0 %v1383
        %v1466 = vpop.f32.mrf.mxu0
        %v1467 = vadd.f32 0.0, %v1466
        %v1468 = vpop.f32.mrf.mxu0
        %1469 = vdwg.mxu0
        %v1470 = vadd.f32 %v1355, %v1452
        %v1471 = vadd.f32 %v1360, %v1457
        %v1472 = vadd.f32 %v1365, %v1462
        %v1473 = vadd.f32 %v1370, %v1467
        %1475 = vset.pattern.permute.xlu0 0
        %1476 = vperm.xlu0 %1475, %v927
        %v1477 = vpop.permute.xlu0 %1476
        %1480 = vset.pattern.permute.xlu0 0
        %1481 = vperm.xlu0 %1480, %v928
        %v1482 = vpop.permute.xlu0 %1481
        %1485 = vset.pattern.permute.xlu0 0
        %1486 = vperm.xlu0 %1485, %v929
        %v1487 = vpop.permute.xlu0 %1486
        %1490 = vset.pattern.permute.xlu0 0
        %1491 = vperm.xlu0 %1490, %v930
        %v1492 = vpop.permute.xlu0 %1491
        %v1494 = vadd.f32 %v1470, %v1477
        %v1495 = vadd.f32 %v1471, %v1482
        %v1496 = vadd.f32 %v1472, %v1487
        %v1497 = vadd.f32 %v1473, %v1492
        %v1498 = vsel %vm809, %v1494, 0.0
        %1499 = vadd.xlane.f32.xlu0 %v1498
        %v1500 = vpop.xlane.xlu0 %1499
        %v1501 = vsel %vm809, %v1495, 0.0
        %1502 = vadd.xlane.f32.xlu0 %v1501
        %v1503 = vpop.xlane.xlu0 %1502
        %v1504 = vsel %vm809, %v1496, 0.0
        %1505 = vadd.xlane.f32.xlu0 %v1504
        %v1506 = vpop.xlane.xlu0 %1505
        %v1507 = vsel %vm809, %v1497, 0.0
        %1508 = vadd.xlane.f32.xlu0 %v1507
        %v1509 = vpop.xlane.xlu0 %1508
        %v1510 = vmul.f32 %v1500, %v967
        %v1511 = vmul.f32 %v1503, %v967
        %v1512 = vmul.f32 %v1506, %v967
        %v1513 = vmul.f32 %v1509, %v967
        %v1514 = vrot.slane %v1510, 4
        %v1515 = vadd.f32 %v1510, %v1514
        %v1516 = vrot.slane %v1515, 2
        %v1517 = vadd.f32 %v1515, %v1516
        %v1518 = vrot.slane %v1517, 1
        %v1519 = vadd.f32 %v1517, %v1518
        %v1520 = vrot.slane %v1511, 4
        %v1521 = vadd.f32 %v1511, %v1520
        %v1522 = vrot.slane %v1521, 2
        %v1523 = vadd.f32 %v1521, %v1522
        %v1524 = vrot.slane %v1523, 1
        %v1525 = vadd.f32 %v1523, %v1524
        %v1526 = vrot.slane %v1512, 4
        %v1527 = vadd.f32 %v1512, %v1526
        %v1528 = vrot.slane %v1527, 2
        %v1529 = vadd.f32 %v1527, %v1528
        %v1530 = vrot.slane %v1529, 1
        %v1531 = vadd.f32 %v1529, %v1530
        %v1532 = vrot.slane %v1513, 4
        %v1533 = vadd.f32 %v1513, %v1532
        %v1534 = vrot.slane %v1533, 2
        %v1535 = vadd.f32 %v1533, %v1534
        %v1536 = vrot.slane %v1535, 1
        %v1537 = vadd.f32 %v1535, %v1536
        %v1538 = vmul.f32 %v1519, %v967
        %v1539 = vmul.f32 %v1525, %v967
        %v1540 = vmul.f32 %v1531, %v967
        %v1541 = vmul.f32 %v1537, %v967
        %v1542 = vsub.f32 %v1494, %v1538
        %v1543 = vsub.f32 %v1495, %v1539
        %v1544 = vsub.f32 %v1496, %v1540
        %v1545 = vsub.f32 %v1497, %v1541
        %v1546 = vmul.f32 %v1542, %v1542
        %v1547 = vmul.f32 %v1543, %v1543
        %v1548 = vmul.f32 %v1544, %v1544
        %v1549 = vmul.f32 %v1545, %v1545
        %v1550 = vsel %vm809, %v1546, 0.0
        %1551 = vadd.xlane.f32.xlu0 %v1550
        %v1552 = vpop.xlane.xlu0 %1551
        %v1553 = vsel %vm809, %v1547, 0.0
        %1554 = vadd.xlane.f32.xlu0 %v1553
        %v1555 = vpop.xlane.xlu0 %1554
        %v1556 = vsel %vm809, %v1548, 0.0
        %1557 = vadd.xlane.f32.xlu0 %v1556
        %v1558 = vpop.xlane.xlu0 %1557
        %v1559 = vsel %vm809, %v1549, 0.0
        %1560 = vadd.xlane.f32.xlu0 %v1559
        %v1561 = vpop.xlane.xlu0 %1560
        %v1562 = vmul.f32 %v1552, %v967
        %v1563 = vmul.f32 %v1555, %v967
        %v1564 = vmul.f32 %v1558, %v967
        %v1565 = vmul.f32 %v1561, %v967
        %v1566 = vrot.slane %v1562, 4
        %v1567 = vadd.f32 %v1562, %v1566
        %v1568 = vrot.slane %v1567, 2
        %v1569 = vadd.f32 %v1567, %v1568
        %v1570 = vrot.slane %v1569, 1
        %v1571 = vadd.f32 %v1569, %v1570
        %v1572 = vrot.slane %v1563, 4
        %v1573 = vadd.f32 %v1563, %v1572
        %v1574 = vrot.slane %v1573, 2
        %v1575 = vadd.f32 %v1573, %v1574
        %v1576 = vrot.slane %v1575, 1
        %v1577 = vadd.f32 %v1575, %v1576
        %v1578 = vrot.slane %v1564, 4
        %v1579 = vadd.f32 %v1564, %v1578
        %v1580 = vrot.slane %v1579, 2
        %v1581 = vadd.f32 %v1579, %v1580
        %v1582 = vrot.slane %v1581, 1
        %v1583 = vadd.f32 %v1581, %v1582
        %v1584 = vrot.slane %v1565, 4
        %v1585 = vadd.f32 %v1565, %v1584
        %v1586 = vrot.slane %v1585, 2
        %v1587 = vadd.f32 %v1585, %v1586
        %v1588 = vrot.slane %v1587, 1
        %v1589 = vadd.f32 %v1587, %v1588
        %v1590 = vmul.f32 %v1571, %v967
        %v1591 = vmul.f32 %v1577, %v967
        %v1592 = vmul.f32 %v1583, %v967
        %v1593 = vmul.f32 %v1589, %v967
        %v1594 = vadd.f32 %v1590, 1e-05
        %v1595 = vadd.f32 %v1591, 1e-05
        %v1596 = vadd.f32 %v1592, 1e-05
        %v1597 = vadd.f32 %v1593, 1e-05
        %v1598 = vrsqrt.pop %v1594
        %v1599 = vrsqrt.pop %v1595
        %v1600 = vrsqrt.pop %v1596
        %v1601 = vrsqrt.pop %v1597
        %v1602 = vmul.f32 %v1542, %v1598
        %v1603 = vmul.f32 %v1543, %v1599
        %v1604 = vmul.f32 %v1544, %v1600
        %v1605 = vmul.f32 %v1545, %v1601
        %1607 = vset.pattern.permute.xlu0 0
        %1608 = vperm.xlu0 %1607, %v931
        %v1609 = vpop.permute.xlu0 %1608
        %1612 = vset.pattern.permute.xlu0 0
        %1613 = vperm.xlu0 %1612, %v932
        %v1614 = vpop.permute.xlu0 %1613
        %1617 = vset.pattern.permute.xlu0 0
        %1618 = vperm.xlu0 %1617, %v933
        %v1619 = vpop.permute.xlu0 %1618
        %1622 = vset.pattern.permute.xlu0 0
        %1623 = vperm.xlu0 %1622, %v934
        %v1624 = vpop.permute.xlu0 %1623
        %v1626 = vmul.f32 %v1602, %v1609
        %v1627 = vmul.f32 %v1603, %v1614
        %v1628 = vmul.f32 %v1604, %v1619
        %v1629 = vmul.f32 %v1605, %v1624
        %1631 = vset.pattern.permute.xlu0 0
        %1632 = vperm.xlu0 %1631, %v935
        %v1633 = vpop.permute.xlu0 %1632
        %1636 = vset.pattern.permute.xlu0 0
        %1637 = vperm.xlu0 %1636, %v936
        %v1638 = vpop.permute.xlu0 %1637
        %1641 = vset.pattern.permute.xlu0 0
        %1642 = vperm.xlu0 %1641, %v937
        %v1643 = vpop.permute.xlu0 %1642
        %1646 = vset.pattern.permute.xlu0 0
        %1647 = vperm.xlu0 %1646, %v938
        %v1648 = vpop.permute.xlu0 %1647
        %v1650 = vadd.f32 %v1626, %v1633
        %v1651 = vadd.f32 %v1627, %v1638
        %v1652 = vadd.f32 %v1628, %v1643
        %v1653 = vadd.f32 %v1629, %v1648
        %v1654 = vxor.u32 %v1650, 2147483648
        %v1655 = vxor.u32 %v1651, 2147483648
        %v1656 = vxor.u32 %v1652, 2147483648
        %v1657 = vxor.u32 %v1653, 2147483648
        %v1658 = vmul.f32 %v1654, 1.442695
        %v1659 = vpow.pop %v1658
        %v1660 = vmul.f32 %v1655, 1.442695
        %v1661 = vpow.pop %v1660
        %v1662 = vmul.f32 %v1656, 1.442695
        %v1663 = vpow.pop %v1662
        %v1664 = vmul.f32 %v1657, 1.442695
        %v1665 = vpow.pop %v1664
        %v1666 = vadd.f32 %v1659, 1.0
        %v1667 = vadd.f32 %v1661, 1.0
        %v1668 = vadd.f32 %v1663, 1.0
        %v1669 = vadd.f32 %v1665, 1.0
        %v1670 = vrcp.pop %v1666
        %v1671 = vmul.f32 1.0, %v1670
        %v1672 = vrcp.pop %v1667
        %v1673 = vmul.f32 1.0, %v1672
        %v1674 = vrcp.pop %v1668
        %v1675 = vmul.f32 1.0, %v1674
        %v1676 = vrcp.pop %v1669
        %v1677 = vmul.f32 1.0, %v1676
        %v1678 = vmul.f32 %v1650, %v1671
        %v1679 = vmul.f32 %v1651, %v1673
        %v1680 = vmul.f32 %v1652, %v1675
        %v1681 = vmul.f32 %v1653, %v1677
        %1686 = vrot.lane.b32.xlu0 %v1678, 1
        %v1687 = vpop.permute.xlu0 %1686
        %1688 = vrot.lane.b32.xlu0 %v1679, 1
        %v1689 = vpop.permute.xlu0 %1688
        %1690 = vrot.lane.b32.xlu0 %v1680, 1
        %v1691 = vpop.permute.xlu0 %1690
        %1692 = vrot.lane.b32.xlu0 %v1681, 1
        %v1693 = vpop.permute.xlu0 %1692
        %v1698 = vsel %vm1156, 0.0, %v1687
        %v1699 = vsel %vm1156, 0.0, %v1689
        %v1700 = vsel %vm1156, 0.0, %v1691
        %v1701 = vsel %vm1156, 0.0, %v1693
        %1702 = vrot.lane.b32.xlu0 %v1678, 127
        %v1703 = vpop.permute.xlu0 %1702
        %1704 = vrot.lane.b32.xlu0 %v1679, 127
        %v1705 = vpop.permute.xlu0 %1704
        %1706 = vrot.lane.b32.xlu0 %v1680, 127
        %v1707 = vpop.permute.xlu0 %1706
        %1708 = vrot.lane.b32.xlu0 %v1681, 127
        %v1709 = vpop.permute.xlu0 %1708
        %v1714 = vsel %vm1173, %v1703, 0.0
        %v1715 = vsel %vm1173, %v1705, 0.0
        %v1716 = vsel %vm1173, %v1707, 0.0
        %v1717 = vsel %vm1173, %v1709, 0.0
        %v1719 = vsel %vm1178, %v939, 0
        %v1722 = vsel %vm1178, %v940, 0
        %v1725 = vsel %vm1178, %v941, 0
        %v1728 = vsel %vm1178, %v942, 0
        %1730 = vmatprep.subr.mxu0 0.0
        %1731 = vmatpush1.msra.mxu0 0.0
        %1732 = vmatprep.subr.mxu0 0.0
        %1733 = vmatpush1.msra.mxu0 0.0
        %1734 = vmatprep.subr.mxu0 0.0
        %1735 = vmatpush1.msra.mxu0 0.0
        %1736 = vmatprep.subr.mxu0 0.0
        %1737 = vmatpush1.msra.mxu0 0.0
        %1738 = vmatprep.subr.mxu0 0.0
        %1739 = vmatpush1.msra.mxu0 0.0
        %1740 = vmatprep.subr.mxu0 0.0
        %1741 = vmatpush1.msra.mxu0 0.0
        %1742 = vmatprep.subr.mxu0 0.0
        %1743 = vmatpush1.msra.mxu0 0.0
        %1744 = vmatprep.subr.mxu0 0.0
        %1745 = vmatpush1.msra.mxu0 0.0
        %1746 = vmatprep.subr.mxu0 0.0
        %1747 = vmatpush1.msra.mxu0 0.0
        %1748 = vmatprep.subr.mxu0 0.0
        %1749 = vmatpush1.msra.mxu0 0.0
        %1750 = vmatprep.subr.mxu0 0.0
        %1751 = vmatpush1.msra.mxu0 0.0
        %1752 = vmatprep.subr.mxu0 0.0
        %1753 = vmatpush1.msra.mxu0 0.0
        %1754 = vmatprep.subr.mxu0 0.0
        %1755 = vmatpush1.msra.mxu0 %v1701
        %1756 = vmatprep.subr.mxu0 0.0
        %1757 = vmatpush1.msra.mxu0 %v1700
        %1758 = vmatprep.subr.mxu0 0.0
        %1759 = vmatpush1.msra.mxu0 %v1699
        %1760 = vmatprep.subr.mxu0 0.0
        %1761 = vmatpush1.msra.mxu0 %v1698
        %1762 = vmatprep.subr.mxu0 0.0
        %1763 = vmatpush2.msra.mxu0 0.0
        %1764 = vmatprep.subr.mxu0 0.0
        %1765 = vmatpush2.msra.mxu0 0.0
        %1766 = vmatprep.subr.mxu0 0.0
        %1767 = vmatpush2.msra.mxu0 0.0
        %1768 = vmatprep.subr.mxu0 0.0
        %1769 = vmatpush2.msra.mxu0 0.0
        %1770 = vmatprep.subr.mxu0 0.0
        %1771 = vmatpush2.msra.mxu0 0.0
        %1772 = vmatprep.subr.mxu0 0.0
        %1773 = vmatpush2.msra.mxu0 0.0
        %1774 = vmatprep.subr.mxu0 0.0
        %1775 = vmatpush2.msra.mxu0 0.0
        %1776 = vmatprep.subr.mxu0 0.0
        %1777 = vmatpush2.msra.mxu0 0.0
        %1778 = vmatprep.subr.mxu0 0.0
        %1779 = vmatpush2.msra.mxu0 0.0
        %1780 = vmatprep.subr.mxu0 0.0
        %1781 = vmatpush2.msra.mxu0 0.0
        %1782 = vmatprep.subr.mxu0 0.0
        %1783 = vmatpush2.msra.mxu0 0.0
        %1784 = vmatprep.subr.mxu0 0.0
        %1785 = vmatpush2.msra.mxu0 0.0
        %1786 = vmatprep.subr.mxu0 0.0
        %1787 = vmatpush2.msra.mxu0 0.0
        %1788 = vmatprep.subr.mxu0 0.0
        %1789 = vmatpush2.msra.mxu0 0.0
        %1790 = vmatprep.subr.mxu0 0.0
        %1791 = vmatpush2.msra.mxu0 0.0
        %1792 = vmatprep.subr.mxu0 0.0
        %1793 = vmatpush2.msra.mxu0 0.0
        %1794 = vmatprep.mubr.f32.mxu0 0.0
        %1795 = vmatmul.mubr.f32.gmra.mxu0 %v1719
        %v1796 = vpop.f32.mrf.mxu0
        %v1797 = vadd.f32 0.0, %v1796
        %v1798 = vpop.f32.mrf.mxu0
        %1799 = vmatprep.mubr.f32.mxu0 0.0
        %1800 = vmatmul.mubr.f32.gmra.mxu0 %v1722
        %v1801 = vpop.f32.mrf.mxu0
        %v1802 = vadd.f32 0.0, %v1801
        %v1803 = vpop.f32.mrf.mxu0
        %1804 = vmatprep.mubr.f32.mxu0 0.0
        %1805 = vmatmul.mubr.f32.gmra.mxu0 %v1725
        %v1806 = vpop.f32.mrf.mxu0
        %v1807 = vadd.f32 0.0, %v1806
        %v1808 = vpop.f32.mrf.mxu0
        %1809 = vmatprep.mubr.f32.mxu0 0.0
        %1810 = vmatmul.mubr.f32.gmra.mxu0 %v1728
        %v1811 = vpop.f32.mrf.mxu0
        %v1812 = vadd.f32 0.0, %v1811
        %v1813 = vpop.f32.mrf.mxu0
        %1814 = vdwg.mxu0
        %v1816 = vsel %vm1178, %v943, 0
        %v1819 = vsel %vm1178, %v944, 0
        %v1822 = vsel %vm1178, %v945, 0
        %v1825 = vsel %vm1178, %v946, 0
        %1827 = vmatprep.subr.mxu0 0.0
        %1828 = vmatpush1.msra.mxu0 0.0
        %1829 = vmatprep.subr.mxu0 0.0
        %1830 = vmatpush1.msra.mxu0 0.0
        %1831 = vmatprep.subr.mxu0 0.0
        %1832 = vmatpush1.msra.mxu0 0.0
        %1833 = vmatprep.subr.mxu0 0.0
        %1834 = vmatpush1.msra.mxu0 0.0
        %1835 = vmatprep.subr.mxu0 0.0
        %1836 = vmatpush1.msra.mxu0 0.0
        %1837 = vmatprep.subr.mxu0 0.0
        %1838 = vmatpush1.msra.mxu0 0.0
        %1839 = vmatprep.subr.mxu0 0.0
        %1840 = vmatpush1.msra.mxu0 0.0
        %1841 = vmatprep.subr.mxu0 0.0
        %1842 = vmatpush1.msra.mxu0 0.0
        %1843 = vmatprep.subr.mxu0 0.0
        %1844 = vmatpush1.msra.mxu0 0.0
        %1845 = vmatprep.subr.mxu0 0.0
        %1846 = vmatpush1.msra.mxu0 0.0
        %1847 = vmatprep.subr.mxu0 0.0
        %1848 = vmatpush1.msra.mxu0 0.0
        %1849 = vmatprep.subr.mxu0 0.0
        %1850 = vmatpush1.msra.mxu0 0.0
        %1851 = vmatprep.subr.mxu0 0.0
        %1852 = vmatpush1.msra.mxu0 %v1681
        %1853 = vmatprep.subr.mxu0 0.0
        %1854 = vmatpush1.msra.mxu0 %v1680
        %1855 = vmatprep.subr.mxu0 0.0
        %1856 = vmatpush1.msra.mxu0 %v1679
        %1857 = vmatprep.subr.mxu0 0.0
        %1858 = vmatpush1.msra.mxu0 %v1678
        %1859 = vmatprep.subr.mxu0 0.0
        %1860 = vmatpush2.msra.mxu0 0.0
        %1861 = vmatprep.subr.mxu0 0.0
        %1862 = vmatpush2.msra.mxu0 0.0
        %1863 = vmatprep.subr.mxu0 0.0
        %1864 = vmatpush2.msra.mxu0 0.0
        %1865 = vmatprep.subr.mxu0 0.0
        %1866 = vmatpush2.msra.mxu0 0.0
        %1867 = vmatprep.subr.mxu0 0.0
        %1868 = vmatpush2.msra.mxu0 0.0
        %1869 = vmatprep.subr.mxu0 0.0
        %1870 = vmatpush2.msra.mxu0 0.0
        %1871 = vmatprep.subr.mxu0 0.0
        %1872 = vmatpush2.msra.mxu0 0.0
        %1873 = vmatprep.subr.mxu0 0.0
        %1874 = vmatpush2.msra.mxu0 0.0
        %1875 = vmatprep.subr.mxu0 0.0
        %1876 = vmatpush2.msra.mxu0 0.0
        %1877 = vmatprep.subr.mxu0 0.0
        %1878 = vmatpush2.msra.mxu0 0.0
        %1879 = vmatprep.subr.mxu0 0.0
        %1880 = vmatpush2.msra.mxu0 0.0
        %1881 = vmatprep.subr.mxu0 0.0
        %1882 = vmatpush2.msra.mxu0 0.0
        %1883 = vmatprep.subr.mxu0 0.0
        %1884 = vmatpush2.msra.mxu0 0.0
        %1885 = vmatprep.subr.mxu0 0.0
        %1886 = vmatpush2.msra.mxu0 0.0
        %1887 = vmatprep.subr.mxu0 0.0
        %1888 = vmatpush2.msra.mxu0 0.0
        %1889 = vmatprep.subr.mxu0 0.0
        %1890 = vmatpush2.msra.mxu0 0.0
        %1891 = vmatprep.mubr.f32.mxu0 0.0
        %1892 = vmatmul.mubr.f32.gmra.mxu0 %v1816
        %v1893 = vpop.f32.mrf.mxu0
        %v1894 = vadd.f32 %v1797, %v1893
        %v1895 = vpop.f32.mrf.mxu0
        %1896 = vmatprep.mubr.f32.mxu0 0.0
        %1897 = vmatmul.mubr.f32.gmra.mxu0 %v1819
        %v1898 = vpop.f32.mrf.mxu0
        %v1899 = vadd.f32 %v1802, %v1898
        %v1900 = vpop.f32.mrf.mxu0
        %1901 = vmatprep.mubr.f32.mxu0 0.0
        %1902 = vmatmul.mubr.f32.gmra.mxu0 %v1822
        %v1903 = vpop.f32.mrf.mxu0
        %v1904 = vadd.f32 %v1807, %v1903
        %v1905 = vpop.f32.mrf.mxu0
        %1906 = vmatprep.mubr.f32.mxu0 0.0
        %1907 = vmatmul.mubr.f32.gmra.mxu0 %v1825
        %v1908 = vpop.f32.mrf.mxu0
        %v1909 = vadd.f32 %v1812, %v1908
        %v1910 = vpop.f32.mrf.mxu0
        %1911 = vdwg.mxu0
        %v1913 = vsel %vm1178, %v947, 0
        %v1916 = vsel %vm1178, %v948, 0
        %v1919 = vsel %vm1178, %v949, 0
        %v1922 = vsel %vm1178, %v950, 0
        %1924 = vmatprep.subr.mxu0 0.0
        %1925 = vmatpush1.msra.mxu0 0.0
        %1926 = vmatprep.subr.mxu0 0.0
        %1927 = vmatpush1.msra.mxu0 0.0
        %1928 = vmatprep.subr.mxu0 0.0
        %1929 = vmatpush1.msra.mxu0 0.0
        %1930 = vmatprep.subr.mxu0 0.0
        %1931 = vmatpush1.msra.mxu0 0.0
        %1932 = vmatprep.subr.mxu0 0.0
        %1933 = vmatpush1.msra.mxu0 0.0
        %1934 = vmatprep.subr.mxu0 0.0
        %1935 = vmatpush1.msra.mxu0 0.0
        %1936 = vmatprep.subr.mxu0 0.0
        %1937 = vmatpush1.msra.mxu0 0.0
        %1938 = vmatprep.subr.mxu0 0.0
        %1939 = vmatpush1.msra.mxu0 0.0
        %1940 = vmatprep.subr.mxu0 0.0
        %1941 = vmatpush1.msra.mxu0 0.0
        %1942 = vmatprep.subr.mxu0 0.0
        %1943 = vmatpush1.msra.mxu0 0.0
        %1944 = vmatprep.subr.mxu0 0.0
        %1945 = vmatpush1.msra.mxu0 0.0
        %1946 = vmatprep.subr.mxu0 0.0
        %1947 = vmatpush1.msra.mxu0 0.0
        %1948 = vmatprep.subr.mxu0 0.0
        %1949 = vmatpush1.msra.mxu0 %v1717
        %1950 = vmatprep.subr.mxu0 0.0
        %1951 = vmatpush1.msra.mxu0 %v1716
        %1952 = vmatprep.subr.mxu0 0.0
        %1953 = vmatpush1.msra.mxu0 %v1715
        %1954 = vmatprep.subr.mxu0 0.0
        %1955 = vmatpush1.msra.mxu0 %v1714
        %1956 = vmatprep.subr.mxu0 0.0
        %1957 = vmatpush2.msra.mxu0 0.0
        %1958 = vmatprep.subr.mxu0 0.0
        %1959 = vmatpush2.msra.mxu0 0.0
        %1960 = vmatprep.subr.mxu0 0.0
        %1961 = vmatpush2.msra.mxu0 0.0
        %1962 = vmatprep.subr.mxu0 0.0
        %1963 = vmatpush2.msra.mxu0 0.0
        %1964 = vmatprep.subr.mxu0 0.0
        %1965 = vmatpush2.msra.mxu0 0.0
        %1966 = vmatprep.subr.mxu0 0.0
        %1967 = vmatpush2.msra.mxu0 0.0
        %1968 = vmatprep.subr.mxu0 0.0
        %1969 = vmatpush2.msra.mxu0 0.0
        %1970 = vmatprep.subr.mxu0 0.0
        %1971 = vmatpush2.msra.mxu0 0.0
        %1972 = vmatprep.subr.mxu0 0.0
        %1973 = vmatpush2.msra.mxu0 0.0
        %1974 = vmatprep.subr.mxu0 0.0
        %1975 = vmatpush2.msra.mxu0 0.0
        %1976 = vmatprep.subr.mxu0 0.0
        %1977 = vmatpush2.msra.mxu0 0.0
        %1978 = vmatprep.subr.mxu0 0.0
        %1979 = vmatpush2.msra.mxu0 0.0
        %1980 = vmatprep.subr.mxu0 0.0
        %1981 = vmatpush2.msra.mxu0 0.0
        %1982 = vmatprep.subr.mxu0 0.0
        %1983 = vmatpush2.msra.mxu0 0.0
        %1984 = vmatprep.subr.mxu0 0.0
        %1985 = vmatpush2.msra.mxu0 0.0
        %1986 = vmatprep.subr.mxu0 0.0
        %1987 = vmatpush2.msra.mxu0 0.0
        %1988 = vmatprep.mubr.f32.mxu0 0.0
        %1989 = vmatmul.mubr.f32.gmra.mxu0 %v1913
        %v1990 = vpop.f32.mrf.mxu0
        %v1991 = vadd.f32 0.0, %v1990
        %v1992 = vpop.f32.mrf.mxu0
        %1993 = vmatprep.mubr.f32.mxu0 0.0
        %1994 = vmatmul.mubr.f32.gmra.mxu0 %v1916
        %v1995 = vpop.f32.mrf.mxu0
        %v1996 = vadd.f32 0.0, %v1995
        %v1997 = vpop.f32.mrf.mxu0
        %1998 = vmatprep.mubr.f32.mxu0 0.0
        %1999 = vmatmul.mubr.f32.gmra.mxu0 %v1919
        %v2000 = vpop.f32.mrf.mxu0
        %v2001 = vadd.f32 0.0, %v2000
        %v2002 = vpop.f32.mrf.mxu0
        %2003 = vmatprep.mubr.f32.mxu0 0.0
        %2004 = vmatmul.mubr.f32.gmra.mxu0 %v1922
        %v2005 = vpop.f32.mrf.mxu0
        %v2006 = vadd.f32 0.0, %v2005
        %v2007 = vpop.f32.mrf.mxu0
        %2008 = vdwg.mxu0
        %v2009 = vadd.f32 %v1894, %v1991
        %v2010 = vadd.f32 %v1899, %v1996
        %v2011 = vadd.f32 %v1904, %v2001
        %v2012 = vadd.f32 %v1909, %v2006
        %2014 = vset.pattern.permute.xlu0 0
        %2015 = vperm.xlu0 %2014, %v951
        %v2016 = vpop.permute.xlu0 %2015
        %2019 = vset.pattern.permute.xlu0 0
        %2020 = vperm.xlu0 %2019, %v952
        %v2021 = vpop.permute.xlu0 %2020
        %2024 = vset.pattern.permute.xlu0 0
        %2025 = vperm.xlu0 %2024, %v953
        %v2026 = vpop.permute.xlu0 %2025
        %2029 = vset.pattern.permute.xlu0 0
        %2030 = vperm.xlu0 %2029, %v954
        %v2031 = vpop.permute.xlu0 %2030
        %v2033 = vadd.f32 %v2009, %v2016
        %v2034 = vadd.f32 %v2010, %v2021
        %v2035 = vadd.f32 %v2011, %v2026
        %v2036 = vadd.f32 %v2012, %v2031
        %v2037 = vadd.f32 %v2033, %v889
        %v2038 = vadd.f32 %v2034, %v894
        %v2039 = vadd.f32 %v2035, %v899
        %v2040 = vadd.f32 %v2036, %v904
        %v2041 = vld [vmem:[%s11] sm:$0xff]
        %v2042 = vld [vmem:[%s11 + $0x8] sm:$0xff]
        %v2043 = vld [vmem:[%s11 + $0x10] sm:$0xff]
        %v2044 = vld [vmem:[%s11 + $0x18] sm:$0xff]
        %v2045 = vld [vmem:[%s11 + $0x20] sm:$0xff]
        %v2046 = vld [vmem:[%s11 + $0x28] sm:$0xff]
        %v2047 = vld [vmem:[%s11 + $0x30] sm:$0xff]
        %v2048 = vld [vmem:[%s11 + $0x38] sm:$0xff]
        %v2049 = vld [vmem:[%s11 + $0x40] sm:$0xff]
        %v2050 = vld [vmem:[%s11 + $0x48] sm:$0xff]
        %v2051 = vld [vmem:[%s11 + $0x50] sm:$0xff]
        %v2052 = vld [vmem:[%s11 + $0x58] sm:$0xff]
        %v2053 = vld [vmem:[%s12] sm:$0xff]
        %v2054 = vld [vmem:[%s12 + $0x8] sm:$0xff]
        %v2055 = vld [vmem:[%s12 + $0x10] sm:$0xff]
        %v2056 = vld [vmem:[%s12 + $0x18] sm:$0xff]
        %v2057 = vlaneseq
        %v2058 = vshrl.u32 %v2057, 7
        %v2059 = vsub.s32 0, %v2058
        %v2060 = vrot.slane %v2037, %v2059
        %2062 = vbcast.lane.b32.xlu0 %v2060, 256
        %v2063 = vpop.permute.xlu0 %2062
        %v2064 = vlaneseq
        %v2065 = vshrl.u32 %v2064, 7
        %v2066 = vsub.s32 1, %v2065
        %v2067 = vrot.slane %v2037, %v2066
        %2069 = vbcast.lane.b32.xlu0 %v2067, 256
        %v2070 = vpop.permute.xlu0 %2069
        %v2071 = vlaneseq
        %v2072 = vshrl.u32 %v2071, 7
        %v2073 = vsub.s32 2, %v2072
        %v2074 = vrot.slane %v2037, %v2073
        %2076 = vbcast.lane.b32.xlu0 %v2074, 256
        %v2077 = vpop.permute.xlu0 %2076
        %v2078 = vlaneseq
        %v2079 = vshrl.u32 %v2078, 7
        %v2080 = vsub.s32 3, %v2079
        %v2081 = vrot.slane %v2037, %v2080
        %2083 = vbcast.lane.b32.xlu0 %v2081, 256
        %v2084 = vpop.permute.xlu0 %2083
        %v2085 = vlaneseq
        %v2086 = vshrl.u32 %v2085, 7
        %v2087 = vsub.s32 4, %v2086
        %v2088 = vrot.slane %v2037, %v2087
        %2090 = vbcast.lane.b32.xlu0 %v2088, 256
        %v2091 = vpop.permute.xlu0 %2090
        %v2092 = vlaneseq
        %v2093 = vshrl.u32 %v2092, 7
        %v2094 = vsub.s32 5, %v2093
        %v2095 = vrot.slane %v2037, %v2094
        %2097 = vbcast.lane.b32.xlu0 %v2095, 256
        %v2098 = vpop.permute.xlu0 %2097
        %v2099 = vlaneseq
        %v2100 = vshrl.u32 %v2099, 7
        %v2101 = vsub.s32 6, %v2100
        %v2102 = vrot.slane %v2037, %v2101
        %2104 = vbcast.lane.b32.xlu0 %v2102, 256
        %v2105 = vpop.permute.xlu0 %2104
        %v2106 = vlaneseq
        %v2107 = vshrl.u32 %v2106, 7
        %v2108 = vsub.s32 7, %v2107
        %v2109 = vrot.slane %v2037, %v2108
        %2111 = vbcast.lane.b32.xlu0 %v2109, 256
        %v2112 = vpop.permute.xlu0 %2111
        %v2113 = vlaneseq
        %v2114 = vshrl.u32 %v2113, 7
        %v2115 = vsub.s32 0, %v2114
        %v2116 = vrot.slane %v2038, %v2115
        %2118 = vbcast.lane.b32.xlu0 %v2116, 256
        %v2119 = vpop.permute.xlu0 %2118
        %v2120 = vlaneseq
        %v2121 = vshrl.u32 %v2120, 7
        %v2122 = vsub.s32 1, %v2121
        %v2123 = vrot.slane %v2038, %v2122
        %2125 = vbcast.lane.b32.xlu0 %v2123, 256
        %v2126 = vpop.permute.xlu0 %2125
        %v2127 = vlaneseq
        %v2128 = vshrl.u32 %v2127, 7
        %v2129 = vsub.s32 2, %v2128
        %v2130 = vrot.slane %v2038, %v2129
        %2132 = vbcast.lane.b32.xlu0 %v2130, 256
        %v2133 = vpop.permute.xlu0 %2132
        %v2134 = vlaneseq
        %v2135 = vshrl.u32 %v2134, 7
        %v2136 = vsub.s32 3, %v2135
        %v2137 = vrot.slane %v2038, %v2136
        %2139 = vbcast.lane.b32.xlu0 %v2137, 256
        %v2140 = vpop.permute.xlu0 %2139
        %v2141 = vlaneseq
        %v2142 = vshrl.u32 %v2141, 7
        %v2143 = vsub.s32 4, %v2142
        %v2144 = vrot.slane %v2038, %v2143
        %2146 = vbcast.lane.b32.xlu0 %v2144, 256
        %v2147 = vpop.permute.xlu0 %2146
        %v2148 = vlaneseq
        %v2149 = vshrl.u32 %v2148, 7
        %v2150 = vsub.s32 5, %v2149
        %v2151 = vrot.slane %v2038, %v2150
        %2153 = vbcast.lane.b32.xlu0 %v2151, 256
        %v2154 = vpop.permute.xlu0 %2153
        %v2155 = vlaneseq
        %v2156 = vshrl.u32 %v2155, 7
        %v2157 = vsub.s32 6, %v2156
        %v2158 = vrot.slane %v2038, %v2157
        %2160 = vbcast.lane.b32.xlu0 %v2158, 256
        %v2161 = vpop.permute.xlu0 %2160
        %v2162 = vlaneseq
        %v2163 = vshrl.u32 %v2162, 7
        %v2164 = vsub.s32 7, %v2163
        %v2165 = vrot.slane %v2038, %v2164
        %2167 = vbcast.lane.b32.xlu0 %v2165, 256
        %v2168 = vpop.permute.xlu0 %2167
        %v2169 = vlaneseq
        %v2170 = vshrl.u32 %v2169, 7
        %v2171 = vsub.s32 0, %v2170
        %v2172 = vrot.slane %v2039, %v2171
        %2174 = vbcast.lane.b32.xlu0 %v2172, 256
        %v2175 = vpop.permute.xlu0 %2174
        %v2176 = vlaneseq
        %v2177 = vshrl.u32 %v2176, 7
        %v2178 = vsub.s32 1, %v2177
        %v2179 = vrot.slane %v2039, %v2178
        %2181 = vbcast.lane.b32.xlu0 %v2179, 256
        %v2182 = vpop.permute.xlu0 %2181
        %v2183 = vlaneseq
        %v2184 = vshrl.u32 %v2183, 7
        %v2185 = vsub.s32 2, %v2184
        %v2186 = vrot.slane %v2039, %v2185
        %2188 = vbcast.lane.b32.xlu0 %v2186, 256
        %v2189 = vpop.permute.xlu0 %2188
        %v2190 = vlaneseq
        %v2191 = vshrl.u32 %v2190, 7
        %v2192 = vsub.s32 3, %v2191
        %v2193 = vrot.slane %v2039, %v2192
        %2195 = vbcast.lane.b32.xlu0 %v2193, 256
        %v2196 = vpop.permute.xlu0 %2195
        %v2197 = vlaneseq
        %v2198 = vshrl.u32 %v2197, 7
        %v2199 = vsub.s32 4, %v2198
        %v2200 = vrot.slane %v2039, %v2199
        %2202 = vbcast.lane.b32.xlu0 %v2200, 256
        %v2203 = vpop.permute.xlu0 %2202
        %v2204 = vlaneseq
        %v2205 = vshrl.u32 %v2204, 7
        %v2206 = vsub.s32 5, %v2205
        %v2207 = vrot.slane %v2039, %v2206
        %2209 = vbcast.lane.b32.xlu0 %v2207, 256
        %v2210 = vpop.permute.xlu0 %2209
        %v2211 = vlaneseq
        %v2212 = vshrl.u32 %v2211, 7
        %v2213 = vsub.s32 6, %v2212
        %v2214 = vrot.slane %v2039, %v2213
        %2216 = vbcast.lane.b32.xlu0 %v2214, 256
        %v2217 = vpop.permute.xlu0 %2216
        %v2218 = vlaneseq
        %v2219 = vshrl.u32 %v2218, 7
        %v2220 = vsub.s32 7, %v2219
        %v2221 = vrot.slane %v2039, %v2220
        %2223 = vbcast.lane.b32.xlu0 %v2221, 256
        %v2224 = vpop.permute.xlu0 %2223
        %v2225 = vlaneseq
        %v2226 = vshrl.u32 %v2225, 7
        %v2227 = vsub.s32 0, %v2226
        %v2228 = vrot.slane %v2040, %v2227
        %2230 = vbcast.lane.b32.xlu0 %v2228, 256
        %v2231 = vpop.permute.xlu0 %2230
        %v2232 = vlaneseq
        %v2233 = vshrl.u32 %v2232, 7
        %v2234 = vsub.s32 1, %v2233
        %v2235 = vrot.slane %v2040, %v2234
        %2237 = vbcast.lane.b32.xlu0 %v2235, 256
        %v2238 = vpop.permute.xlu0 %2237
        %v2239 = vlaneseq
        %v2240 = vshrl.u32 %v2239, 7
        %v2241 = vsub.s32 2, %v2240
        %v2242 = vrot.slane %v2040, %v2241
        %2244 = vbcast.lane.b32.xlu0 %v2242, 256
        %v2245 = vpop.permute.xlu0 %2244
        %v2246 = vlaneseq
        %v2247 = vshrl.u32 %v2246, 7
        %v2248 = vsub.s32 3, %v2247
        %v2249 = vrot.slane %v2040, %v2248
        %2251 = vbcast.lane.b32.xlu0 %v2249, 256
        %v2252 = vpop.permute.xlu0 %2251
        %v2253 = vlaneseq
        %v2254 = vshrl.u32 %v2253, 7
        %v2255 = vsub.s32 4, %v2254
        %v2256 = vrot.slane %v2040, %v2255
        %2258 = vbcast.lane.b32.xlu0 %v2256, 256
        %v2259 = vpop.permute.xlu0 %2258
        %v2260 = vlaneseq
        %v2261 = vshrl.u32 %v2260, 7
        %v2262 = vsub.s32 5, %v2261
        %v2263 = vrot.slane %v2040, %v2262
        %2265 = vbcast.lane.b32.xlu0 %v2263, 256
        %v2266 = vpop.permute.xlu0 %2265
        %v2267 = vlaneseq
        %v2268 = vshrl.u32 %v2267, 7
        %v2269 = vsub.s32 6, %v2268
        %v2270 = vrot.slane %v2040, %v2269
        %2272 = vbcast.lane.b32.xlu0 %v2270, 256
        %v2273 = vpop.permute.xlu0 %2272
        %v2274 = vlaneseq
        %v2275 = vshrl.u32 %v2274, 7
        %v2276 = vsub.s32 7, %v2275
        %v2277 = vrot.slane %v2040, %v2276
        %2279 = vbcast.lane.b32.xlu0 %v2277, 256
        %v2280 = vpop.permute.xlu0 %2279
        %v2281 = vcombine.low %v2063, %v2077
        %v2282 = vcombine.high %v2063, %v2077
        %v2284 = vunpack.c.l.s4 1983009808
        %v2285 = vunpack.c.0.s8 %v2284
        %v2286 = vlaneseq
        %v2287 = vshrl.u32 %v2286, 7
        %v2288 = vsub.s32 %v2285, %v2287
        %v2289 = vrot.slane %v2281, %v2288
        %v2291 = vunpack.c.l.s4 1983009808
        %v2292 = vunpack.c.0.s8 %v2291
        %v2293 = vlaneseq
        %v2294 = vshrl.u32 %v2293, 7
        %v2295 = vsub.s32 %v2292, %v2294
        %v2296 = vrot.slane %v2282, %v2295
        %v2297 = vcombine.low %v2070, %v2084
        %v2298 = vcombine.high %v2070, %v2084
        %v2300 = vunpack.c.l.s4 1983009808
        %v2301 = vunpack.c.0.s8 %v2300
        %v2302 = vlaneseq
        %v2303 = vshrl.u32 %v2302, 7
        %v2304 = vsub.s32 %v2301, %v2303
        %v2305 = vrot.slane %v2297, %v2304
        %v2307 = vunpack.c.l.s4 1983009808
        %v2308 = vunpack.c.0.s8 %v2307
        %v2309 = vlaneseq
        %v2310 = vshrl.u32 %v2309, 7
        %v2311 = vsub.s32 %v2308, %v2310
        %v2312 = vrot.slane %v2298, %v2311
        %v2313 = vcombine.low %v2091, %v2105
        %v2314 = vcombine.high %v2091, %v2105
        %v2316 = vunpack.c.l.s4 1983009808
        %v2317 = vunpack.c.0.s8 %v2316
        %v2318 = vlaneseq
        %v2319 = vshrl.u32 %v2318, 7
        %v2320 = vsub.s32 %v2317, %v2319
        %v2321 = vrot.slane %v2313, %v2320
        %v2323 = vunpack.c.l.s4 1983009808
        %v2324 = vunpack.c.0.s8 %v2323
        %v2325 = vlaneseq
        %v2326 = vshrl.u32 %v2325, 7
        %v2327 = vsub.s32 %v2324, %v2326
        %v2328 = vrot.slane %v2314, %v2327
        %v2329 = vcombine.low %v2098, %v2112
        %v2330 = vcombine.high %v2098, %v2112
        %v2332 = vunpack.c.l.s4 1983009808
        %v2333 = vunpack.c.0.s8 %v2332
        %v2334 = vlaneseq
        %v2335 = vshrl.u32 %v2334, 7
        %v2336 = vsub.s32 %v2333, %v2335
        %v2337 = vrot.slane %v2329, %v2336
        %v2339 = vunpack.c.l.s4 1983009808
        %v2340 = vunpack.c.0.s8 %v2339
        %v2341 = vlaneseq
        %v2342 = vshrl.u32 %v2341, 7
        %v2343 = vsub.s32 %v2340, %v2342
        %v2344 = vrot.slane %v2330, %v2343
        %v2345 = vcombine.low %v2289, %v2305
        %v2346 = vcombine.high %v2289, %v2305
        %v2348 = vunpack.c.l.s4 1934713408
        %v2349 = vunpack.c.0.s8 %v2348
        %v2350 = vlaneseq
        %v2351 = vshrl.u32 %v2350, 7
        %v2352 = vsub.s32 %v2349, %v2351
        %v2353 = vrot.slane %v2345, %v2352
        %v2355 = vunpack.c.l.s4 1934713408
        %v2356 = vunpack.c.0.s8 %v2355
        %v2357 = vlaneseq
        %v2358 = vshrl.u32 %v2357, 7
        %v2359 = vsub.s32 %v2356, %v2358
        %v2360 = vrot.slane %v2346, %v2359
        %v2361 = vcombine.low %v2296, %v2312
        %v2362 = vcombine.high %v2296, %v2312
        %v2364 = vunpack.c.l.s4 1934713408
        %v2365 = vunpack.c.0.s8 %v2364
        %v2366 = vlaneseq
        %v2367 = vshrl.u32 %v2366, 7
        %v2368 = vsub.s32 %v2365, %v2367
        %v2369 = vrot.slane %v2361, %v2368
        %v2371 = vunpack.c.l.s4 1934713408
        %v2372 = vunpack.c.0.s8 %v2371
        %v2373 = vlaneseq
        %v2374 = vshrl.u32 %v2373, 7
        %v2375 = vsub.s32 %v2372, %v2374
        %v2376 = vrot.slane %v2362, %v2375
        %v2377 = vcombine.low %v2321, %v2337
        %v2378 = vcombine.high %v2321, %v2337
        %v2380 = vunpack.c.l.s4 1934713408
        %v2381 = vunpack.c.0.s8 %v2380
        %v2382 = vlaneseq
        %v2383 = vshrl.u32 %v2382, 7
        %v2384 = vsub.s32 %v2381, %v2383
        %v2385 = vrot.slane %v2377, %v2384
        %v2387 = vunpack.c.l.s4 1934713408
        %v2388 = vunpack.c.0.s8 %v2387
        %v2389 = vlaneseq
        %v2390 = vshrl.u32 %v2389, 7
        %v2391 = vsub.s32 %v2388, %v2390
        %v2392 = vrot.slane %v2378, %v2391
        %v2393 = vcombine.low %v2328, %v2344
        %v2394 = vcombine.high %v2328, %v2344
        %v2396 = vunpack.c.l.s4 1934713408
        %v2397 = vunpack.c.0.s8 %v2396
        %v2398 = vlaneseq
        %v2399 = vshrl.u32 %v2398, 7
        %v2400 = vsub.s32 %v2397, %v2399
        %v2401 = vrot.slane %v2393, %v2400
        %v2403 = vunpack.c.l.s4 1934713408
        %v2404 = vunpack.c.0.s8 %v2403
        %v2405 = vlaneseq
        %v2406 = vshrl.u32 %v2405, 7
        %v2407 = vsub.s32 %v2404, %v2406
        %v2408 = vrot.slane %v2394, %v2407
        %v2409 = vcombine.low %v2353, %v2385
        %v2410 = vcombine.high %v2353, %v2385
        %v2411 = vcombine.low %v2360, %v2392
        %v2412 = vcombine.high %v2360, %v2392
        %v2413 = vcombine.low %v2369, %v2401
        %v2414 = vcombine.high %v2369, %v2401
        %v2415 = vcombine.low %v2376, %v2408
        %v2416 = vcombine.high %v2376, %v2408
        %v2417 = vcombine.low %v2119, %v2133
        %v2418 = vcombine.high %v2119, %v2133
        %v2420 = vunpack.c.l.s4 1983009808
        %v2421 = vunpack.c.0.s8 %v2420
        %v2422 = vlaneseq
        %v2423 = vshrl.u32 %v2422, 7
        %v2424 = vsub.s32 %v2421, %v2423
        %v2425 = vrot.slane %v2417, %v2424
        %v2427 = vunpack.c.l.s4 1983009808
        %v2428 = vunpack.c.0.s8 %v2427
        %v2429 = vlaneseq
        %v2430 = vshrl.u32 %v2429, 7
        %v2431 = vsub.s32 %v2428, %v2430
        %v2432 = vrot.slane %v2418, %v2431
        %v2433 = vcombine.low %v2126, %v2140
        %v2434 = vcombine.high %v2126, %v2140
        %v2436 = vunpack.c.l.s4 1983009808
        %v2437 = vunpack.c.0.s8 %v2436
        %v2438 = vlaneseq
        %v2439 = vshrl.u32 %v2438, 7
        %v2440 = vsub.s32 %v2437, %v2439
        %v2441 = vrot.slane %v2433, %v2440
        %v2443 = vunpack.c.l.s4 1983009808
        %v2444 = vunpack.c.0.s8 %v2443
        %v2445 = vlaneseq
        %v2446 = vshrl.u32 %v2445, 7
        %v2447 = vsub.s32 %v2444, %v2446
        %v2448 = vrot.slane %v2434, %v2447
        %v2449 = vcombine.low %v2147, %v2161
        %v2450 = vcombine.high %v2147, %v2161
        %v2452 = vunpack.c.l.s4 1983009808
        %v2453 = vunpack.c.0.s8 %v2452
        %v2454 = vlaneseq
        %v2455 = vshrl.u32 %v2454, 7
        %v2456 = vsub.s32 %v2453, %v2455
        %v2457 = vrot.slane %v2449, %v2456
        %v2459 = vunpack.c.l.s4 1983009808
        %v2460 = vunpack.c.0.s8 %v2459
        %v2461 = vlaneseq
        %v2462 = vshrl.u32 %v2461, 7
        %v2463 = vsub.s32 %v2460, %v2462
        %v2464 = vrot.slane %v2450, %v2463
        %v2465 = vcombine.low %v2154, %v2168
        %v2466 = vcombine.high %v2154, %v2168
        %v2468 = vunpack.c.l.s4 1983009808
        %v2469 = vunpack.c.0.s8 %v2468
        %v2470 = vlaneseq
        %v2471 = vshrl.u32 %v2470, 7
        %v2472 = vsub.s32 %v2469, %v2471
        %v2473 = vrot.slane %v2465, %v2472
        %v2475 = vunpack.c.l.s4 1983009808
        %v2476 = vunpack.c.0.s8 %v2475
        %v2477 = vlaneseq
        %v2478 = vshrl.u32 %v2477, 7
        %v2479 = vsub.s32 %v2476, %v2478
        %v2480 = vrot.slane %v2466, %v2479
        %v2481 = vcombine.low %v2425, %v2441
        %v2482 = vcombine.high %v2425, %v2441
        %v2484 = vunpack.c.l.s4 1934713408
        %v2485 = vunpack.c.0.s8 %v2484
        %v2486 = vlaneseq
        %v2487 = vshrl.u32 %v2486, 7
        %v2488 = vsub.s32 %v2485, %v2487
        %v2489 = vrot.slane %v2481, %v2488
        %v2491 = vunpack.c.l.s4 1934713408
        %v2492 = vunpack.c.0.s8 %v2491
        %v2493 = vlaneseq
        %v2494 = vshrl.u32 %v2493, 7
        %v2495 = vsub.s32 %v2492, %v2494
        %v2496 = vrot.slane %v2482, %v2495
        %v2497 = vcombine.low %v2432, %v2448
        %v2498 = vcombine.high %v2432, %v2448
        %v2500 = vunpack.c.l.s4 1934713408
        %v2501 = vunpack.c.0.s8 %v2500
        %v2502 = vlaneseq
        %v2503 = vshrl.u32 %v2502, 7
        %v2504 = vsub.s32 %v2501, %v2503
        %v2505 = vrot.slane %v2497, %v2504
        %v2507 = vunpack.c.l.s4 1934713408
        %v2508 = vunpack.c.0.s8 %v2507
        %v2509 = vlaneseq
        %v2510 = vshrl.u32 %v2509, 7
        %v2511 = vsub.s32 %v2508, %v2510
        %v2512 = vrot.slane %v2498, %v2511
        %v2513 = vcombine.low %v2457, %v2473
        %v2514 = vcombine.high %v2457, %v2473
        %v2516 = vunpack.c.l.s4 1934713408
        %v2517 = vunpack.c.0.s8 %v2516
        %v2518 = vlaneseq
        %v2519 = vshrl.u32 %v2518, 7
        %v2520 = vsub.s32 %v2517, %v2519
        %v2521 = vrot.slane %v2513, %v2520
        %v2523 = vunpack.c.l.s4 1934713408
        %v2524 = vunpack.c.0.s8 %v2523
        %v2525 = vlaneseq
        %v2526 = vshrl.u32 %v2525, 7
        %v2527 = vsub.s32 %v2524, %v2526
        %v2528 = vrot.slane %v2514, %v2527
        %v2529 = vcombine.low %v2464, %v2480
        %v2530 = vcombine.high %v2464, %v2480
        %v2532 = vunpack.c.l.s4 1934713408
        %v2533 = vunpack.c.0.s8 %v2532
        %v2534 = vlaneseq
        %v2535 = vshrl.u32 %v2534, 7
        %v2536 = vsub.s32 %v2533, %v2535
        %v2537 = vrot.slane %v2529, %v2536
        %v2539 = vunpack.c.l.s4 1934713408
        %v2540 = vunpack.c.0.s8 %v2539
        %v2541 = vlaneseq
        %v2542 = vshrl.u32 %v2541, 7
        %v2543 = vsub.s32 %v2540, %v2542
        %v2544 = vrot.slane %v2530, %v2543
        %v2545 = vcombine.low %v2489, %v2521
        %v2546 = vcombine.high %v2489, %v2521
        %v2547 = vcombine.low %v2496, %v2528
        %v2548 = vcombine.high %v2496, %v2528
        %v2549 = vcombine.low %v2505, %v2537
        %v2550 = vcombine.high %v2505, %v2537
        %v2551 = vcombine.low %v2512, %v2544
        %v2552 = vcombine.high %v2512, %v2544
        %v2553 = vcombine.low %v2175, %v2189
        %v2554 = vcombine.high %v2175, %v2189
        %v2556 = vunpack.c.l.s4 1983009808
        %v2557 = vunpack.c.0.s8 %v2556
        %v2558 = vlaneseq
        %v2559 = vshrl.u32 %v2558, 7
        %v2560 = vsub.s32 %v2557, %v2559
        %v2561 = vrot.slane %v2553, %v2560
        %v2563 = vunpack.c.l.s4 1983009808
        %v2564 = vunpack.c.0.s8 %v2563
        %v2565 = vlaneseq
        %v2566 = vshrl.u32 %v2565, 7
        %v2567 = vsub.s32 %v2564, %v2566
        %v2568 = vrot.slane %v2554, %v2567
        %v2569 = vcombine.low %v2182, %v2196
        %v2570 = vcombine.high %v2182, %v2196
        %v2572 = vunpack.c.l.s4 1983009808
        %v2573 = vunpack.c.0.s8 %v2572
        %v2574 = vlaneseq
        %v2575 = vshrl.u32 %v2574, 7
        %v2576 = vsub.s32 %v2573, %v2575
        %v2577 = vrot.slane %v2569, %v2576
        %v2579 = vunpack.c.l.s4 1983009808
        %v2580 = vunpack.c.0.s8 %v2579
        %v2581 = vlaneseq
        %v2582 = vshrl.u32 %v2581, 7
        %v2583 = vsub.s32 %v2580, %v2582
        %v2584 = vrot.slane %v2570, %v2583
        %v2585 = vcombine.low %v2203, %v2217
        %v2586 = vcombine.high %v2203, %v2217
        %v2588 = vunpack.c.l.s4 1983009808
        %v2589 = vunpack.c.0.s8 %v2588
        %v2590 = vlaneseq
        %v2591 = vshrl.u32 %v2590, 7
        %v2592 = vsub.s32 %v2589, %v2591
        %v2593 = vrot.slane %v2585, %v2592
        %v2595 = vunpack.c.l.s4 1983009808
        %v2596 = vunpack.c.0.s8 %v2595
        %v2597 = vlaneseq
        %v2598 = vshrl.u32 %v2597, 7
        %v2599 = vsub.s32 %v2596, %v2598
        %v2600 = vrot.slane %v2586, %v2599
        %v2601 = vcombine.low %v2210, %v2224
        %v2602 = vcombine.high %v2210, %v2224
        %v2604 = vunpack.c.l.s4 1983009808
        %v2605 = vunpack.c.0.s8 %v2604
        %v2606 = vlaneseq
        %v2607 = vshrl.u32 %v2606, 7
        %v2608 = vsub.s32 %v2605, %v2607
        %v2609 = vrot.slane %v2601, %v2608
        %v2611 = vunpack.c.l.s4 1983009808
        %v2612 = vunpack.c.0.s8 %v2611
        %v2613 = vlaneseq
        %v2614 = vshrl.u32 %v2613, 7
        %v2615 = vsub.s32 %v2612, %v2614
        %v2616 = vrot.slane %v2602, %v2615
        %v2617 = vcombine.low %v2561, %v2577
        %v2618 = vcombine.high %v2561, %v2577
        %v2620 = vunpack.c.l.s4 1934713408
        %v2621 = vunpack.c.0.s8 %v2620
        %v2622 = vlaneseq
        %v2623 = vshrl.u32 %v2622, 7
        %v2624 = vsub.s32 %v2621, %v2623
        %v2625 = vrot.slane %v2617, %v2624
        %v2627 = vunpack.c.l.s4 1934713408
        %v2628 = vunpack.c.0.s8 %v2627
        %v2629 = vlaneseq
        %v2630 = vshrl.u32 %v2629, 7
        %v2631 = vsub.s32 %v2628, %v2630
        %v2632 = vrot.slane %v2618, %v2631
        %v2633 = vcombine.low %v2568, %v2584
        %v2634 = vcombine.high %v2568, %v2584
        %v2636 = vunpack.c.l.s4 1934713408
        %v2637 = vunpack.c.0.s8 %v2636
        %v2638 = vlaneseq
        %v2639 = vshrl.u32 %v2638, 7
        %v2640 = vsub.s32 %v2637, %v2639
        %v2641 = vrot.slane %v2633, %v2640
        %v2643 = vunpack.c.l.s4 1934713408
        %v2644 = vunpack.c.0.s8 %v2643
        %v2645 = vlaneseq
        %v2646 = vshrl.u32 %v2645, 7
        %v2647 = vsub.s32 %v2644, %v2646
        %v2648 = vrot.slane %v2634, %v2647
        %v2649 = vcombine.low %v2593, %v2609
        %v2650 = vcombine.high %v2593, %v2609
        %v2652 = vunpack.c.l.s4 1934713408
        %v2653 = vunpack.c.0.s8 %v2652
        %v2654 = vlaneseq
        %v2655 = vshrl.u32 %v2654, 7
        %v2656 = vsub.s32 %v2653, %v2655
        %v2657 = vrot.slane %v2649, %v2656
        %v2659 = vunpack.c.l.s4 1934713408
        %v2660 = vunpack.c.0.s8 %v2659
        %v2661 = vlaneseq
        %v2662 = vshrl.u32 %v2661, 7
        %v2663 = vsub.s32 %v2660, %v2662
        %v2664 = vrot.slane %v2650, %v2663
        %v2665 = vcombine.low %v2600, %v2616
        %v2666 = vcombine.high %v2600, %v2616
        %v2668 = vunpack.c.l.s4 1934713408
        %v2669 = vunpack.c.0.s8 %v2668
        %v2670 = vlaneseq
        %v2671 = vshrl.u32 %v2670, 7
        %v2672 = vsub.s32 %v2669, %v2671
        %v2673 = vrot.slane %v2665, %v2672
        %v2675 = vunpack.c.l.s4 1934713408
        %v2676 = vunpack.c.0.s8 %v2675
        %v2677 = vlaneseq
        %v2678 = vshrl.u32 %v2677, 7
        %v2679 = vsub.s32 %v2676, %v2678
        %v2680 = vrot.slane %v2666, %v2679
        %v2681 = vcombine.low %v2625, %v2657
        %v2682 = vcombine.high %v2625, %v2657
        %v2683 = vcombine.low %v2632, %v2664
        %v2684 = vcombine.high %v2632, %v2664
        %v2685 = vcombine.low %v2641, %v2673
        %v2686 = vcombine.high %v2641, %v2673
        %v2687 = vcombine.low %v2648, %v2680
        %v2688 = vcombine.high %v2648, %v2680
        %v2689 = vcombine.low %v2231, %v2245
        %v2690 = vcombine.high %v2231, %v2245
        %v2692 = vunpack.c.l.s4 1983009808
        %v2693 = vunpack.c.0.s8 %v2692
        %v2694 = vlaneseq
        %v2695 = vshrl.u32 %v2694, 7
        %v2696 = vsub.s32 %v2693, %v2695
        %v2697 = vrot.slane %v2689, %v2696
        %v2699 = vunpack.c.l.s4 1983009808
        %v2700 = vunpack.c.0.s8 %v2699
        %v2701 = vlaneseq
        %v2702 = vshrl.u32 %v2701, 7
        %v2703 = vsub.s32 %v2700, %v2702
        %v2704 = vrot.slane %v2690, %v2703
        %v2705 = vcombine.low %v2238, %v2252
        %v2706 = vcombine.high %v2238, %v2252
        %v2708 = vunpack.c.l.s4 1983009808
        %v2709 = vunpack.c.0.s8 %v2708
        %v2710 = vlaneseq
        %v2711 = vshrl.u32 %v2710, 7
        %v2712 = vsub.s32 %v2709, %v2711
        %v2713 = vrot.slane %v2705, %v2712
        %v2715 = vunpack.c.l.s4 1983009808
        %v2716 = vunpack.c.0.s8 %v2715
        %v2717 = vlaneseq
        %v2718 = vshrl.u32 %v2717, 7
        %v2719 = vsub.s32 %v2716, %v2718
        %v2720 = vrot.slane %v2706, %v2719
        %v2721 = vcombine.low %v2259, %v2273
        %v2722 = vcombine.high %v2259, %v2273
        %v2724 = vunpack.c.l.s4 1983009808
        %v2725 = vunpack.c.0.s8 %v2724
        %v2726 = vlaneseq
        %v2727 = vshrl.u32 %v2726, 7
        %v2728 = vsub.s32 %v2725, %v2727
        %v2729 = vrot.slane %v2721, %v2728
        %v2731 = vunpack.c.l.s4 1983009808
        %v2732 = vunpack.c.0.s8 %v2731
        %v2733 = vlaneseq
        %v2734 = vshrl.u32 %v2733, 7
        %v2735 = vsub.s32 %v2732, %v2734
        %v2736 = vrot.slane %v2722, %v2735
        %v2737 = vcombine.low %v2266, %v2280
        %v2738 = vcombine.high %v2266, %v2280
        %v2740 = vunpack.c.l.s4 1983009808
        %v2741 = vunpack.c.0.s8 %v2740
        %v2742 = vlaneseq
        %v2743 = vshrl.u32 %v2742, 7
        %v2744 = vsub.s32 %v2741, %v2743
        %v2745 = vrot.slane %v2737, %v2744
        %v2747 = vunpack.c.l.s4 1983009808
        %v2748 = vunpack.c.0.s8 %v2747
        %v2749 = vlaneseq
        %v2750 = vshrl.u32 %v2749, 7
        %v2751 = vsub.s32 %v2748, %v2750
        %v2752 = vrot.slane %v2738, %v2751
        %v2753 = vcombine.low %v2697, %v2713
        %v2754 = vcombine.high %v2697, %v2713
        %v2756 = vunpack.c.l.s4 1934713408
        %v2757 = vunpack.c.0.s8 %v2756
        %v2758 = vlaneseq
        %v2759 = vshrl.u32 %v2758, 7
        %v2760 = vsub.s32 %v2757, %v2759
        %v2761 = vrot.slane %v2753, %v2760
        %v2763 = vunpack.c.l.s4 1934713408
        %v2764 = vunpack.c.0.s8 %v2763
        %v2765 = vlaneseq
        %v2766 = vshrl.u32 %v2765, 7
        %v2767 = vsub.s32 %v2764, %v2766
        %v2768 = vrot.slane %v2754, %v2767
        %v2769 = vcombine.low %v2704, %v2720
        %v2770 = vcombine.high %v2704, %v2720
        %v2772 = vunpack.c.l.s4 1934713408
        %v2773 = vunpack.c.0.s8 %v2772
        %v2774 = vlaneseq
        %v2775 = vshrl.u32 %v2774, 7
        %v2776 = vsub.s32 %v2773, %v2775
        %v2777 = vrot.slane %v2769, %v2776
        %v2779 = vunpack.c.l.s4 1934713408
        %v2780 = vunpack.c.0.s8 %v2779
        %v2781 = vlaneseq
        %v2782 = vshrl.u32 %v2781, 7
        %v2783 = vsub.s32 %v2780, %v2782
        %v2784 = vrot.slane %v2770, %v2783
        %v2785 = vcombine.low %v2729, %v2745
        %v2786 = vcombine.high %v2729, %v2745
        %v2788 = vunpack.c.l.s4 1934713408
        %v2789 = vunpack.c.0.s8 %v2788
        %v2790 = vlaneseq
        %v2791 = vshrl.u32 %v2790, 7
        %v2792 = vsub.s32 %v2789, %v2791
        %v2793 = vrot.slane %v2785, %v2792
        %v2795 = vunpack.c.l.s4 1934713408
        %v2796 = vunpack.c.0.s8 %v2795
        %v2797 = vlaneseq
        %v2798 = vshrl.u32 %v2797, 7
        %v2799 = vsub.s32 %v2796, %v2798
        %v2800 = vrot.slane %v2786, %v2799
        %v2801 = vcombine.low %v2736, %v2752
        %v2802 = vcombine.high %v2736, %v2752
        %v2804 = vunpack.c.l.s4 1934713408
        %v2805 = vunpack.c.0.s8 %v2804
        %v2806 = vlaneseq
        %v2807 = vshrl.u32 %v2806, 7
        %v2808 = vsub.s32 %v2805, %v2807
        %v2809 = vrot.slane %v2801, %v2808
        %v2811 = vunpack.c.l.s4 1934713408
        %v2812 = vunpack.c.0.s8 %v2811
        %v2813 = vlaneseq
        %v2814 = vshrl.u32 %v2813, 7
        %v2815 = vsub.s32 %v2812, %v2814
        %v2816 = vrot.slane %v2802, %v2815
        %v2817 = vcombine.low %v2761, %v2793
        %v2818 = vcombine.high %v2761, %v2793
        %v2819 = vcombine.low %v2768, %v2800
        %v2820 = vcombine.high %v2768, %v2800
        %v2821 = vcombine.low %v2777, %v2809
        %v2822 = vcombine.high %v2777, %v2809
        %v2823 = vcombine.low %v2784, %v2816
        %v2824 = vcombine.high %v2784, %v2816
        %2829 = vrot.lane.b32.xlu0 %v2410, 2
        %v2830 = vpop.permute.xlu0 %2829
        %2831 = vrot.lane.b32.xlu0 %v2546, 2
        %v2832 = vpop.permute.xlu0 %2831
        %2833 = vrot.lane.b32.xlu0 %v2682, 2
        %v2834 = vpop.permute.xlu0 %2833
        %2835 = vrot.lane.b32.xlu0 %v2818, 2
        %v2836 = vpop.permute.xlu0 %2835
        %2845 = vrot.lane.b32.xlu0 %v2411, 4
        %v2846 = vpop.permute.xlu0 %2845
        %2847 = vrot.lane.b32.xlu0 %v2547, 4
        %v2848 = vpop.permute.xlu0 %2847
        %2849 = vrot.lane.b32.xlu0 %v2683, 4
        %v2850 = vpop.permute.xlu0 %2849
        %2851 = vrot.lane.b32.xlu0 %v2819, 4
        %v2852 = vpop.permute.xlu0 %2851
        %2861 = vrot.lane.b32.xlu0 %v2412, 6
        %v2862 = vpop.permute.xlu0 %2861
        %2863 = vrot.lane.b32.xlu0 %v2548, 6
        %v2864 = vpop.permute.xlu0 %2863
        %2865 = vrot.lane.b32.xlu0 %v2684, 6
        %v2866 = vpop.permute.xlu0 %2865
        %2867 = vrot.lane.b32.xlu0 %v2820, 6
        %v2868 = vpop.permute.xlu0 %2867
        %2877 = vrot.lane.b32.xlu0 %v2413, 8
        %v2878 = vpop.permute.xlu0 %2877
        %2879 = vrot.lane.b32.xlu0 %v2549, 8
        %v2880 = vpop.permute.xlu0 %2879
        %2881 = vrot.lane.b32.xlu0 %v2685, 8
        %v2882 = vpop.permute.xlu0 %2881
        %2883 = vrot.lane.b32.xlu0 %v2821, 8
        %v2884 = vpop.permute.xlu0 %2883
        %2893 = vrot.lane.b32.xlu0 %v2414, 10
        %v2894 = vpop.permute.xlu0 %2893
        %2895 = vrot.lane.b32.xlu0 %v2550, 10
        %v2896 = vpop.permute.xlu0 %2895
        %2897 = vrot.lane.b32.xlu0 %v2686, 10
        %v2898 = vpop.permute.xlu0 %2897
        %2899 = vrot.lane.b32.xlu0 %v2822, 10
        %v2900 = vpop.permute.xlu0 %2899
        %2909 = vrot.lane.b32.xlu0 %v2415, 12
        %v2910 = vpop.permute.xlu0 %2909
        %2911 = vrot.lane.b32.xlu0 %v2551, 12
        %v2912 = vpop.permute.xlu0 %2911
        %2913 = vrot.lane.b32.xlu0 %v2687, 12
        %v2914 = vpop.permute.xlu0 %2913
        %2915 = vrot.lane.b32.xlu0 %v2823, 12
        %v2916 = vpop.permute.xlu0 %2915
        %2925 = vrot.lane.b32.xlu0 %v2416, 14
        %v2926 = vpop.permute.xlu0 %2925
        %2927 = vrot.lane.b32.xlu0 %v2552, 14
        %v2928 = vpop.permute.xlu0 %2927
        %2929 = vrot.lane.b32.xlu0 %v2688, 14
        %v2930 = vpop.permute.xlu0 %2929
        %2931 = vrot.lane.b32.xlu0 %v2824, 14
        %v2932 = vpop.permute.xlu0 %2931
        %vm2937 = vcmask 15360
        %v2938 = vsel %vm2937, %v2409, %v2830
        %v2939 = vsel %vm2937, %v2545, %v2832
        %v2940 = vsel %vm2937, %v2681, %v2834
        %v2941 = vsel %vm2937, %v2817, %v2836
        %vm2942 = vcmask 31744
        %v2943 = vsel %vm2942, %v2938, %v2846
        %v2944 = vsel %vm2942, %v2939, %v2848
        %v2945 = vsel %vm2942, %v2940, %v2850
        %v2946 = vsel %vm2942, %v2941, %v2852
        %vm2947 = vcmask 48128
        %v2948 = vsel %vm2947, %v2943, %v2862
        %v2949 = vsel %vm2947, %v2944, %v2864
        %v2950 = vsel %vm2947, %v2945, %v2866
        %v2951 = vsel %vm2947, %v2946, %v2868
        %v2952 = vsel %vm809, %v2948, %v2878
        %v2953 = vsel %vm809, %v2949, %v2880
        %v2954 = vsel %vm809, %v2950, %v2882
        %v2955 = vsel %vm809, %v2951, %v2884
        %vm2956 = vcmask 80896
        %v2957 = vsel %vm2956, %v2952, %v2894
        %v2958 = vsel %vm2956, %v2953, %v2896
        %v2959 = vsel %vm2956, %v2954, %v2898
        %v2960 = vsel %vm2956, %v2955, %v2900
        %vm2961 = vcmask 97280
        %v2962 = vsel %vm2961, %v2957, %v2910
        %v2963 = vsel %vm2961, %v2958, %v2912
        %v2964 = vsel %vm2961, %v2959, %v2914
        %v2965 = vsel %vm2961, %v2960, %v2916
        %vm2966 = vcmask 113664
        %v2967 = vsel %vm2966, %v2962, %v2926
        %v2968 = vsel %vm2966, %v2963, %v2928
        %v2969 = vsel %vm2966, %v2964, %v2930
        %v2970 = vsel %vm2966, %v2965, %v2932
        %2975 = vrot.lane.b32.xlu0 %v2967, 1
        %v2976 = vpop.permute.xlu0 %2975
        %2977 = vrot.lane.b32.xlu0 %v2968, 1
        %v2978 = vpop.permute.xlu0 %2977
        %2979 = vrot.lane.b32.xlu0 %v2969, 1
        %v2980 = vpop.permute.xlu0 %2979
        %2981 = vrot.lane.b32.xlu0 %v2970, 1
        %v2982 = vpop.permute.xlu0 %2981
        %v2987 = vsel %vm1156, 0.0, %v2976
        %v2988 = vsel %vm1156, 0.0, %v2978
        %v2989 = vsel %vm1156, 0.0, %v2980
        %v2990 = vsel %vm1156, 0.0, %v2982
        %2991 = vrot.lane.b32.xlu0 %v2967, 127
        %v2992 = vpop.permute.xlu0 %2991
        %2993 = vrot.lane.b32.xlu0 %v2968, 127
        %v2994 = vpop.permute.xlu0 %2993
        %2995 = vrot.lane.b32.xlu0 %v2969, 127
        %v2996 = vpop.permute.xlu0 %2995
        %2997 = vrot.lane.b32.xlu0 %v2970, 127
        %v2998 = vpop.permute.xlu0 %2997
        %vm3003 = vcmask 121856
        %v3004 = vsel %vm3003, %v2992, 0.0
        %v3005 = vsel %vm3003, %v2994, 0.0
        %v3006 = vsel %vm3003, %v2996, 0.0
        %v3007 = vsel %vm3003, %v2998, 0.0
        %v3009 = vsel %vm1178, %v2041, 0
        %v3012 = vsel %vm1178, %v2042, 0
        %v3015 = vsel %vm1178, %v2043, 0
        %v3018 = vsel %vm1178, %v2044, 0
        %3020 = vmatprep.subr.mxu0 0.0
        %3021 = vmatpush1.msra.mxu0 0.0
        %3022 = vmatprep.subr.mxu0 0.0
        %3023 = vmatpush1.msra.mxu0 0.0
        %3024 = vmatprep.subr.mxu0 0.0
        %3025 = vmatpush1.msra.mxu0 0.0
        %3026 = vmatprep.subr.mxu0 0.0
        %3027 = vmatpush1.msra.mxu0 0.0
        %3028 = vmatprep.subr.mxu0 0.0
        %3029 = vmatpush1.msra.mxu0 0.0
        %3030 = vmatprep.subr.mxu0 0.0
        %3031 = vmatpush1.msra.mxu0 0.0
        %3032 = vmatprep.subr.mxu0 0.0
        %3033 = vmatpush1.msra.mxu0 0.0
        %3034 = vmatprep.subr.mxu0 0.0
        %3035 = vmatpush1.msra.mxu0 0.0
        %3036 = vmatprep.subr.mxu0 0.0
        %3037 = vmatpush1.msra.mxu0 0.0
        %3038 = vmatprep.subr.mxu0 0.0
        %3039 = vmatpush1.msra.mxu0 0.0
        %3040 = vmatprep.subr.mxu0 0.0
        %3041 = vmatpush1.msra.mxu0 0.0
        %3042 = vmatprep.subr.mxu0 0.0
        %3043 = vmatpush1.msra.mxu0 0.0
        %3044 = vmatprep.subr.mxu0 0.0
        %3045 = vmatpush1.msra.mxu0 %v2990
        %3046 = vmatprep.subr.mxu0 0.0
        %3047 = vmatpush1.msra.mxu0 %v2989
        %3048 = vmatprep.subr.mxu0 0.0
        %3049 = vmatpush1.msra.mxu0 %v2988
        %3050 = vmatprep.subr.mxu0 0.0
        %3051 = vmatpush1.msra.mxu0 %v2987
        %3052 = vmatprep.subr.mxu0 0.0
        %3053 = vmatpush2.msra.mxu0 0.0
        %3054 = vmatprep.subr.mxu0 0.0
        %3055 = vmatpush2.msra.mxu0 0.0
        %3056 = vmatprep.subr.mxu0 0.0
        %3057 = vmatpush2.msra.mxu0 0.0
        %3058 = vmatprep.subr.mxu0 0.0
        %3059 = vmatpush2.msra.mxu0 0.0
        %3060 = vmatprep.subr.mxu0 0.0
        %3061 = vmatpush2.msra.mxu0 0.0
        %3062 = vmatprep.subr.mxu0 0.0
        %3063 = vmatpush2.msra.mxu0 0.0
        %3064 = vmatprep.subr.mxu0 0.0
        %3065 = vmatpush2.msra.mxu0 0.0
        %3066 = vmatprep.subr.mxu0 0.0
        %3067 = vmatpush2.msra.mxu0 0.0
        %3068 = vmatprep.subr.mxu0 0.0
        %3069 = vmatpush2.msra.mxu0 0.0
        %3070 = vmatprep.subr.mxu0 0.0
        %3071 = vmatpush2.msra.mxu0 0.0
        %3072 = vmatprep.subr.mxu0 0.0
        %3073 = vmatpush2.msra.mxu0 0.0
        %3074 = vmatprep.subr.mxu0 0.0
        %3075 = vmatpush2.msra.mxu0 0.0
        %3076 = vmatprep.subr.mxu0 0.0
        %3077 = vmatpush2.msra.mxu0 0.0
        %3078 = vmatprep.subr.mxu0 0.0
        %3079 = vmatpush2.msra.mxu0 0.0
        %3080 = vmatprep.subr.mxu0 0.0
        %3081 = vmatpush2.msra.mxu0 0.0
        %3082 = vmatprep.subr.mxu0 0.0
        %3083 = vmatpush2.msra.mxu0 0.0
        %3084 = vmatprep.mubr.f32.mxu0 0.0
        %3085 = vmatmul.mubr.f32.gmra.mxu0 %v3009
        %v3086 = vpop.f32.mrf.mxu0
        %v3087 = vadd.f32 0.0, %v3086
        %v3088 = vpop.f32.mrf.mxu0
        %3089 = vmatprep.mubr.f32.mxu0 0.0
        %3090 = vmatmul.mubr.f32.gmra.mxu0 %v3012
        %v3091 = vpop.f32.mrf.mxu0
        %v3092 = vadd.f32 0.0, %v3091
        %v3093 = vpop.f32.mrf.mxu0
        %3094 = vmatprep.mubr.f32.mxu0 0.0
        %3095 = vmatmul.mubr.f32.gmra.mxu0 %v3015
        %v3096 = vpop.f32.mrf.mxu0
        %v3097 = vadd.f32 0.0, %v3096
        %v3098 = vpop.f32.mrf.mxu0
        %3099 = vmatprep.mubr.f32.mxu0 0.0
        %3100 = vmatmul.mubr.f32.gmra.mxu0 %v3018
        %v3101 = vpop.f32.mrf.mxu0
        %v3102 = vadd.f32 0.0, %v3101
        %v3103 = vpop.f32.mrf.mxu0
        %3104 = vdwg.mxu0
        %v3106 = vsel %vm1178, %v2045, 0
        %v3109 = vsel %vm1178, %v2046, 0
        %v3112 = vsel %vm1178, %v2047, 0
        %v3115 = vsel %vm1178, %v2048, 0
        %3117 = vmatprep.subr.mxu0 0.0
        %3118 = vmatpush1.msra.mxu0 0.0
        %3119 = vmatprep.subr.mxu0 0.0
        %3120 = vmatpush1.msra.mxu0 0.0
        %3121 = vmatprep.subr.mxu0 0.0
        %3122 = vmatpush1.msra.mxu0 0.0
        %3123 = vmatprep.subr.mxu0 0.0
        %3124 = vmatpush1.msra.mxu0 0.0
        %3125 = vmatprep.subr.mxu0 0.0
        %3126 = vmatpush1.msra.mxu0 0.0
        %3127 = vmatprep.subr.mxu0 0.0
        %3128 = vmatpush1.msra.mxu0 0.0
        %3129 = vmatprep.subr.mxu0 0.0
        %3130 = vmatpush1.msra.mxu0 0.0
        %3131 = vmatprep.subr.mxu0 0.0
        %3132 = vmatpush1.msra.mxu0 0.0
        %3133 = vmatprep.subr.mxu0 0.0
        %3134 = vmatpush1.msra.mxu0 0.0
        %3135 = vmatprep.subr.mxu0 0.0
        %3136 = vmatpush1.msra.mxu0 0.0
        %3137 = vmatprep.subr.mxu0 0.0
        %3138 = vmatpush1.msra.mxu0 0.0
        %3139 = vmatprep.subr.mxu0 0.0
        %3140 = vmatpush1.msra.mxu0 0.0
        %3141 = vmatprep.subr.mxu0 0.0
        %3142 = vmatpush1.msra.mxu0 %v2970
        %3143 = vmatprep.subr.mxu0 0.0
        %3144 = vmatpush1.msra.mxu0 %v2969
        %3145 = vmatprep.subr.mxu0 0.0
        %3146 = vmatpush1.msra.mxu0 %v2968
        %3147 = vmatprep.subr.mxu0 0.0
        %3148 = vmatpush1.msra.mxu0 %v2967
        %3149 = vmatprep.subr.mxu0 0.0
        %3150 = vmatpush2.msra.mxu0 0.0
        %3151 = vmatprep.subr.mxu0 0.0
        %3152 = vmatpush2.msra.mxu0 0.0
        %3153 = vmatprep.subr.mxu0 0.0
        %3154 = vmatpush2.msra.mxu0 0.0
        %3155 = vmatprep.subr.mxu0 0.0
        %3156 = vmatpush2.msra.mxu0 0.0
        %3157 = vmatprep.subr.mxu0 0.0
        %3158 = vmatpush2.msra.mxu0 0.0
        %3159 = vmatprep.subr.mxu0 0.0
        %3160 = vmatpush2.msra.mxu0 0.0
        %3161 = vmatprep.subr.mxu0 0.0
        %3162 = vmatpush2.msra.mxu0 0.0
        %3163 = vmatprep.subr.mxu0 0.0
        %3164 = vmatpush2.msra.mxu0 0.0
        %3165 = vmatprep.subr.mxu0 0.0
        %3166 = vmatpush2.msra.mxu0 0.0
        %3167 = vmatprep.subr.mxu0 0.0
        %3168 = vmatpush2.msra.mxu0 0.0
        %3169 = vmatprep.subr.mxu0 0.0
        %3170 = vmatpush2.msra.mxu0 0.0
        %3171 = vmatprep.subr.mxu0 0.0
        %3172 = vmatpush2.msra.mxu0 0.0
        %3173 = vmatprep.subr.mxu0 0.0
        %3174 = vmatpush2.msra.mxu0 0.0
        %3175 = vmatprep.subr.mxu0 0.0
        %3176 = vmatpush2.msra.mxu0 0.0
        %3177 = vmatprep.subr.mxu0 0.0
        %3178 = vmatpush2.msra.mxu0 0.0
        %3179 = vmatprep.subr.mxu0 0.0
        %3180 = vmatpush2.msra.mxu0 0.0
        %3181 = vmatprep.mubr.f32.mxu0 0.0
        %3182 = vmatmul.mubr.f32.gmra.mxu0 %v3106
        %v3183 = vpop.f32.mrf.mxu0
        %v3184 = vadd.f32 %v3087, %v3183
        %v3185 = vpop.f32.mrf.mxu0
        %3186 = vmatprep.mubr.f32.mxu0 0.0
        %3187 = vmatmul.mubr.f32.gmra.mxu0 %v3109
        %v3188 = vpop.f32.mrf.mxu0
        %v3189 = vadd.f32 %v3092, %v3188
        %v3190 = vpop.f32.mrf.mxu0
        %3191 = vmatprep.mubr.f32.mxu0 0.0
        %3192 = vmatmul.mubr.f32.gmra.mxu0 %v3112
        %v3193 = vpop.f32.mrf.mxu0
        %v3194 = vadd.f32 %v3097, %v3193
        %v3195 = vpop.f32.mrf.mxu0
        %3196 = vmatprep.mubr.f32.mxu0 0.0
        %3197 = vmatmul.mubr.f32.gmra.mxu0 %v3115
        %v3198 = vpop.f32.mrf.mxu0
        %v3199 = vadd.f32 %v3102, %v3198
        %v3200 = vpop.f32.mrf.mxu0
        %3201 = vdwg.mxu0
        %v3203 = vsel %vm1178, %v2049, 0
        %v3206 = vsel %vm1178, %v2050, 0
        %v3209 = vsel %vm1178, %v2051, 0
        %v3212 = vsel %vm1178, %v2052, 0
        %3214 = vmatprep.subr.mxu0 0.0
        %3215 = vmatpush1.msra.mxu0 0.0
        %3216 = vmatprep.subr.mxu0 0.0
        %3217 = vmatpush1.msra.mxu0 0.0
        %3218 = vmatprep.subr.mxu0 0.0
        %3219 = vmatpush1.msra.mxu0 0.0
        %3220 = vmatprep.subr.mxu0 0.0
        %3221 = vmatpush1.msra.mxu0 0.0
        %3222 = vmatprep.subr.mxu0 0.0
        %3223 = vmatpush1.msra.mxu0 0.0
        %3224 = vmatprep.subr.mxu0 0.0
        %3225 = vmatpush1.msra.mxu0 0.0
        %3226 = vmatprep.subr.mxu0 0.0
        %3227 = vmatpush1.msra.mxu0 0.0
        %3228 = vmatprep.subr.mxu0 0.0
        %3229 = vmatpush1.msra.mxu0 0.0
        %3230 = vmatprep.subr.mxu0 0.0
        %3231 = vmatpush1.msra.mxu0 0.0
        %3232 = vmatprep.subr.mxu0 0.0
        %3233 = vmatpush1.msra.mxu0 0.0
        %3234 = vmatprep.subr.mxu0 0.0
        %3235 = vmatpush1.msra.mxu0 0.0
        %3236 = vmatprep.subr.mxu0 0.0
        %3237 = vmatpush1.msra.mxu0 0.0
        %3238 = vmatprep.subr.mxu0 0.0
        %3239 = vmatpush1.msra.mxu0 %v3007
        %3240 = vmatprep.subr.mxu0 0.0
        %3241 = vmatpush1.msra.mxu0 %v3006
        %3242 = vmatprep.subr.mxu0 0.0
        %3243 = vmatpush1.msra.mxu0 %v3005
        %3244 = vmatprep.subr.mxu0 0.0
        %3245 = vmatpush1.msra.mxu0 %v3004
        %3246 = vmatprep.subr.mxu0 0.0
        %3247 = vmatpush2.msra.mxu0 0.0
        %3248 = vmatprep.subr.mxu0 0.0
        %3249 = vmatpush2.msra.mxu0 0.0
        %3250 = vmatprep.subr.mxu0 0.0
        %3251 = vmatpush2.msra.mxu0 0.0
        %3252 = vmatprep.subr.mxu0 0.0
        %3253 = vmatpush2.msra.mxu0 0.0
        %3254 = vmatprep.subr.mxu0 0.0
        %3255 = vmatpush2.msra.mxu0 0.0
        %3256 = vmatprep.subr.mxu0 0.0
        %3257 = vmatpush2.msra.mxu0 0.0
        %3258 = vmatprep.subr.mxu0 0.0
        %3259 = vmatpush2.msra.mxu0 0.0
        %3260 = vmatprep.subr.mxu0 0.0
        %3261 = vmatpush2.msra.mxu0 0.0
        %3262 = vmatprep.subr.mxu0 0.0
        %3263 = vmatpush2.msra.mxu0 0.0
        %3264 = vmatprep.subr.mxu0 0.0
        %3265 = vmatpush2.msra.mxu0 0.0
        %3266 = vmatprep.subr.mxu0 0.0
        %3267 = vmatpush2.msra.mxu0 0.0
        %3268 = vmatprep.subr.mxu0 0.0
        %3269 = vmatpush2.msra.mxu0 0.0
        %3270 = vmatprep.subr.mxu0 0.0
        %3271 = vmatpush2.msra.mxu0 0.0
        %3272 = vmatprep.subr.mxu0 0.0
        %3273 = vmatpush2.msra.mxu0 0.0
        %3274 = vmatprep.subr.mxu0 0.0
        %3275 = vmatpush2.msra.mxu0 0.0
        %3276 = vmatprep.subr.mxu0 0.0
        %3277 = vmatpush2.msra.mxu0 0.0
        %3278 = vmatprep.mubr.f32.mxu0 0.0
        %3279 = vmatmul.mubr.f32.gmra.mxu0 %v3203
        %v3280 = vpop.f32.mrf.mxu0
        %v3281 = vadd.f32 0.0, %v3280
        %v3282 = vpop.f32.mrf.mxu0
        %3283 = vmatprep.mubr.f32.mxu0 0.0
        %3284 = vmatmul.mubr.f32.gmra.mxu0 %v3206
        %v3285 = vpop.f32.mrf.mxu0
        %v3286 = vadd.f32 0.0, %v3285
        %v3287 = vpop.f32.mrf.mxu0
        %3288 = vmatprep.mubr.f32.mxu0 0.0
        %3289 = vmatmul.mubr.f32.gmra.mxu0 %v3209
        %v3290 = vpop.f32.mrf.mxu0
        %v3291 = vadd.f32 0.0, %v3290
        %v3292 = vpop.f32.mrf.mxu0
        %3293 = vmatprep.mubr.f32.mxu0 0.0
        %3294 = vmatmul.mubr.f32.gmra.mxu0 %v3212
        %v3295 = vpop.f32.mrf.mxu0
        %v3296 = vadd.f32 0.0, %v3295
        %v3297 = vpop.f32.mrf.mxu0
        %3298 = vdwg.mxu0
        %v3299 = vadd.f32 %v3184, %v3281
        %v3300 = vadd.f32 %v3189, %v3286
        %v3301 = vadd.f32 %v3194, %v3291
        %v3302 = vadd.f32 %v3199, %v3296
        %3304 = vset.pattern.permute.xlu0 0
        %3305 = vperm.xlu0 %3304, %v2053
        %v3306 = vpop.permute.xlu0 %3305
        %3309 = vset.pattern.permute.xlu0 0
        %3310 = vperm.xlu0 %3309, %v2054
        %v3311 = vpop.permute.xlu0 %3310
        %3314 = vset.pattern.permute.xlu0 0
        %3315 = vperm.xlu0 %3314, %v2055
        %v3316 = vpop.permute.xlu0 %3315
        %3319 = vset.pattern.permute.xlu0 0
        %3320 = vperm.xlu0 %3319, %v2056
        %v3321 = vpop.permute.xlu0 %3320
        %v3323 = vadd.f32 %v3299, %v3306
        %v3324 = vadd.f32 %v3300, %v3311
        %v3325 = vadd.f32 %v3301, %v3316
        %v3326 = vadd.f32 %v3302, %v3321
        %v3327 = vld [vmem:[%s13] sm:$0xff]
        %v3328 = vld [vmem:[%s13 + $0x8] sm:$0xff]
        %v3329 = vld [vmem:[%s13 + $0x10] sm:$0xff]
        %v3330 = vld [vmem:[%s13 + $0x18] sm:$0xff]
        %v3331 = vld [vmem:[%s14] sm:$0xff]
        %v3332 = vld [vmem:[%s14 + $0x8] sm:$0xff]
        %v3333 = vld [vmem:[%s14 + $0x10] sm:$0xff]
        %v3334 = vld [vmem:[%s14 + $0x18] sm:$0xff]
        %v3335 = vld [vmem:[%s15] sm:$0xff]
        %v3336 = vld [vmem:[%s15 + $0x8] sm:$0xff]
        %v3337 = vld [vmem:[%s15 + $0x10] sm:$0xff]
        %v3338 = vld [vmem:[%s15 + $0x18] sm:$0xff]
        %v3339 = vld [vmem:[%s15 + $0x20] sm:$0xff]
        %v3340 = vld [vmem:[%s15 + $0x28] sm:$0xff]
        %v3341 = vld [vmem:[%s15 + $0x30] sm:$0xff]
        %v3342 = vld [vmem:[%s15 + $0x38] sm:$0xff]
        %v3343 = vld [vmem:[%s15 + $0x40] sm:$0xff]
        %v3344 = vld [vmem:[%s15 + $0x48] sm:$0xff]
        %v3345 = vld [vmem:[%s15 + $0x50] sm:$0xff]
        %v3346 = vld [vmem:[%s15 + $0x58] sm:$0xff]
        %v3347 = vld [vmem:[%s16] sm:$0xff]
        %v3348 = vld [vmem:[%s16 + $0x8] sm:$0xff]
        %v3349 = vld [vmem:[%s16 + $0x10] sm:$0xff]
        %v3350 = vld [vmem:[%s16 + $0x18] sm:$0xff]
        %v3351 = vld [vmem:[%s17] sm:$0xff]
        %v3352 = vld [vmem:[%s17 + $0x8] sm:$0xff]
        %v3353 = vld [vmem:[%s17 + $0x10] sm:$0xff]
        %v3354 = vld [vmem:[%s17 + $0x18] sm:$0xff]
        %v3355 = vld [vmem:[%s18] sm:$0xff]
        %v3356 = vld [vmem:[%s18 + $0x8] sm:$0xff]
        %v3357 = vld [vmem:[%s18 + $0x10] sm:$0xff]
        %v3358 = vld [vmem:[%s18 + $0x18] sm:$0xff]
        %v3359 = vld [vmem:[%s19] sm:$0xff]
        %v3360 = vld [vmem:[%s19 + $0x8] sm:$0xff]
        %v3361 = vld [vmem:[%s19 + $0x10] sm:$0xff]
        %v3362 = vld [vmem:[%s19 + $0x18] sm:$0xff]
        %v3363 = vld [vmem:[%s19 + $0x20] sm:$0xff]
        %v3364 = vld [vmem:[%s19 + $0x28] sm:$0xff]
        %v3365 = vld [vmem:[%s19 + $0x30] sm:$0xff]
        %v3366 = vld [vmem:[%s19 + $0x38] sm:$0xff]
        %v3367 = vld [vmem:[%s19 + $0x40] sm:$0xff]
        %v3368 = vld [vmem:[%s19 + $0x48] sm:$0xff]
        %v3369 = vld [vmem:[%s19 + $0x50] sm:$0xff]
        %v3370 = vld [vmem:[%s19 + $0x58] sm:$0xff]
        %v3371 = vld [vmem:[%s20] sm:$0xff]
        %v3372 = vld [vmem:[%s20 + $0x8] sm:$0xff]
        %v3373 = vld [vmem:[%s20 + $0x10] sm:$0xff]
        %v3374 = vld [vmem:[%s20 + $0x18] sm:$0xff]
        %vm3375 = vcmask 130048
        %v3376 = vsel %vm3375, %v3323, 0.0
        %3377 = vadd.xlane.f32.xlu0 %v3376
        %v3378 = vpop.xlane.xlu0 %3377
        %v3379 = vsel %vm3375, %v3324, 0.0
        %3380 = vadd.xlane.f32.xlu0 %v3379
        %v3381 = vpop.xlane.xlu0 %3380
        %v3382 = vsel %vm3375, %v3325, 0.0
        %3383 = vadd.xlane.f32.xlu0 %v3382
        %v3384 = vpop.xlane.xlu0 %3383
        %v3385 = vsel %vm3375, %v3326, 0.0
        %3386 = vadd.xlane.f32.xlu0 %v3385
        %v3387 = vpop.xlane.xlu0 %3386
        %v3388 = vrcp.pop 16.0
        %v3389 = vmul.f32 %v3378, %v3388
        %v3390 = vmul.f32 %v3381, %v3388
        %v3391 = vmul.f32 %v3384, %v3388
        %v3392 = vmul.f32 %v3387, %v3388
        %v3393 = vrot.slane %v3389, 4
        %v3394 = vadd.f32 %v3389, %v3393
        %v3395 = vrot.slane %v3394, 2
        %v3396 = vadd.f32 %v3394, %v3395
        %v3397 = vrot.slane %v3396, 1
        %v3398 = vadd.f32 %v3396, %v3397
        %v3399 = vrot.slane %v3390, 4
        %v3400 = vadd.f32 %v3390, %v3399
        %v3401 = vrot.slane %v3400, 2
        %v3402 = vadd.f32 %v3400, %v3401
        %v3403 = vrot.slane %v3402, 1
        %v3404 = vadd.f32 %v3402, %v3403
        %v3405 = vrot.slane %v3391, 4
        %v3406 = vadd.f32 %v3391, %v3405
        %v3407 = vrot.slane %v3406, 2
        %v3408 = vadd.f32 %v3406, %v3407
        %v3409 = vrot.slane %v3408, 1
        %v3410 = vadd.f32 %v3408, %v3409
        %v3411 = vrot.slane %v3392, 4
        %v3412 = vadd.f32 %v3392, %v3411
        %v3413 = vrot.slane %v3412, 2
        %v3414 = vadd.f32 %v3412, %v3413
        %v3415 = vrot.slane %v3414, 1
        %v3416 = vadd.f32 %v3414, %v3415
        %v3417 = vmul.f32 %v3398, %v967
        %v3418 = vmul.f32 %v3404, %v967
        %v3419 = vmul.f32 %v3410, %v967
        %v3420 = vmul.f32 %v3416, %v967
        %v3421 = vsub.f32 %v3323, %v3417
        %v3422 = vsub.f32 %v3324, %v3418
        %v3423 = vsub.f32 %v3325, %v3419
        %v3424 = vsub.f32 %v3326, %v3420
        %v3425 = vmul.f32 %v3421, %v3421
        %v3426 = vmul.f32 %v3422, %v3422
        %v3427 = vmul.f32 %v3423, %v3423
        %v3428 = vmul.f32 %v3424, %v3424
        %v3429 = vsel %vm3375, %v3425, 0.0
        %3430 = vadd.xlane.f32.xlu0 %v3429
        %v3431 = vpop.xlane.xlu0 %3430
        %v3432 = vsel %vm3375, %v3426, 0.0
        %3433 = vadd.xlane.f32.xlu0 %v3432
        %v3434 = vpop.xlane.xlu0 %3433
        %v3435 = vsel %vm3375, %v3427, 0.0
        %3436 = vadd.xlane.f32.xlu0 %v3435
        %v3437 = vpop.xlane.xlu0 %3436
        %v3438 = vsel %vm3375, %v3428, 0.0
        %3439 = vadd.xlane.f32.xlu0 %v3438
        %v3440 = vpop.xlane.xlu0 %3439
        %v3441 = vmul.f32 %v3431, %v3388
        %v3442 = vmul.f32 %v3434, %v3388
        %v3443 = vmul.f32 %v3437, %v3388
        %v3444 = vmul.f32 %v3440, %v3388
        %v3445 = vrot.slane %v3441, 4
        %v3446 = vadd.f32 %v3441, %v3445
        %v3447 = vrot.slane %v3446, 2
        %v3448 = vadd.f32 %v3446, %v3447
        %v3449 = vrot.slane %v3448, 1
        %v3450 = vadd.f32 %v3448, %v3449
        %v3451 = vrot.slane %v3442, 4
        %v3452 = vadd.f32 %v3442, %v3451
        %v3453 = vrot.slane %v3452, 2
        %v3454 = vadd.f32 %v3452, %v3453
        %v3455 = vrot.slane %v3454, 1
        %v3456 = vadd.f32 %v3454, %v3455
        %v3457 = vrot.slane %v3443, 4
        %v3458 = vadd.f32 %v3443, %v3457
        %v3459 = vrot.slane %v3458, 2
        %v3460 = vadd.f32 %v3458, %v3459
        %v3461 = vrot.slane %v3460, 1
        %v3462 = vadd.f32 %v3460, %v3461
        %v3463 = vrot.slane %v3444, 4
        %v3464 = vadd.f32 %v3444, %v3463
        %v3465 = vrot.slane %v3464, 2
        %v3466 = vadd.f32 %v3464, %v3465
        %v3467 = vrot.slane %v3466, 1
        %v3468 = vadd.f32 %v3466, %v3467
        %v3469 = vmul.f32 %v3450, %v967
        %v3470 = vmul.f32 %v3456, %v967
        %v3471 = vmul.f32 %v3462, %v967
        %v3472 = vmul.f32 %v3468, %v967
        %v3473 = vadd.f32 %v3469, 1e-05
        %v3474 = vadd.f32 %v3470, 1e-05
        %v3475 = vadd.f32 %v3471, 1e-05
        %v3476 = vadd.f32 %v3472, 1e-05
        %v3477 = vrsqrt.pop %v3473
        %v3478 = vrsqrt.pop %v3474
        %v3479 = vrsqrt.pop %v3475
        %v3480 = vrsqrt.pop %v3476
        %v3481 = vmul.f32 %v3421, %v3477
        %v3482 = vmul.f32 %v3422, %v3478
        %v3483 = vmul.f32 %v3423, %v3479
        %v3484 = vmul.f32 %v3424, %v3480
        %3486 = vset.pattern.permute.xlu0 0
        %3487 = vperm.xlu0 %3486, %v3327
        %v3488 = vpop.permute.xlu0 %3487
        %3491 = vset.pattern.permute.xlu0 0
        %3492 = vperm.xlu0 %3491, %v3328
        %v3493 = vpop.permute.xlu0 %3492
        %3496 = vset.pattern.permute.xlu0 0
        %3497 = vperm.xlu0 %3496, %v3329
        %v3498 = vpop.permute.xlu0 %3497
        %3501 = vset.pattern.permute.xlu0 0
        %3502 = vperm.xlu0 %3501, %v3330
        %v3503 = vpop.permute.xlu0 %3502
        %v3505 = vmul.f32 %v3481, %v3488
        %v3506 = vmul.f32 %v3482, %v3493
        %v3507 = vmul.f32 %v3483, %v3498
        %v3508 = vmul.f32 %v3484, %v3503
        %3510 = vset.pattern.permute.xlu0 0
        %3511 = vperm.xlu0 %3510, %v3331
        %v3512 = vpop.permute.xlu0 %3511
        %3515 = vset.pattern.permute.xlu0 0
        %3516 = vperm.xlu0 %3515, %v3332
        %v3517 = vpop.permute.xlu0 %3516
        %3520 = vset.pattern.permute.xlu0 0
        %3521 = vperm.xlu0 %3520, %v3333
        %v3522 = vpop.permute.xlu0 %3521
        %3525 = vset.pattern.permute.xlu0 0
        %3526 = vperm.xlu0 %3525, %v3334
        %v3527 = vpop.permute.xlu0 %3526
        %v3529 = vadd.f32 %v3505, %v3512
        %v3530 = vadd.f32 %v3506, %v3517
        %v3531 = vadd.f32 %v3507, %v3522
        %v3532 = vadd.f32 %v3508, %v3527
        %v3533 = vxor.u32 %v3529, 2147483648
        %v3534 = vxor.u32 %v3530, 2147483648
        %v3535 = vxor.u32 %v3531, 2147483648
        %v3536 = vxor.u32 %v3532, 2147483648
        %v3537 = vmul.f32 %v3533, 1.442695
        %v3538 = vpow.pop %v3537
        %v3539 = vmul.f32 %v3534, 1.442695
        %v3540 = vpow.pop %v3539
        %v3541 = vmul.f32 %v3535, 1.442695
        %v3542 = vpow.pop %v3541
        %v3543 = vmul.f32 %v3536, 1.442695
        %v3544 = vpow.pop %v3543
        %v3545 = vadd.f32 %v3538, 1.0
        %v3546 = vadd.f32 %v3540, 1.0
        %v3547 = vadd.f32 %v3542, 1.0
        %v3548 = vadd.f32 %v3544, 1.0
        %v3549 = vrcp.pop %v3545
        %v3550 = vmul.f32 1.0, %v3549
        %v3551 = vrcp.pop %v3546
        %v3552 = vmul.f32 1.0, %v3551
        %v3553 = vrcp.pop %v3547
        %v3554 = vmul.f32 1.0, %v3553
        %v3555 = vrcp.pop %v3548
        %v3556 = vmul.f32 1.0, %v3555
        %v3557 = vmul.f32 %v3529, %v3550
        %v3558 = vmul.f32 %v3530, %v3552
        %v3559 = vmul.f32 %v3531, %v3554
        %v3560 = vmul.f32 %v3532, %v3556
        %3565 = vrot.lane.b32.xlu0 %v3557, 1
        %v3566 = vpop.permute.xlu0 %3565
        %3567 = vrot.lane.b32.xlu0 %v3558, 1
        %v3568 = vpop.permute.xlu0 %3567
        %3569 = vrot.lane.b32.xlu0 %v3559, 1
        %v3570 = vpop.permute.xlu0 %3569
        %3571 = vrot.lane.b32.xlu0 %v3560, 1
        %v3572 = vpop.permute.xlu0 %3571
        %v3577 = vsel %vm1156, 0.0, %v3566
        %v3578 = vsel %vm1156, 0.0, %v3568
        %v3579 = vsel %vm1156, 0.0, %v3570
        %v3580 = vsel %vm1156, 0.0, %v3572
        %3581 = vrot.lane.b32.xlu0 %v3557, 127
        %v3582 = vpop.permute.xlu0 %3581
        %3583 = vrot.lane.b32.xlu0 %v3558, 127
        %v3584 = vpop.permute.xlu0 %3583
        %3585 = vrot.lane.b32.xlu0 %v3559, 127
        %v3586 = vpop.permute.xlu0 %3585
        %3587 = vrot.lane.b32.xlu0 %v3560, 127
        %v3588 = vpop.permute.xlu0 %3587
        %v3593 = vsel %vm3003, %v3582, 0.0
        %v3594 = vsel %vm3003, %v3584, 0.0
        %v3595 = vsel %vm3003, %v3586, 0.0
        %v3596 = vsel %vm3003, %v3588, 0.0
        %v3598 = vsel %vm1178, %v3335, 0
        %v3601 = vsel %vm1178, %v3336, 0
        %v3604 = vsel %vm1178, %v3337, 0
        %v3607 = vsel %vm1178, %v3338, 0
        %3609 = vmatprep.subr.mxu0 0.0
        %3610 = vmatpush1.msra.mxu0 0.0
        %3611 = vmatprep.subr.mxu0 0.0
        %3612 = vmatpush1.msra.mxu0 0.0
        %3613 = vmatprep.subr.mxu0 0.0
        %3614 = vmatpush1.msra.mxu0 0.0
        %3615 = vmatprep.subr.mxu0 0.0
        %3616 = vmatpush1.msra.mxu0 0.0
        %3617 = vmatprep.subr.mxu0 0.0
        %3618 = vmatpush1.msra.mxu0 0.0
        %3619 = vmatprep.subr.mxu0 0.0
        %3620 = vmatpush1.msra.mxu0 0.0
        %3621 = vmatprep.subr.mxu0 0.0
        %3622 = vmatpush1.msra.mxu0 0.0
        %3623 = vmatprep.subr.mxu0 0.0
        %3624 = vmatpush1.msra.mxu0 0.0
        %3625 = vmatprep.subr.mxu0 0.0
        %3626 = vmatpush1.msra.mxu0 0.0
        %3627 = vmatprep.subr.mxu0 0.0
        %3628 = vmatpush1.msra.mxu0 0.0
        %3629 = vmatprep.subr.mxu0 0.0
        %3630 = vmatpush1.msra.mxu0 0.0
        %3631 = vmatprep.subr.mxu0 0.0
        %3632 = vmatpush1.msra.mxu0 0.0
        %3633 = vmatprep.subr.mxu0 0.0
        %3634 = vmatpush1.msra.mxu0 %v3580
        %3635 = vmatprep.subr.mxu0 0.0
        %3636 = vmatpush1.msra.mxu0 %v3579
        %3637 = vmatprep.subr.mxu0 0.0
        %3638 = vmatpush1.msra.mxu0 %v3578
        %3639 = vmatprep.subr.mxu0 0.0
        %3640 = vmatpush1.msra.mxu0 %v3577
        %3641 = vmatprep.subr.mxu0 0.0
        %3642 = vmatpush2.msra.mxu0 0.0
        %3643 = vmatprep.subr.mxu0 0.0
        %3644 = vmatpush2.msra.mxu0 0.0
        %3645 = vmatprep.subr.mxu0 0.0
        %3646 = vmatpush2.msra.mxu0 0.0
        %3647 = vmatprep.subr.mxu0 0.0
        %3648 = vmatpush2.msra.mxu0 0.0
        %3649 = vmatprep.subr.mxu0 0.0
        %3650 = vmatpush2.msra.mxu0 0.0
        %3651 = vmatprep.subr.mxu0 0.0
        %3652 = vmatpush2.msra.mxu0 0.0
        %3653 = vmatprep.subr.mxu0 0.0
        %3654 = vmatpush2.msra.mxu0 0.0
        %3655 = vmatprep.subr.mxu0 0.0
        %3656 = vmatpush2.msra.mxu0 0.0
        %3657 = vmatprep.subr.mxu0 0.0
        %3658 = vmatpush2.msra.mxu0 0.0
        %3659 = vmatprep.subr.mxu0 0.0
        %3660 = vmatpush2.msra.mxu0 0.0
        %3661 = vmatprep.subr.mxu0 0.0
        %3662 = vmatpush2.msra.mxu0 0.0
        %3663 = vmatprep.subr.mxu0 0.0
        %3664 = vmatpush2.msra.mxu0 0.0
        %3665 = vmatprep.subr.mxu0 0.0
        %3666 = vmatpush2.msra.mxu0 0.0
        %3667 = vmatprep.subr.mxu0 0.0
        %3668 = vmatpush2.msra.mxu0 0.0
        %3669 = vmatprep.subr.mxu0 0.0
        %3670 = vmatpush2.msra.mxu0 0.0
        %3671 = vmatprep.subr.mxu0 0.0
        %3672 = vmatpush2.msra.mxu0 0.0
        %3673 = vmatprep.mubr.f32.mxu0 0.0
        %3674 = vmatmul.mubr.f32.gmra.mxu0 %v3598
        %v3675 = vpop.f32.mrf.mxu0
        %v3676 = vadd.f32 0.0, %v3675
        %v3677 = vpop.f32.mrf.mxu0
        %3678 = vmatprep.mubr.f32.mxu0 0.0
        %3679 = vmatmul.mubr.f32.gmra.mxu0 %v3601
        %v3680 = vpop.f32.mrf.mxu0
        %v3681 = vadd.f32 0.0, %v3680
        %v3682 = vpop.f32.mrf.mxu0
        %3683 = vmatprep.mubr.f32.mxu0 0.0
        %3684 = vmatmul.mubr.f32.gmra.mxu0 %v3604
        %v3685 = vpop.f32.mrf.mxu0
        %v3686 = vadd.f32 0.0, %v3685
        %v3687 = vpop.f32.mrf.mxu0
        %3688 = vmatprep.mubr.f32.mxu0 0.0
        %3689 = vmatmul.mubr.f32.gmra.mxu0 %v3607
        %v3690 = vpop.f32.mrf.mxu0
        %v3691 = vadd.f32 0.0, %v3690
        %v3692 = vpop.f32.mrf.mxu0
        %3693 = vdwg.mxu0
        %v3695 = vsel %vm1178, %v3339, 0
        %v3698 = vsel %vm1178, %v3340, 0
        %v3701 = vsel %vm1178, %v3341, 0
        %v3704 = vsel %vm1178, %v3342, 0
        %3706 = vmatprep.subr.mxu0 0.0
        %3707 = vmatpush1.msra.mxu0 0.0
        %3708 = vmatprep.subr.mxu0 0.0
        %3709 = vmatpush1.msra.mxu0 0.0
        %3710 = vmatprep.subr.mxu0 0.0
        %3711 = vmatpush1.msra.mxu0 0.0
        %3712 = vmatprep.subr.mxu0 0.0
        %3713 = vmatpush1.msra.mxu0 0.0
        %3714 = vmatprep.subr.mxu0 0.0
        %3715 = vmatpush1.msra.mxu0 0.0
        %3716 = vmatprep.subr.mxu0 0.0
        %3717 = vmatpush1.msra.mxu0 0.0
        %3718 = vmatprep.subr.mxu0 0.0
        %3719 = vmatpush1.msra.mxu0 0.0
        %3720 = vmatprep.subr.mxu0 0.0
        %3721 = vmatpush1.msra.mxu0 0.0
        %3722 = vmatprep.subr.mxu0 0.0
        %3723 = vmatpush1.msra.mxu0 0.0
        %3724 = vmatprep.subr.mxu0 0.0
        %3725 = vmatpush1.msra.mxu0 0.0
        %3726 = vmatprep.subr.mxu0 0.0
        %3727 = vmatpush1.msra.mxu0 0.0
        %3728 = vmatprep.subr.mxu0 0.0
        %3729 = vmatpush1.msra.mxu0 0.0
        %3730 = vmatprep.subr.mxu0 0.0
        %3731 = vmatpush1.msra.mxu0 %v3560
        %3732 = vmatprep.subr.mxu0 0.0
        %3733 = vmatpush1.msra.mxu0 %v3559
        %3734 = vmatprep.subr.mxu0 0.0
        %3735 = vmatpush1.msra.mxu0 %v3558
        %3736 = vmatprep.subr.mxu0 0.0
        %3737 = vmatpush1.msra.mxu0 %v3557
        %3738 = vmatprep.subr.mxu0 0.0
        %3739 = vmatpush2.msra.mxu0 0.0
        %3740 = vmatprep.subr.mxu0 0.0
        %3741 = vmatpush2.msra.mxu0 0.0
        %3742 = vmatprep.subr.mxu0 0.0
        %3743 = vmatpush2.msra.mxu0 0.0
        %3744 = vmatprep.subr.mxu0 0.0
        %3745 = vmatpush2.msra.mxu0 0.0
        %3746 = vmatprep.subr.mxu0 0.0
        %3747 = vmatpush2.msra.mxu0 0.0
        %3748 = vmatprep.subr.mxu0 0.0
        %3749 = vmatpush2.msra.mxu0 0.0
        %3750 = vmatprep.subr.mxu0 0.0
        %3751 = vmatpush2.msra.mxu0 0.0
        %3752 = vmatprep.subr.mxu0 0.0
        %3753 = vmatpush2.msra.mxu0 0.0
        %3754 = vmatprep.subr.mxu0 0.0
        %3755 = vmatpush2.msra.mxu0 0.0
        %3756 = vmatprep.subr.mxu0 0.0
        %3757 = vmatpush2.msra.mxu0 0.0
        %3758 = vmatprep.subr.mxu0 0.0
        %3759 = vmatpush2.msra.mxu0 0.0
        %3760 = vmatprep.subr.mxu0 0.0
        %3761 = vmatpush2.msra.mxu0 0.0
        %3762 = vmatprep.subr.mxu0 0.0
        %3763 = vmatpush2.msra.mxu0 0.0
        %3764 = vmatprep.subr.mxu0 0.0
        %3765 = vmatpush2.msra.mxu0 0.0
        %3766 = vmatprep.subr.mxu0 0.0
        %3767 = vmatpush2.msra.mxu0 0.0
        %3768 = vmatprep.subr.mxu0 0.0
        %3769 = vmatpush2.msra.mxu0 0.0
        %3770 = vmatprep.mubr.f32.mxu0 0.0
        %3771 = vmatmul.mubr.f32.gmra.mxu0 %v3695
        %v3772 = vpop.f32.mrf.mxu0
        %v3773 = vadd.f32 %v3676, %v3772
        %v3774 = vpop.f32.mrf.mxu0
        %3775 = vmatprep.mubr.f32.mxu0 0.0
        %3776 = vmatmul.mubr.f32.gmra.mxu0 %v3698
        %v3777 = vpop.f32.mrf.mxu0
        %v3778 = vadd.f32 %v3681, %v3777
        %v3779 = vpop.f32.mrf.mxu0
        %3780 = vmatprep.mubr.f32.mxu0 0.0
        %3781 = vmatmul.mubr.f32.gmra.mxu0 %v3701
        %v3782 = vpop.f32.mrf.mxu0
        %v3783 = vadd.f32 %v3686, %v3782
        %v3784 = vpop.f32.mrf.mxu0
        %3785 = vmatprep.mubr.f32.mxu0 0.0
        %3786 = vmatmul.mubr.f32.gmra.mxu0 %v3704
        %v3787 = vpop.f32.mrf.mxu0
        %v3788 = vadd.f32 %v3691, %v3787
        %v3789 = vpop.f32.mrf.mxu0
        %3790 = vdwg.mxu0
        %v3792 = vsel %vm1178, %v3343, 0
        %v3795 = vsel %vm1178, %v3344, 0
        %v3798 = vsel %vm1178, %v3345, 0
        %v3801 = vsel %vm1178, %v3346, 0
        %3803 = vmatprep.subr.mxu0 0.0
        %3804 = vmatpush1.msra.mxu0 0.0
        %3805 = vmatprep.subr.mxu0 0.0
        %3806 = vmatpush1.msra.mxu0 0.0
        %3807 = vmatprep.subr.mxu0 0.0
        %3808 = vmatpush1.msra.mxu0 0.0
        %3809 = vmatprep.subr.mxu0 0.0
        %3810 = vmatpush1.msra.mxu0 0.0
        %3811 = vmatprep.subr.mxu0 0.0
        %3812 = vmatpush1.msra.mxu0 0.0
        %3813 = vmatprep.subr.mxu0 0.0
        %3814 = vmatpush1.msra.mxu0 0.0
        %3815 = vmatprep.subr.mxu0 0.0
        %3816 = vmatpush1.msra.mxu0 0.0
        %3817 = vmatprep.subr.mxu0 0.0
        %3818 = vmatpush1.msra.mxu0 0.0
        %3819 = vmatprep.subr.mxu0 0.0
        %3820 = vmatpush1.msra.mxu0 0.0
        %3821 = vmatprep.subr.mxu0 0.0
        %3822 = vmatpush1.msra.mxu0 0.0
        %3823 = vmatprep.subr.mxu0 0.0
        %3824 = vmatpush1.msra.mxu0 0.0
        %3825 = vmatprep.subr.mxu0 0.0
        %3826 = vmatpush1.msra.mxu0 0.0
        %3827 = vmatprep.subr.mxu0 0.0
        %3828 = vmatpush1.msra.mxu0 %v3596
        %3829 = vmatprep.subr.mxu0 0.0
        %3830 = vmatpush1.msra.mxu0 %v3595
        %3831 = vmatprep.subr.mxu0 0.0
        %3832 = vmatpush1.msra.mxu0 %v3594
        %3833 = vmatprep.subr.mxu0 0.0
        %3834 = vmatpush1.msra.mxu0 %v3593
        %3835 = vmatprep.subr.mxu0 0.0
        %3836 = vmatpush2.msra.mxu0 0.0
        %3837 = vmatprep.subr.mxu0 0.0
        %3838 = vmatpush2.msra.mxu0 0.0
        %3839 = vmatprep.subr.mxu0 0.0
        %3840 = vmatpush2.msra.mxu0 0.0
        %3841 = vmatprep.subr.mxu0 0.0
        %3842 = vmatpush2.msra.mxu0 0.0
        %3843 = vmatprep.subr.mxu0 0.0
        %3844 = vmatpush2.msra.mxu0 0.0
        %3845 = vmatprep.subr.mxu0 0.0
        %3846 = vmatpush2.msra.mxu0 0.0
        %3847 = vmatprep.subr.mxu0 0.0
        %3848 = vmatpush2.msra.mxu0 0.0
        %3849 = vmatprep.subr.mxu0 0.0
        %3850 = vmatpush2.msra.mxu0 0.0
        %3851 = vmatprep.subr.mxu0 0.0
        %3852 = vmatpush2.msra.mxu0 0.0
        %3853 = vmatprep.subr.mxu0 0.0
        %3854 = vmatpush2.msra.mxu0 0.0
        %3855 = vmatprep.subr.mxu0 0.0
        %3856 = vmatpush2.msra.mxu0 0.0
        %3857 = vmatprep.subr.mxu0 0.0
        %3858 = vmatpush2.msra.mxu0 0.0
        %3859 = vmatprep.subr.mxu0 0.0
        %3860 = vmatpush2.msra.mxu0 0.0
        %3861 = vmatprep.subr.mxu0 0.0
        %3862 = vmatpush2.msra.mxu0 0.0
        %3863 = vmatprep.subr.mxu0 0.0
        %3864 = vmatpush2.msra.mxu0 0.0
        %3865 = vmatprep.subr.mxu0 0.0
        %3866 = vmatpush2.msra.mxu0 0.0
        %3867 = vmatprep.mubr.f32.mxu0 0.0
        %3868 = vmatmul.mubr.f32.gmra.mxu0 %v3792
        %v3869 = vpop.f32.mrf.mxu0
        %v3870 = vadd.f32 0.0, %v3869
        %v3871 = vpop.f32.mrf.mxu0
        %3872 = vmatprep.mubr.f32.mxu0 0.0
        %3873 = vmatmul.mubr.f32.gmra.mxu0 %v3795
        %v3874 = vpop.f32.mrf.mxu0
        %v3875 = vadd.f32 0.0, %v3874
        %v3876 = vpop.f32.mrf.mxu0
        %3877 = vmatprep.mubr.f32.mxu0 0.0
        %3878 = vmatmul.mubr.f32.gmra.mxu0 %v3798
        %v3879 = vpop.f32.mrf.mxu0
        %v3880 = vadd.f32 0.0, %v3879
        %v3881 = vpop.f32.mrf.mxu0
        %3882 = vmatprep.mubr.f32.mxu0 0.0
        %3883 = vmatmul.mubr.f32.gmra.mxu0 %v3801
        %v3884 = vpop.f32.mrf.mxu0
        %v3885 = vadd.f32 0.0, %v3884
        %v3886 = vpop.f32.mrf.mxu0
        %3887 = vdwg.mxu0
        %v3888 = vadd.f32 %v3773, %v3870
        %v3889 = vadd.f32 %v3778, %v3875
        %v3890 = vadd.f32 %v3783, %v3880
        %v3891 = vadd.f32 %v3788, %v3885
        %3893 = vset.pattern.permute.xlu0 0
        %3894 = vperm.xlu0 %3893, %v3347
        %v3895 = vpop.permute.xlu0 %3894
        %3898 = vset.pattern.permute.xlu0 0
        %3899 = vperm.xlu0 %3898, %v3348
        %v3900 = vpop.permute.xlu0 %3899
        %3903 = vset.pattern.permute.xlu0 0
        %3904 = vperm.xlu0 %3903, %v3349
        %v3905 = vpop.permute.xlu0 %3904
        %3908 = vset.pattern.permute.xlu0 0
        %3909 = vperm.xlu0 %3908, %v3350
        %v3910 = vpop.permute.xlu0 %3909
        %v3912 = vadd.f32 %v3888, %v3895
        %v3913 = vadd.f32 %v3889, %v3900
        %v3914 = vadd.f32 %v3890, %v3905
        %v3915 = vadd.f32 %v3891, %v3910
        %v3916 = vsel %vm3375, %v3912, 0.0
        %3917 = vadd.xlane.f32.xlu0 %v3916
        %v3918 = vpop.xlane.xlu0 %3917
        %v3919 = vsel %vm3375, %v3913, 0.0
        %3920 = vadd.xlane.f32.xlu0 %v3919
        %v3921 = vpop.xlane.xlu0 %3920
        %v3922 = vsel %vm3375, %v3914, 0.0
        %3923 = vadd.xlane.f32.xlu0 %v3922
        %v3924 = vpop.xlane.xlu0 %3923
        %v3925 = vsel %vm3375, %v3915, 0.0
        %3926 = vadd.xlane.f32.xlu0 %v3925
        %v3927 = vpop.xlane.xlu0 %3926
        %v3928 = vmul.f32 %v3918, %v3388
        %v3929 = vmul.f32 %v3921, %v3388
        %v3930 = vmul.f32 %v3924, %v3388
        %v3931 = vmul.f32 %v3927, %v3388
        %v3932 = vrot.slane %v3928, 4
        %v3933 = vadd.f32 %v3928, %v3932
        %v3934 = vrot.slane %v3933, 2
        %v3935 = vadd.f32 %v3933, %v3934
        %v3936 = vrot.slane %v3935, 1
        %v3937 = vadd.f32 %v3935, %v3936
        %v3938 = vrot.slane %v3929, 4
        %v3939 = vadd.f32 %v3929, %v3938
        %v3940 = vrot.slane %v3939, 2
        %v3941 = vadd.f32 %v3939, %v3940
        %v3942 = vrot.slane %v3941, 1
        %v3943 = vadd.f32 %v3941, %v3942
        %v3944 = vrot.slane %v3930, 4
        %v3945 = vadd.f32 %v3930, %v3944
        %v3946 = vrot.slane %v3945, 2
        %v3947 = vadd.f32 %v3945, %v3946
        %v3948 = vrot.slane %v3947, 1
        %v3949 = vadd.f32 %v3947, %v3948
        %v3950 = vrot.slane %v3931, 4
        %v3951 = vadd.f32 %v3931, %v3950
        %v3952 = vrot.slane %v3951, 2
        %v3953 = vadd.f32 %v3951, %v3952
        %v3954 = vrot.slane %v3953, 1
        %v3955 = vadd.f32 %v3953, %v3954
        %v3956 = vmul.f32 %v3937, %v967
        %v3957 = vmul.f32 %v3943, %v967
        %v3958 = vmul.f32 %v3949, %v967
        %v3959 = vmul.f32 %v3955, %v967
        %v3960 = vsub.f32 %v3912, %v3956
        %v3961 = vsub.f32 %v3913, %v3957
        %v3962 = vsub.f32 %v3914, %v3958
        %v3963 = vsub.f32 %v3915, %v3959
        %v3964 = vmul.f32 %v3960, %v3960
        %v3965 = vmul.f32 %v3961, %v3961
        %v3966 = vmul.f32 %v3962, %v3962
        %v3967 = vmul.f32 %v3963, %v3963
        %v3968 = vsel %vm3375, %v3964, 0.0
        %3969 = vadd.xlane.f32.xlu0 %v3968
        %v3970 = vpop.xlane.xlu0 %3969
        %v3971 = vsel %vm3375, %v3965, 0.0
        %3972 = vadd.xlane.f32.xlu0 %v3971
        %v3973 = vpop.xlane.xlu0 %3972
        %v3974 = vsel %vm3375, %v3966, 0.0
        %3975 = vadd.xlane.f32.xlu0 %v3974
        %v3976 = vpop.xlane.xlu0 %3975
        %v3977 = vsel %vm3375, %v3967, 0.0
        %3978 = vadd.xlane.f32.xlu0 %v3977
        %v3979 = vpop.xlane.xlu0 %3978
        %v3980 = vmul.f32 %v3970, %v3388
        %v3981 = vmul.f32 %v3973, %v3388
        %v3982 = vmul.f32 %v3976, %v3388
        %v3983 = vmul.f32 %v3979, %v3388
        %v3984 = vrot.slane %v3980, 4
        %v3985 = vadd.f32 %v3980, %v3984
        %v3986 = vrot.slane %v3985, 2
        %v3987 = vadd.f32 %v3985, %v3986
        %v3988 = vrot.slane %v3987, 1
        %v3989 = vadd.f32 %v3987, %v3988
        %v3990 = vrot.slane %v3981, 4
        %v3991 = vadd.f32 %v3981, %v3990
        %v3992 = vrot.slane %v3991, 2
        %v3993 = vadd.f32 %v3991, %v3992
        %v3994 = vrot.slane %v3993, 1
        %v3995 = vadd.f32 %v3993, %v3994
        %v3996 = vrot.slane %v3982, 4
        %v3997 = vadd.f32 %v3982, %v3996
        %v3998 = vrot.slane %v3997, 2
        %v3999 = vadd.f32 %v3997, %v3998
        %v4000 = vrot.slane %v3999, 1
        %v4001 = vadd.f32 %v3999, %v4000
        %v4002 = vrot.slane %v3983, 4
        %v4003 = vadd.f32 %v3983, %v4002
        %v4004 = vrot.slane %v4003, 2
        %v4005 = vadd.f32 %v4003, %v4004
        %v4006 = vrot.slane %v4005, 1
        %v4007 = vadd.f32 %v4005, %v4006
        %v4008 = vmul.f32 %v3989, %v967
        %v4009 = vmul.f32 %v3995, %v967
        %v4010 = vmul.f32 %v4001, %v967
        %v4011 = vmul.f32 %v4007, %v967
        %v4012 = vadd.f32 %v4008, 1e-05
        %v4013 = vadd.f32 %v4009, 1e-05
        %v4014 = vadd.f32 %v4010, 1e-05
        %v4015 = vadd.f32 %v4011, 1e-05
        %v4016 = vrsqrt.pop %v4012
        %v4017 = vrsqrt.pop %v4013
        %v4018 = vrsqrt.pop %v4014
        %v4019 = vrsqrt.pop %v4015
        %v4020 = vmul.f32 %v3960, %v4016
        %v4021 = vmul.f32 %v3961, %v4017
        %v4022 = vmul.f32 %v3962, %v4018
        %v4023 = vmul.f32 %v3963, %v4019
        %4025 = vset.pattern.permute.xlu0 0
        %4026 = vperm.xlu0 %4025, %v3351
        %v4027 = vpop.permute.xlu0 %4026
        %4030 = vset.pattern.permute.xlu0 0
        %4031 = vperm.xlu0 %4030, %v3352
        %v4032 = vpop.permute.xlu0 %4031
        %4035 = vset.pattern.permute.xlu0 0
        %4036 = vperm.xlu0 %4035, %v3353
        %v4037 = vpop.permute.xlu0 %4036
        %4040 = vset.pattern.permute.xlu0 0
        %4041 = vperm.xlu0 %4040, %v3354
        %v4042 = vpop.permute.xlu0 %4041
        %v4044 = vmul.f32 %v4020, %v4027
        %v4045 = vmul.f32 %v4021, %v4032
        %v4046 = vmul.f32 %v4022, %v4037
        %v4047 = vmul.f32 %v4023, %v4042
        %4049 = vset.pattern.permute.xlu0 0
        %4050 = vperm.xlu0 %4049, %v3355
        %v4051 = vpop.permute.xlu0 %4050
        %4054 = vset.pattern.permute.xlu0 0
        %4055 = vperm.xlu0 %4054, %v3356
        %v4056 = vpop.permute.xlu0 %4055
        %4059 = vset.pattern.permute.xlu0 0
        %4060 = vperm.xlu0 %4059, %v3357
        %v4061 = vpop.permute.xlu0 %4060
        %4064 = vset.pattern.permute.xlu0 0
        %4065 = vperm.xlu0 %4064, %v3358
        %v4066 = vpop.permute.xlu0 %4065
        %v4068 = vadd.f32 %v4044, %v4051
        %v4069 = vadd.f32 %v4045, %v4056
        %v4070 = vadd.f32 %v4046, %v4061
        %v4071 = vadd.f32 %v4047, %v4066
        %v4072 = vxor.u32 %v4068, 2147483648
        %v4073 = vxor.u32 %v4069, 2147483648
        %v4074 = vxor.u32 %v4070, 2147483648
        %v4075 = vxor.u32 %v4071, 2147483648
        %v4076 = vmul.f32 %v4072, 1.442695
        %v4077 = vpow.pop %v4076
        %v4078 = vmul.f32 %v4073, 1.442695
        %v4079 = vpow.pop %v4078
        %v4080 = vmul.f32 %v4074, 1.442695
        %v4081 = vpow.pop %v4080
        %v4082 = vmul.f32 %v4075, 1.442695
        %v4083 = vpow.pop %v4082
        %v4084 = vadd.f32 %v4077, 1.0
        %v4085 = vadd.f32 %v4079, 1.0
        %v4086 = vadd.f32 %v4081, 1.0
        %v4087 = vadd.f32 %v4083, 1.0
        %v4088 = vrcp.pop %v4084
        %v4089 = vmul.f32 1.0, %v4088
        %v4090 = vrcp.pop %v4085
        %v4091 = vmul.f32 1.0, %v4090
        %v4092 = vrcp.pop %v4086
        %v4093 = vmul.f32 1.0, %v4092
        %v4094 = vrcp.pop %v4087
        %v4095 = vmul.f32 1.0, %v4094
        %v4096 = vmul.f32 %v4068, %v4089
        %v4097 = vmul.f32 %v4069, %v4091
        %v4098 = vmul.f32 %v4070, %v4093
        %v4099 = vmul.f32 %v4071, %v4095
        %4104 = vrot.lane.b32.xlu0 %v4096, 1
        %v4105 = vpop.permute.xlu0 %4104
        %4106 = vrot.lane.b32.xlu0 %v4097, 1
        %v4107 = vpop.permute.xlu0 %4106
        %4108 = vrot.lane.b32.xlu0 %v4098, 1
        %v4109 = vpop.permute.xlu0 %4108
        %4110 = vrot.lane.b32.xlu0 %v4099, 1
        %v4111 = vpop.permute.xlu0 %4110
        %v4116 = vsel %vm1156, 0.0, %v4105
        %v4117 = vsel %vm1156, 0.0, %v4107
        %v4118 = vsel %vm1156, 0.0, %v4109
        %v4119 = vsel %vm1156, 0.0, %v4111
        %4120 = vrot.lane.b32.xlu0 %v4096, 127
        %v4121 = vpop.permute.xlu0 %4120
        %4122 = vrot.lane.b32.xlu0 %v4097, 127
        %v4123 = vpop.permute.xlu0 %4122
        %4124 = vrot.lane.b32.xlu0 %v4098, 127
        %v4125 = vpop.permute.xlu0 %4124
        %4126 = vrot.lane.b32.xlu0 %v4099, 127
        %v4127 = vpop.permute.xlu0 %4126
        %v4132 = vsel %vm3003, %v4121, 0.0
        %v4133 = vsel %vm3003, %v4123, 0.0
        %v4134 = vsel %vm3003, %v4125, 0.0
        %v4135 = vsel %vm3003, %v4127, 0.0
        %v4137 = vsel %vm1178, %v3359, 0
        %v4140 = vsel %vm1178, %v3360, 0
        %v4143 = vsel %vm1178, %v3361, 0
        %v4146 = vsel %vm1178, %v3362, 0
        %4148 = vmatprep.subr.mxu0 0.0
        %4149 = vmatpush1.msra.mxu0 0.0
        %4150 = vmatprep.subr.mxu0 0.0
        %4151 = vmatpush1.msra.mxu0 0.0
        %4152 = vmatprep.subr.mxu0 0.0
        %4153 = vmatpush1.msra.mxu0 0.0
        %4154 = vmatprep.subr.mxu0 0.0
        %4155 = vmatpush1.msra.mxu0 0.0
        %4156 = vmatprep.subr.mxu0 0.0
        %4157 = vmatpush1.msra.mxu0 0.0
        %4158 = vmatprep.subr.mxu0 0.0
        %4159 = vmatpush1.msra.mxu0 0.0
        %4160 = vmatprep.subr.mxu0 0.0
        %4161 = vmatpush1.msra.mxu0 0.0
        %4162 = vmatprep.subr.mxu0 0.0
        %4163 = vmatpush1.msra.mxu0 0.0
        %4164 = vmatprep.subr.mxu0 0.0
        %4165 = vmatpush1.msra.mxu0 0.0
        %4166 = vmatprep.subr.mxu0 0.0
        %4167 = vmatpush1.msra.mxu0 0.0
        %4168 = vmatprep.subr.mxu0 0.0
        %4169 = vmatpush1.msra.mxu0 0.0
        %4170 = vmatprep.subr.mxu0 0.0
        %4171 = vmatpush1.msra.mxu0 0.0
        %4172 = vmatprep.subr.mxu0 0.0
        %4173 = vmatpush1.msra.mxu0 %v4119
        %4174 = vmatprep.subr.mxu0 0.0
        %4175 = vmatpush1.msra.mxu0 %v4118
        %4176 = vmatprep.subr.mxu0 0.0
        %4177 = vmatpush1.msra.mxu0 %v4117
        %4178 = vmatprep.subr.mxu0 0.0
        %4179 = vmatpush1.msra.mxu0 %v4116
        %4180 = vmatprep.subr.mxu0 0.0
        %4181 = vmatpush2.msra.mxu0 0.0
        %4182 = vmatprep.subr.mxu0 0.0
        %4183 = vmatpush2.msra.mxu0 0.0
        %4184 = vmatprep.subr.mxu0 0.0
        %4185 = vmatpush2.msra.mxu0 0.0
        %4186 = vmatprep.subr.mxu0 0.0
        %4187 = vmatpush2.msra.mxu0 0.0
        %4188 = vmatprep.subr.mxu0 0.0
        %4189 = vmatpush2.msra.mxu0 0.0
        %4190 = vmatprep.subr.mxu0 0.0
        %4191 = vmatpush2.msra.mxu0 0.0
        %4192 = vmatprep.subr.mxu0 0.0
        %4193 = vmatpush2.msra.mxu0 0.0
        %4194 = vmatprep.subr.mxu0 0.0
        %4195 = vmatpush2.msra.mxu0 0.0
        %4196 = vmatprep.subr.mxu0 0.0
        %4197 = vmatpush2.msra.mxu0 0.0
        %4198 = vmatprep.subr.mxu0 0.0
        %4199 = vmatpush2.msra.mxu0 0.0
        %4200 = vmatprep.subr.mxu0 0.0
        %4201 = vmatpush2.msra.mxu0 0.0
        %4202 = vmatprep.subr.mxu0 0.0
        %4203 = vmatpush2.msra.mxu0 0.0
        %4204 = vmatprep.subr.mxu0 0.0
        %4205 = vmatpush2.msra.mxu0 0.0
        %4206 = vmatprep.subr.mxu0 0.0
        %4207 = vmatpush2.msra.mxu0 0.0
        %4208 = vmatprep.subr.mxu0 0.0
        %4209 = vmatpush2.msra.mxu0 0.0
        %4210 = vmatprep.subr.mxu0 0.0
        %4211 = vmatpush2.msra.mxu0 0.0
        %4212 = vmatprep.mubr.f32.mxu0 0.0
        %4213 = vmatmul.mubr.f32.gmra.mxu0 %v4137
        %v4214 = vpop.f32.mrf.mxu0
        %v4215 = vadd.f32 0.0, %v4214
        %v4216 = vpop.f32.mrf.mxu0
        %4217 = vmatprep.mubr.f32.mxu0 0.0
        %4218 = vmatmul.mubr.f32.gmra.mxu0 %v4140
        %v4219 = vpop.f32.mrf.mxu0
        %v4220 = vadd.f32 0.0, %v4219
        %v4221 = vpop.f32.mrf.mxu0
        %4222 = vmatprep.mubr.f32.mxu0 0.0
        %4223 = vmatmul.mubr.f32.gmra.mxu0 %v4143
        %v4224 = vpop.f32.mrf.mxu0
        %v4225 = vadd.f32 0.0, %v4224
        %v4226 = vpop.f32.mrf.mxu0
        %4227 = vmatprep.mubr.f32.mxu0 0.0
        %4228 = vmatmul.mubr.f32.gmra.mxu0 %v4146
        %v4229 = vpop.f32.mrf.mxu0
        %v4230 = vadd.f32 0.0, %v4229
        %v4231 = vpop.f32.mrf.mxu0
        %4232 = vdwg.mxu0
        %v4234 = vsel %vm1178, %v3363, 0
        %v4237 = vsel %vm1178, %v3364, 0
        %v4240 = vsel %vm1178, %v3365, 0
        %v4243 = vsel %vm1178, %v3366, 0
        %4245 = vmatprep.subr.mxu0 0.0
        %4246 = vmatpush1.msra.mxu0 0.0
        %4247 = vmatprep.subr.mxu0 0.0
        %4248 = vmatpush1.msra.mxu0 0.0
        %4249 = vmatprep.subr.mxu0 0.0
        %4250 = vmatpush1.msra.mxu0 0.0
        %4251 = vmatprep.subr.mxu0 0.0
        %4252 = vmatpush1.msra.mxu0 0.0
        %4253 = vmatprep.subr.mxu0 0.0
        %4254 = vmatpush1.msra.mxu0 0.0
        %4255 = vmatprep.subr.mxu0 0.0
        %4256 = vmatpush1.msra.mxu0 0.0
        %4257 = vmatprep.subr.mxu0 0.0
        %4258 = vmatpush1.msra.mxu0 0.0
        %4259 = vmatprep.subr.mxu0 0.0
        %4260 = vmatpush1.msra.mxu0 0.0
        %4261 = vmatprep.subr.mxu0 0.0
        %4262 = vmatpush1.msra.mxu0 0.0
        %4263 = vmatprep.subr.mxu0 0.0
        %4264 = vmatpush1.msra.mxu0 0.0
        %4265 = vmatprep.subr.mxu0 0.0
        %4266 = vmatpush1.msra.mxu0 0.0
        %4267 = vmatprep.subr.mxu0 0.0
        %4268 = vmatpush1.msra.mxu0 0.0
        %4269 = vmatprep.subr.mxu0 0.0
        %4270 = vmatpush1.msra.mxu0 %v4099
        %4271 = vmatprep.subr.mxu0 0.0
        %4272 = vmatpush1.msra.mxu0 %v4098
        %4273 = vmatprep.subr.mxu0 0.0
        %4274 = vmatpush1.msra.mxu0 %v4097
        %4275 = vmatprep.subr.mxu0 0.0
        %4276 = vmatpush1.msra.mxu0 %v4096
        %4277 = vmatprep.subr.mxu0 0.0
        %4278 = vmatpush2.msra.mxu0 0.0
        %4279 = vmatprep.subr.mxu0 0.0
        %4280 = vmatpush2.msra.mxu0 0.0
        %4281 = vmatprep.subr.mxu0 0.0
        %4282 = vmatpush2.msra.mxu0 0.0
        %4283 = vmatprep.subr.mxu0 0.0
        %4284 = vmatpush2.msra.mxu0 0.0
        %4285 = vmatprep.subr.mxu0 0.0
        %4286 = vmatpush2.msra.mxu0 0.0
        %4287 = vmatprep.subr.mxu0 0.0
        %4288 = vmatpush2.msra.mxu0 0.0
        %4289 = vmatprep.subr.mxu0 0.0
        %4290 = vmatpush2.msra.mxu0 0.0
        %4291 = vmatprep.subr.mxu0 0.0
        %4292 = vmatpush2.msra.mxu0 0.0
        %4293 = vmatprep.subr.mxu0 0.0
        %4294 = vmatpush2.msra.mxu0 0.0
        %4295 = vmatprep.subr.mxu0 0.0
        %4296 = vmatpush2.msra.mxu0 0.0
        %4297 = vmatprep.subr.mxu0 0.0
        %4298 = vmatpush2.msra.mxu0 0.0
        %4299 = vmatprep.subr.mxu0 0.0
        %4300 = vmatpush2.msra.mxu0 0.0
        %4301 = vmatprep.subr.mxu0 0.0
        %4302 = vmatpush2.msra.mxu0 0.0
        %4303 = vmatprep.subr.mxu0 0.0
        %4304 = vmatpush2.msra.mxu0 0.0
        %4305 = vmatprep.subr.mxu0 0.0
        %4306 = vmatpush2.msra.mxu0 0.0
        %4307 = vmatprep.subr.mxu0 0.0
        %4308 = vmatpush2.msra.mxu0 0.0
        %4309 = vmatprep.mubr.f32.mxu0 0.0
        %4310 = vmatmul.mubr.f32.gmra.mxu0 %v4234
        %v4311 = vpop.f32.mrf.mxu0
        %v4312 = vadd.f32 %v4215, %v4311
        %v4313 = vpop.f32.mrf.mxu0
        %4314 = vmatprep.mubr.f32.mxu0 0.0
        %4315 = vmatmul.mubr.f32.gmra.mxu0 %v4237
        %v4316 = vpop.f32.mrf.mxu0
        %v4317 = vadd.f32 %v4220, %v4316
        %v4318 = vpop.f32.mrf.mxu0
        %4319 = vmatprep.mubr.f32.mxu0 0.0
        %4320 = vmatmul.mubr.f32.gmra.mxu0 %v4240
        %v4321 = vpop.f32.mrf.mxu0
        %v4322 = vadd.f32 %v4225, %v4321
        %v4323 = vpop.f32.mrf.mxu0
        %4324 = vmatprep.mubr.f32.mxu0 0.0
        %4325 = vmatmul.mubr.f32.gmra.mxu0 %v4243
        %v4326 = vpop.f32.mrf.mxu0
        %v4327 = vadd.f32 %v4230, %v4326
        %v4328 = vpop.f32.mrf.mxu0
        %4329 = vdwg.mxu0
        %v4331 = vsel %vm1178, %v3367, 0
        %v4334 = vsel %vm1178, %v3368, 0
        %v4337 = vsel %vm1178, %v3369, 0
        %v4340 = vsel %vm1178, %v3370, 0
        %4342 = vmatprep.subr.mxu0 0.0
        %4343 = vmatpush1.msra.mxu0 0.0
        %4344 = vmatprep.subr.mxu0 0.0
        %4345 = vmatpush1.msra.mxu0 0.0
        %4346 = vmatprep.subr.mxu0 0.0
        %4347 = vmatpush1.msra.mxu0 0.0
        %4348 = vmatprep.subr.mxu0 0.0
        %4349 = vmatpush1.msra.mxu0 0.0
        %4350 = vmatprep.subr.mxu0 0.0
        %4351 = vmatpush1.msra.mxu0 0.0
        %4352 = vmatprep.subr.mxu0 0.0
        %4353 = vmatpush1.msra.mxu0 0.0
        %4354 = vmatprep.subr.mxu0 0.0
        %4355 = vmatpush1.msra.mxu0 0.0
        %4356 = vmatprep.subr.mxu0 0.0
        %4357 = vmatpush1.msra.mxu0 0.0
        %4358 = vmatprep.subr.mxu0 0.0
        %4359 = vmatpush1.msra.mxu0 0.0
        %4360 = vmatprep.subr.mxu0 0.0
        %4361 = vmatpush1.msra.mxu0 0.0
        %4362 = vmatprep.subr.mxu0 0.0
        %4363 = vmatpush1.msra.mxu0 0.0
        %4364 = vmatprep.subr.mxu0 0.0
        %4365 = vmatpush1.msra.mxu0 0.0
        %4366 = vmatprep.subr.mxu0 0.0
        %4367 = vmatpush1.msra.mxu0 %v4135
        %4368 = vmatprep.subr.mxu0 0.0
        %4369 = vmatpush1.msra.mxu0 %v4134
        %4370 = vmatprep.subr.mxu0 0.0
        %4371 = vmatpush1.msra.mxu0 %v4133
        %4372 = vmatprep.subr.mxu0 0.0
        %4373 = vmatpush1.msra.mxu0 %v4132
        %4374 = vmatprep.subr.mxu0 0.0
        %4375 = vmatpush2.msra.mxu0 0.0
        %4376 = vmatprep.subr.mxu0 0.0
        %4377 = vmatpush2.msra.mxu0 0.0
        %4378 = vmatprep.subr.mxu0 0.0
        %4379 = vmatpush2.msra.mxu0 0.0
        %4380 = vmatprep.subr.mxu0 0.0
        %4381 = vmatpush2.msra.mxu0 0.0
        %4382 = vmatprep.subr.mxu0 0.0
        %4383 = vmatpush2.msra.mxu0 0.0
        %4384 = vmatprep.subr.mxu0 0.0
        %4385 = vmatpush2.msra.mxu0 0.0
        %4386 = vmatprep.subr.mxu0 0.0
        %4387 = vmatpush2.msra.mxu0 0.0
        %4388 = vmatprep.subr.mxu0 0.0
        %4389 = vmatpush2.msra.mxu0 0.0
        %4390 = vmatprep.subr.mxu0 0.0
        %4391 = vmatpush2.msra.mxu0 0.0
        %4392 = vmatprep.subr.mxu0 0.0
        %4393 = vmatpush2.msra.mxu0 0.0
        %4394 = vmatprep.subr.mxu0 0.0
        %4395 = vmatpush2.msra.mxu0 0.0
        %4396 = vmatprep.subr.mxu0 0.0
        %4397 = vmatpush2.msra.mxu0 0.0
        %4398 = vmatprep.subr.mxu0 0.0
        %4399 = vmatpush2.msra.mxu0 0.0
        %4400 = vmatprep.subr.mxu0 0.0
        %4401 = vmatpush2.msra.mxu0 0.0
        %4402 = vmatprep.subr.mxu0 0.0
        %4403 = vmatpush2.msra.mxu0 0.0
        %4404 = vmatprep.subr.mxu0 0.0
        %4405 = vmatpush2.msra.mxu0 0.0
        %4406 = vmatprep.mubr.f32.mxu0 0.0
        %4407 = vmatmul.mubr.f32.gmra.mxu0 %v4331
        %v4408 = vpop.f32.mrf.mxu0
        %v4409 = vadd.f32 0.0, %v4408
        %v4410 = vpop.f32.mrf.mxu0
        %4411 = vmatprep.mubr.f32.mxu0 0.0
        %4412 = vmatmul.mubr.f32.gmra.mxu0 %v4334
        %v4413 = vpop.f32.mrf.mxu0
        %v4414 = vadd.f32 0.0, %v4413
        %v4415 = vpop.f32.mrf.mxu0
        %4416 = vmatprep.mubr.f32.mxu0 0.0
        %4417 = vmatmul.mubr.f32.gmra.mxu0 %v4337
        %v4418 = vpop.f32.mrf.mxu0
        %v4419 = vadd.f32 0.0, %v4418
        %v4420 = vpop.f32.mrf.mxu0
        %4421 = vmatprep.mubr.f32.mxu0 0.0
        %4422 = vmatmul.mubr.f32.gmra.mxu0 %v4340
        %v4423 = vpop.f32.mrf.mxu0
        %v4424 = vadd.f32 0.0, %v4423
        %v4425 = vpop.f32.mrf.mxu0
        %4426 = vdwg.mxu0
        %v4427 = vadd.f32 %v4312, %v4409
        %v4428 = vadd.f32 %v4317, %v4414
        %v4429 = vadd.f32 %v4322, %v4419
        %v4430 = vadd.f32 %v4327, %v4424
        %4432 = vset.pattern.permute.xlu0 0
        %4433 = vperm.xlu0 %4432, %v3371
        %v4434 = vpop.permute.xlu0 %4433
        %4437 = vset.pattern.permute.xlu0 0
        %4438 = vperm.xlu0 %4437, %v3372
        %v4439 = vpop.permute.xlu0 %4438
        %4442 = vset.pattern.permute.xlu0 0
        %4443 = vperm.xlu0 %4442, %v3373
        %v4444 = vpop.permute.xlu0 %4443
        %4447 = vset.pattern.permute.xlu0 0
        %4448 = vperm.xlu0 %4447, %v3374
        %v4449 = vpop.permute.xlu0 %4448
        %v4451 = vadd.f32 %v4427, %v4434
        %v4452 = vadd.f32 %v4428, %v4439
        %v4453 = vadd.f32 %v4429, %v4444
        %v4454 = vadd.f32 %v4430, %v4449
        %v4455 = vadd.f32 %v4451, %v3323
        %v4456 = vadd.f32 %v4452, %v3324
        %v4457 = vadd.f32 %v4453, %v3325
        %v4458 = vadd.f32 %v4454, %v3326
        %v4459 = vld [vmem:[%s21] sm:$0xff]
        %v4460 = vld [vmem:[%s21 + $0x8] sm:$0xff]
        %v4461 = vld [vmem:[%s21 + $0x10] sm:$0xff]
        %v4462 = vld [vmem:[%s21 + $0x18] sm:$0xff]
        %v4463 = vld [vmem:[%s21 + $0x20] sm:$0xff]
        %v4464 = vld [vmem:[%s21 + $0x28] sm:$0xff]
        %v4465 = vld [vmem:[%s22] sm:$0xff]
        %v4466 = vld [vmem:[%s22 + $0x8] sm:$0xff]
        %v4467 = vlaneseq
        %v4468 = vshrl.u32 %v4467, 7
        %v4469 = vsub.s32 0, %v4468
        %v4470 = vrot.slane %v4455, %v4469
        %4472 = vbcast.lane.b32.xlu0 %v4470, 256
        %v4473 = vpop.permute.xlu0 %4472
        %s4475 = sor.u32 256, 8
        %4476 = vbcast.lane.b32.xlu0 %v4470, %s4475
        %v4477 = vpop.permute.xlu0 %4476
        %v4478 = vlaneseq
        %v4479 = vshrl.u32 %v4478, 7
        %v4480 = vsub.s32 1, %v4479
        %v4481 = vrot.slane %v4455, %v4480
        %4483 = vbcast.lane.b32.xlu0 %v4481, 256
        %v4484 = vpop.permute.xlu0 %4483
        %s4486 = sor.u32 256, 8
        %4487 = vbcast.lane.b32.xlu0 %v4481, %s4486
        %v4488 = vpop.permute.xlu0 %4487
        %v4489 = vlaneseq
        %v4490 = vshrl.u32 %v4489, 7
        %v4491 = vsub.s32 2, %v4490
        %v4492 = vrot.slane %v4455, %v4491
        %4494 = vbcast.lane.b32.xlu0 %v4492, 256
        %v4495 = vpop.permute.xlu0 %4494
        %s4497 = sor.u32 256, 8
        %4498 = vbcast.lane.b32.xlu0 %v4492, %s4497
        %v4499 = vpop.permute.xlu0 %4498
        %v4500 = vlaneseq
        %v4501 = vshrl.u32 %v4500, 7
        %v4502 = vsub.s32 3, %v4501
        %v4503 = vrot.slane %v4455, %v4502
        %4505 = vbcast.lane.b32.xlu0 %v4503, 256
        %v4506 = vpop.permute.xlu0 %4505
        %s4508 = sor.u32 256, 8
        %4509 = vbcast.lane.b32.xlu0 %v4503, %s4508
        %v4510 = vpop.permute.xlu0 %4509
        %v4511 = vlaneseq
        %v4512 = vshrl.u32 %v4511, 7
        %v4513 = vsub.s32 4, %v4512
        %v4514 = vrot.slane %v4455, %v4513
        %4516 = vbcast.lane.b32.xlu0 %v4514, 256
        %v4517 = vpop.permute.xlu0 %4516
        %s4519 = sor.u32 256, 8
        %4520 = vbcast.lane.b32.xlu0 %v4514, %s4519
        %v4521 = vpop.permute.xlu0 %4520
        %v4522 = vlaneseq
        %v4523 = vshrl.u32 %v4522, 7
        %v4524 = vsub.s32 5, %v4523
        %v4525 = vrot.slane %v4455, %v4524
        %4527 = vbcast.lane.b32.xlu0 %v4525, 256
        %v4528 = vpop.permute.xlu0 %4527
        %s4530 = sor.u32 256, 8
        %4531 = vbcast.lane.b32.xlu0 %v4525, %s4530
        %v4532 = vpop.permute.xlu0 %4531
        %v4533 = vlaneseq
        %v4534 = vshrl.u32 %v4533, 7
        %v4535 = vsub.s32 6, %v4534
        %v4536 = vrot.slane %v4455, %v4535
        %4538 = vbcast.lane.b32.xlu0 %v4536, 256
        %v4539 = vpop.permute.xlu0 %4538
        %s4541 = sor.u32 256, 8
        %4542 = vbcast.lane.b32.xlu0 %v4536, %s4541
        %v4543 = vpop.permute.xlu0 %4542
        %v4544 = vlaneseq
        %v4545 = vshrl.u32 %v4544, 7
        %v4546 = vsub.s32 7, %v4545
        %v4547 = vrot.slane %v4455, %v4546
        %4549 = vbcast.lane.b32.xlu0 %v4547, 256
        %v4550 = vpop.permute.xlu0 %4549
        %s4552 = sor.u32 256, 8
        %4553 = vbcast.lane.b32.xlu0 %v4547, %s4552
        %v4554 = vpop.permute.xlu0 %4553
        %v4555 = vlaneseq
        %v4556 = vshrl.u32 %v4555, 7
        %v4557 = vsub.s32 0, %v4556
        %v4558 = vrot.slane %v4456, %v4557
        %4560 = vbcast.lane.b32.xlu0 %v4558, 256
        %v4561 = vpop.permute.xlu0 %4560
        %s4563 = sor.u32 256, 8
        %4564 = vbcast.lane.b32.xlu0 %v4558, %s4563
        %v4565 = vpop.permute.xlu0 %4564
        %v4566 = vlaneseq
        %v4567 = vshrl.u32 %v4566, 7
        %v4568 = vsub.s32 1, %v4567
        %v4569 = vrot.slane %v4456, %v4568
        %4571 = vbcast.lane.b32.xlu0 %v4569, 256
        %v4572 = vpop.permute.xlu0 %4571
        %s4574 = sor.u32 256, 8
        %4575 = vbcast.lane.b32.xlu0 %v4569, %s4574
        %v4576 = vpop.permute.xlu0 %4575
        %v4577 = vlaneseq
        %v4578 = vshrl.u32 %v4577, 7
        %v4579 = vsub.s32 2, %v4578
        %v4580 = vrot.slane %v4456, %v4579
        %4582 = vbcast.lane.b32.xlu0 %v4580, 256
        %v4583 = vpop.permute.xlu0 %4582
        %s4585 = sor.u32 256, 8
        %4586 = vbcast.lane.b32.xlu0 %v4580, %s4585
        %v4587 = vpop.permute.xlu0 %4586
        %v4588 = vlaneseq
        %v4589 = vshrl.u32 %v4588, 7
        %v4590 = vsub.s32 3, %v4589
        %v4591 = vrot.slane %v4456, %v4590
        %4593 = vbcast.lane.b32.xlu0 %v4591, 256
        %v4594 = vpop.permute.xlu0 %4593
        %s4596 = sor.u32 256, 8
        %4597 = vbcast.lane.b32.xlu0 %v4591, %s4596
        %v4598 = vpop.permute.xlu0 %4597
        %v4599 = vlaneseq
        %v4600 = vshrl.u32 %v4599, 7
        %v4601 = vsub.s32 4, %v4600
        %v4602 = vrot.slane %v4456, %v4601
        %4604 = vbcast.lane.b32.xlu0 %v4602, 256
        %v4605 = vpop.permute.xlu0 %4604
        %s4607 = sor.u32 256, 8
        %4608 = vbcast.lane.b32.xlu0 %v4602, %s4607
        %v4609 = vpop.permute.xlu0 %4608
        %v4610 = vlaneseq
        %v4611 = vshrl.u32 %v4610, 7
        %v4612 = vsub.s32 5, %v4611
        %v4613 = vrot.slane %v4456, %v4612
        %4615 = vbcast.lane.b32.xlu0 %v4613, 256
        %v4616 = vpop.permute.xlu0 %4615
        %s4618 = sor.u32 256, 8
        %4619 = vbcast.lane.b32.xlu0 %v4613, %s4618
        %v4620 = vpop.permute.xlu0 %4619
        %v4621 = vlaneseq
        %v4622 = vshrl.u32 %v4621, 7
        %v4623 = vsub.s32 6, %v4622
        %v4624 = vrot.slane %v4456, %v4623
        %4626 = vbcast.lane.b32.xlu0 %v4624, 256
        %v4627 = vpop.permute.xlu0 %4626
        %s4629 = sor.u32 256, 8
        %4630 = vbcast.lane.b32.xlu0 %v4624, %s4629
        %v4631 = vpop.permute.xlu0 %4630
        %v4632 = vlaneseq
        %v4633 = vshrl.u32 %v4632, 7
        %v4634 = vsub.s32 7, %v4633
        %v4635 = vrot.slane %v4456, %v4634
        %4637 = vbcast.lane.b32.xlu0 %v4635, 256
        %v4638 = vpop.permute.xlu0 %4637
        %s4640 = sor.u32 256, 8
        %4641 = vbcast.lane.b32.xlu0 %v4635, %s4640
        %v4642 = vpop.permute.xlu0 %4641
        %v4643 = vlaneseq
        %v4644 = vshrl.u32 %v4643, 7
        %v4645 = vsub.s32 0, %v4644
        %v4646 = vrot.slane %v4457, %v4645
        %4648 = vbcast.lane.b32.xlu0 %v4646, 256
        %v4649 = vpop.permute.xlu0 %4648
        %s4651 = sor.u32 256, 8
        %4652 = vbcast.lane.b32.xlu0 %v4646, %s4651
        %v4653 = vpop.permute.xlu0 %4652
        %v4654 = vlaneseq
        %v4655 = vshrl.u32 %v4654, 7
        %v4656 = vsub.s32 1, %v4655
        %v4657 = vrot.slane %v4457, %v4656
        %4659 = vbcast.lane.b32.xlu0 %v4657, 256
        %v4660 = vpop.permute.xlu0 %4659
        %s4662 = sor.u32 256, 8
        %4663 = vbcast.lane.b32.xlu0 %v4657, %s4662
        %v4664 = vpop.permute.xlu0 %4663
        %v4665 = vlaneseq
        %v4666 = vshrl.u32 %v4665, 7
        %v4667 = vsub.s32 2, %v4666
        %v4668 = vrot.slane %v4457, %v4667
        %4670 = vbcast.lane.b32.xlu0 %v4668, 256
        %v4671 = vpop.permute.xlu0 %4670
        %s4673 = sor.u32 256, 8
        %4674 = vbcast.lane.b32.xlu0 %v4668, %s4673
        %v4675 = vpop.permute.xlu0 %4674
        %v4676 = vlaneseq
        %v4677 = vshrl.u32 %v4676, 7
        %v4678 = vsub.s32 3, %v4677
        %v4679 = vrot.slane %v4457, %v4678
        %4681 = vbcast.lane.b32.xlu0 %v4679, 256
        %v4682 = vpop.permute.xlu0 %4681
        %s4684 = sor.u32 256, 8
        %4685 = vbcast.lane.b32.xlu0 %v4679, %s4684
        %v4686 = vpop.permute.xlu0 %4685
        %v4687 = vlaneseq
        %v4688 = vshrl.u32 %v4687, 7
        %v4689 = vsub.s32 4, %v4688
        %v4690 = vrot.slane %v4457, %v4689
        %4692 = vbcast.lane.b32.xlu0 %v4690, 256
        %v4693 = vpop.permute.xlu0 %4692
        %s4695 = sor.u32 256, 8
        %4696 = vbcast.lane.b32.xlu0 %v4690, %s4695
        %v4697 = vpop.permute.xlu0 %4696
        %v4698 = vlaneseq
        %v4699 = vshrl.u32 %v4698, 7
        %v4700 = vsub.s32 5, %v4699
        %v4701 = vrot.slane %v4457, %v4700
        %4703 = vbcast.lane.b32.xlu0 %v4701, 256
        %v4704 = vpop.permute.xlu0 %4703
        %s4706 = sor.u32 256, 8
        %4707 = vbcast.lane.b32.xlu0 %v4701, %s4706
        %v4708 = vpop.permute.xlu0 %4707
        %v4709 = vlaneseq
        %v4710 = vshrl.u32 %v4709, 7
        %v4711 = vsub.s32 6, %v4710
        %v4712 = vrot.slane %v4457, %v4711
        %4714 = vbcast.lane.b32.xlu0 %v4712, 256
        %v4715 = vpop.permute.xlu0 %4714
        %s4717 = sor.u32 256, 8
        %4718 = vbcast.lane.b32.xlu0 %v4712, %s4717
        %v4719 = vpop.permute.xlu0 %4718
        %v4720 = vlaneseq
        %v4721 = vshrl.u32 %v4720, 7
        %v4722 = vsub.s32 7, %v4721
        %v4723 = vrot.slane %v4457, %v4722
        %4725 = vbcast.lane.b32.xlu0 %v4723, 256
        %v4726 = vpop.permute.xlu0 %4725
        %s4728 = sor.u32 256, 8
        %4729 = vbcast.lane.b32.xlu0 %v4723, %s4728
        %v4730 = vpop.permute.xlu0 %4729
        %v4731 = vlaneseq
        %v4732 = vshrl.u32 %v4731, 7
        %v4733 = vsub.s32 0, %v4732
        %v4734 = vrot.slane %v4458, %v4733
        %4736 = vbcast.lane.b32.xlu0 %v4734, 256
        %v4737 = vpop.permute.xlu0 %4736
        %s4739 = sor.u32 256, 8
        %4740 = vbcast.lane.b32.xlu0 %v4734, %s4739
        %v4741 = vpop.permute.xlu0 %4740
        %v4742 = vlaneseq
        %v4743 = vshrl.u32 %v4742, 7
        %v4744 = vsub.s32 1, %v4743
        %v4745 = vrot.slane %v4458, %v4744
        %4747 = vbcast.lane.b32.xlu0 %v4745, 256
        %v4748 = vpop.permute.xlu0 %4747
        %s4750 = sor.u32 256, 8
        %4751 = vbcast.lane.b32.xlu0 %v4745, %s4750
        %v4752 = vpop.permute.xlu0 %4751
        %v4753 = vlaneseq
        %v4754 = vshrl.u32 %v4753, 7
        %v4755 = vsub.s32 2, %v4754
        %v4756 = vrot.slane %v4458, %v4755
        %4758 = vbcast.lane.b32.xlu0 %v4756, 256
        %v4759 = vpop.permute.xlu0 %4758
        %s4761 = sor.u32 256, 8
        %4762 = vbcast.lane.b32.xlu0 %v4756, %s4761
        %v4763 = vpop.permute.xlu0 %4762
        %v4764 = vlaneseq
        %v4765 = vshrl.u32 %v4764, 7
        %v4766 = vsub.s32 3, %v4765
        %v4767 = vrot.slane %v4458, %v4766
        %4769 = vbcast.lane.b32.xlu0 %v4767, 256
        %v4770 = vpop.permute.xlu0 %4769
        %s4772 = sor.u32 256, 8
        %4773 = vbcast.lane.b32.xlu0 %v4767, %s4772
        %v4774 = vpop.permute.xlu0 %4773
        %v4775 = vlaneseq
        %v4776 = vshrl.u32 %v4775, 7
        %v4777 = vsub.s32 4, %v4776
        %v4778 = vrot.slane %v4458, %v4777
        %4780 = vbcast.lane.b32.xlu0 %v4778, 256
        %v4781 = vpop.permute.xlu0 %4780
        %s4783 = sor.u32 256, 8
        %4784 = vbcast.lane.b32.xlu0 %v4778, %s4783
        %v4785 = vpop.permute.xlu0 %4784
        %v4786 = vlaneseq
        %v4787 = vshrl.u32 %v4786, 7
        %v4788 = vsub.s32 5, %v4787
        %v4789 = vrot.slane %v4458, %v4788
        %4791 = vbcast.lane.b32.xlu0 %v4789, 256
        %v4792 = vpop.permute.xlu0 %4791
        %s4794 = sor.u32 256, 8
        %4795 = vbcast.lane.b32.xlu0 %v4789, %s4794
        %v4796 = vpop.permute.xlu0 %4795
        %v4797 = vlaneseq
        %v4798 = vshrl.u32 %v4797, 7
        %v4799 = vsub.s32 6, %v4798
        %v4800 = vrot.slane %v4458, %v4799
        %4802 = vbcast.lane.b32.xlu0 %v4800, 256
        %v4803 = vpop.permute.xlu0 %4802
        %s4805 = sor.u32 256, 8
        %4806 = vbcast.lane.b32.xlu0 %v4800, %s4805
        %v4807 = vpop.permute.xlu0 %4806
        %v4808 = vlaneseq
        %v4809 = vshrl.u32 %v4808, 7
        %v4810 = vsub.s32 7, %v4809
        %v4811 = vrot.slane %v4458, %v4810
        %4813 = vbcast.lane.b32.xlu0 %v4811, 256
        %v4814 = vpop.permute.xlu0 %4813
        %s4816 = sor.u32 256, 8
        %4817 = vbcast.lane.b32.xlu0 %v4811, %s4816
        %v4818 = vpop.permute.xlu0 %4817
        %v4819 = vcombine.low %v4473, %v4495
        %v4820 = vcombine.high %v4473, %v4495
        %v4822 = vunpack.c.l.s4 1983009808
        %v4823 = vunpack.c.0.s8 %v4822
        %v4824 = vlaneseq
        %v4825 = vshrl.u32 %v4824, 7
        %v4826 = vsub.s32 %v4823, %v4825
        %v4827 = vrot.slane %v4819, %v4826
        %v4829 = vunpack.c.l.s4 1983009808
        %v4830 = vunpack.c.0.s8 %v4829
        %v4831 = vlaneseq
        %v4832 = vshrl.u32 %v4831, 7
        %v4833 = vsub.s32 %v4830, %v4832
        %v4834 = vrot.slane %v4820, %v4833
        %v4835 = vcombine.low %v4484, %v4506
        %v4836 = vcombine.high %v4484, %v4506
        %v4838 = vunpack.c.l.s4 1983009808
        %v4839 = vunpack.c.0.s8 %v4838
        %v4840 = vlaneseq
        %v4841 = vshrl.u32 %v4840, 7
        %v4842 = vsub.s32 %v4839, %v4841
        %v4843 = vrot.slane %v4835, %v4842
        %v4845 = vunpack.c.l.s4 1983009808
        %v4846 = vunpack.c.0.s8 %v4845
        %v4847 = vlaneseq
        %v4848 = vshrl.u32 %v4847, 7
        %v4849 = vsub.s32 %v4846, %v4848
        %v4850 = vrot.slane %v4836, %v4849
        %v4851 = vcombine.low %v4517, %v4539
        %v4852 = vcombine.high %v4517, %v4539
        %v4854 = vunpack.c.l.s4 1983009808
        %v4855 = vunpack.c.0.s8 %v4854
        %v4856 = vlaneseq
        %v4857 = vshrl.u32 %v4856, 7
        %v4858 = vsub.s32 %v4855, %v4857
        %v4859 = vrot.slane %v4851, %v4858
        %v4861 = vunpack.c.l.s4 1983009808
        %v4862 = vunpack.c.0.s8 %v4861
        %v4863 = vlaneseq
        %v4864 = vshrl.u32 %v4863, 7
        %v4865 = vsub.s32 %v4862, %v4864
        %v4866 = vrot.slane %v4852, %v4865
        %v4867 = vcombine.low %v4528, %v4550
        %v4868 = vcombine.high %v4528, %v4550
        %v4870 = vunpack.c.l.s4 1983009808
        %v4871 = vunpack.c.0.s8 %v4870
        %v4872 = vlaneseq
        %v4873 = vshrl.u32 %v4872, 7
        %v4874 = vsub.s32 %v4871, %v4873
        %v4875 = vrot.slane %v4867, %v4874
        %v4877 = vunpack.c.l.s4 1983009808
        %v4878 = vunpack.c.0.s8 %v4877
        %v4879 = vlaneseq
        %v4880 = vshrl.u32 %v4879, 7
        %v4881 = vsub.s32 %v4878, %v4880
        %v4882 = vrot.slane %v4868, %v4881
        %v4883 = vcombine.low %v4827, %v4843
        %v4884 = vcombine.high %v4827, %v4843
        %v4886 = vunpack.c.l.s4 1934713408
        %v4887 = vunpack.c.0.s8 %v4886
        %v4888 = vlaneseq
        %v4889 = vshrl.u32 %v4888, 7
        %v4890 = vsub.s32 %v4887, %v4889
        %v4891 = vrot.slane %v4883, %v4890
        %v4893 = vunpack.c.l.s4 1934713408
        %v4894 = vunpack.c.0.s8 %v4893
        %v4895 = vlaneseq
        %v4896 = vshrl.u32 %v4895, 7
        %v4897 = vsub.s32 %v4894, %v4896
        %v4898 = vrot.slane %v4884, %v4897
        %v4899 = vcombine.low %v4834, %v4850
        %v4900 = vcombine.high %v4834, %v4850
        %v4902 = vunpack.c.l.s4 1934713408
        %v4903 = vunpack.c.0.s8 %v4902
        %v4904 = vlaneseq
        %v4905 = vshrl.u32 %v4904, 7
        %v4906 = vsub.s32 %v4903, %v4905
        %v4907 = vrot.slane %v4899, %v4906
        %v4909 = vunpack.c.l.s4 1934713408
        %v4910 = vunpack.c.0.s8 %v4909
        %v4911 = vlaneseq
        %v4912 = vshrl.u32 %v4911, 7
        %v4913 = vsub.s32 %v4910, %v4912
        %v4914 = vrot.slane %v4900, %v4913
        %v4915 = vcombine.low %v4859, %v4875
        %v4916 = vcombine.high %v4859, %v4875
        %v4918 = vunpack.c.l.s4 1934713408
        %v4919 = vunpack.c.0.s8 %v4918
        %v4920 = vlaneseq
        %v4921 = vshrl.u32 %v4920, 7
        %v4922 = vsub.s32 %v4919, %v4921
        %v4923 = vrot.slane %v4915, %v4922
        %v4925 = vunpack.c.l.s4 1934713408
        %v4926 = vunpack.c.0.s8 %v4925
        %v4927 = vlaneseq
        %v4928 = vshrl.u32 %v4927, 7
        %v4929 = vsub.s32 %v4926, %v4928
        %v4930 = vrot.slane %v4916, %v4929
        %v4931 = vcombine.low %v4866, %v4882
        %v4932 = vcombine.high %v4866, %v4882
        %v4934 = vunpack.c.l.s4 1934713408
        %v4935 = vunpack.c.0.s8 %v4934
        %v4936 = vlaneseq
        %v4937 = vshrl.u32 %v4936, 7
        %v4938 = vsub.s32 %v4935, %v4937
        %v4939 = vrot.slane %v4931, %v4938
        %v4941 = vunpack.c.l.s4 1934713408
        %v4942 = vunpack.c.0.s8 %v4941
        %v4943 = vlaneseq
        %v4944 = vshrl.u32 %v4943, 7
        %v4945 = vsub.s32 %v4942, %v4944
        %v4946 = vrot.slane %v4932, %v4945
        %v4947 = vcombine.low %v4891, %v4923
        %v4948 = vcombine.high %v4891, %v4923
        %v4949 = vcombine.low %v4898, %v4930
        %v4950 = vcombine.high %v4898, %v4930
        %v4951 = vcombine.low %v4907, %v4939
        %v4952 = vcombine.high %v4907, %v4939
        %v4953 = vcombine.low %v4914, %v4946
        %v4954 = vcombine.high %v4914, %v4946
        %v4955 = vcombine.low %v4561, %v4583
        %v4956 = vcombine.high %v4561, %v4583
        %v4958 = vunpack.c.l.s4 1983009808
        %v4959 = vunpack.c.0.s8 %v4958
        %v4960 = vlaneseq
        %v4961 = vshrl.u32 %v4960, 7
        %v4962 = vsub.s32 %v4959, %v4961
        %v4963 = vrot.slane %v4955, %v4962
        %v4965 = vunpack.c.l.s4 1983009808
        %v4966 = vunpack.c.0.s8 %v4965
        %v4967 = vlaneseq
        %v4968 = vshrl.u32 %v4967, 7
        %v4969 = vsub.s32 %v4966, %v4968
        %v4970 = vrot.slane %v4956, %v4969
        %v4971 = vcombine.low %v4572, %v4594
        %v4972 = vcombine.high %v4572, %v4594
        %v4974 = vunpack.c.l.s4 1983009808
        %v4975 = vunpack.c.0.s8 %v4974
        %v4976 = vlaneseq
        %v4977 = vshrl.u32 %v4976, 7
        %v4978 = vsub.s32 %v4975, %v4977
        %v4979 = vrot.slane %v4971, %v4978
        %v4981 = vunpack.c.l.s4 1983009808
        %v4982 = vunpack.c.0.s8 %v4981
        %v4983 = vlaneseq
        %v4984 = vshrl.u32 %v4983, 7
        %v4985 = vsub.s32 %v4982, %v4984
        %v4986 = vrot.slane %v4972, %v4985
        %v4987 = vcombine.low %v4605, %v4627
        %v4988 = vcombine.high %v4605, %v4627
        %v4990 = vunpack.c.l.s4 1983009808
        %v4991 = vunpack.c.0.s8 %v4990
        %v4992 = vlaneseq
        %v4993 = vshrl.u32 %v4992, 7
        %v4994 = vsub.s32 %v4991, %v4993
        %v4995 = vrot.slane %v4987, %v4994
        %v4997 = vunpack.c.l.s4 1983009808
        %v4998 = vunpack.c.0.s8 %v4997
        %v4999 = vlaneseq
        %v5000 = vshrl.u32 %v4999, 7
        %v5001 = vsub.s32 %v4998, %v5000
        %v5002 = vrot.slane %v4988, %v5001
        %v5003 = vcombine.low %v4616, %v4638
        %v5004 = vcombine.high %v4616, %v4638
        %v5006 = vunpack.c.l.s4 1983009808
        %v5007 = vunpack.c.0.s8 %v5006
        %v5008 = vlaneseq
        %v5009 = vshrl.u32 %v5008, 7
        %v5010 = vsub.s32 %v5007, %v5009
        %v5011 = vrot.slane %v5003, %v5010
        %v5013 = vunpack.c.l.s4 1983009808
        %v5014 = vunpack.c.0.s8 %v5013
        %v5015 = vlaneseq
        %v5016 = vshrl.u32 %v5015, 7
        %v5017 = vsub.s32 %v5014, %v5016
        %v5018 = vrot.slane %v5004, %v5017
        %v5019 = vcombine.low %v4963, %v4979
        %v5020 = vcombine.high %v4963, %v4979
        %v5022 = vunpack.c.l.s4 1934713408
        %v5023 = vunpack.c.0.s8 %v5022
        %v5024 = vlaneseq
        %v5025 = vshrl.u32 %v5024, 7
        %v5026 = vsub.s32 %v5023, %v5025
        %v5027 = vrot.slane %v5019, %v5026
        %v5029 = vunpack.c.l.s4 1934713408
        %v5030 = vunpack.c.0.s8 %v5029
        %v5031 = vlaneseq
        %v5032 = vshrl.u32 %v5031, 7
        %v5033 = vsub.s32 %v5030, %v5032
        %v5034 = vrot.slane %v5020, %v5033
        %v5035 = vcombine.low %v4970, %v4986
        %v5036 = vcombine.high %v4970, %v4986
        %v5038 = vunpack.c.l.s4 1934713408
        %v5039 = vunpack.c.0.s8 %v5038
        %v5040 = vlaneseq
        %v5041 = vshrl.u32 %v5040, 7
        %v5042 = vsub.s32 %v5039, %v5041
        %v5043 = vrot.slane %v5035, %v5042
        %v5045 = vunpack.c.l.s4 1934713408
        %v5046 = vunpack.c.0.s8 %v5045
        %v5047 = vlaneseq
        %v5048 = vshrl.u32 %v5047, 7
        %v5049 = vsub.s32 %v5046, %v5048
        %v5050 = vrot.slane %v5036, %v5049
        %v5051 = vcombine.low %v4995, %v5011
        %v5052 = vcombine.high %v4995, %v5011
        %v5054 = vunpack.c.l.s4 1934713408
        %v5055 = vunpack.c.0.s8 %v5054
        %v5056 = vlaneseq
        %v5057 = vshrl.u32 %v5056, 7
        %v5058 = vsub.s32 %v5055, %v5057
        %v5059 = vrot.slane %v5051, %v5058
        %v5061 = vunpack.c.l.s4 1934713408
        %v5062 = vunpack.c.0.s8 %v5061
        %v5063 = vlaneseq
        %v5064 = vshrl.u32 %v5063, 7
        %v5065 = vsub.s32 %v5062, %v5064
        %v5066 = vrot.slane %v5052, %v5065
        %v5067 = vcombine.low %v5002, %v5018
        %v5068 = vcombine.high %v5002, %v5018
        %v5070 = vunpack.c.l.s4 1934713408
        %v5071 = vunpack.c.0.s8 %v5070
        %v5072 = vlaneseq
        %v5073 = vshrl.u32 %v5072, 7
        %v5074 = vsub.s32 %v5071, %v5073
        %v5075 = vrot.slane %v5067, %v5074
        %v5077 = vunpack.c.l.s4 1934713408
        %v5078 = vunpack.c.0.s8 %v5077
        %v5079 = vlaneseq
        %v5080 = vshrl.u32 %v5079, 7
        %v5081 = vsub.s32 %v5078, %v5080
        %v5082 = vrot.slane %v5068, %v5081
        %v5083 = vcombine.low %v5027, %v5059
        %v5084 = vcombine.high %v5027, %v5059
        %v5085 = vcombine.low %v5034, %v5066
        %v5086 = vcombine.high %v5034, %v5066
        %v5087 = vcombine.low %v5043, %v5075
        %v5088 = vcombine.high %v5043, %v5075
        %v5089 = vcombine.low %v5050, %v5082
        %v5090 = vcombine.high %v5050, %v5082
        %v5091 = vcombine.low %v4649, %v4671
        %v5092 = vcombine.high %v4649, %v4671
        %v5094 = vunpack.c.l.s4 1983009808
        %v5095 = vunpack.c.0.s8 %v5094
        %v5096 = vlaneseq
        %v5097 = vshrl.u32 %v5096, 7
        %v5098 = vsub.s32 %v5095, %v5097
        %v5099 = vrot.slane %v5091, %v5098
        %v5101 = vunpack.c.l.s4 1983009808
        %v5102 = vunpack.c.0.s8 %v5101
        %v5103 = vlaneseq
        %v5104 = vshrl.u32 %v5103, 7
        %v5105 = vsub.s32 %v5102, %v5104
        %v5106 = vrot.slane %v5092, %v5105
        %v5107 = vcombine.low %v4660, %v4682
        %v5108 = vcombine.high %v4660, %v4682
        %v5110 = vunpack.c.l.s4 1983009808
        %v5111 = vunpack.c.0.s8 %v5110
        %v5112 = vlaneseq
        %v5113 = vshrl.u32 %v5112, 7
        %v5114 = vsub.s32 %v5111, %v5113
        %v5115 = vrot.slane %v5107, %v5114
        %v5117 = vunpack.c.l.s4 1983009808
        %v5118 = vunpack.c.0.s8 %v5117
        %v5119 = vlaneseq
        %v5120 = vshrl.u32 %v5119, 7
        %v5121 = vsub.s32 %v5118, %v5120
        %v5122 = vrot.slane %v5108, %v5121
        %v5123 = vcombine.low %v4693, %v4715
        %v5124 = vcombine.high %v4693, %v4715
        %v5126 = vunpack.c.l.s4 1983009808
        %v5127 = vunpack.c.0.s8 %v5126
        %v5128 = vlaneseq
        %v5129 = vshrl.u32 %v5128, 7
        %v5130 = vsub.s32 %v5127, %v5129
        %v5131 = vrot.slane %v5123, %v5130
        %v5133 = vunpack.c.l.s4 1983009808
        %v5134 = vunpack.c.0.s8 %v5133
        %v5135 = vlaneseq
        %v5136 = vshrl.u32 %v5135, 7
        %v5137 = vsub.s32 %v5134, %v5136
        %v5138 = vrot.slane %v5124, %v5137
        %v5139 = vcombine.low %v4704, %v4726
        %v5140 = vcombine.high %v4704, %v4726
        %v5142 = vunpack.c.l.s4 1983009808
        %v5143 = vunpack.c.0.s8 %v5142
        %v5144 = vlaneseq
        %v5145 = vshrl.u32 %v5144, 7
        %v5146 = vsub.s32 %v5143, %v5145
        %v5147 = vrot.slane %v5139, %v5146
        %v5149 = vunpack.c.l.s4 1983009808
        %v5150 = vunpack.c.0.s8 %v5149
        %v5151 = vlaneseq
        %v5152 = vshrl.u32 %v5151, 7
        %v5153 = vsub.s32 %v5150, %v5152
        %v5154 = vrot.slane %v5140, %v5153
        %v5155 = vcombine.low %v5099, %v5115
        %v5156 = vcombine.high %v5099, %v5115
        %v5158 = vunpack.c.l.s4 1934713408
        %v5159 = vunpack.c.0.s8 %v5158
        %v5160 = vlaneseq
        %v5161 = vshrl.u32 %v5160, 7
        %v5162 = vsub.s32 %v5159, %v5161
        %v5163 = vrot.slane %v5155, %v5162
        %v5165 = vunpack.c.l.s4 1934713408
        %v5166 = vunpack.c.0.s8 %v5165
        %v5167 = vlaneseq
        %v5168 = vshrl.u32 %v5167, 7
        %v5169 = vsub.s32 %v5166, %v5168
        %v5170 = vrot.slane %v5156, %v5169
        %v5171 = vcombine.low %v5106, %v5122
        %v5172 = vcombine.high %v5106, %v5122
        %v5174 = vunpack.c.l.s4 1934713408
        %v5175 = vunpack.c.0.s8 %v5174
        %v5176 = vlaneseq
        %v5177 = vshrl.u32 %v5176, 7
        %v5178 = vsub.s32 %v5175, %v5177
        %v5179 = vrot.slane %v5171, %v5178
        %v5181 = vunpack.c.l.s4 1934713408
        %v5182 = vunpack.c.0.s8 %v5181
        %v5183 = vlaneseq
        %v5184 = vshrl.u32 %v5183, 7
        %v5185 = vsub.s32 %v5182, %v5184
        %v5186 = vrot.slane %v5172, %v5185
        %v5187 = vcombine.low %v5131, %v5147
        %v5188 = vcombine.high %v5131, %v5147
        %v5190 = vunpack.c.l.s4 1934713408
        %v5191 = vunpack.c.0.s8 %v5190
        %v5192 = vlaneseq
        %v5193 = vshrl.u32 %v5192, 7
        %v5194 = vsub.s32 %v5191, %v5193
        %v5195 = vrot.slane %v5187, %v5194
        %v5197 = vunpack.c.l.s4 1934713408
        %v5198 = vunpack.c.0.s8 %v5197
        %v5199 = vlaneseq
        %v5200 = vshrl.u32 %v5199, 7
        %v5201 = vsub.s32 %v5198, %v5200
        %v5202 = vrot.slane %v5188, %v5201
        %v5203 = vcombine.low %v5138, %v5154
        %v5204 = vcombine.high %v5138, %v5154
        %v5206 = vunpack.c.l.s4 1934713408
        %v5207 = vunpack.c.0.s8 %v5206
        %v5208 = vlaneseq
        %v5209 = vshrl.u32 %v5208, 7
        %v5210 = vsub.s32 %v5207, %v5209
        %v5211 = vrot.slane %v5203, %v5210
        %v5213 = vunpack.c.l.s4 1934713408
        %v5214 = vunpack.c.0.s8 %v5213
        %v5215 = vlaneseq
        %v5216 = vshrl.u32 %v5215, 7
        %v5217 = vsub.s32 %v5214, %v5216
        %v5218 = vrot.slane %v5204, %v5217
        %v5219 = vcombine.low %v5163, %v5195
        %v5220 = vcombine.high %v5163, %v5195
        %v5221 = vcombine.low %v5170, %v5202
        %v5222 = vcombine.high %v5170, %v5202
        %v5223 = vcombine.low %v5179, %v5211
        %v5224 = vcombine.high %v5179, %v5211
        %v5225 = vcombine.low %v5186, %v5218
        %v5226 = vcombine.high %v5186, %v5218
        %v5227 = vcombine.low %v4737, %v4759
        %v5228 = vcombine.high %v4737, %v4759
        %v5230 = vunpack.c.l.s4 1983009808
        %v5231 = vunpack.c.0.s8 %v5230
        %v5232 = vlaneseq
        %v5233 = vshrl.u32 %v5232, 7
        %v5234 = vsub.s32 %v5231, %v5233
        %v5235 = vrot.slane %v5227, %v5234
        %v5237 = vunpack.c.l.s4 1983009808
        %v5238 = vunpack.c.0.s8 %v5237
        %v5239 = vlaneseq
        %v5240 = vshrl.u32 %v5239, 7
        %v5241 = vsub.s32 %v5238, %v5240
        %v5242 = vrot.slane %v5228, %v5241
        %v5243 = vcombine.low %v4748, %v4770
        %v5244 = vcombine.high %v4748, %v4770
        %v5246 = vunpack.c.l.s4 1983009808
        %v5247 = vunpack.c.0.s8 %v5246
        %v5248 = vlaneseq
        %v5249 = vshrl.u32 %v5248, 7
        %v5250 = vsub.s32 %v5247, %v5249
        %v5251 = vrot.slane %v5243, %v5250
        %v5253 = vunpack.c.l.s4 1983009808
        %v5254 = vunpack.c.0.s8 %v5253
        %v5255 = vlaneseq
        %v5256 = vshrl.u32 %v5255, 7
        %v5257 = vsub.s32 %v5254, %v5256
        %v5258 = vrot.slane %v5244, %v5257
        %v5259 = vcombine.low %v4781, %v4803
        %v5260 = vcombine.high %v4781, %v4803
        %v5262 = vunpack.c.l.s4 1983009808
        %v5263 = vunpack.c.0.s8 %v5262
        %v5264 = vlaneseq
        %v5265 = vshrl.u32 %v5264, 7
        %v5266 = vsub.s32 %v5263, %v5265
        %v5267 = vrot.slane %v5259, %v5266
        %v5269 = vunpack.c.l.s4 1983009808
        %v5270 = vunpack.c.0.s8 %v5269
        %v5271 = vlaneseq
        %v5272 = vshrl.u32 %v5271, 7
        %v5273 = vsub.s32 %v5270, %v5272
        %v5274 = vrot.slane %v5260, %v5273
        %v5275 = vcombine.low %v4792, %v4814
        %v5276 = vcombine.high %v4792, %v4814
        %v5278 = vunpack.c.l.s4 1983009808
        %v5279 = vunpack.c.0.s8 %v5278
        %v5280 = vlaneseq
        %v5281 = vshrl.u32 %v5280, 7
        %v5282 = vsub.s32 %v5279, %v5281
        %v5283 = vrot.slane %v5275, %v5282
        %v5285 = vunpack.c.l.s4 1983009808
        %v5286 = vunpack.c.0.s8 %v5285
        %v5287 = vlaneseq
        %v5288 = vshrl.u32 %v5287, 7
        %v5289 = vsub.s32 %v5286, %v5288
        %v5290 = vrot.slane %v5276, %v5289
        %v5291 = vcombine.low %v5235, %v5251
        %v5292 = vcombine.high %v5235, %v5251
        %v5294 = vunpack.c.l.s4 1934713408
        %v5295 = vunpack.c.0.s8 %v5294
        %v5296 = vlaneseq
        %v5297 = vshrl.u32 %v5296, 7
        %v5298 = vsub.s32 %v5295, %v5297
        %v5299 = vrot.slane %v5291, %v5298
        %v5301 = vunpack.c.l.s4 1934713408
        %v5302 = vunpack.c.0.s8 %v5301
        %v5303 = vlaneseq
        %v5304 = vshrl.u32 %v5303, 7
        %v5305 = vsub.s32 %v5302, %v5304
        %v5306 = vrot.slane %v5292, %v5305
        %v5307 = vcombine.low %v5242, %v5258
        %v5308 = vcombine.high %v5242, %v5258
        %v5310 = vunpack.c.l.s4 1934713408
        %v5311 = vunpack.c.0.s8 %v5310
        %v5312 = vlaneseq
        %v5313 = vshrl.u32 %v5312, 7
        %v5314 = vsub.s32 %v5311, %v5313
        %v5315 = vrot.slane %v5307, %v5314
        %v5317 = vunpack.c.l.s4 1934713408
        %v5318 = vunpack.c.0.s8 %v5317
        %v5319 = vlaneseq
        %v5320 = vshrl.u32 %v5319, 7
        %v5321 = vsub.s32 %v5318, %v5320
        %v5322 = vrot.slane %v5308, %v5321
        %v5323 = vcombine.low %v5267, %v5283
        %v5324 = vcombine.high %v5267, %v5283
        %v5326 = vunpack.c.l.s4 1934713408
        %v5327 = vunpack.c.0.s8 %v5326
        %v5328 = vlaneseq
        %v5329 = vshrl.u32 %v5328, 7
        %v5330 = vsub.s32 %v5327, %v5329
        %v5331 = vrot.slane %v5323, %v5330
        %v5333 = vunpack.c.l.s4 1934713408
        %v5334 = vunpack.c.0.s8 %v5333
        %v5335 = vlaneseq
        %v5336 = vshrl.u32 %v5335, 7
        %v5337 = vsub.s32 %v5334, %v5336
        %v5338 = vrot.slane %v5324, %v5337
        %v5339 = vcombine.low %v5274, %v5290
        %v5340 = vcombine.high %v5274, %v5290
        %v5342 = vunpack.c.l.s4 1934713408
        %v5343 = vunpack.c.0.s8 %v5342
        %v5344 = vlaneseq
        %v5345 = vshrl.u32 %v5344, 7
        %v5346 = vsub.s32 %v5343, %v5345
        %v5347 = vrot.slane %v5339, %v5346
        %v5349 = vunpack.c.l.s4 1934713408
        %v5350 = vunpack.c.0.s8 %v5349
        %v5351 = vlaneseq
        %v5352 = vshrl.u32 %v5351, 7
        %v5353 = vsub.s32 %v5350, %v5352
        %v5354 = vrot.slane %v5340, %v5353
        %v5355 = vcombine.low %v5299, %v5331
        %v5356 = vcombine.high %v5299, %v5331
        %v5357 = vcombine.low %v5306, %v5338
        %v5358 = vcombine.high %v5306, %v5338
        %v5359 = vcombine.low %v5315, %v5347
        %v5360 = vcombine.high %v5315, %v5347
        %v5361 = vcombine.low %v5322, %v5354
        %v5362 = vcombine.high %v5322, %v5354
        %v5363 = vcombine.low %v4477, %v4499
        %v5364 = vcombine.high %v4477, %v4499
        %v5366 = vunpack.c.l.s4 1983009808
        %v5367 = vunpack.c.0.s8 %v5366
        %v5368 = vlaneseq
        %v5369 = vshrl.u32 %v5368, 7
        %v5370 = vsub.s32 %v5367, %v5369
        %v5371 = vrot.slane %v5363, %v5370
        %v5373 = vunpack.c.l.s4 1983009808
        %v5374 = vunpack.c.0.s8 %v5373
        %v5375 = vlaneseq
        %v5376 = vshrl.u32 %v5375, 7
        %v5377 = vsub.s32 %v5374, %v5376
        %v5378 = vrot.slane %v5364, %v5377
        %v5379 = vcombine.low %v4488, %v4510
        %v5380 = vcombine.high %v4488, %v4510
        %v5382 = vunpack.c.l.s4 1983009808
        %v5383 = vunpack.c.0.s8 %v5382
        %v5384 = vlaneseq
        %v5385 = vshrl.u32 %v5384, 7
        %v5386 = vsub.s32 %v5383, %v5385
        %v5387 = vrot.slane %v5379, %v5386
        %v5389 = vunpack.c.l.s4 1983009808
        %v5390 = vunpack.c.0.s8 %v5389
        %v5391 = vlaneseq
        %v5392 = vshrl.u32 %v5391, 7
        %v5393 = vsub.s32 %v5390, %v5392
        %v5394 = vrot.slane %v5380, %v5393
        %v5395 = vcombine.low %v4521, %v4543
        %v5396 = vcombine.high %v4521, %v4543
        %v5398 = vunpack.c.l.s4 1983009808
        %v5399 = vunpack.c.0.s8 %v5398
        %v5400 = vlaneseq
        %v5401 = vshrl.u32 %v5400, 7
        %v5402 = vsub.s32 %v5399, %v5401
        %v5403 = vrot.slane %v5395, %v5402
        %v5405 = vunpack.c.l.s4 1983009808
        %v5406 = vunpack.c.0.s8 %v5405
        %v5407 = vlaneseq
        %v5408 = vshrl.u32 %v5407, 7
        %v5409 = vsub.s32 %v5406, %v5408
        %v5410 = vrot.slane %v5396, %v5409
        %v5411 = vcombine.low %v4532, %v4554
        %v5412 = vcombine.high %v4532, %v4554
        %v5414 = vunpack.c.l.s4 1983009808
        %v5415 = vunpack.c.0.s8 %v5414
        %v5416 = vlaneseq
        %v5417 = vshrl.u32 %v5416, 7
        %v5418 = vsub.s32 %v5415, %v5417
        %v5419 = vrot.slane %v5411, %v5418
        %v5421 = vunpack.c.l.s4 1983009808
        %v5422 = vunpack.c.0.s8 %v5421
        %v5423 = vlaneseq
        %v5424 = vshrl.u32 %v5423, 7
        %v5425 = vsub.s32 %v5422, %v5424
        %v5426 = vrot.slane %v5412, %v5425
        %v5427 = vcombine.low %v5371, %v5387
        %v5428 = vcombine.high %v5371, %v5387
        %v5430 = vunpack.c.l.s4 1934713408
        %v5431 = vunpack.c.0.s8 %v5430
        %v5432 = vlaneseq
        %v5433 = vshrl.u32 %v5432, 7
        %v5434 = vsub.s32 %v5431, %v5433
        %v5435 = vrot.slane %v5427, %v5434
        %v5437 = vunpack.c.l.s4 1934713408
        %v5438 = vunpack.c.0.s8 %v5437
        %v5439 = vlaneseq
        %v5440 = vshrl.u32 %v5439, 7
        %v5441 = vsub.s32 %v5438, %v5440
        %v5442 = vrot.slane %v5428, %v5441
        %v5443 = vcombine.low %v5378, %v5394
        %v5444 = vcombine.high %v5378, %v5394
        %v5446 = vunpack.c.l.s4 1934713408
        %v5447 = vunpack.c.0.s8 %v5446
        %v5448 = vlaneseq
        %v5449 = vshrl.u32 %v5448, 7
        %v5450 = vsub.s32 %v5447, %v5449
        %v5451 = vrot.slane %v5443, %v5450
        %v5453 = vunpack.c.l.s4 1934713408
        %v5454 = vunpack.c.0.s8 %v5453
        %v5455 = vlaneseq
        %v5456 = vshrl.u32 %v5455, 7
        %v5457 = vsub.s32 %v5454, %v5456
        %v5458 = vrot.slane %v5444, %v5457
        %v5459 = vcombine.low %v5403, %v5419
        %v5460 = vcombine.high %v5403, %v5419
        %v5462 = vunpack.c.l.s4 1934713408
        %v5463 = vunpack.c.0.s8 %v5462
        %v5464 = vlaneseq
        %v5465 = vshrl.u32 %v5464, 7
        %v5466 = vsub.s32 %v5463, %v5465
        %v5467 = vrot.slane %v5459, %v5466
        %v5469 = vunpack.c.l.s4 1934713408
        %v5470 = vunpack.c.0.s8 %v5469
        %v5471 = vlaneseq
        %v5472 = vshrl.u32 %v5471, 7
        %v5473 = vsub.s32 %v5470, %v5472
        %v5474 = vrot.slane %v5460, %v5473
        %v5475 = vcombine.low %v5410, %v5426
        %v5476 = vcombine.high %v5410, %v5426
        %v5478 = vunpack.c.l.s4 1934713408
        %v5479 = vunpack.c.0.s8 %v5478
        %v5480 = vlaneseq
        %v5481 = vshrl.u32 %v5480, 7
        %v5482 = vsub.s32 %v5479, %v5481
        %v5483 = vrot.slane %v5475, %v5482
        %v5485 = vunpack.c.l.s4 1934713408
        %v5486 = vunpack.c.0.s8 %v5485
        %v5487 = vlaneseq
        %v5488 = vshrl.u32 %v5487, 7
        %v5489 = vsub.s32 %v5486, %v5488
        %v5490 = vrot.slane %v5476, %v5489
        %v5491 = vcombine.low %v5435, %v5467
        %v5492 = vcombine.high %v5435, %v5467
        %v5493 = vcombine.low %v5442, %v5474
        %v5494 = vcombine.high %v5442, %v5474
        %v5495 = vcombine.low %v5451, %v5483
        %v5496 = vcombine.high %v5451, %v5483
        %v5497 = vcombine.low %v5458, %v5490
        %v5498 = vcombine.high %v5458, %v5490
        %v5499 = vcombine.low %v4565, %v4587
        %v5500 = vcombine.high %v4565, %v4587
        %v5502 = vunpack.c.l.s4 1983009808
        %v5503 = vunpack.c.0.s8 %v5502
        %v5504 = vlaneseq
        %v5505 = vshrl.u32 %v5504, 7
        %v5506 = vsub.s32 %v5503, %v5505
        %v5507 = vrot.slane %v5499, %v5506
        %v5509 = vunpack.c.l.s4 1983009808
        %v5510 = vunpack.c.0.s8 %v5509
        %v5511 = vlaneseq
        %v5512 = vshrl.u32 %v5511, 7
        %v5513 = vsub.s32 %v5510, %v5512
        %v5514 = vrot.slane %v5500, %v5513
        %v5515 = vcombine.low %v4576, %v4598
        %v5516 = vcombine.high %v4576, %v4598
        %v5518 = vunpack.c.l.s4 1983009808
        %v5519 = vunpack.c.0.s8 %v5518
        %v5520 = vlaneseq
        %v5521 = vshrl.u32 %v5520, 7
        %v5522 = vsub.s32 %v5519, %v5521
        %v5523 = vrot.slane %v5515, %v5522
        %v5525 = vunpack.c.l.s4 1983009808
        %v5526 = vunpack.c.0.s8 %v5525
        %v5527 = vlaneseq
        %v5528 = vshrl.u32 %v5527, 7
        %v5529 = vsub.s32 %v5526, %v5528
        %v5530 = vrot.slane %v5516, %v5529
        %v5531 = vcombine.low %v4609, %v4631
        %v5532 = vcombine.high %v4609, %v4631
        %v5534 = vunpack.c.l.s4 1983009808
        %v5535 = vunpack.c.0.s8 %v5534
        %v5536 = vlaneseq
        %v5537 = vshrl.u32 %v5536, 7
        %v5538 = vsub.s32 %v5535, %v5537
        %v5539 = vrot.slane %v5531, %v5538
        %v5541 = vunpack.c.l.s4 1983009808
        %v5542 = vunpack.c.0.s8 %v5541
        %v5543 = vlaneseq
        %v5544 = vshrl.u32 %v5543, 7
        %v5545 = vsub.s32 %v5542, %v5544
        %v5546 = vrot.slane %v5532, %v5545
        %v5547 = vcombine.low %v4620, %v4642
        %v5548 = vcombine.high %v4620, %v4642
        %v5550 = vunpack.c.l.s4 1983009808
        %v5551 = vunpack.c.0.s8 %v5550
        %v5552 = vlaneseq
        %v5553 = vshrl.u32 %v5552, 7
        %v5554 = vsub.s32 %v5551, %v5553
        %v5555 = vrot.slane %v5547, %v5554
        %v5557 = vunpack.c.l.s4 1983009808
        %v5558 = vunpack.c.0.s8 %v5557
        %v5559 = vlaneseq
        %v5560 = vshrl.u32 %v5559, 7
        %v5561 = vsub.s32 %v5558, %v5560
        %v5562 = vrot.slane %v5548, %v5561
        %v5563 = vcombine.low %v5507, %v5523
        %v5564 = vcombine.high %v5507, %v5523
        %v5566 = vunpack.c.l.s4 1934713408
        %v5567 = vunpack.c.0.s8 %v5566
        %v5568 = vlaneseq
        %v5569 = vshrl.u32 %v5568, 7
        %v5570 = vsub.s32 %v5567, %v5569
        %v5571 = vrot.slane %v5563, %v5570
        %v5573 = vunpack.c.l.s4 1934713408
        %v5574 = vunpack.c.0.s8 %v5573
        %v5575 = vlaneseq
        %v5576 = vshrl.u32 %v5575, 7
        %v5577 = vsub.s32 %v5574, %v5576
        %v5578 = vrot.slane %v5564, %v5577
        %v5579 = vcombine.low %v5514, %v5530
        %v5580 = vcombine.high %v5514, %v5530
        %v5582 = vunpack.c.l.s4 1934713408
        %v5583 = vunpack.c.0.s8 %v5582
        %v5584 = vlaneseq
        %v5585 = vshrl.u32 %v5584, 7
        %v5586 = vsub.s32 %v5583, %v5585
        %v5587 = vrot.slane %v5579, %v5586
        %v5589 = vunpack.c.l.s4 1934713408
        %v5590 = vunpack.c.0.s8 %v5589
        %v5591 = vlaneseq
        %v5592 = vshrl.u32 %v5591, 7
        %v5593 = vsub.s32 %v5590, %v5592
        %v5594 = vrot.slane %v5580, %v5593
        %v5595 = vcombine.low %v5539, %v5555
        %v5596 = vcombine.high %v5539, %v5555
        %v5598 = vunpack.c.l.s4 1934713408
        %v5599 = vunpack.c.0.s8 %v5598
        %v5600 = vlaneseq
        %v5601 = vshrl.u32 %v5600, 7
        %v5602 = vsub.s32 %v5599, %v5601
        %v5603 = vrot.slane %v5595, %v5602
        %v5605 = vunpack.c.l.s4 1934713408
        %v5606 = vunpack.c.0.s8 %v5605
        %v5607 = vlaneseq
        %v5608 = vshrl.u32 %v5607, 7
        %v5609 = vsub.s32 %v5606, %v5608
        %v5610 = vrot.slane %v5596, %v5609
        %v5611 = vcombine.low %v5546, %v5562
        %v5612 = vcombine.high %v5546, %v5562
        %v5614 = vunpack.c.l.s4 1934713408
        %v5615 = vunpack.c.0.s8 %v5614
        %v5616 = vlaneseq
        %v5617 = vshrl.u32 %v5616, 7
        %v5618 = vsub.s32 %v5615, %v5617
        %v5619 = vrot.slane %v5611, %v5618
        %v5621 = vunpack.c.l.s4 1934713408
        %v5622 = vunpack.c.0.s8 %v5621
        %v5623 = vlaneseq
        %v5624 = vshrl.u32 %v5623, 7
        %v5625 = vsub.s32 %v5622, %v5624
        %v5626 = vrot.slane %v5612, %v5625
        %v5627 = vcombine.low %v5571, %v5603
        %v5628 = vcombine.high %v5571, %v5603
        %v5629 = vcombine.low %v5578, %v5610
        %v5630 = vcombine.high %v5578, %v5610
        %v5631 = vcombine.low %v5587, %v5619
        %v5632 = vcombine.high %v5587, %v5619
        %v5633 = vcombine.low %v5594, %v5626
        %v5634 = vcombine.high %v5594, %v5626
        %v5635 = vcombine.low %v4653, %v4675
        %v5636 = vcombine.high %v4653, %v4675
        %v5638 = vunpack.c.l.s4 1983009808
        %v5639 = vunpack.c.0.s8 %v5638
        %v5640 = vlaneseq
        %v5641 = vshrl.u32 %v5640, 7
        %v5642 = vsub.s32 %v5639, %v5641
        %v5643 = vrot.slane %v5635, %v5642
        %v5645 = vunpack.c.l.s4 1983009808
        %v5646 = vunpack.c.0.s8 %v5645
        %v5647 = vlaneseq
        %v5648 = vshrl.u32 %v5647, 7
        %v5649 = vsub.s32 %v5646, %v5648
        %v5650 = vrot.slane %v5636, %v5649
        %v5651 = vcombine.low %v4664, %v4686
        %v5652 = vcombine.high %v4664, %v4686
        %v5654 = vunpack.c.l.s4 1983009808
        %v5655 = vunpack.c.0.s8 %v5654
        %v5656 = vlaneseq
        %v5657 = vshrl.u32 %v5656, 7
        %v5658 = vsub.s32 %v5655, %v5657
        %v5659 = vrot.slane %v5651, %v5658
        %v5661 = vunpack.c.l.s4 1983009808
        %v5662 = vunpack.c.0.s8 %v5661
        %v5663 = vlaneseq
        %v5664 = vshrl.u32 %v5663, 7
        %v5665 = vsub.s32 %v5662, %v5664
        %v5666 = vrot.slane %v5652, %v5665
        %v5667 = vcombine.low %v4697, %v4719
        %v5668 = vcombine.high %v4697, %v4719
        %v5670 = vunpack.c.l.s4 1983009808
        %v5671 = vunpack.c.0.s8 %v5670
        %v5672 = vlaneseq
        %v5673 = vshrl.u32 %v5672, 7
        %v5674 = vsub.s32 %v5671, %v5673
        %v5675 = vrot.slane %v5667, %v5674
        %v5677 = vunpack.c.l.s4 1983009808
        %v5678 = vunpack.c.0.s8 %v5677
        %v5679 = vlaneseq
        %v5680 = vshrl.u32 %v5679, 7
        %v5681 = vsub.s32 %v5678, %v5680
        %v5682 = vrot.slane %v5668, %v5681
        %v5683 = vcombine.low %v4708, %v4730
        %v5684 = vcombine.high %v4708, %v4730
        %v5686 = vunpack.c.l.s4 1983009808
        %v5687 = vunpack.c.0.s8 %v5686
        %v5688 = vlaneseq
        %v5689 = vshrl.u32 %v5688, 7
        %v5690 = vsub.s32 %v5687, %v5689
        %v5691 = vrot.slane %v5683, %v5690
        %v5693 = vunpack.c.l.s4 1983009808
        %v5694 = vunpack.c.0.s8 %v5693
        %v5695 = vlaneseq
        %v5696 = vshrl.u32 %v5695, 7
        %v5697 = vsub.s32 %v5694, %v5696
        %v5698 = vrot.slane %v5684, %v5697
        %v5699 = vcombine.low %v5643, %v5659
        %v5700 = vcombine.high %v5643, %v5659
        %v5702 = vunpack.c.l.s4 1934713408
        %v5703 = vunpack.c.0.s8 %v5702
        %v5704 = vlaneseq
        %v5705 = vshrl.u32 %v5704, 7
        %v5706 = vsub.s32 %v5703, %v5705
        %v5707 = vrot.slane %v5699, %v5706
        %v5709 = vunpack.c.l.s4 1934713408
        %v5710 = vunpack.c.0.s8 %v5709
        %v5711 = vlaneseq
        %v5712 = vshrl.u32 %v5711, 7
        %v5713 = vsub.s32 %v5710, %v5712
        %v5714 = vrot.slane %v5700, %v5713
        %v5715 = vcombine.low %v5650, %v5666
        %v5716 = vcombine.high %v5650, %v5666
        %v5718 = vunpack.c.l.s4 1934713408
        %v5719 = vunpack.c.0.s8 %v5718
        %v5720 = vlaneseq
        %v5721 = vshrl.u32 %v5720, 7
        %v5722 = vsub.s32 %v5719, %v5721
        %v5723 = vrot.slane %v5715, %v5722
        %v5725 = vunpack.c.l.s4 1934713408
        %v5726 = vunpack.c.0.s8 %v5725
        %v5727 = vlaneseq
        %v5728 = vshrl.u32 %v5727, 7
        %v5729 = vsub.s32 %v5726, %v5728
        %v5730 = vrot.slane %v5716, %v5729
        %v5731 = vcombine.low %v5675, %v5691
        %v5732 = vcombine.high %v5675, %v5691
        %v5734 = vunpack.c.l.s4 1934713408
        %v5735 = vunpack.c.0.s8 %v5734
        %v5736 = vlaneseq
        %v5737 = vshrl.u32 %v5736, 7
        %v5738 = vsub.s32 %v5735, %v5737
        %v5739 = vrot.slane %v5731, %v5738
        %v5741 = vunpack.c.l.s4 1934713408
        %v5742 = vunpack.c.0.s8 %v5741
        %v5743 = vlaneseq
        %v5744 = vshrl.u32 %v5743, 7
        %v5745 = vsub.s32 %v5742, %v5744
        %v5746 = vrot.slane %v5732, %v5745
        %v5747 = vcombine.low %v5682, %v5698
        %v5748 = vcombine.high %v5682, %v5698
        %v5750 = vunpack.c.l.s4 1934713408
        %v5751 = vunpack.c.0.s8 %v5750
        %v5752 = vlaneseq
        %v5753 = vshrl.u32 %v5752, 7
        %v5754 = vsub.s32 %v5751, %v5753
        %v5755 = vrot.slane %v5747, %v5754
        %v5757 = vunpack.c.l.s4 1934713408
        %v5758 = vunpack.c.0.s8 %v5757
        %v5759 = vlaneseq
        %v5760 = vshrl.u32 %v5759, 7
        %v5761 = vsub.s32 %v5758, %v5760
        %v5762 = vrot.slane %v5748, %v5761
        %v5763 = vcombine.low %v5707, %v5739
        %v5764 = vcombine.high %v5707, %v5739
        %v5765 = vcombine.low %v5714, %v5746
        %v5766 = vcombine.high %v5714, %v5746
        %v5767 = vcombine.low %v5723, %v5755
        %v5768 = vcombine.high %v5723, %v5755
        %v5769 = vcombine.low %v5730, %v5762
        %v5770 = vcombine.high %v5730, %v5762
        %v5771 = vcombine.low %v4741, %v4763
        %v5772 = vcombine.high %v4741, %v4763
        %v5774 = vunpack.c.l.s4 1983009808
        %v5775 = vunpack.c.0.s8 %v5774
        %v5776 = vlaneseq
        %v5777 = vshrl.u32 %v5776, 7
        %v5778 = vsub.s32 %v5775, %v5777
        %v5779 = vrot.slane %v5771, %v5778
        %v5781 = vunpack.c.l.s4 1983009808
        %v5782 = vunpack.c.0.s8 %v5781
        %v5783 = vlaneseq
        %v5784 = vshrl.u32 %v5783, 7
        %v5785 = vsub.s32 %v5782, %v5784
        %v5786 = vrot.slane %v5772, %v5785
        %v5787 = vcombine.low %v4752, %v4774
        %v5788 = vcombine.high %v4752, %v4774
        %v5790 = vunpack.c.l.s4 1983009808
        %v5791 = vunpack.c.0.s8 %v5790
        %v5792 = vlaneseq
        %v5793 = vshrl.u32 %v5792, 7
        %v5794 = vsub.s32 %v5791, %v5793
        %v5795 = vrot.slane %v5787, %v5794
        %v5797 = vunpack.c.l.s4 1983009808
        %v5798 = vunpack.c.0.s8 %v5797
        %v5799 = vlaneseq
        %v5800 = vshrl.u32 %v5799, 7
        %v5801 = vsub.s32 %v5798, %v5800
        %v5802 = vrot.slane %v5788, %v5801
        %v5803 = vcombine.low %v4785, %v4807
        %v5804 = vcombine.high %v4785, %v4807
        %v5806 = vunpack.c.l.s4 1983009808
        %v5807 = vunpack.c.0.s8 %v5806
        %v5808 = vlaneseq
        %v5809 = vshrl.u32 %v5808, 7
        %v5810 = vsub.s32 %v5807, %v5809
        %v5811 = vrot.slane %v5803, %v5810
        %v5813 = vunpack.c.l.s4 1983009808
        %v5814 = vunpack.c.0.s8 %v5813
        %v5815 = vlaneseq
        %v5816 = vshrl.u32 %v5815, 7
        %v5817 = vsub.s32 %v5814, %v5816
        %v5818 = vrot.slane %v5804, %v5817
        %v5819 = vcombine.low %v4796, %v4818
        %v5820 = vcombine.high %v4796, %v4818
        %v5822 = vunpack.c.l.s4 1983009808
        %v5823 = vunpack.c.0.s8 %v5822
        %v5824 = vlaneseq
        %v5825 = vshrl.u32 %v5824, 7
        %v5826 = vsub.s32 %v5823, %v5825
        %v5827 = vrot.slane %v5819, %v5826
        %v5829 = vunpack.c.l.s4 1983009808
        %v5830 = vunpack.c.0.s8 %v5829
        %v5831 = vlaneseq
        %v5832 = vshrl.u32 %v5831, 7
        %v5833 = vsub.s32 %v5830, %v5832
        %v5834 = vrot.slane %v5820, %v5833
        %v5835 = vcombine.low %v5779, %v5795
        %v5836 = vcombine.high %v5779, %v5795
        %v5838 = vunpack.c.l.s4 1934713408
        %v5839 = vunpack.c.0.s8 %v5838
        %v5840 = vlaneseq
        %v5841 = vshrl.u32 %v5840, 7
        %v5842 = vsub.s32 %v5839, %v5841
        %v5843 = vrot.slane %v5835, %v5842
        %v5845 = vunpack.c.l.s4 1934713408
        %v5846 = vunpack.c.0.s8 %v5845
        %v5847 = vlaneseq
        %v5848 = vshrl.u32 %v5847, 7
        %v5849 = vsub.s32 %v5846, %v5848
        %v5850 = vrot.slane %v5836, %v5849
        %v5851 = vcombine.low %v5786, %v5802
        %v5852 = vcombine.high %v5786, %v5802
        %v5854 = vunpack.c.l.s4 1934713408
        %v5855 = vunpack.c.0.s8 %v5854
        %v5856 = vlaneseq
        %v5857 = vshrl.u32 %v5856, 7
        %v5858 = vsub.s32 %v5855, %v5857
        %v5859 = vrot.slane %v5851, %v5858
        %v5861 = vunpack.c.l.s4 1934713408
        %v5862 = vunpack.c.0.s8 %v5861
        %v5863 = vlaneseq
        %v5864 = vshrl.u32 %v5863, 7
        %v5865 = vsub.s32 %v5862, %v5864
        %v5866 = vrot.slane %v5852, %v5865
        %v5867 = vcombine.low %v5811, %v5827
        %v5868 = vcombine.high %v5811, %v5827
        %v5870 = vunpack.c.l.s4 1934713408
        %v5871 = vunpack.c.0.s8 %v5870
        %v5872 = vlaneseq
        %v5873 = vshrl.u32 %v5872, 7
        %v5874 = vsub.s32 %v5871, %v5873
        %v5875 = vrot.slane %v5867, %v5874
        %v5877 = vunpack.c.l.s4 1934713408
        %v5878 = vunpack.c.0.s8 %v5877
        %v5879 = vlaneseq
        %v5880 = vshrl.u32 %v5879, 7
        %v5881 = vsub.s32 %v5878, %v5880
        %v5882 = vrot.slane %v5868, %v5881
        %v5883 = vcombine.low %v5818, %v5834
        %v5884 = vcombine.high %v5818, %v5834
        %v5886 = vunpack.c.l.s4 1934713408
        %v5887 = vunpack.c.0.s8 %v5886
        %v5888 = vlaneseq
        %v5889 = vshrl.u32 %v5888, 7
        %v5890 = vsub.s32 %v5887, %v5889
        %v5891 = vrot.slane %v5883, %v5890
        %v5893 = vunpack.c.l.s4 1934713408
        %v5894 = vunpack.c.0.s8 %v5893
        %v5895 = vlaneseq
        %v5896 = vshrl.u32 %v5895, 7
        %v5897 = vsub.s32 %v5894, %v5896
        %v5898 = vrot.slane %v5884, %v5897
        %v5899 = vcombine.low %v5843, %v5875
        %v5900 = vcombine.high %v5843, %v5875
        %v5901 = vcombine.low %v5850, %v5882
        %v5902 = vcombine.high %v5850, %v5882
        %v5903 = vcombine.low %v5859, %v5891
        %v5904 = vcombine.high %v5859, %v5891
        %v5905 = vcombine.low %v5866, %v5898
        %v5906 = vcombine.high %v5866, %v5898
        %5911 = vrot.lane.b32.xlu0 %v4948, 2
        %v5912 = vpop.permute.xlu0 %5911
        %5913 = vrot.lane.b32.xlu0 %v5084, 2
        %v5914 = vpop.permute.xlu0 %5913
        %5915 = vrot.lane.b32.xlu0 %v5220, 2
        %v5916 = vpop.permute.xlu0 %5915
        %5917 = vrot.lane.b32.xlu0 %v5356, 2
        %v5918 = vpop.permute.xlu0 %5917
        %5927 = vrot.lane.b32.xlu0 %v4949, 4
        %v5928 = vpop.permute.xlu0 %5927
        %5929 = vrot.lane.b32.xlu0 %v5085, 4
        %v5930 = vpop.permute.xlu0 %5929
        %5931 = vrot.lane.b32.xlu0 %v5221, 4
        %v5932 = vpop.permute.xlu0 %5931
        %5933 = vrot.lane.b32.xlu0 %v5357, 4
        %v5934 = vpop.permute.xlu0 %5933
        %5943 = vrot.lane.b32.xlu0 %v4950, 6
        %v5944 = vpop.permute.xlu0 %5943
        %5945 = vrot.lane.b32.xlu0 %v5086, 6
        %v5946 = vpop.permute.xlu0 %5945
        %5947 = vrot.lane.b32.xlu0 %v5222, 6
        %v5948 = vpop.permute.xlu0 %5947
        %5949 = vrot.lane.b32.xlu0 %v5358, 6
        %v5950 = vpop.permute.xlu0 %5949
        %5959 = vrot.lane.b32.xlu0 %v4951, 8
        %v5960 = vpop.permute.xlu0 %5959
        %5961 = vrot.lane.b32.xlu0 %v5087, 8
        %v5962 = vpop.permute.xlu0 %5961
        %5963 = vrot.lane.b32.xlu0 %v5223, 8
        %v5964 = vpop.permute.xlu0 %5963
        %5965 = vrot.lane.b32.xlu0 %v5359, 8
        %v5966 = vpop.permute.xlu0 %5965
        %5975 = vrot.lane.b32.xlu0 %v4952, 10
        %v5976 = vpop.permute.xlu0 %5975
        %5977 = vrot.lane.b32.xlu0 %v5088, 10
        %v5978 = vpop.permute.xlu0 %5977
        %5979 = vrot.lane.b32.xlu0 %v5224, 10
        %v5980 = vpop.permute.xlu0 %5979
        %5981 = vrot.lane.b32.xlu0 %v5360, 10
        %v5982 = vpop.permute.xlu0 %5981
        %5991 = vrot.lane.b32.xlu0 %v4953, 12
        %v5992 = vpop.permute.xlu0 %5991
        %5993 = vrot.lane.b32.xlu0 %v5089, 12
        %v5994 = vpop.permute.xlu0 %5993
        %5995 = vrot.lane.b32.xlu0 %v5225, 12
        %v5996 = vpop.permute.xlu0 %5995
        %5997 = vrot.lane.b32.xlu0 %v5361, 12
        %v5998 = vpop.permute.xlu0 %5997
        %6007 = vrot.lane.b32.xlu0 %v4954, 14
        %v6008 = vpop.permute.xlu0 %6007
        %6009 = vrot.lane.b32.xlu0 %v5090, 14
        %v6010 = vpop.permute.xlu0 %6009
        %6011 = vrot.lane.b32.xlu0 %v5226, 14
        %v6012 = vpop.permute.xlu0 %6011
        %6013 = vrot.lane.b32.xlu0 %v5362, 14
        %v6014 = vpop.permute.xlu0 %6013
        %6023 = vrot.lane.b32.xlu0 %v5491, 16
        %v6024 = vpop.permute.xlu0 %6023
        %6025 = vrot.lane.b32.xlu0 %v5627, 16
        %v6026 = vpop.permute.xlu0 %6025
        %6027 = vrot.lane.b32.xlu0 %v5763, 16
        %v6028 = vpop.permute.xlu0 %6027
        %6029 = vrot.lane.b32.xlu0 %v5899, 16
        %v6030 = vpop.permute.xlu0 %6029
        %6039 = vrot.lane.b32.xlu0 %v5492, 18
        %v6040 = vpop.permute.xlu0 %6039
        %6041 = vrot.lane.b32.xlu0 %v5628, 18
        %v6042 = vpop.permute.xlu0 %6041
        %6043 = vrot.lane.b32.xlu0 %v5764, 18
        %v6044 = vpop.permute.xlu0 %6043
        %6045 = vrot.lane.b32.xlu0 %v5900, 18
        %v6046 = vpop.permute.xlu0 %6045
        %6055 = vrot.lane.b32.xlu0 %v5493, 20
        %v6056 = vpop.permute.xlu0 %6055
        %6057 = vrot.lane.b32.xlu0 %v5629, 20
        %v6058 = vpop.permute.xlu0 %6057
        %6059 = vrot.lane.b32.xlu0 %v5765, 20
        %v6060 = vpop.permute.xlu0 %6059
        %6061 = vrot.lane.b32.xlu0 %v5901, 20
        %v6062 = vpop.permute.xlu0 %6061
        %6071 = vrot.lane.b32.xlu0 %v5494, 22
        %v6072 = vpop.permute.xlu0 %6071
        %6073 = vrot.lane.b32.xlu0 %v5630, 22
        %v6074 = vpop.permute.xlu0 %6073
        %6075 = vrot.lane.b32.xlu0 %v5766, 22
        %v6076 = vpop.permute.xlu0 %6075
        %6077 = vrot.lane.b32.xlu0 %v5902, 22
        %v6078 = vpop.permute.xlu0 %6077
        %6087 = vrot.lane.b32.xlu0 %v5495, 24
        %v6088 = vpop.permute.xlu0 %6087
        %6089 = vrot.lane.b32.xlu0 %v5631, 24
        %v6090 = vpop.permute.xlu0 %6089
        %6091 = vrot.lane.b32.xlu0 %v5767, 24
        %v6092 = vpop.permute.xlu0 %6091
        %6093 = vrot.lane.b32.xlu0 %v5903, 24
        %v6094 = vpop.permute.xlu0 %6093
        %6103 = vrot.lane.b32.xlu0 %v5496, 26
        %v6104 = vpop.permute.xlu0 %6103
        %6105 = vrot.lane.b32.xlu0 %v5632, 26
        %v6106 = vpop.permute.xlu0 %6105
        %6107 = vrot.lane.b32.xlu0 %v5768, 26
        %v6108 = vpop.permute.xlu0 %6107
        %6109 = vrot.lane.b32.xlu0 %v5904, 26
        %v6110 = vpop.permute.xlu0 %6109
        %6119 = vrot.lane.b32.xlu0 %v5497, 28
        %v6120 = vpop.permute.xlu0 %6119
        %6121 = vrot.lane.b32.xlu0 %v5633, 28
        %v6122 = vpop.permute.xlu0 %6121
        %6123 = vrot.lane.b32.xlu0 %v5769, 28
        %v6124 = vpop.permute.xlu0 %6123
        %6125 = vrot.lane.b32.xlu0 %v5905, 28
        %v6126 = vpop.permute.xlu0 %6125
        %6135 = vrot.lane.b32.xlu0 %v5498, 30
        %v6136 = vpop.permute.xlu0 %6135
        %6137 = vrot.lane.b32.xlu0 %v5634, 30
        %v6138 = vpop.permute.xlu0 %6137
        %6139 = vrot.lane.b32.xlu0 %v5770, 30
        %v6140 = vpop.permute.xlu0 %6139
        %6141 = vrot.lane.b32.xlu0 %v5906, 30
        %v6142 = vpop.permute.xlu0 %6141
        %v6147 = vsel %vm2937, %v4947, %v5912
        %v6148 = vsel %vm2937, %v5083, %v5914
        %v6149 = vsel %vm2937, %v5219, %v5916
        %v6150 = vsel %vm2937, %v5355, %v5918
        %v6151 = vsel %vm2942, %v6147, %v5928
        %v6152 = vsel %vm2942, %v6148, %v5930
        %v6153 = vsel %vm2942, %v6149, %v5932
        %v6154 = vsel %vm2942, %v6150, %v5934
        %v6155 = vsel %vm2947, %v6151, %v5944
        %v6156 = vsel %vm2947, %v6152, %v5946
        %v6157 = vsel %vm2947, %v6153, %v5948
        %v6158 = vsel %vm2947, %v6154, %v5950
        %v6159 = vsel %vm809, %v6155, %v5960
        %v6160 = vsel %vm809, %v6156, %v5962
        %v6161 = vsel %vm809, %v6157, %v5964
        %v6162 = vsel %vm809, %v6158, %v5966
        %v6163 = vsel %vm2956, %v6159, %v5976
        %v6164 = vsel %vm2956, %v6160, %v5978
        %v6165 = vsel %vm2956, %v6161, %v5980
        %v6166 = vsel %vm2956, %v6162, %v5982
        %v6167 = vsel %vm2961, %v6163, %v5992
        %v6168 = vsel %vm2961, %v6164, %v5994
        %v6169 = vsel %vm2961, %v6165, %v5996
        %v6170 = vsel %vm2961, %v6166, %v5998
        %v6171 = vsel %vm2966, %v6167, %v6008
        %v6172 = vsel %vm2966, %v6168, %v6010
        %v6173 = vsel %vm2966, %v6169, %v6012
        %v6174 = vsel %vm2966, %v6170, %v6014
        %v6175 = vsel %vm3375, %v6171, %v6024
        %v6176 = vsel %vm3375, %v6172, %v6026
        %v6177 = vsel %vm3375, %v6173, %v6028
        %v6178 = vsel %vm3375, %v6174, %v6030
        %vm6179 = vcmask 146432
        %v6180 = vsel %vm6179, %v6175, %v6040
        %v6181 = vsel %vm6179, %v6176, %v6042
        %v6182 = vsel %vm6179, %v6177, %v6044
        %v6183 = vsel %vm6179, %v6178, %v6046
        %vm6184 = vcmask 162816
        %v6185 = vsel %vm6184, %v6180, %v6056
        %v6186 = vsel %vm6184, %v6181, %v6058
        %v6187 = vsel %vm6184, %v6182, %v6060
        %v6188 = vsel %vm6184, %v6183, %v6062
        %vm6189 = vcmask 179200
        %v6190 = vsel %vm6189, %v6185, %v6072
        %v6191 = vsel %vm6189, %v6186, %v6074
        %v6192 = vsel %vm6189, %v6187, %v6076
        %v6193 = vsel %vm6189, %v6188, %v6078
        %vm6194 = vcmask 195584
        %v6195 = vsel %vm6194, %v6190, %v6088
        %v6196 = vsel %vm6194, %v6191, %v6090
        %v6197 = vsel %vm6194, %v6192, %v6092
        %v6198 = vsel %vm6194, %v6193, %v6094
        %vm6199 = vcmask 211968
        %v6200 = vsel %vm6199, %v6195, %v6104
        %v6201 = vsel %vm6199, %v6196, %v6106
        %v6202 = vsel %vm6199, %v6197, %v6108
        %v6203 = vsel %vm6199, %v6198, %v6110
        %vm6204 = vcmask 228352
        %v6205 = vsel %vm6204, %v6200, %v6120
        %v6206 = vsel %vm6204, %v6201, %v6122
        %v6207 = vsel %vm6204, %v6202, %v6124
        %v6208 = vsel %vm6204, %v6203, %v6126
        %vm6209 = vcmask 244736
        %v6210 = vsel %vm6209, %v6205, %v6136
        %v6211 = vsel %vm6209, %v6206, %v6138
        %v6212 = vsel %vm6209, %v6207, %v6140
        %v6213 = vsel %vm6209, %v6208, %v6142
        %6218 = vrot.lane.b32.xlu0 %v6210, 1
        %v6219 = vpop.permute.xlu0 %6218
        %6220 = vrot.lane.b32.xlu0 %v6211, 1
        %v6221 = vpop.permute.xlu0 %6220
        %6222 = vrot.lane.b32.xlu0 %v6212, 1
        %v6223 = vpop.permute.xlu0 %6222
        %6224 = vrot.lane.b32.xlu0 %v6213, 1
        %v6225 = vpop.permute.xlu0 %6224
        %v6230 = vsel %vm1156, 0.0, %v6219
        %v6231 = vsel %vm1156, 0.0, %v6221
        %v6232 = vsel %vm1156, 0.0, %v6223
        %v6233 = vsel %vm1156, 0.0, %v6225
        %6234 = vrot.lane.b32.xlu0 %v6210, 127
        %v6235 = vpop.permute.xlu0 %6234
        %6236 = vrot.lane.b32.xlu0 %v6211, 127
        %v6237 = vpop.permute.xlu0 %6236
        %6238 = vrot.lane.b32.xlu0 %v6212, 127
        %v6239 = vpop.permute.xlu0 %6238
        %6240 = vrot.lane.b32.xlu0 %v6213, 127
        %v6241 = vpop.permute.xlu0 %6240
        %vm6246 = vcmask 252928
        %v6247 = vsel %vm6246, %v6235, 0.0
        %v6248 = vsel %vm6246, %v6237, 0.0
        %v6249 = vsel %vm6246, %v6239, 0.0
        %v6250 = vsel %vm6246, %v6241, 0.0
        %v6252 = vsel %vm1178, %v4459, 0
        %v6255 = vsel %vm1178, %v4460, 0
        %6257 = vmatprep.subr.mxu0 0.0
        %6258 = vmatpush1.msra.mxu0 0.0
        %6259 = vmatprep.subr.mxu0 0.0
        %6260 = vmatpush1.msra.mxu0 0.0
        %6261 = vmatprep.subr.mxu0 0.0
        %6262 = vmatpush1.msra.mxu0 0.0
        %6263 = vmatprep.subr.mxu0 0.0
        %6264 = vmatpush1.msra.mxu0 0.0
        %6265 = vmatprep.subr.mxu0 0.0
        %6266 = vmatpush1.msra.mxu0 0.0
        %6267 = vmatprep.subr.mxu0 0.0
        %6268 = vmatpush1.msra.mxu0 0.0
        %6269 = vmatprep.subr.mxu0 0.0
        %6270 = vmatpush1.msra.mxu0 0.0
        %6271 = vmatprep.subr.mxu0 0.0
        %6272 = vmatpush1.msra.mxu0 0.0
        %6273 = vmatprep.subr.mxu0 0.0
        %6274 = vmatpush1.msra.mxu0 0.0
        %6275 = vmatprep.subr.mxu0 0.0
        %6276 = vmatpush1.msra.mxu0 0.0
        %6277 = vmatprep.subr.mxu0 0.0
        %6278 = vmatpush1.msra.mxu0 0.0
        %6279 = vmatprep.subr.mxu0 0.0
        %6280 = vmatpush1.msra.mxu0 0.0
        %6281 = vmatprep.subr.mxu0 0.0
        %6282 = vmatpush1.msra.mxu0 %v6233
        %6283 = vmatprep.subr.mxu0 0.0
        %6284 = vmatpush1.msra.mxu0 %v6232
        %6285 = vmatprep.subr.mxu0 0.0
        %6286 = vmatpush1.msra.mxu0 %v6231
        %6287 = vmatprep.subr.mxu0 0.0
        %6288 = vmatpush1.msra.mxu0 %v6230
        %6289 = vmatprep.subr.mxu0 0.0
        %6290 = vmatpush2.msra.mxu0 0.0
        %6291 = vmatprep.subr.mxu0 0.0
        %6292 = vmatpush2.msra.mxu0 0.0
        %6293 = vmatprep.subr.mxu0 0.0
        %6294 = vmatpush2.msra.mxu0 0.0
        %6295 = vmatprep.subr.mxu0 0.0
        %6296 = vmatpush2.msra.mxu0 0.0
        %6297 = vmatprep.subr.mxu0 0.0
        %6298 = vmatpush2.msra.mxu0 0.0
        %6299 = vmatprep.subr.mxu0 0.0
        %6300 = vmatpush2.msra.mxu0 0.0
        %6301 = vmatprep.subr.mxu0 0.0
        %6302 = vmatpush2.msra.mxu0 0.0
        %6303 = vmatprep.subr.mxu0 0.0
        %6304 = vmatpush2.msra.mxu0 0.0
        %6305 = vmatprep.subr.mxu0 0.0
        %6306 = vmatpush2.msra.mxu0 0.0
        %6307 = vmatprep.subr.mxu0 0.0
        %6308 = vmatpush2.msra.mxu0 0.0
        %6309 = vmatprep.subr.mxu0 0.0
        %6310 = vmatpush2.msra.mxu0 0.0
        %6311 = vmatprep.subr.mxu0 0.0
        %6312 = vmatpush2.msra.mxu0 0.0
        %6313 = vmatprep.subr.mxu0 0.0
        %6314 = vmatpush2.msra.mxu0 0.0
        %6315 = vmatprep.subr.mxu0 0.0
        %6316 = vmatpush2.msra.mxu0 0.0
        %6317 = vmatprep.subr.mxu0 0.0
        %6318 = vmatpush2.msra.mxu0 0.0
        %6319 = vmatprep.subr.mxu0 0.0
        %6320 = vmatpush2.msra.mxu0 0.0
        %6321 = vmatprep.mubr.f32.mxu0 0.0
        %6322 = vmatmul.mubr.f32.gmra.mxu0 %v6252
        %v6323 = vpop.f32.mrf.mxu0
        %v6324 = vadd.f32 0.0, %v6323
        %v6325 = vpop.f32.mrf.mxu0
        %6326 = vmatprep.mubr.f32.mxu0 0.0
        %6327 = vmatmul.mubr.f32.gmra.mxu0 %v6255
        %v6328 = vpop.f32.mrf.mxu0
        %v6329 = vadd.f32 0.0, %v6328
        %v6330 = vpop.f32.mrf.mxu0
        %6331 = vdwg.mxu0
        %v6333 = vsel %vm1178, %v4461, 0
        %v6336 = vsel %vm1178, %v4462, 0
        %6338 = vmatprep.subr.mxu0 0.0
        %6339 = vmatpush1.msra.mxu0 0.0
        %6340 = vmatprep.subr.mxu0 0.0
        %6341 = vmatpush1.msra.mxu0 0.0
        %6342 = vmatprep.subr.mxu0 0.0
        %6343 = vmatpush1.msra.mxu0 0.0
        %6344 = vmatprep.subr.mxu0 0.0
        %6345 = vmatpush1.msra.mxu0 0.0
        %6346 = vmatprep.subr.mxu0 0.0
        %6347 = vmatpush1.msra.mxu0 0.0
        %6348 = vmatprep.subr.mxu0 0.0
        %6349 = vmatpush1.msra.mxu0 0.0
        %6350 = vmatprep.subr.mxu0 0.0
        %6351 = vmatpush1.msra.mxu0 0.0
        %6352 = vmatprep.subr.mxu0 0.0
        %6353 = vmatpush1.msra.mxu0 0.0
        %6354 = vmatprep.subr.mxu0 0.0
        %6355 = vmatpush1.msra.mxu0 0.0
        %6356 = vmatprep.subr.mxu0 0.0
        %6357 = vmatpush1.msra.mxu0 0.0
        %6358 = vmatprep.subr.mxu0 0.0
        %6359 = vmatpush1.msra.mxu0 0.0
        %6360 = vmatprep.subr.mxu0 0.0
        %6361 = vmatpush1.msra.mxu0 0.0
        %6362 = vmatprep.subr.mxu0 0.0
        %6363 = vmatpush1.msra.mxu0 %v6213
        %6364 = vmatprep.subr.mxu0 0.0
        %6365 = vmatpush1.msra.mxu0 %v6212
        %6366 = vmatprep.subr.mxu0 0.0
        %6367 = vmatpush1.msra.mxu0 %v6211
        %6368 = vmatprep.subr.mxu0 0.0
        %6369 = vmatpush1.msra.mxu0 %v6210
        %6370 = vmatprep.subr.mxu0 0.0
        %6371 = vmatpush2.msra.mxu0 0.0
        %6372 = vmatprep.subr.mxu0 0.0
        %6373 = vmatpush2.msra.mxu0 0.0
        %6374 = vmatprep.subr.mxu0 0.0
        %6375 = vmatpush2.msra.mxu0 0.0
        %6376 = vmatprep.subr.mxu0 0.0
        %6377 = vmatpush2.msra.mxu0 0.0
        %6378 = vmatprep.subr.mxu0 0.0
        %6379 = vmatpush2.msra.mxu0 0.0
        %6380 = vmatprep.subr.mxu0 0.0
        %6381 = vmatpush2.msra.mxu0 0.0
        %6382 = vmatprep.subr.mxu0 0.0
        %6383 = vmatpush2.msra.mxu0 0.0
        %6384 = vmatprep.subr.mxu0 0.0
        %6385 = vmatpush2.msra.mxu0 0.0
        %6386 = vmatprep.subr.mxu0 0.0
        %6387 = vmatpush2.msra.mxu0 0.0
        %6388 = vmatprep.subr.mxu0 0.0
        %6389 = vmatpush2.msra.mxu0 0.0
        %6390 = vmatprep.subr.mxu0 0.0
        %6391 = vmatpush2.msra.mxu0 0.0
        %6392 = vmatprep.subr.mxu0 0.0
        %6393 = vmatpush2.msra.mxu0 0.0
        %6394 = vmatprep.subr.mxu0 0.0
        %6395 = vmatpush2.msra.mxu0 0.0
        %6396 = vmatprep.subr.mxu0 0.0
        %6397 = vmatpush2.msra.mxu0 0.0
        %6398 = vmatprep.subr.mxu0 0.0
        %6399 = vmatpush2.msra.mxu0 0.0
        %6400 = vmatprep.subr.mxu0 0.0
        %6401 = vmatpush2.msra.mxu0 0.0
        %6402 = vmatprep.mubr.f32.mxu0 0.0
        %6403 = vmatmul.mubr.f32.gmra.mxu0 %v6333
        %v6404 = vpop.f32.mrf.mxu0
        %v6405 = vadd.f32 %v6324, %v6404
        %v6406 = vpop.f32.mrf.mxu0
        %6407 = vmatprep.mubr.f32.mxu0 0.0
        %6408 = vmatmul.mubr.f32.gmra.mxu0 %v6336
        %v6409 = vpop.f32.mrf.mxu0
        %v6410 = vadd.f32 %v6329, %v6409
        %v6411 = vpop.f32.mrf.mxu0
        %6412 = vdwg.mxu0
        %v6414 = vsel %vm1178, %v4463, 0
        %v6417 = vsel %vm1178, %v4464, 0
        %6419 = vmatprep.subr.mxu0 0.0
        %6420 = vmatpush1.msra.mxu0 0.0
        %6421 = vmatprep.subr.mxu0 0.0
        %6422 = vmatpush1.msra.mxu0 0.0
        %6423 = vmatprep.subr.mxu0 0.0
        %6424 = vmatpush1.msra.mxu0 0.0
        %6425 = vmatprep.subr.mxu0 0.0
        %6426 = vmatpush1.msra.mxu0 0.0
        %6427 = vmatprep.subr.mxu0 0.0
        %6428 = vmatpush1.msra.mxu0 0.0
        %6429 = vmatprep.subr.mxu0 0.0
        %6430 = vmatpush1.msra.mxu0 0.0
        %6431 = vmatprep.subr.mxu0 0.0
        %6432 = vmatpush1.msra.mxu0 0.0
        %6433 = vmatprep.subr.mxu0 0.0
        %6434 = vmatpush1.msra.mxu0 0.0
        %6435 = vmatprep.subr.mxu0 0.0
        %6436 = vmatpush1.msra.mxu0 0.0
        %6437 = vmatprep.subr.mxu0 0.0
        %6438 = vmatpush1.msra.mxu0 0.0
        %6439 = vmatprep.subr.mxu0 0.0
        %6440 = vmatpush1.msra.mxu0 0.0
        %6441 = vmatprep.subr.mxu0 0.0
        %6442 = vmatpush1.msra.mxu0 0.0
        %6443 = vmatprep.subr.mxu0 0.0
        %6444 = vmatpush1.msra.mxu0 %v6250
        %6445 = vmatprep.subr.mxu0 0.0
        %6446 = vmatpush1.msra.mxu0 %v6249
        %6447 = vmatprep.subr.mxu0 0.0
        %6448 = vmatpush1.msra.mxu0 %v6248
        %6449 = vmatprep.subr.mxu0 0.0
        %6450 = vmatpush1.msra.mxu0 %v6247
        %6451 = vmatprep.subr.mxu0 0.0
        %6452 = vmatpush2.msra.mxu0 0.0
        %6453 = vmatprep.subr.mxu0 0.0
        %6454 = vmatpush2.msra.mxu0 0.0
        %6455 = vmatprep.subr.mxu0 0.0
        %6456 = vmatpush2.msra.mxu0 0.0
        %6457 = vmatprep.subr.mxu0 0.0
        %6458 = vmatpush2.msra.mxu0 0.0
        %6459 = vmatprep.subr.mxu0 0.0
        %6460 = vmatpush2.msra.mxu0 0.0
        %6461 = vmatprep.subr.mxu0 0.0
        %6462 = vmatpush2.msra.mxu0 0.0
        %6463 = vmatprep.subr.mxu0 0.0
        %6464 = vmatpush2.msra.mxu0 0.0
        %6465 = vmatprep.subr.mxu0 0.0
        %6466 = vmatpush2.msra.mxu0 0.0
        %6467 = vmatprep.subr.mxu0 0.0
        %6468 = vmatpush2.msra.mxu0 0.0
        %6469 = vmatprep.subr.mxu0 0.0
        %6470 = vmatpush2.msra.mxu0 0.0
        %6471 = vmatprep.subr.mxu0 0.0
        %6472 = vmatpush2.msra.mxu0 0.0
        %6473 = vmatprep.subr.mxu0 0.0
        %6474 = vmatpush2.msra.mxu0 0.0
        %6475 = vmatprep.subr.mxu0 0.0
        %6476 = vmatpush2.msra.mxu0 0.0
        %6477 = vmatprep.subr.mxu0 0.0
        %6478 = vmatpush2.msra.mxu0 0.0
        %6479 = vmatprep.subr.mxu0 0.0
        %6480 = vmatpush2.msra.mxu0 0.0
        %6481 = vmatprep.subr.mxu0 0.0
        %6482 = vmatpush2.msra.mxu0 0.0
        %6483 = vmatprep.mubr.f32.mxu0 0.0
        %6484 = vmatmul.mubr.f32.gmra.mxu0 %v6414
        %v6485 = vpop.f32.mrf.mxu0
        %v6486 = vadd.f32 0.0, %v6485
        %v6487 = vpop.f32.mrf.mxu0
        %6488 = vmatprep.mubr.f32.mxu0 0.0
        %6489 = vmatmul.mubr.f32.gmra.mxu0 %v6417
        %v6490 = vpop.f32.mrf.mxu0
        %v6491 = vadd.f32 0.0, %v6490
        %v6492 = vpop.f32.mrf.mxu0
        %6493 = vdwg.mxu0
        %v6494 = vadd.f32 %v6405, %v6486
        %v6495 = vadd.f32 %v6410, %v6491
        %6497 = vset.pattern.permute.xlu0 0
        %6498 = vperm.xlu0 %6497, %v4465
        %v6499 = vpop.permute.xlu0 %6498
        %6502 = vset.pattern.permute.xlu0 0
        %6503 = vperm.xlu0 %6502, %v4466
        %v6504 = vpop.permute.xlu0 %6503
        %v6506 = vadd.f32 %v6494, %v6499
        %v6507 = vadd.f32 %v6495, %v6504
        %v6508 = vld [vmem:[%s23] sm:$0x3]
        %v6509 = vld [vmem:[%s23 + $0x2] sm:$0x3]
        %v6510 = vld [vmem:[%s23 + $0x4] sm:$0x3]
        %v6511 = vld [vmem:[%s23 + $0x6] sm:$0x3]
        %v6512 = vld [vmem:[%s24] sm:$0x3]
        %v6514 = vsel %vm3375, %v6508, 0
        %6516 = vmatprep.subr.mxu0 0.0
        %6517 = vmatpush1.msra.mxu0 0.0
        %6518 = vmatprep.subr.mxu0 0.0
        %6519 = vmatpush1.msra.mxu0 0.0
        %6520 = vmatprep.subr.mxu0 0.0
        %6521 = vmatpush1.msra.mxu0 0.0
        %6522 = vmatprep.subr.mxu0 0.0
        %6523 = vmatpush1.msra.mxu0 0.0
        %6524 = vmatprep.subr.mxu0 0.0
        %6525 = vmatpush1.msra.mxu0 0.0
        %6526 = vmatprep.subr.mxu0 0.0
        %6527 = vmatpush1.msra.mxu0 0.0
        %6528 = vmatprep.subr.mxu0 0.0
        %6529 = vmatpush1.msra.mxu0 0.0
        %6530 = vmatprep.subr.mxu0 0.0
        %6531 = vmatpush1.msra.mxu0 0.0
        %6532 = vmatprep.subr.mxu0 0.0
        %6533 = vmatpush1.msra.mxu0 0.0
        %6534 = vmatprep.subr.mxu0 0.0
        %6535 = vmatpush1.msra.mxu0 0.0
        %6536 = vmatprep.subr.mxu0 0.0
        %6537 = vmatpush1.msra.mxu0 0.0
        %6538 = vmatprep.subr.mxu0 0.0
        %6539 = vmatpush1.msra.mxu0 0.0
        %6540 = vmatprep.subr.mxu0 0.0
        %6541 = vmatpush1.msra.mxu0 0.0
        %6542 = vmatprep.subr.mxu0 0.0
        %6543 = vmatpush1.msra.mxu0 0.0
        %6544 = vmatprep.subr.mxu0 0.0
        %6545 = vmatpush1.msra.mxu0 %v6507
        %6546 = vmatprep.subr.mxu0 0.0
        %6547 = vmatpush1.msra.mxu0 %v6506
        %6548 = vmatprep.subr.mxu0 0.0
        %6549 = vmatpush2.msra.mxu0 0.0
        %6550 = vmatprep.subr.mxu0 0.0
        %6551 = vmatpush2.msra.mxu0 0.0
        %6552 = vmatprep.subr.mxu0 0.0
        %6553 = vmatpush2.msra.mxu0 0.0
        %6554 = vmatprep.subr.mxu0 0.0
        %6555 = vmatpush2.msra.mxu0 0.0
        %6556 = vmatprep.subr.mxu0 0.0
        %6557 = vmatpush2.msra.mxu0 0.0
        %6558 = vmatprep.subr.mxu0 0.0
        %6559 = vmatpush2.msra.mxu0 0.0
        %6560 = vmatprep.subr.mxu0 0.0
        %6561 = vmatpush2.msra.mxu0 0.0
        %6562 = vmatprep.subr.mxu0 0.0
        %6563 = vmatpush2.msra.mxu0 0.0
        %6564 = vmatprep.subr.mxu0 0.0
        %6565 = vmatpush2.msra.mxu0 0.0
        %6566 = vmatprep.subr.mxu0 0.0
        %6567 = vmatpush2.msra.mxu0 0.0
        %6568 = vmatprep.subr.mxu0 0.0
        %6569 = vmatpush2.msra.mxu0 0.0
        %6570 = vmatprep.subr.mxu0 0.0
        %6571 = vmatpush2.msra.mxu0 0.0
        %6572 = vmatprep.subr.mxu0 0.0
        %6573 = vmatpush2.msra.mxu0 0.0
        %6574 = vmatprep.subr.mxu0 0.0
        %6575 = vmatpush2.msra.mxu0 0.0
        %6576 = vmatprep.subr.mxu0 0.0
        %6577 = vmatpush2.msra.mxu0 0.0
        %6578 = vmatprep.subr.mxu0 0.0
        %6579 = vmatpush2.msra.mxu0 0.0
        %6580 = vmatprep.mubr.f32.mxu0 0.0
        %6581 = vmatmul.mubr.f32.gmra.mxu0 %v6514
        %v6582 = vpop.f32.mrf.mxu0
        %v6583 = vadd.f32 0.0, %v6582
        %v6584 = vpop.f32.mrf.mxu0
        %6585 = vdwg.mxu0
        %v6587 = vsel %vm3375, %v6509, 0
        %6589 = vmatprep.subr.mxu0 0.0
        %6590 = vmatpush1.msra.mxu0 0.0
        %6591 = vmatprep.subr.mxu0 0.0
        %6592 = vmatpush1.msra.mxu0 0.0
        %6593 = vmatprep.subr.mxu0 0.0
        %6594 = vmatpush1.msra.mxu0 0.0
        %6595 = vmatprep.subr.mxu0 0.0
        %6596 = vmatpush1.msra.mxu0 0.0
        %6597 = vmatprep.subr.mxu0 0.0
        %6598 = vmatpush1.msra.mxu0 0.0
        %6599 = vmatprep.subr.mxu0 0.0
        %6600 = vmatpush1.msra.mxu0 0.0
        %6601 = vmatprep.subr.mxu0 0.0
        %6602 = vmatpush1.msra.mxu0 0.0
        %6603 = vmatprep.subr.mxu0 0.0
        %6604 = vmatpush1.msra.mxu0 0.0
        %6605 = vmatprep.subr.mxu0 0.0
        %6606 = vmatpush1.msra.mxu0 0.0
        %6607 = vmatprep.subr.mxu0 0.0
        %6608 = vmatpush1.msra.mxu0 0.0
        %6609 = vmatprep.subr.mxu0 0.0
        %6610 = vmatpush1.msra.mxu0 0.0
        %6611 = vmatprep.subr.mxu0 0.0
        %6612 = vmatpush1.msra.mxu0 0.0
        %6613 = vmatprep.subr.mxu0 0.0
        %6614 = vmatpush1.msra.mxu0 0.0
        %6615 = vmatprep.subr.mxu0 0.0
        %6616 = vmatpush1.msra.mxu0 0.0
        %6617 = vmatprep.subr.mxu0 0.0
        %6618 = vmatpush1.msra.mxu0 %v6507
        %6619 = vmatprep.subr.mxu0 0.0
        %6620 = vmatpush1.msra.mxu0 %v6506
        %6621 = vmatprep.subr.mxu0 0.0
        %6622 = vmatpush2.msra.mxu0 0.0
        %6623 = vmatprep.subr.mxu0 0.0
        %6624 = vmatpush2.msra.mxu0 0.0
        %6625 = vmatprep.subr.mxu0 0.0
        %6626 = vmatpush2.msra.mxu0 0.0
        %6627 = vmatprep.subr.mxu0 0.0
        %6628 = vmatpush2.msra.mxu0 0.0
        %6629 = vmatprep.subr.mxu0 0.0
        %6630 = vmatpush2.msra.mxu0 0.0
        %6631 = vmatprep.subr.mxu0 0.0
        %6632 = vmatpush2.msra.mxu0 0.0
        %6633 = vmatprep.subr.mxu0 0.0
        %6634 = vmatpush2.msra.mxu0 0.0
        %6635 = vmatprep.subr.mxu0 0.0
        %6636 = vmatpush2.msra.mxu0 0.0
        %6637 = vmatprep.subr.mxu0 0.0
        %6638 = vmatpush2.msra.mxu0 0.0
        %6639 = vmatprep.subr.mxu0 0.0
        %6640 = vmatpush2.msra.mxu0 0.0
        %6641 = vmatprep.subr.mxu0 0.0
        %6642 = vmatpush2.msra.mxu0 0.0
        %6643 = vmatprep.subr.mxu0 0.0
        %6644 = vmatpush2.msra.mxu0 0.0
        %6645 = vmatprep.subr.mxu0 0.0
        %6646 = vmatpush2.msra.mxu0 0.0
        %6647 = vmatprep.subr.mxu0 0.0
        %6648 = vmatpush2.msra.mxu0 0.0
        %6649 = vmatprep.subr.mxu0 0.0
        %6650 = vmatpush2.msra.mxu0 0.0
        %6651 = vmatprep.subr.mxu0 0.0
        %6652 = vmatpush2.msra.mxu0 0.0
        %6653 = vmatprep.mubr.f32.mxu0 0.0
        %6654 = vmatmul.mubr.f32.gmra.mxu0 %v6587
        %v6655 = vpop.f32.mrf.mxu0
        %v6656 = vadd.f32 0.0, %v6655
        %v6657 = vpop.f32.mrf.mxu0
        %6658 = vdwg.mxu0
        %v6660 = vsel %vm3375, %v6510, 0
        %6662 = vmatprep.subr.mxu0 0.0
        %6663 = vmatpush1.msra.mxu0 0.0
        %6664 = vmatprep.subr.mxu0 0.0
        %6665 = vmatpush1.msra.mxu0 0.0
        %6666 = vmatprep.subr.mxu0 0.0
        %6667 = vmatpush1.msra.mxu0 0.0
        %6668 = vmatprep.subr.mxu0 0.0
        %6669 = vmatpush1.msra.mxu0 0.0
        %6670 = vmatprep.subr.mxu0 0.0
        %6671 = vmatpush1.msra.mxu0 0.0
        %6672 = vmatprep.subr.mxu0 0.0
        %6673 = vmatpush1.msra.mxu0 0.0
        %6674 = vmatprep.subr.mxu0 0.0
        %6675 = vmatpush1.msra.mxu0 0.0
        %6676 = vmatprep.subr.mxu0 0.0
        %6677 = vmatpush1.msra.mxu0 0.0
        %6678 = vmatprep.subr.mxu0 0.0
        %6679 = vmatpush1.msra.mxu0 0.0
        %6680 = vmatprep.subr.mxu0 0.0
        %6681 = vmatpush1.msra.mxu0 0.0
        %6682 = vmatprep.subr.mxu0 0.0
        %6683 = vmatpush1.msra.mxu0 0.0
        %6684 = vmatprep.subr.mxu0 0.0
        %6685 = vmatpush1.msra.mxu0 0.0
        %6686 = vmatprep.subr.mxu0 0.0
        %6687 = vmatpush1.msra.mxu0 0.0
        %6688 = vmatprep.subr.mxu0 0.0
        %6689 = vmatpush1.msra.mxu0 0.0
        %6690 = vmatprep.subr.mxu0 0.0
        %6691 = vmatpush1.msra.mxu0 %v6507
        %6692 = vmatprep.subr.mxu0 0.0
        %6693 = vmatpush1.msra.mxu0 %v6506
        %6694 = vmatprep.subr.mxu0 0.0
        %6695 = vmatpush2.msra.mxu0 0.0
        %6696 = vmatprep.subr.mxu0 0.0
        %6697 = vmatpush2.msra.mxu0 0.0
        %6698 = vmatprep.subr.mxu0 0.0
        %6699 = vmatpush2.msra.mxu0 0.0
        %6700 = vmatprep.subr.mxu0 0.0
        %6701 = vmatpush2.msra.mxu0 0.0
        %6702 = vmatprep.subr.mxu0 0.0
        %6703 = vmatpush2.msra.mxu0 0.0
        %6704 = vmatprep.subr.mxu0 0.0
        %6705 = vmatpush2.msra.mxu0 0.0
        %6706 = vmatprep.subr.mxu0 0.0
        %6707 = vmatpush2.msra.mxu0 0.0
        %6708 = vmatprep.subr.mxu0 0.0
        %6709 = vmatpush2.msra.mxu0 0.0
        %6710 = vmatprep.subr.mxu0 0.0
        %6711 = vmatpush2.msra.mxu0 0.0
        %6712 = vmatprep.subr.mxu0 0.0
        %6713 = vmatpush2.msra.mxu0 0.0
        %6714 = vmatprep.subr.mxu0 0.0
        %6715 = vmatpush2.msra.mxu0 0.0
        %6716 = vmatprep.subr.mxu0 0.0
        %6717 = vmatpush2.msra.mxu0 0.0
        %6718 = vmatprep.subr.mxu0 0.0
        %6719 = vmatpush2.msra.mxu0 0.0
        %6720 = vmatprep.subr.mxu0 0.0
        %6721 = vmatpush2.msra.mxu0 0.0
        %6722 = vmatprep.subr.mxu0 0.0
        %6723 = vmatpush2.msra.mxu0 0.0
        %6724 = vmatprep.subr.mxu0 0.0
        %6725 = vmatpush2.msra.mxu0 0.0
        %6726 = vmatprep.mubr.f32.mxu0 0.0
        %6727 = vmatmul.mubr.f32.gmra.mxu0 %v6660
        %v6728 = vpop.f32.mrf.mxu0
        %v6729 = vadd.f32 0.0, %v6728
        %v6730 = vpop.f32.mrf.mxu0
        %6731 = vdwg.mxu0
        %v6733 = vsel %vm3375, %v6511, 0
        %6735 = vmatprep.subr.mxu0 0.0
        %6736 = vmatpush1.msra.mxu0 0.0
        %6737 = vmatprep.subr.mxu0 0.0
        %6738 = vmatpush1.msra.mxu0 0.0
        %6739 = vmatprep.subr.mxu0 0.0
        %6740 = vmatpush1.msra.mxu0 0.0
        %6741 = vmatprep.subr.mxu0 0.0
        %6742 = vmatpush1.msra.mxu0 0.0
        %6743 = vmatprep.subr.mxu0 0.0
        %6744 = vmatpush1.msra.mxu0 0.0
        %6745 = vmatprep.subr.mxu0 0.0
        %6746 = vmatpush1.msra.mxu0 0.0
        %6747 = vmatprep.subr.mxu0 0.0
        %6748 = vmatpush1.msra.mxu0 0.0
        %6749 = vmatprep.subr.mxu0 0.0
        %6750 = vmatpush1.msra.mxu0 0.0
        %6751 = vmatprep.subr.mxu0 0.0
        %6752 = vmatpush1.msra.mxu0 0.0
        %6753 = vmatprep.subr.mxu0 0.0
        %6754 = vmatpush1.msra.mxu0 0.0
        %6755 = vmatprep.subr.mxu0 0.0
        %6756 = vmatpush1.msra.mxu0 0.0
        %6757 = vmatprep.subr.mxu0 0.0
        %6758 = vmatpush1.msra.mxu0 0.0
        %6759 = vmatprep.subr.mxu0 0.0
        %6760 = vmatpush1.msra.mxu0 0.0
        %6761 = vmatprep.subr.mxu0 0.0
        %6762 = vmatpush1.msra.mxu0 0.0
        %6763 = vmatprep.subr.mxu0 0.0
        %6764 = vmatpush1.msra.mxu0 %v6507
        %6765 = vmatprep.subr.mxu0 0.0
        %6766 = vmatpush1.msra.mxu0 %v6506
        %6767 = vmatprep.subr.mxu0 0.0
        %6768 = vmatpush2.msra.mxu0 0.0
        %6769 = vmatprep.subr.mxu0 0.0
        %6770 = vmatpush2.msra.mxu0 0.0
        %6771 = vmatprep.subr.mxu0 0.0
        %6772 = vmatpush2.msra.mxu0 0.0
        %6773 = vmatprep.subr.mxu0 0.0
        %6774 = vmatpush2.msra.mxu0 0.0
        %6775 = vmatprep.subr.mxu0 0.0
        %6776 = vmatpush2.msra.mxu0 0.0
        %6777 = vmatprep.subr.mxu0 0.0
        %6778 = vmatpush2.msra.mxu0 0.0
        %6779 = vmatprep.subr.mxu0 0.0
        %6780 = vmatpush2.msra.mxu0 0.0
        %6781 = vmatprep.subr.mxu0 0.0
        %6782 = vmatpush2.msra.mxu0 0.0
        %6783 = vmatprep.subr.mxu0 0.0
        %6784 = vmatpush2.msra.mxu0 0.0
        %6785 = vmatprep.subr.mxu0 0.0
        %6786 = vmatpush2.msra.mxu0 0.0
        %6787 = vmatprep.subr.mxu0 0.0
        %6788 = vmatpush2.msra.mxu0 0.0
        %6789 = vmatprep.subr.mxu0 0.0
        %6790 = vmatpush2.msra.mxu0 0.0
        %6791 = vmatprep.subr.mxu0 0.0
        %6792 = vmatpush2.msra.mxu0 0.0
        %6793 = vmatprep.subr.mxu0 0.0
        %6794 = vmatpush2.msra.mxu0 0.0
        %6795 = vmatprep.subr.mxu0 0.0
        %6796 = vmatpush2.msra.mxu0 0.0
        %6797 = vmatprep.subr.mxu0 0.0
        %6798 = vmatpush2.msra.mxu0 0.0
        %6799 = vmatprep.mubr.f32.mxu0 0.0
        %6800 = vmatmul.mubr.f32.gmra.mxu0 %v6733
        %v6801 = vpop.f32.mrf.mxu0
        %v6802 = vadd.f32 0.0, %v6801
        %v6803 = vpop.f32.mrf.mxu0
        %6804 = vdwg.mxu0
        %v6805 = vlaneseq
        %v6806 = vshrl.u32 %v6805, 7
        %v6807 = vsub.s32 0, %v6806
        %v6808 = vrot.slane %v6583, %v6807
        %6810 = vbcast.lane.b32.xlu0 %v6808, 256
        %v6811 = vpop.permute.xlu0 %6810
        %s6813 = sor.u32 256, 8
        %6814 = vbcast.lane.b32.xlu0 %v6808, %s6813
        %v6815 = vpop.permute.xlu0 %6814
        %s6817 = sor.u32 256, 16
        %6818 = vbcast.lane.b32.xlu0 %v6808, %s6817
        %v6819 = vpop.permute.xlu0 %6818
        %s6821 = sor.u32 256, 24
        %6822 = vbcast.lane.b32.xlu0 %v6808, %s6821
        %v6823 = vpop.permute.xlu0 %6822
        %v6824 = vlaneseq
        %v6825 = vshrl.u32 %v6824, 7
        %v6826 = vsub.s32 1, %v6825
        %v6827 = vrot.slane %v6583, %v6826
        %6829 = vbcast.lane.b32.xlu0 %v6827, 256
        %v6830 = vpop.permute.xlu0 %6829
        %s6832 = sor.u32 256, 8
        %6833 = vbcast.lane.b32.xlu0 %v6827, %s6832
        %v6834 = vpop.permute.xlu0 %6833
        %s6836 = sor.u32 256, 16
        %6837 = vbcast.lane.b32.xlu0 %v6827, %s6836
        %v6838 = vpop.permute.xlu0 %6837
        %s6840 = sor.u32 256, 24
        %6841 = vbcast.lane.b32.xlu0 %v6827, %s6840
        %v6842 = vpop.permute.xlu0 %6841
        %v6843 = vlaneseq
        %v6844 = vshrl.u32 %v6843, 7
        %v6845 = vsub.s32 0, %v6844
        %v6846 = vrot.slane %v6656, %v6845
        %6848 = vbcast.lane.b32.xlu0 %v6846, 256
        %v6849 = vpop.permute.xlu0 %6848
        %s6851 = sor.u32 256, 8
        %6852 = vbcast.lane.b32.xlu0 %v6846, %s6851
        %v6853 = vpop.permute.xlu0 %6852
        %s6855 = sor.u32 256, 16
        %6856 = vbcast.lane.b32.xlu0 %v6846, %s6855
        %v6857 = vpop.permute.xlu0 %6856
        %s6859 = sor.u32 256, 24
        %6860 = vbcast.lane.b32.xlu0 %v6846, %s6859
        %v6861 = vpop.permute.xlu0 %6860
        %v6862 = vlaneseq
        %v6863 = vshrl.u32 %v6862, 7
        %v6864 = vsub.s32 1, %v6863
        %v6865 = vrot.slane %v6656, %v6864
        %6867 = vbcast.lane.b32.xlu0 %v6865, 256
        %v6868 = vpop.permute.xlu0 %6867
        %s6870 = sor.u32 256, 8
        %6871 = vbcast.lane.b32.xlu0 %v6865, %s6870
        %v6872 = vpop.permute.xlu0 %6871
        %s6874 = sor.u32 256, 16
        %6875 = vbcast.lane.b32.xlu0 %v6865, %s6874
        %v6876 = vpop.permute.xlu0 %6875
        %s6878 = sor.u32 256, 24
        %6879 = vbcast.lane.b32.xlu0 %v6865, %s6878
        %v6880 = vpop.permute.xlu0 %6879
        %v6881 = vlaneseq
        %v6882 = vshrl.u32 %v6881, 7
        %v6883 = vsub.s32 0, %v6882
        %v6884 = vrot.slane %v6729, %v6883
        %6886 = vbcast.lane.b32.xlu0 %v6884, 256
        %v6887 = vpop.permute.xlu0 %6886
        %s6889 = sor.u32 256, 8
        %6890 = vbcast.lane.b32.xlu0 %v6884, %s6889
        %v6891 = vpop.permute.xlu0 %6890
        %s6893 = sor.u32 256, 16
        %6894 = vbcast.lane.b32.xlu0 %v6884, %s6893
        %v6895 = vpop.permute.xlu0 %6894
        %s6897 = sor.u32 256, 24
        %6898 = vbcast.lane.b32.xlu0 %v6884, %s6897
        %v6899 = vpop.permute.xlu0 %6898
        %v6900 = vlaneseq
        %v6901 = vshrl.u32 %v6900, 7
        %v6902 = vsub.s32 1, %v6901
        %v6903 = vrot.slane %v6729, %v6902
        %6905 = vbcast.lane.b32.xlu0 %v6903, 256
        %v6906 = vpop.permute.xlu0 %6905
        %s6908 = sor.u32 256, 8
        %6909 = vbcast.lane.b32.xlu0 %v6903, %s6908
        %v6910 = vpop.permute.xlu0 %6909
        %s6912 = sor.u32 256, 16
        %6913 = vbcast.lane.b32.xlu0 %v6903, %s6912
        %v6914 = vpop.permute.xlu0 %6913
        %s6916 = sor.u32 256, 24
        %6917 = vbcast.lane.b32.xlu0 %v6903, %s6916
        %v6918 = vpop.permute.xlu0 %6917
        %v6919 = vlaneseq
        %v6920 = vshrl.u32 %v6919, 7
        %v6921 = vsub.s32 0, %v6920
        %v6922 = vrot.slane %v6802, %v6921
        %6924 = vbcast.lane.b32.xlu0 %v6922, 256
        %v6925 = vpop.permute.xlu0 %6924
        %s6927 = sor.u32 256, 8
        %6928 = vbcast.lane.b32.xlu0 %v6922, %s6927
        %v6929 = vpop.permute.xlu0 %6928
        %s6931 = sor.u32 256, 16
        %6932 = vbcast.lane.b32.xlu0 %v6922, %s6931
        %v6933 = vpop.permute.xlu0 %6932
        %s6935 = sor.u32 256, 24
        %6936 = vbcast.lane.b32.xlu0 %v6922, %s6935
        %v6937 = vpop.permute.xlu0 %6936
        %v6938 = vlaneseq
        %v6939 = vshrl.u32 %v6938, 7
        %v6940 = vsub.s32 1, %v6939
        %v6941 = vrot.slane %v6802, %v6940
        %6943 = vbcast.lane.b32.xlu0 %v6941, 256
        %v6944 = vpop.permute.xlu0 %6943
        %s6946 = sor.u32 256, 8
        %6947 = vbcast.lane.b32.xlu0 %v6941, %s6946
        %v6948 = vpop.permute.xlu0 %6947
        %s6950 = sor.u32 256, 16
        %6951 = vbcast.lane.b32.xlu0 %v6941, %s6950
        %v6952 = vpop.permute.xlu0 %6951
        %s6954 = sor.u32 256, 24
        %6955 = vbcast.lane.b32.xlu0 %v6941, %s6954
        %v6956 = vpop.permute.xlu0 %6955
        %v6957 = vsel %vm1156, %v6811, %v6849
        %v6958 = vsel %vm1156, %v6815, %v6853
        %v6959 = vsel %vm1156, %v6819, %v6857
        %v6960 = vsel %vm1156, %v6823, %v6861
        %v6961 = vsel %vm1156, %v6830, %v6868
        %v6962 = vsel %vm1156, %v6834, %v6872
        %v6963 = vsel %vm1156, %v6838, %v6876
        %v6964 = vsel %vm1156, %v6842, %v6880
        %v6965 = vsel %vm2937, %v6957, %v6887
        %v6966 = vsel %vm2937, %v6958, %v6891
        %v6967 = vsel %vm2937, %v6959, %v6895
        %v6968 = vsel %vm2937, %v6960, %v6899
        %v6969 = vsel %vm2937, %v6961, %v6906
        %v6970 = vsel %vm2937, %v6962, %v6910
        %v6971 = vsel %vm2937, %v6963, %v6914
        %v6972 = vsel %vm2937, %v6964, %v6918
        %vm6973 = vcmask 23552
        %v6974 = vsel %vm6973, %v6965, %v6925
        %v6975 = vsel %vm6973, %v6966, %v6929
        %v6976 = vsel %vm6973, %v6967, %v6933
        %v6977 = vsel %vm6973, %v6968, %v6937
        %v6978 = vsel %vm6973, %v6969, %v6944
        %v6979 = vsel %vm6973, %v6970, %v6948
        %v6980 = vsel %vm6973, %v6971, %v6952
        %v6981 = vsel %vm6973, %v6972, %v6956
        %v6982 = vcombine.high %v6974, 0.0
        %v6984 = vunpack.c.l.s4 1983009808
        %v6985 = vunpack.c.0.s8 %v6984
        %v6986 = vlaneseq
        %v6987 = vshrl.u32 %v6986, 7
        %v6988 = vsub.s32 %v6985, %v6987
        %v6989 = vrot.slane %v6974, %v6988
        %v6991 = vunpack.c.l.s4 1983009808
        %v6992 = vunpack.c.0.s8 %v6991
        %v6993 = vlaneseq
        %v6994 = vshrl.u32 %v6993, 7
        %v6995 = vsub.s32 %v6992, %v6994
        %v6996 = vrot.slane %v6982, %v6995
        %v6997 = vcombine.high %v6978, 0.0
        %v6999 = vunpack.c.l.s4 1983009808
        %v7000 = vunpack.c.0.s8 %v6999
        %v7001 = vlaneseq
        %v7002 = vshrl.u32 %v7001, 7
        %v7003 = vsub.s32 %v7000, %v7002
        %v7004 = vrot.slane %v6978, %v7003
        %v7006 = vunpack.c.l.s4 1983009808
        %v7007 = vunpack.c.0.s8 %v7006
        %v7008 = vlaneseq
        %v7009 = vshrl.u32 %v7008, 7
        %v7010 = vsub.s32 %v7007, %v7009
        %v7011 = vrot.slane %v6997, %v7010
        %v7012 = vcombine.low %v6989, %v7004
        %v7013 = vcombine.high %v6989, %v7004
        %v7015 = vunpack.c.l.s4 1934713408
        %v7016 = vunpack.c.0.s8 %v7015
        %v7017 = vlaneseq
        %v7018 = vshrl.u32 %v7017, 7
        %v7019 = vsub.s32 %v7016, %v7018
        %v7020 = vrot.slane %v7012, %v7019
        %v7022 = vunpack.c.l.s4 1934713408
        %v7023 = vunpack.c.0.s8 %v7022
        %v7024 = vlaneseq
        %v7025 = vshrl.u32 %v7024, 7
        %v7026 = vsub.s32 %v7023, %v7025
        %v7027 = vrot.slane %v7013, %v7026
        %v7028 = vcombine.low %v6996, %v7011
        %v7029 = vcombine.high %v6996, %v7011
        %v7031 = vunpack.c.l.s4 1934713408
        %v7032 = vunpack.c.0.s8 %v7031
        %v7033 = vlaneseq
        %v7034 = vshrl.u32 %v7033, 7
        %v7035 = vsub.s32 %v7032, %v7034
        %v7036 = vrot.slane %v7028, %v7035
        %v7038 = vunpack.c.l.s4 1934713408
        %v7039 = vunpack.c.0.s8 %v7038
        %v7040 = vlaneseq
        %v7041 = vshrl.u32 %v7040, 7
        %v7042 = vsub.s32 %v7039, %v7041
        %v7043 = vrot.slane %v7029, %v7042
        %v7044 = vcombine.high %v7020, 0.0
        %v7045 = vcombine.high %v7027, 0.0
        %v7046 = vcombine.high %v7036, 0.0
        %v7047 = vcombine.high %v7043, 0.0
        %v7048 = vcombine.high %v6975, 0.0
        %v7050 = vunpack.c.l.s4 1983009808
        %v7051 = vunpack.c.0.s8 %v7050
        %v7052 = vlaneseq
        %v7053 = vshrl.u32 %v7052, 7
        %v7054 = vsub.s32 %v7051, %v7053
        %v7055 = vrot.slane %v6975, %v7054
        %v7057 = vunpack.c.l.s4 1983009808
        %v7058 = vunpack.c.0.s8 %v7057
        %v7059 = vlaneseq
        %v7060 = vshrl.u32 %v7059, 7
        %v7061 = vsub.s32 %v7058, %v7060
        %v7062 = vrot.slane %v7048, %v7061
        %v7063 = vcombine.high %v6979, 0.0
        %v7065 = vunpack.c.l.s4 1983009808
        %v7066 = vunpack.c.0.s8 %v7065
        %v7067 = vlaneseq
        %v7068 = vshrl.u32 %v7067, 7
        %v7069 = vsub.s32 %v7066, %v7068
        %v7070 = vrot.slane %v6979, %v7069
        %v7072 = vunpack.c.l.s4 1983009808
        %v7073 = vunpack.c.0.s8 %v7072
        %v7074 = vlaneseq
        %v7075 = vshrl.u32 %v7074, 7
        %v7076 = vsub.s32 %v7073, %v7075
        %v7077 = vrot.slane %v7063, %v7076
        %v7078 = vcombine.low %v7055, %v7070
        %v7079 = vcombine.high %v7055, %v7070
        %v7081 = vunpack.c.l.s4 1934713408
        %v7082 = vunpack.c.0.s8 %v7081
        %v7083 = vlaneseq
        %v7084 = vshrl.u32 %v7083, 7
        %v7085 = vsub.s32 %v7082, %v7084
        %v7086 = vrot.slane %v7078, %v7085
        %v7088 = vunpack.c.l.s4 1934713408
        %v7089 = vunpack.c.0.s8 %v7088
        %v7090 = vlaneseq
        %v7091 = vshrl.u32 %v7090, 7
        %v7092 = vsub.s32 %v7089, %v7091
        %v7093 = vrot.slane %v7079, %v7092
        %v7094 = vcombine.low %v7062, %v7077
        %v7095 = vcombine.high %v7062, %v7077
        %v7097 = vunpack.c.l.s4 1934713408
        %v7098 = vunpack.c.0.s8 %v7097
        %v7099 = vlaneseq
        %v7100 = vshrl.u32 %v7099, 7
        %v7101 = vsub.s32 %v7098, %v7100
        %v7102 = vrot.slane %v7094, %v7101
        %v7104 = vunpack.c.l.s4 1934713408
        %v7105 = vunpack.c.0.s8 %v7104
        %v7106 = vlaneseq
        %v7107 = vshrl.u32 %v7106, 7
        %v7108 = vsub.s32 %v7105, %v7107
        %v7109 = vrot.slane %v7095, %v7108
        %v7110 = vcombine.high %v7086, 0.0
        %v7111 = vcombine.high %v7093, 0.0
        %v7112 = vcombine.high %v7102, 0.0
        %v7113 = vcombine.high %v7109, 0.0
        %v7114 = vcombine.high %v6976, 0.0
        %v7116 = vunpack.c.l.s4 1983009808
        %v7117 = vunpack.c.0.s8 %v7116
        %v7118 = vlaneseq
        %v7119 = vshrl.u32 %v7118, 7
        %v7120 = vsub.s32 %v7117, %v7119
        %v7121 = vrot.slane %v6976, %v7120
        %v7123 = vunpack.c.l.s4 1983009808
        %v7124 = vunpack.c.0.s8 %v7123
        %v7125 = vlaneseq
        %v7126 = vshrl.u32 %v7125, 7
        %v7127 = vsub.s32 %v7124, %v7126
        %v7128 = vrot.slane %v7114, %v7127
        %v7129 = vcombine.high %v6980, 0.0
        %v7131 = vunpack.c.l.s4 1983009808
        %v7132 = vunpack.c.0.s8 %v7131
        %v7133 = vlaneseq
        %v7134 = vshrl.u32 %v7133, 7
        %v7135 = vsub.s32 %v7132, %v7134
        %v7136 = vrot.slane %v6980, %v7135
        %v7138 = vunpack.c.l.s4 1983009808
        %v7139 = vunpack.c.0.s8 %v7138
        %v7140 = vlaneseq
        %v7141 = vshrl.u32 %v7140, 7
        %v7142 = vsub.s32 %v7139, %v7141
        %v7143 = vrot.slane %v7129, %v7142
        %v7144 = vcombine.low %v7121, %v7136
        %v7145 = vcombine.high %v7121, %v7136
        %v7147 = vunpack.c.l.s4 1934713408
        %v7148 = vunpack.c.0.s8 %v7147
        %v7149 = vlaneseq
        %v7150 = vshrl.u32 %v7149, 7
        %v7151 = vsub.s32 %v7148, %v7150
        %v7152 = vrot.slane %v7144, %v7151
        %v7154 = vunpack.c.l.s4 1934713408
        %v7155 = vunpack.c.0.s8 %v7154
        %v7156 = vlaneseq
        %v7157 = vshrl.u32 %v7156, 7
        %v7158 = vsub.s32 %v7155, %v7157
        %v7159 = vrot.slane %v7145, %v7158
        %v7160 = vcombine.low %v7128, %v7143
        %v7161 = vcombine.high %v7128, %v7143
        %v7163 = vunpack.c.l.s4 1934713408
        %v7164 = vunpack.c.0.s8 %v7163
        %v7165 = vlaneseq
        %v7166 = vshrl.u32 %v7165, 7
        %v7167 = vsub.s32 %v7164, %v7166
        %v7168 = vrot.slane %v7160, %v7167
        %v7170 = vunpack.c.l.s4 1934713408
        %v7171 = vunpack.c.0.s8 %v7170
        %v7172 = vlaneseq
        %v7173 = vshrl.u32 %v7172, 7
        %v7174 = vsub.s32 %v7171, %v7173
        %v7175 = vrot.slane %v7161, %v7174
        %v7176 = vcombine.high %v7152, 0.0
        %v7177 = vcombine.high %v7159, 0.0
        %v7178 = vcombine.high %v7168, 0.0
        %v7179 = vcombine.high %v7175, 0.0
        %v7180 = vcombine.high %v6977, 0.0
        %v7182 = vunpack.c.l.s4 1983009808
        %v7183 = vunpack.c.0.s8 %v7182
        %v7184 = vlaneseq
        %v7185 = vshrl.u32 %v7184, 7
        %v7186 = vsub.s32 %v7183, %v7185
        %v7187 = vrot.slane %v6977, %v7186
        %v7189 = vunpack.c.l.s4 1983009808
        %v7190 = vunpack.c.0.s8 %v7189
        %v7191 = vlaneseq
        %v7192 = vshrl.u32 %v7191, 7
        %v7193 = vsub.s32 %v7190, %v7192
        %v7194 = vrot.slane %v7180, %v7193
        %v7195 = vcombine.high %v6981, 0.0
        %v7197 = vunpack.c.l.s4 1983009808
        %v7198 = vunpack.c.0.s8 %v7197
        %v7199 = vlaneseq
        %v7200 = vshrl.u32 %v7199, 7
        %v7201 = vsub.s32 %v7198, %v7200
        %v7202 = vrot.slane %v6981, %v7201
        %v7204 = vunpack.c.l.s4 1983009808
        %v7205 = vunpack.c.0.s8 %v7204
        %v7206 = vlaneseq
        %v7207 = vshrl.u32 %v7206, 7
        %v7208 = vsub.s32 %v7205, %v7207
        %v7209 = vrot.slane %v7195, %v7208
        %v7210 = vcombine.low %v7187, %v7202
        %v7211 = vcombine.high %v7187, %v7202
        %v7213 = vunpack.c.l.s4 1934713408
        %v7214 = vunpack.c.0.s8 %v7213
        %v7215 = vlaneseq
        %v7216 = vshrl.u32 %v7215, 7
        %v7217 = vsub.s32 %v7214, %v7216
        %v7218 = vrot.slane %v7210, %v7217
        %v7220 = vunpack.c.l.s4 1934713408
        %v7221 = vunpack.c.0.s8 %v7220
        %v7222 = vlaneseq
        %v7223 = vshrl.u32 %v7222, 7
        %v7224 = vsub.s32 %v7221, %v7223
        %v7225 = vrot.slane %v7211, %v7224
        %v7226 = vcombine.low %v7194, %v7209
        %v7227 = vcombine.high %v7194, %v7209
        %v7229 = vunpack.c.l.s4 1934713408
        %v7230 = vunpack.c.0.s8 %v7229
        %v7231 = vlaneseq
        %v7232 = vshrl.u32 %v7231, 7
        %v7233 = vsub.s32 %v7230, %v7232
        %v7234 = vrot.slane %v7226, %v7233
        %v7236 = vunpack.c.l.s4 1934713408
        %v7237 = vunpack.c.0.s8 %v7236
        %v7238 = vlaneseq
        %v7239 = vshrl.u32 %v7238, 7
        %v7240 = vsub.s32 %v7237, %v7239
        %v7241 = vrot.slane %v7227, %v7240
        %v7242 = vcombine.high %v7218, 0.0
        %v7243 = vcombine.high %v7225, 0.0
        %v7244 = vcombine.high %v7234, 0.0
        %v7245 = vcombine.high %v7241, 0.0
        %7247 = vrot.lane.b32.xlu0 %v7044, 4
        %v7248 = vpop.permute.xlu0 %7247
        %7251 = vrot.lane.b32.xlu0 %v7027, 8
        %v7252 = vpop.permute.xlu0 %7251
        %7255 = vrot.lane.b32.xlu0 %v7045, 12
        %v7256 = vpop.permute.xlu0 %7255
        %7259 = vrot.lane.b32.xlu0 %v7036, 16
        %v7260 = vpop.permute.xlu0 %7259
        %7263 = vrot.lane.b32.xlu0 %v7046, 20
        %v7264 = vpop.permute.xlu0 %7263
        %7267 = vrot.lane.b32.xlu0 %v7043, 24
        %v7268 = vpop.permute.xlu0 %7267
        %7271 = vrot.lane.b32.xlu0 %v7047, 28
        %v7272 = vpop.permute.xlu0 %7271
        %7275 = vrot.lane.b32.xlu0 %v7086, 32
        %v7276 = vpop.permute.xlu0 %7275
        %7279 = vrot.lane.b32.xlu0 %v7110, 36
        %v7280 = vpop.permute.xlu0 %7279
        %7283 = vrot.lane.b32.xlu0 %v7093, 40
        %v7284 = vpop.permute.xlu0 %7283
        %7287 = vrot.lane.b32.xlu0 %v7111, 44
        %v7288 = vpop.permute.xlu0 %7287
        %7291 = vrot.lane.b32.xlu0 %v7102, 48
        %v7292 = vpop.permute.xlu0 %7291
        %7295 = vrot.lane.b32.xlu0 %v7112, 52
        %v7296 = vpop.permute.xlu0 %7295
        %7299 = vrot.lane.b32.xlu0 %v7109, 56
        %v7300 = vpop.permute.xlu0 %7299
        %7303 = vrot.lane.b32.xlu0 %v7113, 60
        %v7304 = vpop.permute.xlu0 %7303
        %7307 = vrot.lane.b32.xlu0 %v7152, 64
        %v7308 = vpop.permute.xlu0 %7307
        %7311 = vrot.lane.b32.xlu0 %v7176, 68
        %v7312 = vpop.permute.xlu0 %7311
        %7315 = vrot.lane.b32.xlu0 %v7159, 72
        %v7316 = vpop.permute.xlu0 %7315
        %7319 = vrot.lane.b32.xlu0 %v7177, 76
        %v7320 = vpop.permute.xlu0 %7319
        %7323 = vrot.lane.b32.xlu0 %v7168, 80
        %v7324 = vpop.permute.xlu0 %7323
        %7327 = vrot.lane.b32.xlu0 %v7178, 84
        %v7328 = vpop.permute.xlu0 %7327
        %7331 = vrot.lane.b32.xlu0 %v7175, 88
        %v7332 = vpop.permute.xlu0 %7331
        %7335 = vrot.lane.b32.xlu0 %v7179, 92
        %v7336 = vpop.permute.xlu0 %7335
        %7339 = vrot.lane.b32.xlu0 %v7218, 96
        %v7340 = vpop.permute.xlu0 %7339
        %7343 = vrot.lane.b32.xlu0 %v7242, 100
        %v7344 = vpop.permute.xlu0 %7343
        %7347 = vrot.lane.b32.xlu0 %v7225, 104
        %v7348 = vpop.permute.xlu0 %7347
        %7351 = vrot.lane.b32.xlu0 %v7243, 108
        %v7352 = vpop.permute.xlu0 %7351
        %7355 = vrot.lane.b32.xlu0 %v7234, 112
        %v7356 = vpop.permute.xlu0 %7355
        %7359 = vrot.lane.b32.xlu0 %v7244, 116
        %v7360 = vpop.permute.xlu0 %7359
        %7363 = vrot.lane.b32.xlu0 %v7241, 120
        %v7364 = vpop.permute.xlu0 %7363
        %7367 = vrot.lane.b32.xlu0 %v7245, 124
        %v7368 = vpop.permute.xlu0 %7367
        %v7370 = vsel %vm2942, %v7020, %v7248
        %v7371 = vsel %vm809, %v7370, %v7252
        %v7372 = vsel %vm2961, %v7371, %v7256
        %v7373 = vsel %vm3375, %v7372, %v7260
        %v7374 = vsel %vm6184, %v7373, %v7264
        %v7375 = vsel %vm6194, %v7374, %v7268
        %v7376 = vsel %vm6204, %v7375, %v7272
        %v7377 = vsel %vm1178, %v7376, %v7276
        %vm7378 = vcmask 293888
        %v7379 = vsel %vm7378, %v7377, %v7280
        %vm7380 = vcmask 326656
        %v7381 = vsel %vm7380, %v7379, %v7284
        %vm7382 = vcmask 359424
        %v7383 = vsel %vm7382, %v7381, %v7288
        %vm7384 = vcmask 392192
        %v7385 = vsel %vm7384, %v7383, %v7292
        %vm7386 = vcmask 424960
        %v7387 = vsel %vm7386, %v7385, %v7296
        %vm7388 = vcmask 457728
        %v7389 = vsel %vm7388, %v7387, %v7300
        %vm7390 = vcmask 490496
        %v7391 = vsel %vm7390, %v7389, %v7304
        %vm7392 = vcmask 523264
        %v7393 = vsel %vm7392, %v7391, %v7308
        %vm7394 = vcmask 556032
        %v7395 = vsel %vm7394, %v7393, %v7312
        %vm7396 = vcmask 588800
        %v7397 = vsel %vm7396, %v7395, %v7316
        %vm7398 = vcmask 621568
        %v7399 = vsel %vm7398, %v7397, %v7320
        %vm7400 = vcmask 654336
        %v7401 = vsel %vm7400, %v7399, %v7324
        %vm7402 = vcmask 687104
        %v7403 = vsel %vm7402, %v7401, %v7328
        %vm7404 = vcmask 719872
        %v7405 = vsel %vm7404, %v7403, %v7332
        %vm7406 = vcmask 752640
        %v7407 = vsel %vm7406, %v7405, %v7336
        %vm7408 = vcmask 785408
        %v7409 = vsel %vm7408, %v7407, %v7340
        %vm7410 = vcmask 818176
        %v7411 = vsel %vm7410, %v7409, %v7344
        %vm7412 = vcmask 850944
        %v7413 = vsel %vm7412, %v7411, %v7348
        %vm7414 = vcmask 883712
        %v7415 = vsel %vm7414, %v7413, %v7352
        %vm7416 = vcmask 916480
        %v7417 = vsel %vm7416, %v7415, %v7356
        %vm7418 = vcmask 949248
        %v7419 = vsel %vm7418, %v7417, %v7360
        %vm7420 = vcmask 982016
        %v7421 = vsel %vm7420, %v7419, %v7364
        %vm7422 = vcmask 1014784
        %v7423 = vsel %vm7422, %v7421, %v7368
        %7425 = vset.pattern.permute.xlu0 0
        %7426 = vperm.xlu0 %7425, %v6512
        %v7427 = vpop.permute.xlu0 %7426
        %v7429 = vadd.f32 %v7423, %v7427
        %7430 = vst [vmem:[%s779] sm:$0x3] %v7429
        %s7431 = sand.u32 %s580, 1
        %s7432 = scalar_lea.sflag [#allocation4], %s7431
        %s7433 = sand.u32 %s580, 1
        %s7434 = smul.addr %s7433, 2
        %s7435 = scalar_lea.vmem [#allocation5], %s7434
        // Predicated region
        $region125: #{tpu_custom_call.1} parent=119 // pred_check
          %p7436 = pneg %p590
        $region126: #{tpu_custom_call.1} parent=119 // pred_check_branch
          %7438 = sbr.rel (%p7436) target = $region128
        $region127: #{tpu_custom_call.1} parent=119 // pred_region
          %s7440 = ssub.s32 32, 32
          %7441 = vsyncadd %s7432, %s7440
          %s7442 = smul.addr %s42, 32
          %s7443 = scalar_lea.hbm %s25, %s7442
          %s7445 = sshll.u32 %s7435, 4
          %s7446 = int_to_ptr.vmem [resolvable:$true] %s7445
          %7448 = dma.vmem_to_hbm [thread:$0]  %s7446, 32, %s7443, %s7432
        $region128: #{tpu_custom_call.1} parent=119 // pred_fallthru
          _
      $region120: #{tpu_custom_call.1} parent=5 // pred_fallthru
        _
      %p7449 = scmp.le.s32.totalorder 2, %s37
      // Predicated region
      $region129: #{tpu_custom_call.1} parent=5 // pred_check
        %p7450 = pneg %p7449
      $region130: #{tpu_custom_call.1} parent=5 // pred_check_branch
        %7452 = sbr.rel (%p7450) target = $region132
      $region131: #{tpu_custom_call.1} parent=5 // pred_region
        %s7453 = ssub.s32 %s37, 2
        // Predicated region
        $region133: #{tpu_custom_call.1} parent=131 // pred_check
          %p7454 = pneg %p596
        $region134: #{tpu_custom_call.1} parent=131 // pred_check_branch
          %7456 = sbr.rel (%p7454) target = $region136
        $region135: #{tpu_custom_call.1} parent=131 // pred_region
          %s7457 = sand.u32 %s581, 1
          %s7458 = scalar_lea.sflag [#allocation4], %s7457
          %s7459 = sand.u32 %s581, 1
          %s7460 = smul.addr %s7459, 2
          %s7461 = scalar_lea.vmem [#allocation5], %s7460
          %7462 = dma.done %s7458, 32
        $region136: #{tpu_custom_call.1} parent=131 // pred_fallthru
          _
      $region132: #{tpu_custom_call.1} parent=5 // pred_fallthru
        _
    $region6: #{tpu_custom_call.1} parent=1 // loop_footer
      %s41 = sadd.s32 1, %s37
    $region7: #{tpu_custom_call.1} parent=1 // loop_footer_branch
      %36 = sbr.rel target = $region3
    $region8: #{tpu_custom_call.1} parent=1 // loop_exit
      _
    %7463 = vsyncpa [#allocation3], 1
    %s7464 = scalar_lea.sflag [#allocation3], 1
    %7465 = vsyncpa %s7464, 1
    %7466 = vsyncpa [#allocation4], 1
    %s7467 = scalar_lea.sflag [#allocation4], 1
    %7468 = vsyncpa %s7467, 1

</llo_original>
